<compile_context>
chip_gen: v7x
topology: tpu7x:2x2x1
jax: 0.10.0
libtpu: 0.0.40
codegen_flags: <defaults>
</compile_context>

<pallas_src>
import functools

import numpy as np
import jax
import jax.numpy as jnp
from jax import lax
from jax.experimental import pallas as pl
from jax.experimental.pallas import tpu as pltpu

# ---- static shape bookkeeping (mirrors the PyTorch module arithmetic) -------
L_IN = 178                          # input length implied by the 32*46 flatten
K = 8                               # conv kernel size
C_IN, C1, C2 = 1, 16, 32
L_C1 = L_IN + 2 * 4 - K + 1         # 179  (conv1, padding=4)
L_P1 = (L_C1 + 2 * 1 - 2) // 2 + 1  # 90   (maxpool k=2,s=2,p=1)
L_P1P = L_P1 + 2 * 4                # 98   (pool1 output incl. conv2's zero padding)
L_C2 = L_P1 + 2 * 4 - K + 1         # 91   (conv2, padding=4)
L_P2 = (L_C2 + 2 * 1 - 2) // 2 + 1  # 46   (maxpool k=2,s=2,p=1)
FEAT = C2 * L_P2                    # 1472
HALF = 128                          # lane-aligned selector half width
TB_MAX = 32                         # per-step batch cap (keeps perm matrix <= 2 MB bf16)


# ---- host-side constant matrices --------------------------------------------
def _pool_selector(l_in, l_out, out_pad):
    """MaxPool1d(k=2,s=2,p=1) as ONE matmul + a max of two 128-lane-aligned halves.

    Valid because the pool input is post-ReLU (>= 0), so all-zero columns stand in for
    the pool's -inf padding.  For v >= 0 of length l_in:
        r = v @ S                                  # (..., 256)
        pooled_and_padded = max(r[..., :128], r[..., 128:])[:, :l_out + 2*out_pad]
    Column k (< 128) of either half is output position (k - out_pad); the first half
    picks input index 2*(k-out_pad)-1, the second 2*(k-out_pad).  `out_pad` extra zero
    columns per side provide the *next* conv's zero padding for free.  Both halves are
    padded to 128 lanes so the split lands on a vreg boundary (no cross-lane copies).
    """
    w = l_out + 2 * out_pad
    assert w <= HALF
    sel = np.zeros((l_in, 2 * HALF), np.float32)
    for kcol in range(w):
        t = kcol - out_pad
        if 0 <= t < l_out:
            if 2 * t - 1 >= 0:
                sel[2 * t - 1, kcol] = 1.0
            sel[2 * t, HALF + kcol] = 1.0
    return sel


_S1 = _pool_selector(L_C1, L_P1, 4)      # (179, 256)
_S2 = _pool_selector(L_C2, L_P2, 0)      # (91, 256)


@functools.lru_cache(maxsize=None)
def _perm_matrix(tb):
    """Exact (b,c)-major -> (c,b)-major row permutation for the tb*C2 pooled rows."""
    p = np.zeros((tb * C2, tb * C2), np.float32)
    for b in range(tb):
        for c in range(C2):
            p[c * tb + b, b * C2 + c] = 1.0
    return p


def _pick_tb(batch):
    """Per-grid-step batch tile: multiple of 8, <= TB_MAX, >= 2 steps when batch >= 16."""
    b8 = -(-batch // 8) * 8
    tb = min(TB_MAX, b8)
    if b8 >= 16 and b8 <= tb:              # would otherwise be a single grid step
        tb = -(-(b8 // 2) // 8) * 8        # split across >= 2 steps (v7x: 2 TensorCores)
    return tb


# ------------------------------ fused kernel ---------------------------------
def _make_kernel(tb, hid):
    f32 = jnp.float32
    bf16 = jnp.bfloat16

    def kernel(x_ref, w1_ref, w2f_ref, s1_ref, s2_ref, perm_ref,
               fc1w_ref, fc1b_ref, fc2w_ref, fc2b_ref, out_ref):
        # ---- conv1 (1->16, k=8, pad=4, no bias) + ReLU : f32 VPU madds ------
        x = x_ref[...]                                            # (tb, 178)
        z4 = jnp.zeros((tb, 4), f32)
        xp = jnp.concatenate([z4, x, z4], axis=1)[:, None, :]     # (tb, 1, 186)
        w1 = w1_ref[...]                                          # (16, 8)
        h1 = jnp.zeros((tb, C1, L_C1), f32)
        for j in range(K):                                        # static unroll
            h1 = h1 + w1[None, :, j:j + 1] * xp[:, :, j:j + L_C1]
        h1 = jnp.maximum(h1, 0.0)                                 # (tb, 16, 179)

        # ---- maxpool1 (+ conv2's zero padding): one bf16 selector matmul,
        #      halves split on the 128-lane boundary, max on the VPU.
        h1b = h1.reshape(tb * C1, L_C1).astype(bf16)
        t1 = jnp.dot(h1b, s1_ref[...], preferred_element_type=f32)   # (tb*16, 256)
        p1p = jnp.maximum(t1[:, :HALF], t1[:, HALF:])                # (tb*16, 128)
        p1p = p1p.reshape(tb, C1, HALF).astype(bf16)                 # cols >=98 are 0

        # ---- conv2 (16->32, k=8, pad=4, no bias) + ReLU:
        #      im2col (8 lane-shifted copies on sublanes) -> batched bf16 einsum.
        # TODO(synk): a single (32,128)x(128,tb*91) matmul would avoid the tb weight
        # copies but needs a lane-merging reshape Mosaic may not lower; keep batched.
        i2c = jnp.concatenate([p1p[:, :, j:j + L_C2] for j in range(K)],
                              axis=1)                                # (tb, 128, 91)
        w2b = jnp.broadcast_to(w2f_ref[...][None], (tb, C2, K * C1))
        h2 = jnp.einsum('bok,bkt->bot', w2b, i2c,
                        preferred_element_type=f32)                  # (tb, 32, 91)
        h2 = jnp.maximum(h2, 0.0)

        # ---- maxpool2: one bf16 selector matmul, lane-aligned halves --------
        h2b = h2.reshape(tb * C2, L_C2).astype(bf16)
        t2 = jnp.dot(h2b, s2_ref[...], preferred_element_type=f32)   # (tb*32, 256)
        p2 = jnp.maximum(t2[:, :L_P2], t2[:, HALF:HALF + L_P2])      # (tb*32, 46) (b,c)

        # ---- (b,c)->(c,b) row reorder as an exact 0/1 bf16 matmul (avoids any
        #      sublane relayout of the (32,46) tiles).
        p2_cb = jnp.dot(perm_ref[...], p2.astype(bf16),
                        preferred_element_type=f32)                  # (tb*32, 46) (c,b)
        p2_cb = p2_cb.reshape(C2, tb, L_P2).astype(bf16)              # (32, tb, 46)

        # ---- FC1 with the PyTorch flatten folded in: 32 channel matmuls
        #      accumulated straight into one (tb, hid) f32 accumulator.
        acc = jnp.zeros((tb, hid), f32)
        for c in range(C2):                                          # static unroll
            acc = acc + jnp.dot(p2_cb[c], fc1w_ref[c],
                                preferred_element_type=f32)
        h = acc + fc1b_ref[...]                                      # (tb, hid)

        # ---- FC2 (no activation in between, as in the PyTorch module) -------
        out_ref[...] = (jnp.dot(h.astype(bf16), fc2w_ref[...],
                                preferred_element_type=f32) + fc2b_ref[...])

    return kernel


# ------------------------------ full forward ---------------------------------
@jax.jit
def epilepsy_cnn_target_forward(x, params):
    """x: (B, 1, 178) float32; params as in the PyTorch module."""
    w1, w2, fc1_w, fc1_b, fc2_w, fc2_b = params
    B = x.shape[0]
    hid = fc1_w.shape[0]
    dim = fc2_w.shape[0]
    # TODO(synk): only input_channel=1 (the module default) is supported here.
    assert x.shape[1] == C_IN and x.shape[2] == L_IN
    assert fc1_w.shape[1] == FEAT

    tb = _pick_tb(B)
    b_pad = -(-B // tb) * tb

    # ---- parameter / input plumbing (pure glue, traced once under jit) ------
    xf = x.reshape(B, L_IN).astype(jnp.float32)
    if b_pad != B:
        # Padded rows produce bias-only garbage that the final out[:B] slice discards.
        xf = jnp.concatenate(
            [xf, jnp.zeros((b_pad - B, L_IN), jnp.float32)], axis=0)
    w1m = w1[:, 0, :].astype(jnp.float32)                               # (16, 8) f32
    w2f = jnp.transpose(w2, (0, 2, 1)).reshape(C2, K * C1)              # [o, j*16+c]
    w2f = w2f.astype(jnp.bfloat16)
    s1 = jnp.asarray(_S1, dtype=jnp.bfloat16)                           # exact 0/1
    s2 = jnp.asarray(_S2, dtype=jnp.bfloat16)
    perm = jnp.asarray(_perm_matrix(tb), dtype=jnp.bfloat16)            # exact 0/1
    fc1w = fc1_w.T.reshape(C2, L_P2, hid).astype(jnp.bfloat16)          # [c, t, h]
    fc1b = fc1_b[None, :].astype(jnp.float32)
    fc2w = fc2_w.T.astype(jnp.bfloat16)                                 # (hid, dim)
    fc2b = fc2_b[None, :].astype(jnp.float32)

    out = pl.pallas_call(
        _make_kernel(tb, hid),
        out_shape=jax.ShapeDtypeStruct((b_pad, dim), jnp.float32),
        grid_spec=pltpu.PrefetchScalarGridSpec(
            num_scalar_prefetch=0,
            grid=(b_pad // tb,),
            in_specs=[
                pl.BlockSpec((tb, L_IN), lambda b: (b, 0)),
                pl.BlockSpec((C1, K), lambda b: (0, 0)),
                pl.BlockSpec((C2, K * C1), lambda b: (0, 0)),
                pl.BlockSpec(_S1.shape, lambda b: (0, 0)),
                pl.BlockSpec(_S2.shape, lambda b: (0, 0)),
                pl.BlockSpec((tb * C2, tb * C2), lambda b: (0, 0)),
                pl.BlockSpec((C2, L_P2, hid), lambda b: (0, 0, 0)),
                pl.BlockSpec((1, hid), lambda b: (0, 0)),
                pl.BlockSpec((hid, dim), lambda b: (0, 0)),
                pl.BlockSpec((1, dim), lambda b: (0, 0)),
            ],
            out_specs=pl.BlockSpec((tb, dim), lambda b: (b, 0)),
        ),
        compiler_params=pltpu.CompilerParams(
            dimension_semantics=("parallel",),
            vmem_limit_bytes=32 * 1024 * 1024),
    )(xf, w1m, w2f, s1, s2, perm, fc1w, fc1b, fc2w, fc2b)
    return out[:B]


# --------------------------- pure-JAX reference ------------------------------
def reference_forward(x, params):
    w1, w2, fc1_w, fc1_b, fc2_w, fc2_b = params
    dn = ("NCH", "OIH", "NCH")
    h = lax.conv_general_dilated(x, w1, (1,), [(4, 4)], dimension_numbers=dn)
    h = jnp.maximum(h, 0.0)
    h = lax.reduce_window(h, -jnp.inf, lax.max, (1, 1, 2), (1, 1, 2),
                          [(0, 0), (0, 0), (1, 1)])
    h = lax.conv_general_dilated(h, w2, (1,), [(4, 4)], dimension_numbers=dn)
    h = jnp.maximum(h, 0.0)
    h = lax.reduce_window(h, -jnp.inf, lax.max, (1, 1, 2), (1, 1, 2),
                          [(0, 0), (0, 0), (1, 1)])
    f = h.reshape(x.shape[0], -1)
    f = f @ fc1_w.T + fc1_b
    return f @ fc2_w.T + fc2_b


# ------------------------------------ main -----------------------------------
if __name__ == "__main__":
    B = 2
    DIM = 512
    HID = 256
    key = jax.random.PRNGKey(0)
    ks = jax.random.split(key, 7)
    x = jax.random.normal(ks[0], (B, C_IN, L_IN), jnp.float32)
    w1 = jax.random.normal(ks[1], (C1, C_IN, K), jnp.float32) * 0.10
    w2 = jax.random.normal(ks[2], (C2, C1, K), jnp.float32) * 0.05
    fc1_w = jax.random.normal(ks[3], (HID, FEAT), jnp.float32) * 0.02
    fc1_b = jax.random.normal(ks[4], (HID,), jnp.float32) * 0.02
    fc2_w = jax.random.normal(ks[5], (DIM, HID), jnp.float32) * 0.02
    fc2_b = jax.random.normal(ks[6], (DIM,), jnp.float32) * 0.02
    params = (w1, w2, fc1_w, fc1_b, fc2_w, fc2_b)

    out = epilepsy_cnn_target_forward(x, params)
    out = jax.block_until_ready(out)
    assert out.shape == (B, DIM), out.shape

    ref = reference_forward(x, params)
    # bf16 MXU operands (f32 accumulation) throughout the conv stack and MLP.
    np.testing.assert_allclose(np.asarray(out), np.asarray(ref),
                               rtol=1e-2, atol=1e-2)
    print("KERNEL_OK")
</pallas_src>

<mosaic_0001>
module attributes {stable_mosaic.version = 11 : i64} {
  func.func @kernel(%arg0: i32, %arg1: memref<8x178xf32, #tpu.memory_space<vmem>>, %arg2: memref<16x8xf32, #tpu.memory_space<vmem>>, %arg3: memref<32x128xbf16, #tpu.memory_space<vmem>>, %arg4: memref<179x256xbf16, #tpu.memory_space<vmem>>, %arg5: memref<91x256xbf16, #tpu.memory_space<vmem>>, %arg6: memref<256x256xbf16, #tpu.memory_space<vmem>>, %arg7: memref<32x46x256xbf16, #tpu.memory_space<vmem>>, %arg8: memref<1x256xf32, #tpu.memory_space<vmem>>, %arg9: memref<256x512xbf16, #tpu.memory_space<vmem>>, %arg10: memref<1x512xf32, #tpu.memory_space<vmem>>, %arg11: memref<8x512xf32, #tpu.memory_space<vmem>>) attributes {dimension_semantics = [#tpu.dimension_semantics<parallel>], iteration_bounds = array<i64: 1>, scalar_prefetch = 0 : i64, scratch_operands = 0 : i64, tpu.core_type = #tpu.core_type<tc>, window_params = [{transform_indices = @transform_0, window_bounds = array<i64: 8, 178>}, {pipeline_mode = #tpu.pipeline_mode<synchronous>, transform_indices = @transform_1, window_bounds = array<i64: 16, 8>}, {pipeline_mode = #tpu.pipeline_mode<synchronous>, transform_indices = @transform_2, window_bounds = array<i64: 32, 128>}, {pipeline_mode = #tpu.pipeline_mode<synchronous>, transform_indices = @transform_3, window_bounds = array<i64: 179, 256>}, {pipeline_mode = #tpu.pipeline_mode<synchronous>, transform_indices = @transform_4, window_bounds = array<i64: 91, 256>}, {pipeline_mode = #tpu.pipeline_mode<synchronous>, transform_indices = @transform_5, window_bounds = array<i64: 256, 256>}, {pipeline_mode = #tpu.pipeline_mode<synchronous>, transform_indices = @transform_6, window_bounds = array<i64: 32, 46, 256>}, {pipeline_mode = #tpu.pipeline_mode<synchronous>, transform_indices = @transform_7, window_bounds = array<i64: 1, 256>}, {pipeline_mode = #tpu.pipeline_mode<synchronous>, transform_indices = @transform_8, window_bounds = array<i64: 256, 512>}, {pipeline_mode = #tpu.pipeline_mode<synchronous>, transform_indices = @transform_9, window_bounds = array<i64: 1, 512>}, {transform_indices = @transform_10, window_bounds = array<i64: 8, 512>}]} {
    %c0 = arith.constant 0 : index
    %c0_0 = arith.constant 0 : index
    %0 = vector.load %arg1[%c0, %c0_0] : memref<8x178xf32, #tpu.memory_space<vmem>>, vector<8x178xf32>
    %cst = arith.constant 0.000000e+00 : f32
    %1 = vector.broadcast %cst : f32 to vector<8x4xf32>
    %2 = tpu.concatenate %1, %0, %1 in 1 : vector<8x4xf32>, vector<8x178xf32>, vector<8x4xf32> -> vector<8x186xf32>
    %3 = vector.shape_cast %2 : vector<8x186xf32> to vector<8x1x186xf32>
    %c0_1 = arith.constant 0 : index
    %c0_2 = arith.constant 0 : index
    %4 = vector.load %arg2[%c0_1, %c0_2] : memref<16x8xf32, #tpu.memory_space<vmem>>, vector<16x8xf32>
    %cst_3 = arith.constant 0.000000e+00 : f32
    %5 = vector.broadcast %cst_3 : f32 to vector<8x16x179xf32>
    %6 = vector.extract_strided_slice %4 {offsets = [0, 0], sizes = [16, 1], strides = [1, 1]} : vector<16x8xf32> to vector<16x1xf32>
    %7 = vector.shape_cast %6 : vector<16x1xf32> to vector<1x16x1xf32>
    %8 = vector.extract_strided_slice %3 {offsets = [0, 0, 0], sizes = [8, 1, 179], strides = [1, 1, 1]} : vector<8x1x186xf32> to vector<8x1x179xf32>
    %9 = vector.broadcast %7 : vector<1x16x1xf32> to vector<8x16x179xf32>
    %10 = vector.broadcast %8 : vector<8x1x179xf32> to vector<8x16x179xf32>
    %11 = arith.mulf %9, %10 : vector<8x16x179xf32>
    %12 = arith.addf %5, %11 : vector<8x16x179xf32>
    %13 = vector.extract_strided_slice %4 {offsets = [0, 1], sizes = [16, 1], strides = [1, 1]} : vector<16x8xf32> to vector<16x1xf32>
    %14 = vector.shape_cast %13 : vector<16x1xf32> to vector<1x16x1xf32>
    %15 = vector.extract_strided_slice %3 {offsets = [0, 0, 1], sizes = [8, 1, 179], strides = [1, 1, 1]} : vector<8x1x186xf32> to vector<8x1x179xf32>
    %16 = vector.broadcast %14 : vector<1x16x1xf32> to vector<8x16x179xf32>
    %17 = vector.broadcast %15 : vector<8x1x179xf32> to vector<8x16x179xf32>
    %18 = arith.mulf %16, %17 : vector<8x16x179xf32>
    %19 = arith.addf %12, %18 : vector<8x16x179xf32>
    %20 = vector.extract_strided_slice %4 {offsets = [0, 2], sizes = [16, 1], strides = [1, 1]} : vector<16x8xf32> to vector<16x1xf32>
    %21 = vector.shape_cast %20 : vector<16x1xf32> to vector<1x16x1xf32>
    %22 = vector.extract_strided_slice %3 {offsets = [0, 0, 2], sizes = [8, 1, 179], strides = [1, 1, 1]} : vector<8x1x186xf32> to vector<8x1x179xf32>
    %23 = vector.broadcast %21 : vector<1x16x1xf32> to vector<8x16x179xf32>
    %24 = vector.broadcast %22 : vector<8x1x179xf32> to vector<8x16x179xf32>
    %25 = arith.mulf %23, %24 : vector<8x16x179xf32>
    %26 = arith.addf %19, %25 : vector<8x16x179xf32>
    %27 = vector.extract_strided_slice %4 {offsets = [0, 3], sizes = [16, 1], strides = [1, 1]} : vector<16x8xf32> to vector<16x1xf32>
    %28 = vector.shape_cast %27 : vector<16x1xf32> to vector<1x16x1xf32>
    %29 = vector.extract_strided_slice %3 {offsets = [0, 0, 3], sizes = [8, 1, 179], strides = [1, 1, 1]} : vector<8x1x186xf32> to vector<8x1x179xf32>
    %30 = vector.broadcast %28 : vector<1x16x1xf32> to vector<8x16x179xf32>
    %31 = vector.broadcast %29 : vector<8x1x179xf32> to vector<8x16x179xf32>
    %32 = arith.mulf %30, %31 : vector<8x16x179xf32>
    %33 = arith.addf %26, %32 : vector<8x16x179xf32>
    %34 = vector.extract_strided_slice %4 {offsets = [0, 4], sizes = [16, 1], strides = [1, 1]} : vector<16x8xf32> to vector<16x1xf32>
    %35 = vector.shape_cast %34 : vector<16x1xf32> to vector<1x16x1xf32>
    %36 = vector.extract_strided_slice %3 {offsets = [0, 0, 4], sizes = [8, 1, 179], strides = [1, 1, 1]} : vector<8x1x186xf32> to vector<8x1x179xf32>
    %37 = vector.broadcast %35 : vector<1x16x1xf32> to vector<8x16x179xf32>
    %38 = vector.broadcast %36 : vector<8x1x179xf32> to vector<8x16x179xf32>
    %39 = arith.mulf %37, %38 : vector<8x16x179xf32>
    %40 = arith.addf %33, %39 : vector<8x16x179xf32>
    %41 = vector.extract_strided_slice %4 {offsets = [0, 5], sizes = [16, 1], strides = [1, 1]} : vector<16x8xf32> to vector<16x1xf32>
    %42 = vector.shape_cast %41 : vector<16x1xf32> to vector<1x16x1xf32>
    %43 = vector.extract_strided_slice %3 {offsets = [0, 0, 5], sizes = [8, 1, 179], strides = [1, 1, 1]} : vector<8x1x186xf32> to vector<8x1x179xf32>
    %44 = vector.broadcast %42 : vector<1x16x1xf32> to vector<8x16x179xf32>
    %45 = vector.broadcast %43 : vector<8x1x179xf32> to vector<8x16x179xf32>
    %46 = arith.mulf %44, %45 : vector<8x16x179xf32>
    %47 = arith.addf %40, %46 : vector<8x16x179xf32>
    %48 = vector.extract_strided_slice %4 {offsets = [0, 6], sizes = [16, 1], strides = [1, 1]} : vector<16x8xf32> to vector<16x1xf32>
    %49 = vector.shape_cast %48 : vector<16x1xf32> to vector<1x16x1xf32>
    %50 = vector.extract_strided_slice %3 {offsets = [0, 0, 6], sizes = [8, 1, 179], strides = [1, 1, 1]} : vector<8x1x186xf32> to vector<8x1x179xf32>
    %51 = vector.broadcast %49 : vector<1x16x1xf32> to vector<8x16x179xf32>
    %52 = vector.broadcast %50 : vector<8x1x179xf32> to vector<8x16x179xf32>
    %53 = arith.mulf %51, %52 : vector<8x16x179xf32>
    %54 = arith.addf %47, %53 : vector<8x16x179xf32>
    %55 = vector.extract_strided_slice %4 {offsets = [0, 7], sizes = [16, 1], strides = [1, 1]} : vector<16x8xf32> to vector<16x1xf32>
    %56 = vector.shape_cast %55 : vector<16x1xf32> to vector<1x16x1xf32>
    %57 = vector.extract_strided_slice %3 {offsets = [0, 0, 7], sizes = [8, 1, 179], strides = [1, 1, 1]} : vector<8x1x186xf32> to vector<8x1x179xf32>
    %58 = vector.broadcast %56 : vector<1x16x1xf32> to vector<8x16x179xf32>
    %59 = vector.broadcast %57 : vector<8x1x179xf32> to vector<8x16x179xf32>
    %60 = arith.mulf %58, %59 : vector<8x16x179xf32>
    %61 = arith.addf %54, %60 : vector<8x16x179xf32>
    %cst_4 = arith.constant 0.000000e+00 : f32
    %62 = vector.broadcast %cst_4 : f32 to vector<8x16x179xf32>
    %63 = arith.maximumf %61, %62 : vector<8x16x179xf32>
    %64 = vector.shape_cast %63 : vector<8x16x179xf32> to vector<128x179xf32>
    %65 = arith.truncf %64 : vector<128x179xf32> to vector<128x179xbf16>
    %c0_5 = arith.constant 0 : index
    %c0_6 = arith.constant 0 : index
    %66 = vector.load %arg4[%c0_5, %c0_6] : memref<179x256xbf16, #tpu.memory_space<vmem>>, vector<179x256xbf16>
    %cst_7 = arith.constant dense<0.000000e+00> : vector<128x256xf32>
    %67 = tpu.matmul %65, %66, %cst_7 {dimension_numbers = #tpu.dot_dimension_numbers<[1], [0], [0], [1], [0, 0, 1, 1], [], []>} : vector<128x179xbf16>, vector<179x256xbf16>, vector<128x256xf32> -> vector<128x256xf32>
    %68 = vector.extract_strided_slice %67 {offsets = [0, 0], sizes = [128, 128], strides = [1, 1]} : vector<128x256xf32> to vector<128x128xf32>
    %69 = vector.extract_strided_slice %67 {offsets = [0, 128], sizes = [128, 128], strides = [1, 1]} : vector<128x256xf32> to vector<128x128xf32>
    %70 = arith.maximumf %68, %69 : vector<128x128xf32>
    %71 = vector.shape_cast %70 : vector<128x128xf32> to vector<8x16x128xf32>
    %72 = arith.truncf %71 : vector<8x16x128xf32> to vector<8x16x128xbf16>
    %73 = vector.extract_strided_slice %72 {offsets = [0, 0, 0], sizes = [8, 16, 91], strides = [1, 1, 1]} : vector<8x16x128xbf16> to vector<8x16x91xbf16>
    %74 = vector.extract_strided_slice %72 {offsets = [0, 0, 1], sizes = [8, 16, 91], strides = [1, 1, 1]} : vector<8x16x128xbf16> to vector<8x16x91xbf16>
    %75 = vector.extract_strided_slice %72 {offsets = [0, 0, 2], sizes = [8, 16, 91], strides = [1, 1, 1]} : vector<8x16x128xbf16> to vector<8x16x91xbf16>
    %76 = vector.extract_strided_slice %72 {offsets = [0, 0, 3], sizes = [8, 16, 91], strides = [1, 1, 1]} : vector<8x16x128xbf16> to vector<8x16x91xbf16>
    %77 = vector.extract_strided_slice %72 {offsets = [0, 0, 4], sizes = [8, 16, 91], strides = [1, 1, 1]} : vector<8x16x128xbf16> to vector<8x16x91xbf16>
    %78 = vector.extract_strided_slice %72 {offsets = [0, 0, 5], sizes = [8, 16, 91], strides = [1, 1, 1]} : vector<8x16x128xbf16> to vector<8x16x91xbf16>
    %79 = vector.extract_strided_slice %72 {offsets = [0, 0, 6], sizes = [8, 16, 91], strides = [1, 1, 1]} : vector<8x16x128xbf16> to vector<8x16x91xbf16>
    %80 = vector.extract_strided_slice %72 {offsets = [0, 0, 7], sizes = [8, 16, 91], strides = [1, 1, 1]} : vector<8x16x128xbf16> to vector<8x16x91xbf16>
    %81 = tpu.concatenate %73, %74, %75, %76, %77, %78, %79, %80 in 1 : vector<8x16x91xbf16>, vector<8x16x91xbf16>, vector<8x16x91xbf16>, vector<8x16x91xbf16>, vector<8x16x91xbf16>, vector<8x16x91xbf16>, vector<8x16x91xbf16>, vector<8x16x91xbf16> -> vector<8x128x91xbf16>
    %c0_8 = arith.constant 0 : index
    %c0_9 = arith.constant 0 : index
    %82 = vector.load %arg3[%c0_8, %c0_9] : memref<32x128xbf16, #tpu.memory_space<vmem>>, vector<32x128xbf16>
    %83 = vector.shape_cast %82 : vector<32x128xbf16> to vector<1x32x128xbf16>
    %84 = vector.shape_cast %83 : vector<1x32x128xbf16> to vector<1x32x128xbf16>
    %85 = vector.broadcast %84 : vector<1x32x128xbf16> to vector<8x32x128xbf16>
    "tpu.trace_start"() <{level = 10 : i32, message = "bok,bkt->bot"}> : () -> ()
    %cst_10 = arith.constant dense<0.000000e+00> : vector<8x32x91xf32>
    %86 = tpu.matmul %85, %81, %cst_10 {dimension_numbers = #tpu.dot_dimension_numbers<[2], [1], [1], [2], [0, 0, 0, 1, 1, 2], [0], [0]>} : vector<8x32x128xbf16>, vector<8x128x91xbf16>, vector<8x32x91xf32> -> vector<8x32x91xf32>
    "tpu.trace_stop"() : () -> ()
    %cst_11 = arith.constant 0.000000e+00 : f32
    %87 = vector.broadcast %cst_11 : f32 to vector<8x32x91xf32>
    %88 = arith.maximumf %86, %87 : vector<8x32x91xf32>
    %89 = vector.shape_cast %88 : vector<8x32x91xf32> to vector<256x91xf32>
    %90 = arith.truncf %89 : vector<256x91xf32> to vector<256x91xbf16>
    %c0_12 = arith.constant 0 : index
    %c0_13 = arith.constant 0 : index
    %91 = vector.load %arg5[%c0_12, %c0_13] : memref<91x256xbf16, #tpu.memory_space<vmem>>, vector<91x256xbf16>
    %cst_14 = arith.constant dense<0.000000e+00> : vector<256x256xf32>
    %92 = tpu.matmul %90, %91, %cst_14 {dimension_numbers = #tpu.dot_dimension_numbers<[1], [0], [0], [1], [0, 0, 1, 1], [], []>} : vector<256x91xbf16>, vector<91x256xbf16>, vector<256x256xf32> -> vector<256x256xf32>
    %93 = vector.extract_strided_slice %92 {offsets = [0, 0], sizes = [256, 46], strides = [1, 1]} : vector<256x256xf32> to vector<256x46xf32>
    %94 = vector.extract_strided_slice %92 {offsets = [0, 128], sizes = [256, 46], strides = [1, 1]} : vector<256x256xf32> to vector<256x46xf32>
    %95 = arith.maximumf %93, %94 : vector<256x46xf32>
    %c0_15 = arith.constant 0 : index
    %c0_16 = arith.constant 0 : index
    %96 = vector.load %arg6[%c0_15, %c0_16] : memref<256x256xbf16, #tpu.memory_space<vmem>>, vector<256x256xbf16>
    %97 = arith.truncf %95 : vector<256x46xf32> to vector<256x46xbf16>
    %cst_17 = arith.constant dense<0.000000e+00> : vector<256x46xf32>
    %98 = tpu.matmul %96, %97, %cst_17 {dimension_numbers = #tpu.dot_dimension_numbers<[1], [0], [0], [1], [0, 0, 1, 1], [], []>} : vector<256x256xbf16>, vector<256x46xbf16>, vector<256x46xf32> -> vector<256x46xf32>
    %99 = vector.shape_cast %98 : vector<256x46xf32> to vector<32x8x46xf32>
    %100 = arith.truncf %99 : vector<32x8x46xf32> to vector<32x8x46xbf16>
    %cst_18 = arith.constant 0.000000e+00 : f32
    %101 = vector.broadcast %cst_18 : f32 to vector<8x256xf32>
    %102 = vector.extract_strided_slice %100 {offsets = [0, 0, 0], sizes = [1, 8, 46], strides = [1, 1, 1]} : vector<32x8x46xbf16> to vector<1x8x46xbf16>
    %103 = vector.shape_cast %102 : vector<1x8x46xbf16> to vector<8x46xbf16>
    %c0_19 = arith.constant 0 : index
    %c0_20 = arith.constant 0 : index
    %c0_21 = arith.constant 0 : index
    %104 = vector.load %arg7[%c0_19, %c0_20, %c0_21] : memref<32x46x256xbf16, #tpu.memory_space<vmem>>, vector<1x46x256xbf16>
    %105 = vector.shape_cast %104 : vector<1x46x256xbf16> to vector<46x256xbf16>
    %cst_22 = arith.constant dense<0.000000e+00> : vector<8x256xf32>
    %106 = tpu.matmul %103, %105, %cst_22 {dimension_numbers = #tpu.dot_dimension_numbers<[1], [0], [0], [1], [0, 0, 1, 1], [], []>} : vector<8x46xbf16>, vector<46x256xbf16>, vector<8x256xf32> -> vector<8x256xf32>
    %107 = arith.addf %101, %106 : vector<8x256xf32>
    %108 = vector.extract_strided_slice %100 {offsets = [1, 0, 0], sizes = [1, 8, 46], strides = [1, 1, 1]} : vector<32x8x46xbf16> to vector<1x8x46xbf16>
    %109 = vector.shape_cast %108 : vector<1x8x46xbf16> to vector<8x46xbf16>
    %c1 = arith.constant 1 : index
    %c0_23 = arith.constant 0 : index
    %c0_24 = arith.constant 0 : index
    %110 = vector.load %arg7[%c1, %c0_23, %c0_24] : memref<32x46x256xbf16, #tpu.memory_space<vmem>>, vector<1x46x256xbf16>
    %111 = vector.shape_cast %110 : vector<1x46x256xbf16> to vector<46x256xbf16>
    %cst_25 = arith.constant dense<0.000000e+00> : vector<8x256xf32>
    %112 = tpu.matmul %109, %111, %cst_25 {dimension_numbers = #tpu.dot_dimension_numbers<[1], [0], [0], [1], [0, 0, 1, 1], [], []>} : vector<8x46xbf16>, vector<46x256xbf16>, vector<8x256xf32> -> vector<8x256xf32>
    %113 = arith.addf %107, %112 : vector<8x256xf32>
    %114 = vector.extract_strided_slice %100 {offsets = [2, 0, 0], sizes = [1, 8, 46], strides = [1, 1, 1]} : vector<32x8x46xbf16> to vector<1x8x46xbf16>
    %115 = vector.shape_cast %114 : vector<1x8x46xbf16> to vector<8x46xbf16>
    %c2 = arith.constant 2 : index
    %c0_26 = arith.constant 0 : index
    %c0_27 = arith.constant 0 : index
    %116 = vector.load %arg7[%c2, %c0_26, %c0_27] : memref<32x46x256xbf16, #tpu.memory_space<vmem>>, vector<1x46x256xbf16>
    %117 = vector.shape_cast %116 : vector<1x46x256xbf16> to vector<46x256xbf16>
    %cst_28 = arith.constant dense<0.000000e+00> : vector<8x256xf32>
    %118 = tpu.matmul %115, %117, %cst_28 {dimension_numbers = #tpu.dot_dimension_numbers<[1], [0], [0], [1], [0, 0, 1, 1], [], []>} : vector<8x46xbf16>, vector<46x256xbf16>, vector<8x256xf32> -> vector<8x256xf32>
    %119 = arith.addf %113, %118 : vector<8x256xf32>
    %120 = vector.extract_strided_slice %100 {offsets = [3, 0, 0], sizes = [1, 8, 46], strides = [1, 1, 1]} : vector<32x8x46xbf16> to vector<1x8x46xbf16>
    %121 = vector.shape_cast %120 : vector<1x8x46xbf16> to vector<8x46xbf16>
    %c3 = arith.constant 3 : index
    %c0_29 = arith.constant 0 : index
    %c0_30 = arith.constant 0 : index
    %122 = vector.load %arg7[%c3, %c0_29, %c0_30] : memref<32x46x256xbf16, #tpu.memory_space<vmem>>, vector<1x46x256xbf16>
    %123 = vector.shape_cast %122 : vector<1x46x256xbf16> to vector<46x256xbf16>
    %cst_31 = arith.constant dense<0.000000e+00> : vector<8x256xf32>
    %124 = tpu.matmul %121, %123, %cst_31 {dimension_numbers = #tpu.dot_dimension_numbers<[1], [0], [0], [1], [0, 0, 1, 1], [], []>} : vector<8x46xbf16>, vector<46x256xbf16>, vector<8x256xf32> -> vector<8x256xf32>
    %125 = arith.addf %119, %124 : vector<8x256xf32>
    %126 = vector.extract_strided_slice %100 {offsets = [4, 0, 0], sizes = [1, 8, 46], strides = [1, 1, 1]} : vector<32x8x46xbf16> to vector<1x8x46xbf16>
    %127 = vector.shape_cast %126 : vector<1x8x46xbf16> to vector<8x46xbf16>
    %c4 = arith.constant 4 : index
    %c0_32 = arith.constant 0 : index
    %c0_33 = arith.constant 0 : index
    %128 = vector.load %arg7[%c4, %c0_32, %c0_33] : memref<32x46x256xbf16, #tpu.memory_space<vmem>>, vector<1x46x256xbf16>
    %129 = vector.shape_cast %128 : vector<1x46x256xbf16> to vector<46x256xbf16>
    %cst_34 = arith.constant dense<0.000000e+00> : vector<8x256xf32>
    %130 = tpu.matmul %127, %129, %cst_34 {dimension_numbers = #tpu.dot_dimension_numbers<[1], [0], [0], [1], [0, 0, 1, 1], [], []>} : vector<8x46xbf16>, vector<46x256xbf16>, vector<8x256xf32> -> vector<8x256xf32>
    %131 = arith.addf %125, %130 : vector<8x256xf32>
    %132 = vector.extract_strided_slice %100 {offsets = [5, 0, 0], sizes = [1, 8, 46], strides = [1, 1, 1]} : vector<32x8x46xbf16> to vector<1x8x46xbf16>
    %133 = vector.shape_cast %132 : vector<1x8x46xbf16> to vector<8x46xbf16>
    %c5 = arith.constant 5 : index
    %c0_35 = arith.constant 0 : index
    %c0_36 = arith.constant 0 : index
    %134 = vector.load %arg7[%c5, %c0_35, %c0_36] : memref<32x46x256xbf16, #tpu.memory_space<vmem>>, vector<1x46x256xbf16>
    %135 = vector.shape_cast %134 : vector<1x46x256xbf16> to vector<46x256xbf16>
    %cst_37 = arith.constant dense<0.000000e+00> : vector<8x256xf32>
    %136 = tpu.matmul %133, %135, %cst_37 {dimension_numbers = #tpu.dot_dimension_numbers<[1], [0], [0], [1], [0, 0, 1, 1], [], []>} : vector<8x46xbf16>, vector<46x256xbf16>, vector<8x256xf32> -> vector<8x256xf32>
    %137 = arith.addf %131, %136 : vector<8x256xf32>
    %138 = vector.extract_strided_slice %100 {offsets = [6, 0, 0], sizes = [1, 8, 46], strides = [1, 1, 1]} : vector<32x8x46xbf16> to vector<1x8x46xbf16>
    %139 = vector.shape_cast %138 : vector<1x8x46xbf16> to vector<8x46xbf16>
    %c6 = arith.constant 6 : index
    %c0_38 = arith.constant 0 : index
    %c0_39 = arith.constant 0 : index
    %140 = vector.load %arg7[%c6, %c0_38, %c0_39] : memref<32x46x256xbf16, #tpu.memory_space<vmem>>, vector<1x46x256xbf16>
    %141 = vector.shape_cast %140 : vector<1x46x256xbf16> to vector<46x256xbf16>
    %cst_40 = arith.constant dense<0.000000e+00> : vector<8x256xf32>
    %142 = tpu.matmul %139, %141, %cst_40 {dimension_numbers = #tpu.dot_dimension_numbers<[1], [0], [0], [1], [0, 0, 1, 1], [], []>} : vector<8x46xbf16>, vector<46x256xbf16>, vector<8x256xf32> -> vector<8x256xf32>
    %143 = arith.addf %137, %142 : vector<8x256xf32>
    %144 = vector.extract_strided_slice %100 {offsets = [7, 0, 0], sizes = [1, 8, 46], strides = [1, 1, 1]} : vector<32x8x46xbf16> to vector<1x8x46xbf16>
    %145 = vector.shape_cast %144 : vector<1x8x46xbf16> to vector<8x46xbf16>
    %c7 = arith.constant 7 : index
    %c0_41 = arith.constant 0 : index
    %c0_42 = arith.constant 0 : index
    %146 = vector.load %arg7[%c7, %c0_41, %c0_42] : memref<32x46x256xbf16, #tpu.memory_space<vmem>>, vector<1x46x256xbf16>
    %147 = vector.shape_cast %146 : vector<1x46x256xbf16> to vector<46x256xbf16>
    %cst_43 = arith.constant dense<0.000000e+00> : vector<8x256xf32>
    %148 = tpu.matmul %145, %147, %cst_43 {dimension_numbers = #tpu.dot_dimension_numbers<[1], [0], [0], [1], [0, 0, 1, 1], [], []>} : vector<8x46xbf16>, vector<46x256xbf16>, vector<8x256xf32> -> vector<8x256xf32>
    %149 = arith.addf %143, %148 : vector<8x256xf32>
    %150 = vector.extract_strided_slice %100 {offsets = [8, 0, 0], sizes = [1, 8, 46], strides = [1, 1, 1]} : vector<32x8x46xbf16> to vector<1x8x46xbf16>
    %151 = vector.shape_cast %150 : vector<1x8x46xbf16> to vector<8x46xbf16>
    %c8 = arith.constant 8 : index
    %c0_44 = arith.constant 0 : index
    %c0_45 = arith.constant 0 : index
    %152 = vector.load %arg7[%c8, %c0_44, %c0_45] : memref<32x46x256xbf16, #tpu.memory_space<vmem>>, vector<1x46x256xbf16>
    %153 = vector.shape_cast %152 : vector<1x46x256xbf16> to vector<46x256xbf16>
    %cst_46 = arith.constant dense<0.000000e+00> : vector<8x256xf32>
    %154 = tpu.matmul %151, %153, %cst_46 {dimension_numbers = #tpu.dot_dimension_numbers<[1], [0], [0], [1], [0, 0, 1, 1], [], []>} : vector<8x46xbf16>, vector<46x256xbf16>, vector<8x256xf32> -> vector<8x256xf32>
    %155 = arith.addf %149, %154 : vector<8x256xf32>
    %156 = vector.extract_strided_slice %100 {offsets = [9, 0, 0], sizes = [1, 8, 46], strides = [1, 1, 1]} : vector<32x8x46xbf16> to vector<1x8x46xbf16>
    %157 = vector.shape_cast %156 : vector<1x8x46xbf16> to vector<8x46xbf16>
    %c9 = arith.constant 9 : index
    %c0_47 = arith.constant 0 : index
    %c0_48 = arith.constant 0 : index
    %158 = vector.load %arg7[%c9, %c0_47, %c0_48] : memref<32x46x256xbf16, #tpu.memory_space<vmem>>, vector<1x46x256xbf16>
    %159 = vector.shape_cast %158 : vector<1x46x256xbf16> to vector<46x256xbf16>
    %cst_49 = arith.constant dense<0.000000e+00> : vector<8x256xf32>
    %160 = tpu.matmul %157, %159, %cst_49 {dimension_numbers = #tpu.dot_dimension_numbers<[1], [0], [0], [1], [0, 0, 1, 1], [], []>} : vector<8x46xbf16>, vector<46x256xbf16>, vector<8x256xf32> -> vector<8x256xf32>
    %161 = arith.addf %155, %160 : vector<8x256xf32>
    %162 = vector.extract_strided_slice %100 {offsets = [10, 0, 0], sizes = [1, 8, 46], strides = [1, 1, 1]} : vector<32x8x46xbf16> to vector<1x8x46xbf16>
    %163 = vector.shape_cast %162 : vector<1x8x46xbf16> to vector<8x46xbf16>
    %c10 = arith.constant 10 : index
    %c0_50 = arith.constant 0 : index
    %c0_51 = arith.constant 0 : index
    %164 = vector.load %arg7[%c10, %c0_50, %c0_51] : memref<32x46x256xbf16, #tpu.memory_space<vmem>>, vector<1x46x256xbf16>
    %165 = vector.shape_cast %164 : vector<1x46x256xbf16> to vector<46x256xbf16>
    %cst_52 = arith.constant dense<0.000000e+00> : vector<8x256xf32>
    %166 = tpu.matmul %163, %165, %cst_52 {dimension_numbers = #tpu.dot_dimension_numbers<[1], [0], [0], [1], [0, 0, 1, 1], [], []>} : vector<8x46xbf16>, vector<46x256xbf16>, vector<8x256xf32> -> vector<8x256xf32>
    %167 = arith.addf %161, %166 : vector<8x256xf32>
    %168 = vector.extract_strided_slice %100 {offsets = [11, 0, 0], sizes = [1, 8, 46], strides = [1, 1, 1]} : vector<32x8x46xbf16> to vector<1x8x46xbf16>
    %169 = vector.shape_cast %168 : vector<1x8x46xbf16> to vector<8x46xbf16>
    %c11 = arith.constant 11 : index
    %c0_53 = arith.constant 0 : index
    %c0_54 = arith.constant 0 : index
    %170 = vector.load %arg7[%c11, %c0_53, %c0_54] : memref<32x46x256xbf16, #tpu.memory_space<vmem>>, vector<1x46x256xbf16>
    %171 = vector.shape_cast %170 : vector<1x46x256xbf16> to vector<46x256xbf16>
    %cst_55 = arith.constant dense<0.000000e+00> : vector<8x256xf32>
    %172 = tpu.matmul %169, %171, %cst_55 {dimension_numbers = #tpu.dot_dimension_numbers<[1], [0], [0], [1], [0, 0, 1, 1], [], []>} : vector<8x46xbf16>, vector<46x256xbf16>, vector<8x256xf32> -> vector<8x256xf32>
    %173 = arith.addf %167, %172 : vector<8x256xf32>
    %174 = vector.extract_strided_slice %100 {offsets = [12, 0, 0], sizes = [1, 8, 46], strides = [1, 1, 1]} : vector<32x8x46xbf16> to vector<1x8x46xbf16>
    %175 = vector.shape_cast %174 : vector<1x8x46xbf16> to vector<8x46xbf16>
    %c12 = arith.constant 12 : index
    %c0_56 = arith.constant 0 : index
    %c0_57 = arith.constant 0 : index
    %176 = vector.load %arg7[%c12, %c0_56, %c0_57] : memref<32x46x256xbf16, #tpu.memory_space<vmem>>, vector<1x46x256xbf16>
    %177 = vector.shape_cast %176 : vector<1x46x256xbf16> to vector<46x256xbf16>
    %cst_58 = arith.constant dense<0.000000e+00> : vector<8x256xf32>
    %178 = tpu.matmul %175, %177, %cst_58 {dimension_numbers = #tpu.dot_dimension_numbers<[1], [0], [0], [1], [0, 0, 1, 1], [], []>} : vector<8x46xbf16>, vector<46x256xbf16>, vector<8x256xf32> -> vector<8x256xf32>
    %179 = arith.addf %173, %178 : vector<8x256xf32>
    %180 = vector.extract_strided_slice %100 {offsets = [13, 0, 0], sizes = [1, 8, 46], strides = [1, 1, 1]} : vector<32x8x46xbf16> to vector<1x8x46xbf16>
    %181 = vector.shape_cast %180 : vector<1x8x46xbf16> to vector<8x46xbf16>
    %c13 = arith.constant 13 : index
    %c0_59 = arith.constant 0 : index
    %c0_60 = arith.constant 0 : index
    %182 = vector.load %arg7[%c13, %c0_59, %c0_60] : memref<32x46x256xbf16, #tpu.memory_space<vmem>>, vector<1x46x256xbf16>
    %183 = vector.shape_cast %182 : vector<1x46x256xbf16> to vector<46x256xbf16>
    %cst_61 = arith.constant dense<0.000000e+00> : vector<8x256xf32>
    %184 = tpu.matmul %181, %183, %cst_61 {dimension_numbers = #tpu.dot_dimension_numbers<[1], [0], [0], [1], [0, 0, 1, 1], [], []>} : vector<8x46xbf16>, vector<46x256xbf16>, vector<8x256xf32> -> vector<8x256xf32>
    %185 = arith.addf %179, %184 : vector<8x256xf32>
    %186 = vector.extract_strided_slice %100 {offsets = [14, 0, 0], sizes = [1, 8, 46], strides = [1, 1, 1]} : vector<32x8x46xbf16> to vector<1x8x46xbf16>
    %187 = vector.shape_cast %186 : vector<1x8x46xbf16> to vector<8x46xbf16>
    %c14 = arith.constant 14 : index
    %c0_62 = arith.constant 0 : index
    %c0_63 = arith.constant 0 : index
    %188 = vector.load %arg7[%c14, %c0_62, %c0_63] : memref<32x46x256xbf16, #tpu.memory_space<vmem>>, vector<1x46x256xbf16>
    %189 = vector.shape_cast %188 : vector<1x46x256xbf16> to vector<46x256xbf16>
    %cst_64 = arith.constant dense<0.000000e+00> : vector<8x256xf32>
    %190 = tpu.matmul %187, %189, %cst_64 {dimension_numbers = #tpu.dot_dimension_numbers<[1], [0], [0], [1], [0, 0, 1, 1], [], []>} : vector<8x46xbf16>, vector<46x256xbf16>, vector<8x256xf32> -> vector<8x256xf32>
    %191 = arith.addf %185, %190 : vector<8x256xf32>
    %192 = vector.extract_strided_slice %100 {offsets = [15, 0, 0], sizes = [1, 8, 46], strides = [1, 1, 1]} : vector<32x8x46xbf16> to vector<1x8x46xbf16>
    %193 = vector.shape_cast %192 : vector<1x8x46xbf16> to vector<8x46xbf16>
    %c15 = arith.constant 15 : index
    %c0_65 = arith.constant 0 : index
    %c0_66 = arith.constant 0 : index
    %194 = vector.load %arg7[%c15, %c0_65, %c0_66] : memref<32x46x256xbf16, #tpu.memory_space<vmem>>, vector<1x46x256xbf16>
    %195 = vector.shape_cast %194 : vector<1x46x256xbf16> to vector<46x256xbf16>
    %cst_67 = arith.constant dense<0.000000e+00> : vector<8x256xf32>
    %196 = tpu.matmul %193, %195, %cst_67 {dimension_numbers = #tpu.dot_dimension_numbers<[1], [0], [0], [1], [0, 0, 1, 1], [], []>} : vector<8x46xbf16>, vector<46x256xbf16>, vector<8x256xf32> -> vector<8x256xf32>
    %197 = arith.addf %191, %196 : vector<8x256xf32>
    %198 = vector.extract_strided_slice %100 {offsets = [16, 0, 0], sizes = [1, 8, 46], strides = [1, 1, 1]} : vector<32x8x46xbf16> to vector<1x8x46xbf16>
    %199 = vector.shape_cast %198 : vector<1x8x46xbf16> to vector<8x46xbf16>
    %c16 = arith.constant 16 : index
    %c0_68 = arith.constant 0 : index
    %c0_69 = arith.constant 0 : index
    %200 = vector.load %arg7[%c16, %c0_68, %c0_69] : memref<32x46x256xbf16, #tpu.memory_space<vmem>>, vector<1x46x256xbf16>
    %201 = vector.shape_cast %200 : vector<1x46x256xbf16> to vector<46x256xbf16>
    %cst_70 = arith.constant dense<0.000000e+00> : vector<8x256xf32>
    %202 = tpu.matmul %199, %201, %cst_70 {dimension_numbers = #tpu.dot_dimension_numbers<[1], [0], [0], [1], [0, 0, 1, 1], [], []>} : vector<8x46xbf16>, vector<46x256xbf16>, vector<8x256xf32> -> vector<8x256xf32>
    %203 = arith.addf %197, %202 : vector<8x256xf32>
    %204 = vector.extract_strided_slice %100 {offsets = [17, 0, 0], sizes = [1, 8, 46], strides = [1, 1, 1]} : vector<32x8x46xbf16> to vector<1x8x46xbf16>
    %205 = vector.shape_cast %204 : vector<1x8x46xbf16> to vector<8x46xbf16>
    %c17 = arith.constant 17 : index
    %c0_71 = arith.constant 0 : index
    %c0_72 = arith.constant 0 : index
    %206 = vector.load %arg7[%c17, %c0_71, %c0_72] : memref<32x46x256xbf16, #tpu.memory_space<vmem>>, vector<1x46x256xbf16>
    %207 = vector.shape_cast %206 : vector<1x46x256xbf16> to vector<46x256xbf16>
    %cst_73 = arith.constant dense<0.000000e+00> : vector<8x256xf32>
    %208 = tpu.matmul %205, %207, %cst_73 {dimension_numbers = #tpu.dot_dimension_numbers<[1], [0], [0], [1], [0, 0, 1, 1], [], []>} : vector<8x46xbf16>, vector<46x256xbf16>, vector<8x256xf32> -> vector<8x256xf32>
    %209 = arith.addf %203, %208 : vector<8x256xf32>
    %210 = vector.extract_strided_slice %100 {offsets = [18, 0, 0], sizes = [1, 8, 46], strides = [1, 1, 1]} : vector<32x8x46xbf16> to vector<1x8x46xbf16>
    %211 = vector.shape_cast %210 : vector<1x8x46xbf16> to vector<8x46xbf16>
    %c18 = arith.constant 18 : index
    %c0_74 = arith.constant 0 : index
    %c0_75 = arith.constant 0 : index
    %212 = vector.load %arg7[%c18, %c0_74, %c0_75] : memref<32x46x256xbf16, #tpu.memory_space<vmem>>, vector<1x46x256xbf16>
    %213 = vector.shape_cast %212 : vector<1x46x256xbf16> to vector<46x256xbf16>
    %cst_76 = arith.constant dense<0.000000e+00> : vector<8x256xf32>
    %214 = tpu.matmul %211, %213, %cst_76 {dimension_numbers = #tpu.dot_dimension_numbers<[1], [0], [0], [1], [0, 0, 1, 1], [], []>} : vector<8x46xbf16>, vector<46x256xbf16>, vector<8x256xf32> -> vector<8x256xf32>
    %215 = arith.addf %209, %214 : vector<8x256xf32>
    %216 = vector.extract_strided_slice %100 {offsets = [19, 0, 0], sizes = [1, 8, 46], strides = [1, 1, 1]} : vector<32x8x46xbf16> to vector<1x8x46xbf16>
    %217 = vector.shape_cast %216 : vector<1x8x46xbf16> to vector<8x46xbf16>
    %c19 = arith.constant 19 : index
    %c0_77 = arith.constant 0 : index
    %c0_78 = arith.constant 0 : index
    %218 = vector.load %arg7[%c19, %c0_77, %c0_78] : memref<32x46x256xbf16, #tpu.memory_space<vmem>>, vector<1x46x256xbf16>
    %219 = vector.shape_cast %218 : vector<1x46x256xbf16> to vector<46x256xbf16>
    %cst_79 = arith.constant dense<0.000000e+00> : vector<8x256xf32>
    %220 = tpu.matmul %217, %219, %cst_79 {dimension_numbers = #tpu.dot_dimension_numbers<[1], [0], [0], [1], [0, 0, 1, 1], [], []>} : vector<8x46xbf16>, vector<46x256xbf16>, vector<8x256xf32> -> vector<8x256xf32>
    %221 = arith.addf %215, %220 : vector<8x256xf32>
    %222 = vector.extract_strided_slice %100 {offsets = [20, 0, 0], sizes = [1, 8, 46], strides = [1, 1, 1]} : vector<32x8x46xbf16> to vector<1x8x46xbf16>
    %223 = vector.shape_cast %222 : vector<1x8x46xbf16> to vector<8x46xbf16>
    %c20 = arith.constant 20 : index
    %c0_80 = arith.constant 0 : index
    %c0_81 = arith.constant 0 : index
    %224 = vector.load %arg7[%c20, %c0_80, %c0_81] : memref<32x46x256xbf16, #tpu.memory_space<vmem>>, vector<1x46x256xbf16>
    %225 = vector.shape_cast %224 : vector<1x46x256xbf16> to vector<46x256xbf16>
    %cst_82 = arith.constant dense<0.000000e+00> : vector<8x256xf32>
    %226 = tpu.matmul %223, %225, %cst_82 {dimension_numbers = #tpu.dot_dimension_numbers<[1], [0], [0], [1], [0, 0, 1, 1], [], []>} : vector<8x46xbf16>, vector<46x256xbf16>, vector<8x256xf32> -> vector<8x256xf32>
    %227 = arith.addf %221, %226 : vector<8x256xf32>
    %228 = vector.extract_strided_slice %100 {offsets = [21, 0, 0], sizes = [1, 8, 46], strides = [1, 1, 1]} : vector<32x8x46xbf16> to vector<1x8x46xbf16>
    %229 = vector.shape_cast %228 : vector<1x8x46xbf16> to vector<8x46xbf16>
    %c21 = arith.constant 21 : index
    %c0_83 = arith.constant 0 : index
    %c0_84 = arith.constant 0 : index
    %230 = vector.load %arg7[%c21, %c0_83, %c0_84] : memref<32x46x256xbf16, #tpu.memory_space<vmem>>, vector<1x46x256xbf16>
    %231 = vector.shape_cast %230 : vector<1x46x256xbf16> to vector<46x256xbf16>
    %cst_85 = arith.constant dense<0.000000e+00> : vector<8x256xf32>
    %232 = tpu.matmul %229, %231, %cst_85 {dimension_numbers = #tpu.dot_dimension_numbers<[1], [0], [0], [1], [0, 0, 1, 1], [], []>} : vector<8x46xbf16>, vector<46x256xbf16>, vector<8x256xf32> -> vector<8x256xf32>
    %233 = arith.addf %227, %232 : vector<8x256xf32>
    %234 = vector.extract_strided_slice %100 {offsets = [22, 0, 0], sizes = [1, 8, 46], strides = [1, 1, 1]} : vector<32x8x46xbf16> to vector<1x8x46xbf16>
    %235 = vector.shape_cast %234 : vector<1x8x46xbf16> to vector<8x46xbf16>
    %c22 = arith.constant 22 : index
    %c0_86 = arith.constant 0 : index
    %c0_87 = arith.constant 0 : index
    %236 = vector.load %arg7[%c22, %c0_86, %c0_87] : memref<32x46x256xbf16, #tpu.memory_space<vmem>>, vector<1x46x256xbf16>
    %237 = vector.shape_cast %236 : vector<1x46x256xbf16> to vector<46x256xbf16>
    %cst_88 = arith.constant dense<0.000000e+00> : vector<8x256xf32>
    %238 = tpu.matmul %235, %237, %cst_88 {dimension_numbers = #tpu.dot_dimension_numbers<[1], [0], [0], [1], [0, 0, 1, 1], [], []>} : vector<8x46xbf16>, vector<46x256xbf16>, vector<8x256xf32> -> vector<8x256xf32>
    %239 = arith.addf %233, %238 : vector<8x256xf32>
    %240 = vector.extract_strided_slice %100 {offsets = [23, 0, 0], sizes = [1, 8, 46], strides = [1, 1, 1]} : vector<32x8x46xbf16> to vector<1x8x46xbf16>
    %241 = vector.shape_cast %240 : vector<1x8x46xbf16> to vector<8x46xbf16>
    %c23 = arith.constant 23 : index
    %c0_89 = arith.constant 0 : index
    %c0_90 = arith.constant 0 : index
    %242 = vector.load %arg7[%c23, %c0_89, %c0_90] : memref<32x46x256xbf16, #tpu.memory_space<vmem>>, vector<1x46x256xbf16>
    %243 = vector.shape_cast %242 : vector<1x46x256xbf16> to vector<46x256xbf16>
    %cst_91 = arith.constant dense<0.000000e+00> : vector<8x256xf32>
    %244 = tpu.matmul %241, %243, %cst_91 {dimension_numbers = #tpu.dot_dimension_numbers<[1], [0], [0], [1], [0, 0, 1, 1], [], []>} : vector<8x46xbf16>, vector<46x256xbf16>, vector<8x256xf32> -> vector<8x256xf32>
    %245 = arith.addf %239, %244 : vector<8x256xf32>
    %246 = vector.extract_strided_slice %100 {offsets = [24, 0, 0], sizes = [1, 8, 46], strides = [1, 1, 1]} : vector<32x8x46xbf16> to vector<1x8x46xbf16>
    %247 = vector.shape_cast %246 : vector<1x8x46xbf16> to vector<8x46xbf16>
    %c24 = arith.constant 24 : index
    %c0_92 = arith.constant 0 : index
    %c0_93 = arith.constant 0 : index
    %248 = vector.load %arg7[%c24, %c0_92, %c0_93] : memref<32x46x256xbf16, #tpu.memory_space<vmem>>, vector<1x46x256xbf16>
    %249 = vector.shape_cast %248 : vector<1x46x256xbf16> to vector<46x256xbf16>
    %cst_94 = arith.constant dense<0.000000e+00> : vector<8x256xf32>
    %250 = tpu.matmul %247, %249, %cst_94 {dimension_numbers = #tpu.dot_dimension_numbers<[1], [0], [0], [1], [0, 0, 1, 1], [], []>} : vector<8x46xbf16>, vector<46x256xbf16>, vector<8x256xf32> -> vector<8x256xf32>
    %251 = arith.addf %245, %250 : vector<8x256xf32>
    %252 = vector.extract_strided_slice %100 {offsets = [25, 0, 0], sizes = [1, 8, 46], strides = [1, 1, 1]} : vector<32x8x46xbf16> to vector<1x8x46xbf16>
    %253 = vector.shape_cast %252 : vector<1x8x46xbf16> to vector<8x46xbf16>
    %c25 = arith.constant 25 : index
    %c0_95 = arith.constant 0 : index
    %c0_96 = arith.constant 0 : index
    %254 = vector.load %arg7[%c25, %c0_95, %c0_96] : memref<32x46x256xbf16, #tpu.memory_space<vmem>>, vector<1x46x256xbf16>
    %255 = vector.shape_cast %254 : vector<1x46x256xbf16> to vector<46x256xbf16>
    %cst_97 = arith.constant dense<0.000000e+00> : vector<8x256xf32>
    %256 = tpu.matmul %253, %255, %cst_97 {dimension_numbers = #tpu.dot_dimension_numbers<[1], [0], [0], [1], [0, 0, 1, 1], [], []>} : vector<8x46xbf16>, vector<46x256xbf16>, vector<8x256xf32> -> vector<8x256xf32>
    %257 = arith.addf %251, %256 : vector<8x256xf32>
    %258 = vector.extract_strided_slice %100 {offsets = [26, 0, 0], sizes = [1, 8, 46], strides = [1, 1, 1]} : vector<32x8x46xbf16> to vector<1x8x46xbf16>
    %259 = vector.shape_cast %258 : vector<1x8x46xbf16> to vector<8x46xbf16>
    %c26 = arith.constant 26 : index
    %c0_98 = arith.constant 0 : index
    %c0_99 = arith.constant 0 : index
    %260 = vector.load %arg7[%c26, %c0_98, %c0_99] : memref<32x46x256xbf16, #tpu.memory_space<vmem>>, vector<1x46x256xbf16>
    %261 = vector.shape_cast %260 : vector<1x46x256xbf16> to vector<46x256xbf16>
    %cst_100 = arith.constant dense<0.000000e+00> : vector<8x256xf32>
    %262 = tpu.matmul %259, %261, %cst_100 {dimension_numbers = #tpu.dot_dimension_numbers<[1], [0], [0], [1], [0, 0, 1, 1], [], []>} : vector<8x46xbf16>, vector<46x256xbf16>, vector<8x256xf32> -> vector<8x256xf32>
    %263 = arith.addf %257, %262 : vector<8x256xf32>
    %264 = vector.extract_strided_slice %100 {offsets = [27, 0, 0], sizes = [1, 8, 46], strides = [1, 1, 1]} : vector<32x8x46xbf16> to vector<1x8x46xbf16>
    %265 = vector.shape_cast %264 : vector<1x8x46xbf16> to vector<8x46xbf16>
    %c27 = arith.constant 27 : index
    %c0_101 = arith.constant 0 : index
    %c0_102 = arith.constant 0 : index
    %266 = vector.load %arg7[%c27, %c0_101, %c0_102] : memref<32x46x256xbf16, #tpu.memory_space<vmem>>, vector<1x46x256xbf16>
    %267 = vector.shape_cast %266 : vector<1x46x256xbf16> to vector<46x256xbf16>
    %cst_103 = arith.constant dense<0.000000e+00> : vector<8x256xf32>
    %268 = tpu.matmul %265, %267, %cst_103 {dimension_numbers = #tpu.dot_dimension_numbers<[1], [0], [0], [1], [0, 0, 1, 1], [], []>} : vector<8x46xbf16>, vector<46x256xbf16>, vector<8x256xf32> -> vector<8x256xf32>
    %269 = arith.addf %263, %268 : vector<8x256xf32>
    %270 = vector.extract_strided_slice %100 {offsets = [28, 0, 0], sizes = [1, 8, 46], strides = [1, 1, 1]} : vector<32x8x46xbf16> to vector<1x8x46xbf16>
    %271 = vector.shape_cast %270 : vector<1x8x46xbf16> to vector<8x46xbf16>
    %c28 = arith.constant 28 : index
    %c0_104 = arith.constant 0 : index
    %c0_105 = arith.constant 0 : index
    %272 = vector.load %arg7[%c28, %c0_104, %c0_105] : memref<32x46x256xbf16, #tpu.memory_space<vmem>>, vector<1x46x256xbf16>
    %273 = vector.shape_cast %272 : vector<1x46x256xbf16> to vector<46x256xbf16>
    %cst_106 = arith.constant dense<0.000000e+00> : vector<8x256xf32>
    %274 = tpu.matmul %271, %273, %cst_106 {dimension_numbers = #tpu.dot_dimension_numbers<[1], [0], [0], [1], [0, 0, 1, 1], [], []>} : vector<8x46xbf16>, vector<46x256xbf16>, vector<8x256xf32> -> vector<8x256xf32>
    %275 = arith.addf %269, %274 : vector<8x256xf32>
    %276 = vector.extract_strided_slice %100 {offsets = [29, 0, 0], sizes = [1, 8, 46], strides = [1, 1, 1]} : vector<32x8x46xbf16> to vector<1x8x46xbf16>
    %277 = vector.shape_cast %276 : vector<1x8x46xbf16> to vector<8x46xbf16>
    %c29 = arith.constant 29 : index
    %c0_107 = arith.constant 0 : index
    %c0_108 = arith.constant 0 : index
    %278 = vector.load %arg7[%c29, %c0_107, %c0_108] : memref<32x46x256xbf16, #tpu.memory_space<vmem>>, vector<1x46x256xbf16>
    %279 = vector.shape_cast %278 : vector<1x46x256xbf16> to vector<46x256xbf16>
    %cst_109 = arith.constant dense<0.000000e+00> : vector<8x256xf32>
    %280 = tpu.matmul %277, %279, %cst_109 {dimension_numbers = #tpu.dot_dimension_numbers<[1], [0], [0], [1], [0, 0, 1, 1], [], []>} : vector<8x46xbf16>, vector<46x256xbf16>, vector<8x256xf32> -> vector<8x256xf32>
    %281 = arith.addf %275, %280 : vector<8x256xf32>
    %282 = vector.extract_strided_slice %100 {offsets = [30, 0, 0], sizes = [1, 8, 46], strides = [1, 1, 1]} : vector<32x8x46xbf16> to vector<1x8x46xbf16>
    %283 = vector.shape_cast %282 : vector<1x8x46xbf16> to vector<8x46xbf16>
    %c30 = arith.constant 30 : index
    %c0_110 = arith.constant 0 : index
    %c0_111 = arith.constant 0 : index
    %284 = vector.load %arg7[%c30, %c0_110, %c0_111] : memref<32x46x256xbf16, #tpu.memory_space<vmem>>, vector<1x46x256xbf16>
    %285 = vector.shape_cast %284 : vector<1x46x256xbf16> to vector<46x256xbf16>
    %cst_112 = arith.constant dense<0.000000e+00> : vector<8x256xf32>
    %286 = tpu.matmul %283, %285, %cst_112 {dimension_numbers = #tpu.dot_dimension_numbers<[1], [0], [0], [1], [0, 0, 1, 1], [], []>} : vector<8x46xbf16>, vector<46x256xbf16>, vector<8x256xf32> -> vector<8x256xf32>
    %287 = arith.addf %281, %286 : vector<8x256xf32>
    %288 = vector.extract_strided_slice %100 {offsets = [31, 0, 0], sizes = [1, 8, 46], strides = [1, 1, 1]} : vector<32x8x46xbf16> to vector<1x8x46xbf16>
    %289 = vector.shape_cast %288 : vector<1x8x46xbf16> to vector<8x46xbf16>
    %c31 = arith.constant 31 : index
    %c0_113 = arith.constant 0 : index
    %c0_114 = arith.constant 0 : index
    %290 = vector.load %arg7[%c31, %c0_113, %c0_114] : memref<32x46x256xbf16, #tpu.memory_space<vmem>>, vector<1x46x256xbf16>
    %291 = vector.shape_cast %290 : vector<1x46x256xbf16> to vector<46x256xbf16>
    %cst_115 = arith.constant dense<0.000000e+00> : vector<8x256xf32>
    %292 = tpu.matmul %289, %291, %cst_115 {dimension_numbers = #tpu.dot_dimension_numbers<[1], [0], [0], [1], [0, 0, 1, 1], [], []>} : vector<8x46xbf16>, vector<46x256xbf16>, vector<8x256xf32> -> vector<8x256xf32>
    %293 = arith.addf %287, %292 : vector<8x256xf32>
    %c0_116 = arith.constant 0 : index
    %c0_117 = arith.constant 0 : index
    %294 = vector.load %arg8[%c0_116, %c0_117] : memref<1x256xf32, #tpu.memory_space<vmem>>, vector<1x256xf32>
    %295 = vector.broadcast %294 : vector<1x256xf32> to vector<8x256xf32>
    %296 = arith.addf %293, %295 : vector<8x256xf32>
    %297 = arith.truncf %296 : vector<8x256xf32> to vector<8x256xbf16>
    %c0_118 = arith.constant 0 : index
    %c0_119 = arith.constant 0 : index
    %298 = vector.load %arg9[%c0_118, %c0_119] : memref<256x512xbf16, #tpu.memory_space<vmem>>, vector<256x512xbf16>
    %cst_120 = arith.constant dense<0.000000e+00> : vector<8x512xf32>
    %299 = tpu.matmul %297, %298, %cst_120 {dimension_numbers = #tpu.dot_dimension_numbers<[1], [0], [0], [1], [0, 0, 1, 1], [], []>} : vector<8x256xbf16>, vector<256x512xbf16>, vector<8x512xf32> -> vector<8x512xf32>
    %c0_121 = arith.constant 0 : index
    %c0_122 = arith.constant 0 : index
    %300 = vector.load %arg10[%c0_121, %c0_122] : memref<1x512xf32, #tpu.memory_space<vmem>>, vector<1x512xf32>
    %301 = vector.broadcast %300 : vector<1x512xf32> to vector<8x512xf32>
    %302 = arith.addf %299, %301 : vector<8x512xf32>
    %c0_123 = arith.constant 0 : index
    %c0_124 = arith.constant 0 : index
    %303 = vector.load %arg11[%c0_123, %c0_124] : memref<8x512xf32, #tpu.memory_space<vmem>>, vector<8x512xf32>
    tpu.vector_store %arg11[%c0_123, %c0_124], %302 {strides = array<i32>} : memref<8x512xf32, #tpu.memory_space<vmem>>, vector<8x512xf32>,
    return
  }
  func.func @transform_0(%arg0: i32) -> (i32, i32) {
    %c0_i32 = arith.constant 0 : i32
    %c0_i32_0 = arith.constant 0 : i32
    return %arg0, %c0_i32 : i32, i32
  }
  func.func @transform_1(%arg0: i32) -> (i32, i32) {
    %c0_i32 = arith.constant 0 : i32
    %c0_i32_0 = arith.constant 0 : i32
    %c0_i32_1 = arith.constant 0 : i32
    return %c0_i32, %c0_i32_0 : i32, i32
  }
  func.func @transform_2(%arg0: i32) -> (i32, i32) {
    %c0_i32 = arith.constant 0 : i32
    %c0_i32_0 = arith.constant 0 : i32
    %c0_i32_1 = arith.constant 0 : i32
    return %c0_i32, %c0_i32_0 : i32, i32
  }
  func.func @transform_3(%arg0: i32) -> (i32, i32) {
    %c0_i32 = arith.constant 0 : i32
    %c0_i32_0 = arith.constant 0 : i32
    %c0_i32_1 = arith.constant 0 : i32
    return %c0_i32, %c0_i32_0 : i32, i32
  }
  func.func @transform_4(%arg0: i32) -> (i32, i32) {
    %c0_i32 = arith.constant 0 : i32
    %c0_i32_0 = arith.constant 0 : i32
    %c0_i32_1 = arith.constant 0 : i32
    return %c0_i32, %c0_i32_0 : i32, i32
  }
  func.func @transform_5(%arg0: i32) -> (i32, i32) {
    %c0_i32 = arith.constant 0 : i32
    %c0_i32_0 = arith.constant 0 : i32
    %c0_i32_1 = arith.constant 0 : i32
    return %c0_i32, %c0_i32_0 : i32, i32
  }
  func.func @transform_6(%arg0: i32) -> (i32, i32, i32) {
    %c0_i32 = arith.constant 0 : i32
    %c0_i32_0 = arith.constant 0 : i32
    %c0_i32_1 = arith.constant 0 : i32
    %c0_i32_2 = arith.constant 0 : i32
    return %c0_i32, %c0_i32_0, %c0_i32_1 : i32, i32, i32
  }
  func.func @transform_7(%arg0: i32) -> (i32, i32) {
    %c0_i32 = arith.constant 0 : i32
    %c0_i32_0 = arith.constant 0 : i32
    %c0_i32_1 = arith.constant 0 : i32
    return %c0_i32, %c0_i32_0 : i32, i32
  }
  func.func @transform_8(%arg0: i32) -> (i32, i32) {
    %c0_i32 = arith.constant 0 : i32
    %c0_i32_0 = arith.constant 0 : i32
    %c0_i32_1 = arith.constant 0 : i32
    return %c0_i32, %c0_i32_0 : i32, i32
  }
  func.func @transform_9(%arg0: i32) -> (i32, i32) {
    %c0_i32 = arith.constant 0 : i32
    %c0_i32_0 = arith.constant 0 : i32
    %c0_i32_1 = arith.constant 0 : i32
    return %c0_i32, %c0_i32_0 : i32, i32
  }
  func.func @transform_10(%arg0: i32) -> (i32, i32) {
    %c0_i32 = arith.constant 0 : i32
    %c0_i32_0 = arith.constant 0 : i32
    return %arg0, %c0_i32 : i32, i32
  }
}

</mosaic_0001>

<llo_original>
// kernel: epilepsy_cnn_target_forward.1
$region0: #{epilepsy_cnn_target_forward.1}
  #allocation0 [shape = 'u32[]', space=smem, size = 0x4, offset = 0x4, fixed_abs, tag = 'smem constant byte address 0x4 - core index']
  #allocation1 [shape = 'u32[144,128]{1,0:T(1,128)}', space=vmem, size = 0x12000, scoped, tag = 'internal scratch']
  %s0 = inlined_call_operand.vmem [shape: f32[8,178], index: 0, kind: input, shape index: {}]
  %s1 = inlined_call_operand.vmem [shape: f32[16,8], index: 1, kind: input, shape index: {}]
  %s2 = inlined_call_operand.vmem [shape: bf16[32,128], index: 2, kind: input, shape index: {}]
  %s3 = inlined_call_operand.vmem [shape: bf16[179,256], index: 3, kind: input, shape index: {}]
  %s4 = inlined_call_operand.vmem [shape: bf16[91,256], index: 4, kind: input, shape index: {}]
  %s5 = inlined_call_operand.vmem [shape: bf16[256,256], index: 5, kind: input, shape index: {}]
  %s6 = inlined_call_operand.vmem [shape: bf16[32,46,256], index: 6, kind: input, shape index: {}]
  %s7 = inlined_call_operand.vmem [shape: f32[1,256], index: 7, kind: input, shape index: {}]
  %s8 = inlined_call_operand.vmem [shape: bf16[256,512], index: 8, kind: input, shape index: {}]
  %s9 = inlined_call_operand.vmem [shape: f32[1,512], index: 9, kind: input, shape index: {}]
  %s10 = inlined_call_operand.vmem [shape: f32[8,512], index: 10, kind: output, shape index: {}]
  %s11 = sld [smem:[#allocation0]]
  $region50: #{epilepsy_cnn_target_forward.1} parent=0
    _
  %s13 = ssub.s32 1, %s11
  %s14 = scalar_select 0, %s13, %s11
  // Predicated region
  $region2: #{epilepsy_cnn_target_forward.1} parent=0 // pred_check
    _
  $region3: #{epilepsy_cnn_target_forward.1} parent=0 // pred_check_branch
    %16 = sbr.rel (0) target = $region5
  $region4: #{epilepsy_cnn_target_forward.1} parent=0 // pred_region
    _
  $region5: #{epilepsy_cnn_target_forward.1} parent=0 // pred_fallthru
    _
  // Predicated region
  $region6: #{epilepsy_cnn_target_forward.1} parent=0 // pred_check
    _
  $region7: #{epilepsy_cnn_target_forward.1} parent=0 // pred_check_branch
    %18 = sbr.rel (0) target = $region9
  $region8: #{epilepsy_cnn_target_forward.1} parent=0 // pred_region
    _
  $region9: #{epilepsy_cnn_target_forward.1} parent=0 // pred_fallthru
    _
  // Predicated region
  $region10: #{epilepsy_cnn_target_forward.1} parent=0 // pred_check
    _
  $region11: #{epilepsy_cnn_target_forward.1} parent=0 // pred_check_branch
    %20 = sbr.rel (0) target = $region13
  $region12: #{epilepsy_cnn_target_forward.1} parent=0 // pred_region
    _
  $region13: #{epilepsy_cnn_target_forward.1} parent=0 // pred_fallthru
    _
  // Predicated region
  $region14: #{epilepsy_cnn_target_forward.1} parent=0 // pred_check
    _
  $region15: #{epilepsy_cnn_target_forward.1} parent=0 // pred_check_branch
    %22 = sbr.rel (0) target = $region17
  $region16: #{epilepsy_cnn_target_forward.1} parent=0 // pred_region
    _
  $region17: #{epilepsy_cnn_target_forward.1} parent=0 // pred_fallthru
    _
  // Predicated region
  $region18: #{epilepsy_cnn_target_forward.1} parent=0 // pred_check
    _
  $region19: #{epilepsy_cnn_target_forward.1} parent=0 // pred_check_branch
    %24 = sbr.rel (0) target = $region21
  $region20: #{epilepsy_cnn_target_forward.1} parent=0 // pred_region
    _
  $region21: #{epilepsy_cnn_target_forward.1} parent=0 // pred_fallthru
    _
  // Predicated region
  $region22: #{epilepsy_cnn_target_forward.1} parent=0 // pred_check
    _
  $region23: #{epilepsy_cnn_target_forward.1} parent=0 // pred_check_branch
    %26 = sbr.rel (0) target = $region25
  $region24: #{epilepsy_cnn_target_forward.1} parent=0 // pred_region
    _
  $region25: #{epilepsy_cnn_target_forward.1} parent=0 // pred_fallthru
    _
  // Predicated region
  $region26: #{epilepsy_cnn_target_forward.1} parent=0 // pred_check
    _
  $region27: #{epilepsy_cnn_target_forward.1} parent=0 // pred_check_branch
    %28 = sbr.rel (0) target = $region29
  $region28: #{epilepsy_cnn_target_forward.1} parent=0 // pred_region
    _
  $region29: #{epilepsy_cnn_target_forward.1} parent=0 // pred_fallthru
    _
  // Predicated region
  $region30: #{epilepsy_cnn_target_forward.1} parent=0 // pred_check
    _
  $region31: #{epilepsy_cnn_target_forward.1} parent=0 // pred_check_branch
    %30 = sbr.rel (0) target = $region33
  $region32: #{epilepsy_cnn_target_forward.1} parent=0 // pred_region
    _
  $region33: #{epilepsy_cnn_target_forward.1} parent=0 // pred_fallthru
    _
  // Predicated region
  $region34: #{epilepsy_cnn_target_forward.1} parent=0 // pred_check
    _
  $region35: #{epilepsy_cnn_target_forward.1} parent=0 // pred_check_branch
    %32 = sbr.rel (0) target = $region37
  $region36: #{epilepsy_cnn_target_forward.1} parent=0 // pred_region
    _
  $region37: #{epilepsy_cnn_target_forward.1} parent=0 // pred_fallthru
    _
  // Predicated region
  $region38: #{epilepsy_cnn_target_forward.1} parent=0 // pred_check
    _
  $region39: #{epilepsy_cnn_target_forward.1} parent=0 // pred_check_branch
    %34 = sbr.rel (0) target = $region41
  $region40: #{epilepsy_cnn_target_forward.1} parent=0 // pred_region
    _
  $region41: #{epilepsy_cnn_target_forward.1} parent=0 // pred_fallthru
    _
  %v36 = vld [vmem:[%s0] sm:$0xff]
  %v37 = vld [vmem:[%s0 + $0x8] sm:$0xff]
  %40 = vrot.lane.b32.xlu0 %v36, 4
  %v41 = vpop.permute.xlu0 %40
  %42 = vrot.lane.b32.xlu0 %v37, 4
  %v43 = vpop.permute.xlu0 %42
  %vm44 = vcmask 31744
  %v45 = vsel %vm44, %v41, %v43
  %v48 = vsel %vm44, 0.0, %v41
  %vm49 = vcmask 441344
  %v50 = vsel %vm49, %v45, 0.0
  %v53 = vcombine.low %v48, %v50
  %v54 = vcombine.high %v48, %v50
  %v56 = vunpack.c.l.s4 1966171168
  %v57 = vunpack.c.0.s8 %v56
  %v58 = vlaneseq
  %v59 = vshrl.u32 %v58, 7
  %v60 = vsub.s32 %v57, %v59
  %v61 = vrot.slane %v53, %v60
  %v63 = vunpack.c.l.s4 1966171168
  %v64 = vunpack.c.0.s8 %v63
  %v65 = vlaneseq
  %v66 = vshrl.u32 %v65, 7
  %v67 = vsub.s32 %v64, %v66
  %v68 = vrot.slane %v54, %v67
  %v69 = vcombine.high %v61, %v61
  %v70 = vcombine.high %v68, %v68
  %v72 = vunpack.c.l.s4 1966171168
  %v73 = vunpack.c.0.s8 %v72
  %v74 = vlaneseq
  %v75 = vshrl.u32 %v74, 7
  %v76 = vsub.s32 %v73, %v75
  %v77 = vrot.slane %v61, %v76
  %v79 = vunpack.c.l.s4 1966171168
  %v80 = vunpack.c.0.s8 %v79
  %v81 = vlaneseq
  %v82 = vshrl.u32 %v81, 7
  %v83 = vsub.s32 %v80, %v82
  %v84 = vrot.slane %v68, %v83
  %v86 = vunpack.c.l.s4 1966171168
  %v87 = vunpack.c.0.s8 %v86
  %v88 = vlaneseq
  %v89 = vshrl.u32 %v88, 7
  %v90 = vsub.s32 %v87, %v89
  %v91 = vrot.slane %v69, %v90
  %v93 = vunpack.c.l.s4 1966171168
  %v94 = vunpack.c.0.s8 %v93
  %v95 = vlaneseq
  %v96 = vshrl.u32 %v95, 7
  %v97 = vsub.s32 %v94, %v96
  %v98 = vrot.slane %v70, %v97
  %v99 = vcombine.high %v77, %v77
  %v100 = vcombine.high %v84, %v84
  %v101 = vcombine.high %v91, %v91
  %v102 = vcombine.high %v98, %v98
  %v103 = vld [vmem:[%s1] sm:$0xff]
  %v104 = vld [vmem:[%s1 + $0x8] sm:$0xff]
  %106 = vset.pattern.permute.xlu0 0
  %107 = vperm.xlu0 %106, %v103
  %v108 = vpop.permute.xlu0 %107
  %111 = vset.pattern.permute.xlu0 0
  %112 = vperm.xlu0 %111, %v104
  %v113 = vpop.permute.xlu0 %112
  %v115 = vlaneseq
  %v116 = vshrl.u32 %v115, 7
  %v117 = vsub.s32 0, %v116
  %v118 = vrot.slane %v77, %v117
  %v119 = vlaneseq
  %v120 = vshrl.u32 %v119, 7
  %v121 = vsub.s32 1, %v120
  %v122 = vrot.slane %v77, %v121
  %v123 = vlaneseq
  %v124 = vshrl.u32 %v123, 7
  %v125 = vsub.s32 0, %v124
  %v126 = vrot.slane %v91, %v125
  %v127 = vlaneseq
  %v128 = vshrl.u32 %v127, 7
  %v129 = vsub.s32 1, %v128
  %v130 = vrot.slane %v91, %v129
  %v131 = vlaneseq
  %v132 = vshrl.u32 %v131, 7
  %v133 = vsub.s32 0, %v132
  %v134 = vrot.slane %v99, %v133
  %v135 = vlaneseq
  %v136 = vshrl.u32 %v135, 7
  %v137 = vsub.s32 1, %v136
  %v138 = vrot.slane %v99, %v137
  %v139 = vlaneseq
  %v140 = vshrl.u32 %v139, 7
  %v141 = vsub.s32 0, %v140
  %v142 = vrot.slane %v101, %v141
  %v143 = vlaneseq
  %v144 = vshrl.u32 %v143, 7
  %v145 = vsub.s32 1, %v144
  %v146 = vrot.slane %v101, %v145
  %v147 = vlaneseq
  %v148 = vshrl.u32 %v147, 7
  %v149 = vsub.s32 0, %v148
  %v150 = vrot.slane %v84, %v149
  %v151 = vlaneseq
  %v152 = vshrl.u32 %v151, 7
  %v153 = vsub.s32 1, %v152
  %v154 = vrot.slane %v84, %v153
  %v155 = vlaneseq
  %v156 = vshrl.u32 %v155, 7
  %v157 = vsub.s32 0, %v156
  %v158 = vrot.slane %v98, %v157
  %v159 = vlaneseq
  %v160 = vshrl.u32 %v159, 7
  %v161 = vsub.s32 1, %v160
  %v162 = vrot.slane %v98, %v161
  %v163 = vlaneseq
  %v164 = vshrl.u32 %v163, 7
  %v165 = vsub.s32 0, %v164
  %v166 = vrot.slane %v100, %v165
  %v167 = vlaneseq
  %v168 = vshrl.u32 %v167, 7
  %v169 = vsub.s32 1, %v168
  %v170 = vrot.slane %v100, %v169
  %v171 = vlaneseq
  %v172 = vshrl.u32 %v171, 7
  %v173 = vsub.s32 0, %v172
  %v174 = vrot.slane %v102, %v173
  %v175 = vlaneseq
  %v176 = vshrl.u32 %v175, 7
  %v177 = vsub.s32 1, %v176
  %v178 = vrot.slane %v102, %v177
  %v195 = vmul.f32 %v108, %v118
  %v196 = vmul.f32 %v108, %v122
  %v197 = vmul.f32 %v113, %v118
  %v198 = vmul.f32 %v113, %v122
  %v199 = vmul.f32 %v108, %v126
  %v200 = vmul.f32 %v108, %v130
  %v201 = vmul.f32 %v113, %v126
  %v202 = vmul.f32 %v113, %v130
  %v203 = vmul.f32 %v108, %v134
  %v204 = vmul.f32 %v108, %v138
  %v205 = vmul.f32 %v113, %v134
  %v206 = vmul.f32 %v113, %v138
  %v207 = vmul.f32 %v108, %v142
  %v208 = vmul.f32 %v108, %v146
  %v209 = vmul.f32 %v113, %v142
  %v210 = vmul.f32 %v113, %v146
  %v211 = vmul.f32 %v108, %v150
  %v212 = vmul.f32 %v108, %v154
  %v213 = vmul.f32 %v113, %v150
  %v214 = vmul.f32 %v113, %v154
  %v215 = vmul.f32 %v108, %v158
  %v216 = vmul.f32 %v108, %v162
  %v217 = vmul.f32 %v113, %v158
  %v218 = vmul.f32 %v113, %v162
  %v219 = vmul.f32 %v108, %v166
  %v220 = vmul.f32 %v108, %v170
  %v221 = vmul.f32 %v113, %v166
  %v222 = vmul.f32 %v113, %v170
  %v223 = vmul.f32 %v108, %v174
  %v224 = vmul.f32 %v108, %v178
  %v225 = vmul.f32 %v113, %v174
  %v226 = vmul.f32 %v113, %v178
  %v227 = vadd.f32 %v195, 0.0
  %v228 = vadd.f32 %v196, 0.0
  %v229 = vadd.f32 %v197, 0.0
  %v230 = vadd.f32 %v198, 0.0
  %v231 = vadd.f32 %v199, 0.0
  %v232 = vadd.f32 %v200, 0.0
  %v233 = vadd.f32 %v201, 0.0
  %v234 = vadd.f32 %v202, 0.0
  %v235 = vadd.f32 %v203, 0.0
  %v236 = vadd.f32 %v204, 0.0
  %v237 = vadd.f32 %v205, 0.0
  %v238 = vadd.f32 %v206, 0.0
  %v239 = vadd.f32 %v207, 0.0
  %v240 = vadd.f32 %v208, 0.0
  %v241 = vadd.f32 %v209, 0.0
  %v242 = vadd.f32 %v210, 0.0
  %v243 = vadd.f32 %v211, 0.0
  %v244 = vadd.f32 %v212, 0.0
  %v245 = vadd.f32 %v213, 0.0
  %v246 = vadd.f32 %v214, 0.0
  %v247 = vadd.f32 %v215, 0.0
  %v248 = vadd.f32 %v216, 0.0
  %v249 = vadd.f32 %v217, 0.0
  %v250 = vadd.f32 %v218, 0.0
  %v251 = vadd.f32 %v219, 0.0
  %v252 = vadd.f32 %v220, 0.0
  %v253 = vadd.f32 %v221, 0.0
  %v254 = vadd.f32 %v222, 0.0
  %v255 = vadd.f32 %v223, 0.0
  %v256 = vadd.f32 %v224, 0.0
  %v257 = vadd.f32 %v225, 0.0
  %v258 = vadd.f32 %v226, 0.0
  %259 = vset.pattern.permute.xlu0 1
  %260 = vperm.xlu0 %259, %v103
  %v261 = vpop.permute.xlu0 %260
  %263 = vset.pattern.permute.xlu0 1
  %264 = vperm.xlu0 %263, %v104
  %v265 = vpop.permute.xlu0 %264
  %v267 = vmul.f32 %v261, %v118
  %v268 = vmul.f32 %v261, %v122
  %v269 = vmul.f32 %v265, %v118
  %v270 = vmul.f32 %v265, %v122
  %v271 = vmul.f32 %v261, %v126
  %v272 = vmul.f32 %v261, %v130
  %v273 = vmul.f32 %v265, %v126
  %v274 = vmul.f32 %v265, %v130
  %v275 = vmul.f32 %v261, %v134
  %v276 = vmul.f32 %v261, %v138
  %v277 = vmul.f32 %v265, %v134
  %v278 = vmul.f32 %v265, %v138
  %v279 = vmul.f32 %v261, %v142
  %v280 = vmul.f32 %v261, %v146
  %v281 = vmul.f32 %v265, %v142
  %v282 = vmul.f32 %v265, %v146
  %v283 = vmul.f32 %v261, %v150
  %v284 = vmul.f32 %v261, %v154
  %v285 = vmul.f32 %v265, %v150
  %v286 = vmul.f32 %v265, %v154
  %v287 = vmul.f32 %v261, %v158
  %v288 = vmul.f32 %v261, %v162
  %v289 = vmul.f32 %v265, %v158
  %v290 = vmul.f32 %v265, %v162
  %v291 = vmul.f32 %v261, %v166
  %v292 = vmul.f32 %v261, %v170
  %v293 = vmul.f32 %v265, %v166
  %v294 = vmul.f32 %v265, %v170
  %v295 = vmul.f32 %v261, %v174
  %v296 = vmul.f32 %v261, %v178
  %v297 = vmul.f32 %v265, %v174
  %v298 = vmul.f32 %v265, %v178
  %331 = vrot.lane.b32.xlu0 %v267, 127
  %v332 = vpop.permute.xlu0 %331
  %333 = vrot.lane.b32.xlu0 %v268, 127
  %v334 = vpop.permute.xlu0 %333
  %335 = vrot.lane.b32.xlu0 %v269, 127
  %v336 = vpop.permute.xlu0 %335
  %337 = vrot.lane.b32.xlu0 %v270, 127
  %v338 = vpop.permute.xlu0 %337
  %339 = vrot.lane.b32.xlu0 %v271, 127
  %v340 = vpop.permute.xlu0 %339
  %341 = vrot.lane.b32.xlu0 %v272, 127
  %v342 = vpop.permute.xlu0 %341
  %343 = vrot.lane.b32.xlu0 %v273, 127
  %v344 = vpop.permute.xlu0 %343
  %345 = vrot.lane.b32.xlu0 %v274, 127
  %v346 = vpop.permute.xlu0 %345
  %347 = vrot.lane.b32.xlu0 %v275, 127
  %v348 = vpop.permute.xlu0 %347
  %349 = vrot.lane.b32.xlu0 %v276, 127
  %v350 = vpop.permute.xlu0 %349
  %351 = vrot.lane.b32.xlu0 %v277, 127
  %v352 = vpop.permute.xlu0 %351
  %353 = vrot.lane.b32.xlu0 %v278, 127
  %v354 = vpop.permute.xlu0 %353
  %355 = vrot.lane.b32.xlu0 %v279, 127
  %v356 = vpop.permute.xlu0 %355
  %357 = vrot.lane.b32.xlu0 %v280, 127
  %v358 = vpop.permute.xlu0 %357
  %359 = vrot.lane.b32.xlu0 %v281, 127
  %v360 = vpop.permute.xlu0 %359
  %361 = vrot.lane.b32.xlu0 %v282, 127
  %v362 = vpop.permute.xlu0 %361
  %363 = vrot.lane.b32.xlu0 %v283, 127
  %v364 = vpop.permute.xlu0 %363
  %365 = vrot.lane.b32.xlu0 %v284, 127
  %v366 = vpop.permute.xlu0 %365
  %367 = vrot.lane.b32.xlu0 %v285, 127
  %v368 = vpop.permute.xlu0 %367
  %369 = vrot.lane.b32.xlu0 %v286, 127
  %v370 = vpop.permute.xlu0 %369
  %371 = vrot.lane.b32.xlu0 %v287, 127
  %v372 = vpop.permute.xlu0 %371
  %373 = vrot.lane.b32.xlu0 %v288, 127
  %v374 = vpop.permute.xlu0 %373
  %375 = vrot.lane.b32.xlu0 %v289, 127
  %v376 = vpop.permute.xlu0 %375
  %377 = vrot.lane.b32.xlu0 %v290, 127
  %v378 = vpop.permute.xlu0 %377
  %379 = vrot.lane.b32.xlu0 %v291, 127
  %v380 = vpop.permute.xlu0 %379
  %381 = vrot.lane.b32.xlu0 %v292, 127
  %v382 = vpop.permute.xlu0 %381
  %383 = vrot.lane.b32.xlu0 %v293, 127
  %v384 = vpop.permute.xlu0 %383
  %385 = vrot.lane.b32.xlu0 %v294, 127
  %v386 = vpop.permute.xlu0 %385
  %387 = vrot.lane.b32.xlu0 %v295, 127
  %v388 = vpop.permute.xlu0 %387
  %389 = vrot.lane.b32.xlu0 %v296, 127
  %v390 = vpop.permute.xlu0 %389
  %391 = vrot.lane.b32.xlu0 %v297, 127
  %v392 = vpop.permute.xlu0 %391
  %393 = vrot.lane.b32.xlu0 %v298, 127
  %v394 = vpop.permute.xlu0 %393
  %vm395 = vcmask 1039360
  %v396 = vsel %vm395, %v332, %v334
  %v397 = vsel %vm395, %v336, %v338
  %v398 = vsel %vm395, %v340, %v342
  %v399 = vsel %vm395, %v344, %v346
  %v400 = vsel %vm395, %v348, %v350
  %v401 = vsel %vm395, %v352, %v354
  %v402 = vsel %vm395, %v356, %v358
  %v403 = vsel %vm395, %v360, %v362
  %v404 = vsel %vm395, %v364, %v366
  %v405 = vsel %vm395, %v368, %v370
  %v406 = vsel %vm395, %v372, %v374
  %v407 = vsel %vm395, %v376, %v378
  %v408 = vsel %vm395, %v380, %v382
  %v409 = vsel %vm395, %v384, %v386
  %v410 = vsel %vm395, %v388, %v390
  %v411 = vsel %vm395, %v392, %v394
  %v444 = vadd.f32 %v227, %v396
  %v445 = vadd.f32 %v228, %v334
  %v446 = vadd.f32 %v229, %v397
  %v447 = vadd.f32 %v230, %v338
  %v448 = vadd.f32 %v231, %v398
  %v449 = vadd.f32 %v232, %v342
  %v450 = vadd.f32 %v233, %v399
  %v451 = vadd.f32 %v234, %v346
  %v452 = vadd.f32 %v235, %v400
  %v453 = vadd.f32 %v236, %v350
  %v454 = vadd.f32 %v237, %v401
  %v455 = vadd.f32 %v238, %v354
  %v456 = vadd.f32 %v239, %v402
  %v457 = vadd.f32 %v240, %v358
  %v458 = vadd.f32 %v241, %v403
  %v459 = vadd.f32 %v242, %v362
  %v460 = vadd.f32 %v243, %v404
  %v461 = vadd.f32 %v244, %v366
  %v462 = vadd.f32 %v245, %v405
  %v463 = vadd.f32 %v246, %v370
  %v464 = vadd.f32 %v247, %v406
  %v465 = vadd.f32 %v248, %v374
  %v466 = vadd.f32 %v249, %v407
  %v467 = vadd.f32 %v250, %v378
  %v468 = vadd.f32 %v251, %v408
  %v469 = vadd.f32 %v252, %v382
  %v470 = vadd.f32 %v253, %v409
  %v471 = vadd.f32 %v254, %v386
  %v472 = vadd.f32 %v255, %v410
  %v473 = vadd.f32 %v256, %v390
  %v474 = vadd.f32 %v257, %v411
  %v475 = vadd.f32 %v258, %v394
  %476 = vset.pattern.permute.xlu0 2
  %477 = vperm.xlu0 %476, %v103
  %v478 = vpop.permute.xlu0 %477
  %480 = vset.pattern.permute.xlu0 2
  %481 = vperm.xlu0 %480, %v104
  %v482 = vpop.permute.xlu0 %481
  %v484 = vmul.f32 %v478, %v118
  %v485 = vmul.f32 %v478, %v122
  %v486 = vmul.f32 %v482, %v118
  %v487 = vmul.f32 %v482, %v122
  %v488 = vmul.f32 %v478, %v126
  %v489 = vmul.f32 %v478, %v130
  %v490 = vmul.f32 %v482, %v126
  %v491 = vmul.f32 %v482, %v130
  %v492 = vmul.f32 %v478, %v134
  %v493 = vmul.f32 %v478, %v138
  %v494 = vmul.f32 %v482, %v134
  %v495 = vmul.f32 %v482, %v138
  %v496 = vmul.f32 %v478, %v142
  %v497 = vmul.f32 %v478, %v146
  %v498 = vmul.f32 %v482, %v142
  %v499 = vmul.f32 %v482, %v146
  %v500 = vmul.f32 %v478, %v150
  %v501 = vmul.f32 %v478, %v154
  %v502 = vmul.f32 %v482, %v150
  %v503 = vmul.f32 %v482, %v154
  %v504 = vmul.f32 %v478, %v158
  %v505 = vmul.f32 %v478, %v162
  %v506 = vmul.f32 %v482, %v158
  %v507 = vmul.f32 %v482, %v162
  %v508 = vmul.f32 %v478, %v166
  %v509 = vmul.f32 %v478, %v170
  %v510 = vmul.f32 %v482, %v166
  %v511 = vmul.f32 %v482, %v170
  %v512 = vmul.f32 %v478, %v174
  %v513 = vmul.f32 %v478, %v178
  %v514 = vmul.f32 %v482, %v174
  %v515 = vmul.f32 %v482, %v178
  %548 = vrot.lane.b32.xlu0 %v484, 126
  %v549 = vpop.permute.xlu0 %548
  %550 = vrot.lane.b32.xlu0 %v485, 126
  %v551 = vpop.permute.xlu0 %550
  %552 = vrot.lane.b32.xlu0 %v486, 126
  %v553 = vpop.permute.xlu0 %552
  %554 = vrot.lane.b32.xlu0 %v487, 126
  %v555 = vpop.permute.xlu0 %554
  %556 = vrot.lane.b32.xlu0 %v488, 126
  %v557 = vpop.permute.xlu0 %556
  %558 = vrot.lane.b32.xlu0 %v489, 126
  %v559 = vpop.permute.xlu0 %558
  %560 = vrot.lane.b32.xlu0 %v490, 126
  %v561 = vpop.permute.xlu0 %560
  %562 = vrot.lane.b32.xlu0 %v491, 126
  %v563 = vpop.permute.xlu0 %562
  %564 = vrot.lane.b32.xlu0 %v492, 126
  %v565 = vpop.permute.xlu0 %564
  %566 = vrot.lane.b32.xlu0 %v493, 126
  %v567 = vpop.permute.xlu0 %566
  %568 = vrot.lane.b32.xlu0 %v494, 126
  %v569 = vpop.permute.xlu0 %568
  %570 = vrot.lane.b32.xlu0 %v495, 126
  %v571 = vpop.permute.xlu0 %570
  %572 = vrot.lane.b32.xlu0 %v496, 126
  %v573 = vpop.permute.xlu0 %572
  %574 = vrot.lane.b32.xlu0 %v497, 126
  %v575 = vpop.permute.xlu0 %574
  %576 = vrot.lane.b32.xlu0 %v498, 126
  %v577 = vpop.permute.xlu0 %576
  %578 = vrot.lane.b32.xlu0 %v499, 126
  %v579 = vpop.permute.xlu0 %578
  %580 = vrot.lane.b32.xlu0 %v500, 126
  %v581 = vpop.permute.xlu0 %580
  %582 = vrot.lane.b32.xlu0 %v501, 126
  %v583 = vpop.permute.xlu0 %582
  %584 = vrot.lane.b32.xlu0 %v502, 126
  %v585 = vpop.permute.xlu0 %584
  %586 = vrot.lane.b32.xlu0 %v503, 126
  %v587 = vpop.permute.xlu0 %586
  %588 = vrot.lane.b32.xlu0 %v504, 126
  %v589 = vpop.permute.xlu0 %588
  %590 = vrot.lane.b32.xlu0 %v505, 126
  %v591 = vpop.permute.xlu0 %590
  %592 = vrot.lane.b32.xlu0 %v506, 126
  %v593 = vpop.permute.xlu0 %592
  %594 = vrot.lane.b32.xlu0 %v507, 126
  %v595 = vpop.permute.xlu0 %594
  %596 = vrot.lane.b32.xlu0 %v508, 126
  %v597 = vpop.permute.xlu0 %596
  %598 = vrot.lane.b32.xlu0 %v509, 126
  %v599 = vpop.permute.xlu0 %598
  %600 = vrot.lane.b32.xlu0 %v510, 126
  %v601 = vpop.permute.xlu0 %600
  %602 = vrot.lane.b32.xlu0 %v511, 126
  %v603 = vpop.permute.xlu0 %602
  %604 = vrot.lane.b32.xlu0 %v512, 126
  %v605 = vpop.permute.xlu0 %604
  %606 = vrot.lane.b32.xlu0 %v513, 126
  %v607 = vpop.permute.xlu0 %606
  %608 = vrot.lane.b32.xlu0 %v514, 126
  %v609 = vpop.permute.xlu0 %608
  %610 = vrot.lane.b32.xlu0 %v515, 126
  %v611 = vpop.permute.xlu0 %610
  %vm612 = vcmask 1031168
  %v613 = vsel %vm612, %v549, %v551
  %v614 = vsel %vm612, %v553, %v555
  %v615 = vsel %vm612, %v557, %v559
  %v616 = vsel %vm612, %v561, %v563
  %v617 = vsel %vm612, %v565, %v567
  %v618 = vsel %vm612, %v569, %v571
  %v619 = vsel %vm612, %v573, %v575
  %v620 = vsel %vm612, %v577, %v579
  %v621 = vsel %vm612, %v581, %v583
  %v622 = vsel %vm612, %v585, %v587
  %v623 = vsel %vm612, %v589, %v591
  %v624 = vsel %vm612, %v593, %v595
  %v625 = vsel %vm612, %v597, %v599
  %v626 = vsel %vm612, %v601, %v603
  %v627 = vsel %vm612, %v605, %v607
  %v628 = vsel %vm612, %v609, %v611
  %v661 = vadd.f32 %v444, %v613
  %v662 = vadd.f32 %v445, %v551
  %v663 = vadd.f32 %v446, %v614
  %v664 = vadd.f32 %v447, %v555
  %v665 = vadd.f32 %v448, %v615
  %v666 = vadd.f32 %v449, %v559
  %v667 = vadd.f32 %v450, %v616
  %v668 = vadd.f32 %v451, %v563
  %v669 = vadd.f32 %v452, %v617
  %v670 = vadd.f32 %v453, %v567
  %v671 = vadd.f32 %v454, %v618
  %v672 = vadd.f32 %v455, %v571
  %v673 = vadd.f32 %v456, %v619
  %v674 = vadd.f32 %v457, %v575
  %v675 = vadd.f32 %v458, %v620
  %v676 = vadd.f32 %v459, %v579
  %v677 = vadd.f32 %v460, %v621
  %v678 = vadd.f32 %v461, %v583
  %v679 = vadd.f32 %v462, %v622
  %v680 = vadd.f32 %v463, %v587
  %v681 = vadd.f32 %v464, %v623
  %v682 = vadd.f32 %v465, %v591
  %v683 = vadd.f32 %v466, %v624
  %v684 = vadd.f32 %v467, %v595
  %v685 = vadd.f32 %v468, %v625
  %v686 = vadd.f32 %v469, %v599
  %v687 = vadd.f32 %v470, %v626
  %v688 = vadd.f32 %v471, %v603
  %v689 = vadd.f32 %v472, %v627
  %v690 = vadd.f32 %v473, %v607
  %v691 = vadd.f32 %v474, %v628
  %v692 = vadd.f32 %v475, %v611
  %693 = vset.pattern.permute.xlu0 3
  %694 = vperm.xlu0 %693, %v103
  %v695 = vpop.permute.xlu0 %694
  %697 = vset.pattern.permute.xlu0 3
  %698 = vperm.xlu0 %697, %v104
  %v699 = vpop.permute.xlu0 %698
  %v701 = vmul.f32 %v695, %v118
  %v702 = vmul.f32 %v695, %v122
  %v703 = vmul.f32 %v699, %v118
  %v704 = vmul.f32 %v699, %v122
  %v705 = vmul.f32 %v695, %v126
  %v706 = vmul.f32 %v695, %v130
  %v707 = vmul.f32 %v699, %v126
  %v708 = vmul.f32 %v699, %v130
  %v709 = vmul.f32 %v695, %v134
  %v710 = vmul.f32 %v695, %v138
  %v711 = vmul.f32 %v699, %v134
  %v712 = vmul.f32 %v699, %v138
  %v713 = vmul.f32 %v695, %v142
  %v714 = vmul.f32 %v695, %v146
  %v715 = vmul.f32 %v699, %v142
  %v716 = vmul.f32 %v699, %v146
  %v717 = vmul.f32 %v695, %v150
  %v718 = vmul.f32 %v695, %v154
  %v719 = vmul.f32 %v699, %v150
  %v720 = vmul.f32 %v699, %v154
  %v721 = vmul.f32 %v695, %v158
  %v722 = vmul.f32 %v695, %v162
  %v723 = vmul.f32 %v699, %v158
  %v724 = vmul.f32 %v699, %v162
  %v725 = vmul.f32 %v695, %v166
  %v726 = vmul.f32 %v695, %v170
  %v727 = vmul.f32 %v699, %v166
  %v728 = vmul.f32 %v699, %v170
  %v729 = vmul.f32 %v695, %v174
  %v730 = vmul.f32 %v695, %v178
  %v731 = vmul.f32 %v699, %v174
  %v732 = vmul.f32 %v699, %v178
  %765 = vrot.lane.b32.xlu0 %v701, 125
  %v766 = vpop.permute.xlu0 %765
  %767 = vrot.lane.b32.xlu0 %v702, 125
  %v768 = vpop.permute.xlu0 %767
  %769 = vrot.lane.b32.xlu0 %v703, 125
  %v770 = vpop.permute.xlu0 %769
  %771 = vrot.lane.b32.xlu0 %v704, 125
  %v772 = vpop.permute.xlu0 %771
  %773 = vrot.lane.b32.xlu0 %v705, 125
  %v774 = vpop.permute.xlu0 %773
  %775 = vrot.lane.b32.xlu0 %v706, 125
  %v776 = vpop.permute.xlu0 %775
  %777 = vrot.lane.b32.xlu0 %v707, 125
  %v778 = vpop.permute.xlu0 %777
  %779 = vrot.lane.b32.xlu0 %v708, 125
  %v780 = vpop.permute.xlu0 %779
  %781 = vrot.lane.b32.xlu0 %v709, 125
  %v782 = vpop.permute.xlu0 %781
  %783 = vrot.lane.b32.xlu0 %v710, 125
  %v784 = vpop.permute.xlu0 %783
  %785 = vrot.lane.b32.xlu0 %v711, 125
  %v786 = vpop.permute.xlu0 %785
  %787 = vrot.lane.b32.xlu0 %v712, 125
  %v788 = vpop.permute.xlu0 %787
  %789 = vrot.lane.b32.xlu0 %v713, 125
  %v790 = vpop.permute.xlu0 %789
  %791 = vrot.lane.b32.xlu0 %v714, 125
  %v792 = vpop.permute.xlu0 %791
  %793 = vrot.lane.b32.xlu0 %v715, 125
  %v794 = vpop.permute.xlu0 %793
  %795 = vrot.lane.b32.xlu0 %v716, 125
  %v796 = vpop.permute.xlu0 %795
  %797 = vrot.lane.b32.xlu0 %v717, 125
  %v798 = vpop.permute.xlu0 %797
  %799 = vrot.lane.b32.xlu0 %v718, 125
  %v800 = vpop.permute.xlu0 %799
  %801 = vrot.lane.b32.xlu0 %v719, 125
  %v802 = vpop.permute.xlu0 %801
  %803 = vrot.lane.b32.xlu0 %v720, 125
  %v804 = vpop.permute.xlu0 %803
  %805 = vrot.lane.b32.xlu0 %v721, 125
  %v806 = vpop.permute.xlu0 %805
  %807 = vrot.lane.b32.xlu0 %v722, 125
  %v808 = vpop.permute.xlu0 %807
  %809 = vrot.lane.b32.xlu0 %v723, 125
  %v810 = vpop.permute.xlu0 %809
  %811 = vrot.lane.b32.xlu0 %v724, 125
  %v812 = vpop.permute.xlu0 %811
  %813 = vrot.lane.b32.xlu0 %v725, 125
  %v814 = vpop.permute.xlu0 %813
  %815 = vrot.lane.b32.xlu0 %v726, 125
  %v816 = vpop.permute.xlu0 %815
  %817 = vrot.lane.b32.xlu0 %v727, 125
  %v818 = vpop.permute.xlu0 %817
  %819 = vrot.lane.b32.xlu0 %v728, 125
  %v820 = vpop.permute.xlu0 %819
  %821 = vrot.lane.b32.xlu0 %v729, 125
  %v822 = vpop.permute.xlu0 %821
  %823 = vrot.lane.b32.xlu0 %v730, 125
  %v824 = vpop.permute.xlu0 %823
  %825 = vrot.lane.b32.xlu0 %v731, 125
  %v826 = vpop.permute.xlu0 %825
  %827 = vrot.lane.b32.xlu0 %v732, 125
  %v828 = vpop.permute.xlu0 %827
  %vm829 = vcmask 1022976
  %v830 = vsel %vm829, %v766, %v768
  %v831 = vsel %vm829, %v770, %v772
  %v832 = vsel %vm829, %v774, %v776
  %v833 = vsel %vm829, %v778, %v780
  %v834 = vsel %vm829, %v782, %v784
  %v835 = vsel %vm829, %v786, %v788
  %v836 = vsel %vm829, %v790, %v792
  %v837 = vsel %vm829, %v794, %v796
  %v838 = vsel %vm829, %v798, %v800
  %v839 = vsel %vm829, %v802, %v804
  %v840 = vsel %vm829, %v806, %v808
  %v841 = vsel %vm829, %v810, %v812
  %v842 = vsel %vm829, %v814, %v816
  %v843 = vsel %vm829, %v818, %v820
  %v844 = vsel %vm829, %v822, %v824
  %v845 = vsel %vm829, %v826, %v828
  %v878 = vadd.f32 %v661, %v830
  %v879 = vadd.f32 %v662, %v768
  %v880 = vadd.f32 %v663, %v831
  %v881 = vadd.f32 %v664, %v772
  %v882 = vadd.f32 %v665, %v832
  %v883 = vadd.f32 %v666, %v776
  %v884 = vadd.f32 %v667, %v833
  %v885 = vadd.f32 %v668, %v780
  %v886 = vadd.f32 %v669, %v834
  %v887 = vadd.f32 %v670, %v784
  %v888 = vadd.f32 %v671, %v835
  %v889 = vadd.f32 %v672, %v788
  %v890 = vadd.f32 %v673, %v836
  %v891 = vadd.f32 %v674, %v792
  %v892 = vadd.f32 %v675, %v837
  %v893 = vadd.f32 %v676, %v796
  %v894 = vadd.f32 %v677, %v838
  %v895 = vadd.f32 %v678, %v800
  %v896 = vadd.f32 %v679, %v839
  %v897 = vadd.f32 %v680, %v804
  %v898 = vadd.f32 %v681, %v840
  %v899 = vadd.f32 %v682, %v808
  %v900 = vadd.f32 %v683, %v841
  %v901 = vadd.f32 %v684, %v812
  %v902 = vadd.f32 %v685, %v842
  %v903 = vadd.f32 %v686, %v816
  %v904 = vadd.f32 %v687, %v843
  %v905 = vadd.f32 %v688, %v820
  %v906 = vadd.f32 %v689, %v844
  %v907 = vadd.f32 %v690, %v824
  %v908 = vadd.f32 %v691, %v845
  %v909 = vadd.f32 %v692, %v828
  %910 = vset.pattern.permute.xlu0 4
  %911 = vperm.xlu0 %910, %v103
  %v912 = vpop.permute.xlu0 %911
  %914 = vset.pattern.permute.xlu0 4
  %915 = vperm.xlu0 %914, %v104
  %v916 = vpop.permute.xlu0 %915
  %v918 = vmul.f32 %v912, %v118
  %v919 = vmul.f32 %v912, %v122
  %v920 = vmul.f32 %v916, %v118
  %v921 = vmul.f32 %v916, %v122
  %v922 = vmul.f32 %v912, %v126
  %v923 = vmul.f32 %v912, %v130
  %v924 = vmul.f32 %v916, %v126
  %v925 = vmul.f32 %v916, %v130
  %v926 = vmul.f32 %v912, %v134
  %v927 = vmul.f32 %v912, %v138
  %v928 = vmul.f32 %v916, %v134
  %v929 = vmul.f32 %v916, %v138
  %v930 = vmul.f32 %v912, %v142
  %v931 = vmul.f32 %v912, %v146
  %v932 = vmul.f32 %v916, %v142
  %v933 = vmul.f32 %v916, %v146
  %v934 = vmul.f32 %v912, %v150
  %v935 = vmul.f32 %v912, %v154
  %v936 = vmul.f32 %v916, %v150
  %v937 = vmul.f32 %v916, %v154
  %v938 = vmul.f32 %v912, %v158
  %v939 = vmul.f32 %v912, %v162
  %v940 = vmul.f32 %v916, %v158
  %v941 = vmul.f32 %v916, %v162
  %v942 = vmul.f32 %v912, %v166
  %v943 = vmul.f32 %v912, %v170
  %v944 = vmul.f32 %v916, %v166
  %v945 = vmul.f32 %v916, %v170
  %v946 = vmul.f32 %v912, %v174
  %v947 = vmul.f32 %v912, %v178
  %v948 = vmul.f32 %v916, %v174
  %v949 = vmul.f32 %v916, %v178
  %982 = vrot.lane.b32.xlu0 %v918, 124
  %v983 = vpop.permute.xlu0 %982
  %984 = vrot.lane.b32.xlu0 %v919, 124
  %v985 = vpop.permute.xlu0 %984
  %986 = vrot.lane.b32.xlu0 %v920, 124
  %v987 = vpop.permute.xlu0 %986
  %988 = vrot.lane.b32.xlu0 %v921, 124
  %v989 = vpop.permute.xlu0 %988
  %990 = vrot.lane.b32.xlu0 %v922, 124
  %v991 = vpop.permute.xlu0 %990
  %992 = vrot.lane.b32.xlu0 %v923, 124
  %v993 = vpop.permute.xlu0 %992
  %994 = vrot.lane.b32.xlu0 %v924, 124
  %v995 = vpop.permute.xlu0 %994
  %996 = vrot.lane.b32.xlu0 %v925, 124
  %v997 = vpop.permute.xlu0 %996
  %998 = vrot.lane.b32.xlu0 %v926, 124
  %v999 = vpop.permute.xlu0 %998
  %1000 = vrot.lane.b32.xlu0 %v927, 124
  %v1001 = vpop.permute.xlu0 %1000
  %1002 = vrot.lane.b32.xlu0 %v928, 124
  %v1003 = vpop.permute.xlu0 %1002
  %1004 = vrot.lane.b32.xlu0 %v929, 124
  %v1005 = vpop.permute.xlu0 %1004
  %1006 = vrot.lane.b32.xlu0 %v930, 124
  %v1007 = vpop.permute.xlu0 %1006
  %1008 = vrot.lane.b32.xlu0 %v931, 124
  %v1009 = vpop.permute.xlu0 %1008
  %1010 = vrot.lane.b32.xlu0 %v932, 124
  %v1011 = vpop.permute.xlu0 %1010
  %1012 = vrot.lane.b32.xlu0 %v933, 124
  %v1013 = vpop.permute.xlu0 %1012
  %1014 = vrot.lane.b32.xlu0 %v934, 124
  %v1015 = vpop.permute.xlu0 %1014
  %1016 = vrot.lane.b32.xlu0 %v935, 124
  %v1017 = vpop.permute.xlu0 %1016
  %1018 = vrot.lane.b32.xlu0 %v936, 124
  %v1019 = vpop.permute.xlu0 %1018
  %1020 = vrot.lane.b32.xlu0 %v937, 124
  %v1021 = vpop.permute.xlu0 %1020
  %1022 = vrot.lane.b32.xlu0 %v938, 124
  %v1023 = vpop.permute.xlu0 %1022
  %1024 = vrot.lane.b32.xlu0 %v939, 124
  %v1025 = vpop.permute.xlu0 %1024
  %1026 = vrot.lane.b32.xlu0 %v940, 124
  %v1027 = vpop.permute.xlu0 %1026
  %1028 = vrot.lane.b32.xlu0 %v941, 124
  %v1029 = vpop.permute.xlu0 %1028
  %1030 = vrot.lane.b32.xlu0 %v942, 124
  %v1031 = vpop.permute.xlu0 %1030
  %1032 = vrot.lane.b32.xlu0 %v943, 124
  %v1033 = vpop.permute.xlu0 %1032
  %1034 = vrot.lane.b32.xlu0 %v944, 124
  %v1035 = vpop.permute.xlu0 %1034
  %1036 = vrot.lane.b32.xlu0 %v945, 124
  %v1037 = vpop.permute.xlu0 %1036
  %1038 = vrot.lane.b32.xlu0 %v946, 124
  %v1039 = vpop.permute.xlu0 %1038
  %1040 = vrot.lane.b32.xlu0 %v947, 124
  %v1041 = vpop.permute.xlu0 %1040
  %1042 = vrot.lane.b32.xlu0 %v948, 124
  %v1043 = vpop.permute.xlu0 %1042
  %1044 = vrot.lane.b32.xlu0 %v949, 124
  %v1045 = vpop.permute.xlu0 %1044
  %vm1046 = vcmask 1014784
  %v1047 = vsel %vm1046, %v983, %v985
  %v1048 = vsel %vm1046, %v987, %v989
  %v1049 = vsel %vm1046, %v991, %v993
  %v1050 = vsel %vm1046, %v995, %v997
  %v1051 = vsel %vm1046, %v999, %v1001
  %v1052 = vsel %vm1046, %v1003, %v1005
  %v1053 = vsel %vm1046, %v1007, %v1009
  %v1054 = vsel %vm1046, %v1011, %v1013
  %v1055 = vsel %vm1046, %v1015, %v1017
  %v1056 = vsel %vm1046, %v1019, %v1021
  %v1057 = vsel %vm1046, %v1023, %v1025
  %v1058 = vsel %vm1046, %v1027, %v1029
  %v1059 = vsel %vm1046, %v1031, %v1033
  %v1060 = vsel %vm1046, %v1035, %v1037
  %v1061 = vsel %vm1046, %v1039, %v1041
  %v1062 = vsel %vm1046, %v1043, %v1045
  %v1095 = vadd.f32 %v878, %v1047
  %v1096 = vadd.f32 %v879, %v985
  %v1097 = vadd.f32 %v880, %v1048
  %v1098 = vadd.f32 %v881, %v989
  %v1099 = vadd.f32 %v882, %v1049
  %v1100 = vadd.f32 %v883, %v993
  %v1101 = vadd.f32 %v884, %v1050
  %v1102 = vadd.f32 %v885, %v997
  %v1103 = vadd.f32 %v886, %v1051
  %v1104 = vadd.f32 %v887, %v1001
  %v1105 = vadd.f32 %v888, %v1052
  %v1106 = vadd.f32 %v889, %v1005
  %v1107 = vadd.f32 %v890, %v1053
  %v1108 = vadd.f32 %v891, %v1009
  %v1109 = vadd.f32 %v892, %v1054
  %v1110 = vadd.f32 %v893, %v1013
  %v1111 = vadd.f32 %v894, %v1055
  %v1112 = vadd.f32 %v895, %v1017
  %v1113 = vadd.f32 %v896, %v1056
  %v1114 = vadd.f32 %v897, %v1021
  %v1115 = vadd.f32 %v898, %v1057
  %v1116 = vadd.f32 %v899, %v1025
  %v1117 = vadd.f32 %v900, %v1058
  %v1118 = vadd.f32 %v901, %v1029
  %v1119 = vadd.f32 %v902, %v1059
  %v1120 = vadd.f32 %v903, %v1033
  %v1121 = vadd.f32 %v904, %v1060
  %v1122 = vadd.f32 %v905, %v1037
  %v1123 = vadd.f32 %v906, %v1061
  %v1124 = vadd.f32 %v907, %v1041
  %v1125 = vadd.f32 %v908, %v1062
  %v1126 = vadd.f32 %v909, %v1045
  %1127 = vset.pattern.permute.xlu0 5
  %1128 = vperm.xlu0 %1127, %v103
  %v1129 = vpop.permute.xlu0 %1128
  %1131 = vset.pattern.permute.xlu0 5
  %1132 = vperm.xlu0 %1131, %v104
  %v1133 = vpop.permute.xlu0 %1132
  %v1135 = vmul.f32 %v1129, %v118
  %v1136 = vmul.f32 %v1129, %v122
  %v1137 = vmul.f32 %v1133, %v118
  %v1138 = vmul.f32 %v1133, %v122
  %v1139 = vmul.f32 %v1129, %v126
  %v1140 = vmul.f32 %v1129, %v130
  %v1141 = vmul.f32 %v1133, %v126
  %v1142 = vmul.f32 %v1133, %v130
  %v1143 = vmul.f32 %v1129, %v134
  %v1144 = vmul.f32 %v1129, %v138
  %v1145 = vmul.f32 %v1133, %v134
  %v1146 = vmul.f32 %v1133, %v138
  %v1147 = vmul.f32 %v1129, %v142
  %v1148 = vmul.f32 %v1129, %v146
  %v1149 = vmul.f32 %v1133, %v142
  %v1150 = vmul.f32 %v1133, %v146
  %v1151 = vmul.f32 %v1129, %v150
  %v1152 = vmul.f32 %v1129, %v154
  %v1153 = vmul.f32 %v1133, %v150
  %v1154 = vmul.f32 %v1133, %v154
  %v1155 = vmul.f32 %v1129, %v158
  %v1156 = vmul.f32 %v1129, %v162
  %v1157 = vmul.f32 %v1133, %v158
  %v1158 = vmul.f32 %v1133, %v162
  %v1159 = vmul.f32 %v1129, %v166
  %v1160 = vmul.f32 %v1129, %v170
  %v1161 = vmul.f32 %v1133, %v166
  %v1162 = vmul.f32 %v1133, %v170
  %v1163 = vmul.f32 %v1129, %v174
  %v1164 = vmul.f32 %v1129, %v178
  %v1165 = vmul.f32 %v1133, %v174
  %v1166 = vmul.f32 %v1133, %v178
  %1199 = vrot.lane.b32.xlu0 %v1135, 123
  %v1200 = vpop.permute.xlu0 %1199
  %1201 = vrot.lane.b32.xlu0 %v1136, 123
  %v1202 = vpop.permute.xlu0 %1201
  %1203 = vrot.lane.b32.xlu0 %v1137, 123
  %v1204 = vpop.permute.xlu0 %1203
  %1205 = vrot.lane.b32.xlu0 %v1138, 123
  %v1206 = vpop.permute.xlu0 %1205
  %1207 = vrot.lane.b32.xlu0 %v1139, 123
  %v1208 = vpop.permute.xlu0 %1207
  %1209 = vrot.lane.b32.xlu0 %v1140, 123
  %v1210 = vpop.permute.xlu0 %1209
  %1211 = vrot.lane.b32.xlu0 %v1141, 123
  %v1212 = vpop.permute.xlu0 %1211
  %1213 = vrot.lane.b32.xlu0 %v1142, 123
  %v1214 = vpop.permute.xlu0 %1213
  %1215 = vrot.lane.b32.xlu0 %v1143, 123
  %v1216 = vpop.permute.xlu0 %1215
  %1217 = vrot.lane.b32.xlu0 %v1144, 123
  %v1218 = vpop.permute.xlu0 %1217
  %1219 = vrot.lane.b32.xlu0 %v1145, 123
  %v1220 = vpop.permute.xlu0 %1219
  %1221 = vrot.lane.b32.xlu0 %v1146, 123
  %v1222 = vpop.permute.xlu0 %1221
  %1223 = vrot.lane.b32.xlu0 %v1147, 123
  %v1224 = vpop.permute.xlu0 %1223
  %1225 = vrot.lane.b32.xlu0 %v1148, 123
  %v1226 = vpop.permute.xlu0 %1225
  %1227 = vrot.lane.b32.xlu0 %v1149, 123
  %v1228 = vpop.permute.xlu0 %1227
  %1229 = vrot.lane.b32.xlu0 %v1150, 123
  %v1230 = vpop.permute.xlu0 %1229
  %1231 = vrot.lane.b32.xlu0 %v1151, 123
  %v1232 = vpop.permute.xlu0 %1231
  %1233 = vrot.lane.b32.xlu0 %v1152, 123
  %v1234 = vpop.permute.xlu0 %1233
  %1235 = vrot.lane.b32.xlu0 %v1153, 123
  %v1236 = vpop.permute.xlu0 %1235
  %1237 = vrot.lane.b32.xlu0 %v1154, 123
  %v1238 = vpop.permute.xlu0 %1237
  %1239 = vrot.lane.b32.xlu0 %v1155, 123
  %v1240 = vpop.permute.xlu0 %1239
  %1241 = vrot.lane.b32.xlu0 %v1156, 123
  %v1242 = vpop.permute.xlu0 %1241
  %1243 = vrot.lane.b32.xlu0 %v1157, 123
  %v1244 = vpop.permute.xlu0 %1243
  %1245 = vrot.lane.b32.xlu0 %v1158, 123
  %v1246 = vpop.permute.xlu0 %1245
  %1247 = vrot.lane.b32.xlu0 %v1159, 123
  %v1248 = vpop.permute.xlu0 %1247
  %1249 = vrot.lane.b32.xlu0 %v1160, 123
  %v1250 = vpop.permute.xlu0 %1249
  %1251 = vrot.lane.b32.xlu0 %v1161, 123
  %v1252 = vpop.permute.xlu0 %1251
  %1253 = vrot.lane.b32.xlu0 %v1162, 123
  %v1254 = vpop.permute.xlu0 %1253
  %1255 = vrot.lane.b32.xlu0 %v1163, 123
  %v1256 = vpop.permute.xlu0 %1255
  %1257 = vrot.lane.b32.xlu0 %v1164, 123
  %v1258 = vpop.permute.xlu0 %1257
  %1259 = vrot.lane.b32.xlu0 %v1165, 123
  %v1260 = vpop.permute.xlu0 %1259
  %1261 = vrot.lane.b32.xlu0 %v1166, 123
  %v1262 = vpop.permute.xlu0 %1261
  %vm1263 = vcmask 1006592
  %v1264 = vsel %vm1263, %v1200, %v1202
  %v1265 = vsel %vm1263, %v1204, %v1206
  %v1266 = vsel %vm1263, %v1208, %v1210
  %v1267 = vsel %vm1263, %v1212, %v1214
  %v1268 = vsel %vm1263, %v1216, %v1218
  %v1269 = vsel %vm1263, %v1220, %v1222
  %v1270 = vsel %vm1263, %v1224, %v1226
  %v1271 = vsel %vm1263, %v1228, %v1230
  %v1272 = vsel %vm1263, %v1232, %v1234
  %v1273 = vsel %vm1263, %v1236, %v1238
  %v1274 = vsel %vm1263, %v1240, %v1242
  %v1275 = vsel %vm1263, %v1244, %v1246
  %v1276 = vsel %vm1263, %v1248, %v1250
  %v1277 = vsel %vm1263, %v1252, %v1254
  %v1278 = vsel %vm1263, %v1256, %v1258
  %v1279 = vsel %vm1263, %v1260, %v1262
  %v1312 = vadd.f32 %v1095, %v1264
  %v1313 = vadd.f32 %v1096, %v1202
  %v1314 = vadd.f32 %v1097, %v1265
  %v1315 = vadd.f32 %v1098, %v1206
  %v1316 = vadd.f32 %v1099, %v1266
  %v1317 = vadd.f32 %v1100, %v1210
  %v1318 = vadd.f32 %v1101, %v1267
  %v1319 = vadd.f32 %v1102, %v1214
  %v1320 = vadd.f32 %v1103, %v1268
  %v1321 = vadd.f32 %v1104, %v1218
  %v1322 = vadd.f32 %v1105, %v1269
  %v1323 = vadd.f32 %v1106, %v1222
  %v1324 = vadd.f32 %v1107, %v1270
  %v1325 = vadd.f32 %v1108, %v1226
  %v1326 = vadd.f32 %v1109, %v1271
  %v1327 = vadd.f32 %v1110, %v1230
  %v1328 = vadd.f32 %v1111, %v1272
  %v1329 = vadd.f32 %v1112, %v1234
  %v1330 = vadd.f32 %v1113, %v1273
  %v1331 = vadd.f32 %v1114, %v1238
  %v1332 = vadd.f32 %v1115, %v1274
  %v1333 = vadd.f32 %v1116, %v1242
  %v1334 = vadd.f32 %v1117, %v1275
  %v1335 = vadd.f32 %v1118, %v1246
  %v1336 = vadd.f32 %v1119, %v1276
  %v1337 = vadd.f32 %v1120, %v1250
  %v1338 = vadd.f32 %v1121, %v1277
  %v1339 = vadd.f32 %v1122, %v1254
  %v1340 = vadd.f32 %v1123, %v1278
  %v1341 = vadd.f32 %v1124, %v1258
  %v1342 = vadd.f32 %v1125, %v1279
  %v1343 = vadd.f32 %v1126, %v1262
  %1344 = vset.pattern.permute.xlu0 6
  %1345 = vperm.xlu0 %1344, %v103
  %v1346 = vpop.permute.xlu0 %1345
  %1348 = vset.pattern.permute.xlu0 6
  %1349 = vperm.xlu0 %1348, %v104
  %v1350 = vpop.permute.xlu0 %1349
  %v1352 = vmul.f32 %v1346, %v118
  %v1353 = vmul.f32 %v1346, %v122
  %v1354 = vmul.f32 %v1350, %v118
  %v1355 = vmul.f32 %v1350, %v122
  %v1356 = vmul.f32 %v1346, %v126
  %v1357 = vmul.f32 %v1346, %v130
  %v1358 = vmul.f32 %v1350, %v126
  %v1359 = vmul.f32 %v1350, %v130
  %v1360 = vmul.f32 %v1346, %v134
  %v1361 = vmul.f32 %v1346, %v138
  %v1362 = vmul.f32 %v1350, %v134
  %v1363 = vmul.f32 %v1350, %v138
  %v1364 = vmul.f32 %v1346, %v142
  %v1365 = vmul.f32 %v1346, %v146
  %v1366 = vmul.f32 %v1350, %v142
  %v1367 = vmul.f32 %v1350, %v146
  %v1368 = vmul.f32 %v1346, %v150
  %v1369 = vmul.f32 %v1346, %v154
  %v1370 = vmul.f32 %v1350, %v150
  %v1371 = vmul.f32 %v1350, %v154
  %v1372 = vmul.f32 %v1346, %v158
  %v1373 = vmul.f32 %v1346, %v162
  %v1374 = vmul.f32 %v1350, %v158
  %v1375 = vmul.f32 %v1350, %v162
  %v1376 = vmul.f32 %v1346, %v166
  %v1377 = vmul.f32 %v1346, %v170
  %v1378 = vmul.f32 %v1350, %v166
  %v1379 = vmul.f32 %v1350, %v170
  %v1380 = vmul.f32 %v1346, %v174
  %v1381 = vmul.f32 %v1346, %v178
  %v1382 = vmul.f32 %v1350, %v174
  %v1383 = vmul.f32 %v1350, %v178
  %1416 = vrot.lane.b32.xlu0 %v1352, 122
  %v1417 = vpop.permute.xlu0 %1416
  %1418 = vrot.lane.b32.xlu0 %v1353, 122
  %v1419 = vpop.permute.xlu0 %1418
  %1420 = vrot.lane.b32.xlu0 %v1354, 122
  %v1421 = vpop.permute.xlu0 %1420
  %1422 = vrot.lane.b32.xlu0 %v1355, 122
  %v1423 = vpop.permute.xlu0 %1422
  %1424 = vrot.lane.b32.xlu0 %v1356, 122
  %v1425 = vpop.permute.xlu0 %1424
  %1426 = vrot.lane.b32.xlu0 %v1357, 122
  %v1427 = vpop.permute.xlu0 %1426
  %1428 = vrot.lane.b32.xlu0 %v1358, 122
  %v1429 = vpop.permute.xlu0 %1428
  %1430 = vrot.lane.b32.xlu0 %v1359, 122
  %v1431 = vpop.permute.xlu0 %1430
  %1432 = vrot.lane.b32.xlu0 %v1360, 122
  %v1433 = vpop.permute.xlu0 %1432
  %1434 = vrot.lane.b32.xlu0 %v1361, 122
  %v1435 = vpop.permute.xlu0 %1434
  %1436 = vrot.lane.b32.xlu0 %v1362, 122
  %v1437 = vpop.permute.xlu0 %1436
  %1438 = vrot.lane.b32.xlu0 %v1363, 122
  %v1439 = vpop.permute.xlu0 %1438
  %1440 = vrot.lane.b32.xlu0 %v1364, 122
  %v1441 = vpop.permute.xlu0 %1440
  %1442 = vrot.lane.b32.xlu0 %v1365, 122
  %v1443 = vpop.permute.xlu0 %1442
  %1444 = vrot.lane.b32.xlu0 %v1366, 122
  %v1445 = vpop.permute.xlu0 %1444
  %1446 = vrot.lane.b32.xlu0 %v1367, 122
  %v1447 = vpop.permute.xlu0 %1446
  %1448 = vrot.lane.b32.xlu0 %v1368, 122
  %v1449 = vpop.permute.xlu0 %1448
  %1450 = vrot.lane.b32.xlu0 %v1369, 122
  %v1451 = vpop.permute.xlu0 %1450
  %1452 = vrot.lane.b32.xlu0 %v1370, 122
  %v1453 = vpop.permute.xlu0 %1452
  %1454 = vrot.lane.b32.xlu0 %v1371, 122
  %v1455 = vpop.permute.xlu0 %1454
  %1456 = vrot.lane.b32.xlu0 %v1372, 122
  %v1457 = vpop.permute.xlu0 %1456
  %1458 = vrot.lane.b32.xlu0 %v1373, 122
  %v1459 = vpop.permute.xlu0 %1458
  %1460 = vrot.lane.b32.xlu0 %v1374, 122
  %v1461 = vpop.permute.xlu0 %1460
  %1462 = vrot.lane.b32.xlu0 %v1375, 122
  %v1463 = vpop.permute.xlu0 %1462
  %1464 = vrot.lane.b32.xlu0 %v1376, 122
  %v1465 = vpop.permute.xlu0 %1464
  %1466 = vrot.lane.b32.xlu0 %v1377, 122
  %v1467 = vpop.permute.xlu0 %1466
  %1468 = vrot.lane.b32.xlu0 %v1378, 122
  %v1469 = vpop.permute.xlu0 %1468
  %1470 = vrot.lane.b32.xlu0 %v1379, 122
  %v1471 = vpop.permute.xlu0 %1470
  %1472 = vrot.lane.b32.xlu0 %v1380, 122
  %v1473 = vpop.permute.xlu0 %1472
  %1474 = vrot.lane.b32.xlu0 %v1381, 122
  %v1475 = vpop.permute.xlu0 %1474
  %1476 = vrot.lane.b32.xlu0 %v1382, 122
  %v1477 = vpop.permute.xlu0 %1476
  %1478 = vrot.lane.b32.xlu0 %v1383, 122
  %v1479 = vpop.permute.xlu0 %1478
  %vm1480 = vcmask 998400
  %v1481 = vsel %vm1480, %v1417, %v1419
  %v1482 = vsel %vm1480, %v1421, %v1423
  %v1483 = vsel %vm1480, %v1425, %v1427
  %v1484 = vsel %vm1480, %v1429, %v1431
  %v1485 = vsel %vm1480, %v1433, %v1435
  %v1486 = vsel %vm1480, %v1437, %v1439
  %v1487 = vsel %vm1480, %v1441, %v1443
  %v1488 = vsel %vm1480, %v1445, %v1447
  %v1489 = vsel %vm1480, %v1449, %v1451
  %v1490 = vsel %vm1480, %v1453, %v1455
  %v1491 = vsel %vm1480, %v1457, %v1459
  %v1492 = vsel %vm1480, %v1461, %v1463
  %v1493 = vsel %vm1480, %v1465, %v1467
  %v1494 = vsel %vm1480, %v1469, %v1471
  %v1495 = vsel %vm1480, %v1473, %v1475
  %v1496 = vsel %vm1480, %v1477, %v1479
  %v1529 = vadd.f32 %v1312, %v1481
  %v1530 = vadd.f32 %v1313, %v1419
  %v1531 = vadd.f32 %v1314, %v1482
  %v1532 = vadd.f32 %v1315, %v1423
  %v1533 = vadd.f32 %v1316, %v1483
  %v1534 = vadd.f32 %v1317, %v1427
  %v1535 = vadd.f32 %v1318, %v1484
  %v1536 = vadd.f32 %v1319, %v1431
  %v1537 = vadd.f32 %v1320, %v1485
  %v1538 = vadd.f32 %v1321, %v1435
  %v1539 = vadd.f32 %v1322, %v1486
  %v1540 = vadd.f32 %v1323, %v1439
  %v1541 = vadd.f32 %v1324, %v1487
  %v1542 = vadd.f32 %v1325, %v1443
  %v1543 = vadd.f32 %v1326, %v1488
  %v1544 = vadd.f32 %v1327, %v1447
  %v1545 = vadd.f32 %v1328, %v1489
  %v1546 = vadd.f32 %v1329, %v1451
  %v1547 = vadd.f32 %v1330, %v1490
  %v1548 = vadd.f32 %v1331, %v1455
  %v1549 = vadd.f32 %v1332, %v1491
  %v1550 = vadd.f32 %v1333, %v1459
  %v1551 = vadd.f32 %v1334, %v1492
  %v1552 = vadd.f32 %v1335, %v1463
  %v1553 = vadd.f32 %v1336, %v1493
  %v1554 = vadd.f32 %v1337, %v1467
  %v1555 = vadd.f32 %v1338, %v1494
  %v1556 = vadd.f32 %v1339, %v1471
  %v1557 = vadd.f32 %v1340, %v1495
  %v1558 = vadd.f32 %v1341, %v1475
  %v1559 = vadd.f32 %v1342, %v1496
  %v1560 = vadd.f32 %v1343, %v1479
  %1561 = vset.pattern.permute.xlu0 7
  %1562 = vperm.xlu0 %1561, %v103
  %v1563 = vpop.permute.xlu0 %1562
  %1565 = vset.pattern.permute.xlu0 7
  %1566 = vperm.xlu0 %1565, %v104
  %v1567 = vpop.permute.xlu0 %1566
  %v1569 = vmul.f32 %v1563, %v118
  %v1570 = vmul.f32 %v1563, %v122
  %v1571 = vmul.f32 %v1567, %v118
  %v1572 = vmul.f32 %v1567, %v122
  %v1573 = vmul.f32 %v1563, %v126
  %v1574 = vmul.f32 %v1563, %v130
  %v1575 = vmul.f32 %v1567, %v126
  %v1576 = vmul.f32 %v1567, %v130
  %v1577 = vmul.f32 %v1563, %v134
  %v1578 = vmul.f32 %v1563, %v138
  %v1579 = vmul.f32 %v1567, %v134
  %v1580 = vmul.f32 %v1567, %v138
  %v1581 = vmul.f32 %v1563, %v142
  %v1582 = vmul.f32 %v1563, %v146
  %v1583 = vmul.f32 %v1567, %v142
  %v1584 = vmul.f32 %v1567, %v146
  %v1585 = vmul.f32 %v1563, %v150
  %v1586 = vmul.f32 %v1563, %v154
  %v1587 = vmul.f32 %v1567, %v150
  %v1588 = vmul.f32 %v1567, %v154
  %v1589 = vmul.f32 %v1563, %v158
  %v1590 = vmul.f32 %v1563, %v162
  %v1591 = vmul.f32 %v1567, %v158
  %v1592 = vmul.f32 %v1567, %v162
  %v1593 = vmul.f32 %v1563, %v166
  %v1594 = vmul.f32 %v1563, %v170
  %v1595 = vmul.f32 %v1567, %v166
  %v1596 = vmul.f32 %v1567, %v170
  %v1597 = vmul.f32 %v1563, %v174
  %v1598 = vmul.f32 %v1563, %v178
  %v1599 = vmul.f32 %v1567, %v174
  %v1600 = vmul.f32 %v1567, %v178
  %1633 = vrot.lane.b32.xlu0 %v1569, 121
  %v1634 = vpop.permute.xlu0 %1633
  %1635 = vrot.lane.b32.xlu0 %v1570, 121
  %v1636 = vpop.permute.xlu0 %1635
  %1637 = vrot.lane.b32.xlu0 %v1571, 121
  %v1638 = vpop.permute.xlu0 %1637
  %1639 = vrot.lane.b32.xlu0 %v1572, 121
  %v1640 = vpop.permute.xlu0 %1639
  %1641 = vrot.lane.b32.xlu0 %v1573, 121
  %v1642 = vpop.permute.xlu0 %1641
  %1643 = vrot.lane.b32.xlu0 %v1574, 121
  %v1644 = vpop.permute.xlu0 %1643
  %1645 = vrot.lane.b32.xlu0 %v1575, 121
  %v1646 = vpop.permute.xlu0 %1645
  %1647 = vrot.lane.b32.xlu0 %v1576, 121
  %v1648 = vpop.permute.xlu0 %1647
  %1649 = vrot.lane.b32.xlu0 %v1577, 121
  %v1650 = vpop.permute.xlu0 %1649
  %1651 = vrot.lane.b32.xlu0 %v1578, 121
  %v1652 = vpop.permute.xlu0 %1651
  %1653 = vrot.lane.b32.xlu0 %v1579, 121
  %v1654 = vpop.permute.xlu0 %1653
  %1655 = vrot.lane.b32.xlu0 %v1580, 121
  %v1656 = vpop.permute.xlu0 %1655
  %1657 = vrot.lane.b32.xlu0 %v1581, 121
  %v1658 = vpop.permute.xlu0 %1657
  %1659 = vrot.lane.b32.xlu0 %v1582, 121
  %v1660 = vpop.permute.xlu0 %1659
  %1661 = vrot.lane.b32.xlu0 %v1583, 121
  %v1662 = vpop.permute.xlu0 %1661
  %1663 = vrot.lane.b32.xlu0 %v1584, 121
  %v1664 = vpop.permute.xlu0 %1663
  %1665 = vrot.lane.b32.xlu0 %v1585, 121
  %v1666 = vpop.permute.xlu0 %1665
  %1667 = vrot.lane.b32.xlu0 %v1586, 121
  %v1668 = vpop.permute.xlu0 %1667
  %1669 = vrot.lane.b32.xlu0 %v1587, 121
  %v1670 = vpop.permute.xlu0 %1669
  %1671 = vrot.lane.b32.xlu0 %v1588, 121
  %v1672 = vpop.permute.xlu0 %1671
  %1673 = vrot.lane.b32.xlu0 %v1589, 121
  %v1674 = vpop.permute.xlu0 %1673
  %1675 = vrot.lane.b32.xlu0 %v1590, 121
  %v1676 = vpop.permute.xlu0 %1675
  %1677 = vrot.lane.b32.xlu0 %v1591, 121
  %v1678 = vpop.permute.xlu0 %1677
  %1679 = vrot.lane.b32.xlu0 %v1592, 121
  %v1680 = vpop.permute.xlu0 %1679
  %1681 = vrot.lane.b32.xlu0 %v1593, 121
  %v1682 = vpop.permute.xlu0 %1681
  %1683 = vrot.lane.b32.xlu0 %v1594, 121
  %v1684 = vpop.permute.xlu0 %1683
  %1685 = vrot.lane.b32.xlu0 %v1595, 121
  %v1686 = vpop.permute.xlu0 %1685
  %1687 = vrot.lane.b32.xlu0 %v1596, 121
  %v1688 = vpop.permute.xlu0 %1687
  %1689 = vrot.lane.b32.xlu0 %v1597, 121
  %v1690 = vpop.permute.xlu0 %1689
  %1691 = vrot.lane.b32.xlu0 %v1598, 121
  %v1692 = vpop.permute.xlu0 %1691
  %1693 = vrot.lane.b32.xlu0 %v1599, 121
  %v1694 = vpop.permute.xlu0 %1693
  %1695 = vrot.lane.b32.xlu0 %v1600, 121
  %v1696 = vpop.permute.xlu0 %1695
  %vm1697 = vcmask 990208
  %v1698 = vsel %vm1697, %v1634, %v1636
  %v1699 = vsel %vm1697, %v1638, %v1640
  %v1700 = vsel %vm1697, %v1642, %v1644
  %v1701 = vsel %vm1697, %v1646, %v1648
  %v1702 = vsel %vm1697, %v1650, %v1652
  %v1703 = vsel %vm1697, %v1654, %v1656
  %v1704 = vsel %vm1697, %v1658, %v1660
  %v1705 = vsel %vm1697, %v1662, %v1664
  %v1706 = vsel %vm1697, %v1666, %v1668
  %v1707 = vsel %vm1697, %v1670, %v1672
  %v1708 = vsel %vm1697, %v1674, %v1676
  %v1709 = vsel %vm1697, %v1678, %v1680
  %v1710 = vsel %vm1697, %v1682, %v1684
  %v1711 = vsel %vm1697, %v1686, %v1688
  %v1712 = vsel %vm1697, %v1690, %v1692
  %v1713 = vsel %vm1697, %v1694, %v1696
  %v1746 = vadd.f32 %v1529, %v1698
  %v1747 = vadd.f32 %v1530, %v1636
  %v1748 = vadd.f32 %v1531, %v1699
  %v1749 = vadd.f32 %v1532, %v1640
  %v1750 = vadd.f32 %v1533, %v1700
  %v1751 = vadd.f32 %v1534, %v1644
  %v1752 = vadd.f32 %v1535, %v1701
  %v1753 = vadd.f32 %v1536, %v1648
  %v1754 = vadd.f32 %v1537, %v1702
  %v1755 = vadd.f32 %v1538, %v1652
  %v1756 = vadd.f32 %v1539, %v1703
  %v1757 = vadd.f32 %v1540, %v1656
  %v1758 = vadd.f32 %v1541, %v1704
  %v1759 = vadd.f32 %v1542, %v1660
  %v1760 = vadd.f32 %v1543, %v1705
  %v1761 = vadd.f32 %v1544, %v1664
  %v1762 = vadd.f32 %v1545, %v1706
  %v1763 = vadd.f32 %v1546, %v1668
  %v1764 = vadd.f32 %v1547, %v1707
  %v1765 = vadd.f32 %v1548, %v1672
  %v1766 = vadd.f32 %v1549, %v1708
  %v1767 = vadd.f32 %v1550, %v1676
  %v1768 = vadd.f32 %v1551, %v1709
  %v1769 = vadd.f32 %v1552, %v1680
  %v1770 = vadd.f32 %v1553, %v1710
  %v1771 = vadd.f32 %v1554, %v1684
  %v1772 = vadd.f32 %v1555, %v1711
  %v1773 = vadd.f32 %v1556, %v1688
  %v1774 = vadd.f32 %v1557, %v1712
  %v1775 = vadd.f32 %v1558, %v1692
  %v1776 = vadd.f32 %v1559, %v1713
  %v1777 = vadd.f32 %v1560, %v1696
  %v1778 = vmax.f32 %v1746, 0.0
  %v1779 = vmax.f32 %v1747, 0.0
  %v1780 = vmax.f32 %v1748, 0.0
  %v1781 = vmax.f32 %v1749, 0.0
  %v1782 = vmax.f32 %v1750, 0.0
  %v1783 = vmax.f32 %v1751, 0.0
  %v1784 = vmax.f32 %v1752, 0.0
  %v1785 = vmax.f32 %v1753, 0.0
  %v1786 = vmax.f32 %v1754, 0.0
  %v1787 = vmax.f32 %v1755, 0.0
  %v1788 = vmax.f32 %v1756, 0.0
  %v1789 = vmax.f32 %v1757, 0.0
  %v1790 = vmax.f32 %v1758, 0.0
  %v1791 = vmax.f32 %v1759, 0.0
  %v1792 = vmax.f32 %v1760, 0.0
  %v1793 = vmax.f32 %v1761, 0.0
  %v1794 = vmax.f32 %v1762, 0.0
  %v1795 = vmax.f32 %v1763, 0.0
  %v1796 = vmax.f32 %v1764, 0.0
  %v1797 = vmax.f32 %v1765, 0.0
  %v1798 = vmax.f32 %v1766, 0.0
  %v1799 = vmax.f32 %v1767, 0.0
  %v1800 = vmax.f32 %v1768, 0.0
  %v1801 = vmax.f32 %v1769, 0.0
  %v1802 = vmax.f32 %v1770, 0.0
  %v1803 = vmax.f32 %v1771, 0.0
  %v1804 = vmax.f32 %v1772, 0.0
  %v1805 = vmax.f32 %v1773, 0.0
  %v1806 = vmax.f32 %v1774, 0.0
  %v1807 = vmax.f32 %v1775, 0.0
  %v1808 = vmax.f32 %v1776, 0.0
  %v1809 = vmax.f32 %v1777, 0.0
  %v1810 = vpack.c.bf16 %v1780, %v1778
  %v1811 = vpack.c.bf16 %v1781, %v1779
  %v1812 = vpack.c.bf16 %v1784, %v1782
  %v1813 = vpack.c.bf16 %v1785, %v1783
  %v1814 = vpack.c.bf16 %v1788, %v1786
  %v1815 = vpack.c.bf16 %v1789, %v1787
  %v1816 = vpack.c.bf16 %v1792, %v1790
  %v1817 = vpack.c.bf16 %v1793, %v1791
  %v1818 = vpack.c.bf16 %v1796, %v1794
  %v1819 = vpack.c.bf16 %v1797, %v1795
  %v1820 = vpack.c.bf16 %v1800, %v1798
  %v1821 = vpack.c.bf16 %v1801, %v1799
  %v1822 = vpack.c.bf16 %v1804, %v1802
  %v1823 = vpack.c.bf16 %v1805, %v1803
  %v1824 = vpack.c.bf16 %v1808, %v1806
  %v1825 = vpack.c.bf16 %v1809, %v1807
  %v1826 = vld [vmem:[%s3] sm:$0xff]
  %v1827 = vld [vmem:[%s3 + $0x8] sm:$0xff]
  %v1828 = vld [vmem:[%s3 + $0x10] sm:$0xff]
  %v1829 = vld [vmem:[%s3 + $0x18] sm:$0xff]
  %v1830 = vld [vmem:[%s3 + $0x20] sm:$0xff]
  %v1831 = vld [vmem:[%s3 + $0x28] sm:$0xff]
  %v1832 = vld [vmem:[%s3 + $0x30] sm:$0xff]
  %v1833 = vld [vmem:[%s3 + $0x38] sm:$0xff]
  %v1834 = vld [vmem:[%s3 + $0x40] sm:$0xff]
  %v1835 = vld [vmem:[%s3 + $0x48] sm:$0xff]
  %v1836 = vld [vmem:[%s3 + $0x50] sm:$0xff]
  %v1837 = vld [vmem:[%s3 + $0x58] sm:$0xff]
  %v1838 = vld [vmem:[%s3 + $0x60] sm:$0xff]
  %v1839 = vld [vmem:[%s3 + $0x68] sm:$0xff]
  %v1840 = vld [vmem:[%s3 + $0x70] sm:$0xff]
  %v1841 = vld [vmem:[%s3 + $0x78] sm:$0xff]
  %v1842 = vld [vmem:[%s3 + $0x80] sm:$0xff]
  %v1843 = vld [vmem:[%s3 + $0x88] sm:$0xff]
  %v1844 = vld [vmem:[%s3 + $0x90] sm:$0xff]
  %v1845 = vld [vmem:[%s3 + $0x98] sm:$0xff]
  %v1846 = vld [vmem:[%s3 + $0xa0] sm:$0xff]
  %v1847 = vld [vmem:[%s3 + $0xa8] sm:$0xff]
  %v1848 = vld [vmem:[%s3 + $0xb0] sm:$0x33]
  %v1872 = vunpack.c.l.b16 %v1826
  %v1873 = vunpack.c.h.b16 %v1826
  %v1874 = vunpack.c.l.b16 %v1827
  %v1875 = vunpack.c.h.b16 %v1827
  %v1876 = vunpack.c.l.b16 %v1828
  %v1877 = vunpack.c.h.b16 %v1828
  %v1878 = vunpack.c.l.b16 %v1829
  %v1879 = vunpack.c.h.b16 %v1829
  %v1880 = vunpack.c.l.b16 %v1830
  %v1881 = vunpack.c.h.b16 %v1830
  %v1882 = vunpack.c.l.b16 %v1831
  %v1883 = vunpack.c.h.b16 %v1831
  %v1884 = vunpack.c.l.b16 %v1832
  %v1885 = vunpack.c.h.b16 %v1832
  %v1886 = vunpack.c.l.b16 %v1833
  %v1887 = vunpack.c.h.b16 %v1833
  %v1888 = vunpack.c.l.b16 %v1834
  %v1889 = vunpack.c.h.b16 %v1834
  %v1890 = vunpack.c.l.b16 %v1835
  %v1891 = vunpack.c.h.b16 %v1835
  %v1892 = vunpack.c.l.b16 %v1836
  %v1893 = vunpack.c.h.b16 %v1836
  %v1894 = vunpack.c.l.b16 %v1837
  %v1895 = vunpack.c.h.b16 %v1837
  %v1896 = vunpack.c.l.b16 %v1838
  %v1897 = vunpack.c.h.b16 %v1838
  %v1898 = vunpack.c.l.b16 %v1839
  %v1899 = vunpack.c.h.b16 %v1839
  %v1900 = vunpack.c.l.b16 %v1840
  %v1901 = vunpack.c.h.b16 %v1840
  %v1902 = vunpack.c.l.b16 %v1841
  %v1903 = vunpack.c.h.b16 %v1841
  %v1904 = vunpack.c.l.b16 %v1842
  %v1905 = vunpack.c.h.b16 %v1842
  %v1906 = vunpack.c.l.b16 %v1843
  %v1907 = vunpack.c.h.b16 %v1843
  %v1908 = vunpack.c.l.b16 %v1844
  %v1909 = vunpack.c.h.b16 %v1844
  %v1910 = vunpack.c.l.b16 %v1845
  %v1911 = vunpack.c.h.b16 %v1845
  %v1912 = vunpack.c.l.b16 %v1846
  %v1913 = vunpack.c.h.b16 %v1846
  %v1914 = vunpack.c.l.b16 %v1847
  %v1915 = vunpack.c.h.b16 %v1847
  %v1916 = vunpack.c.l.b16 %v1848
  %v1917 = vunpack.c.h.b16 %v1848
  %v1918 = vpack.c.b16 %v1874, %v1872
  %v1919 = vpack.c.b16 %v1875, %v1873
  %v1920 = vpack.c.b16 %v1878, %v1876
  %v1921 = vpack.c.b16 %v1879, %v1877
  %v1922 = vpack.c.b16 %v1882, %v1880
  %v1923 = vpack.c.b16 %v1883, %v1881
  %v1924 = vpack.c.b16 %v1886, %v1884
  %v1925 = vpack.c.b16 %v1887, %v1885
  %v1926 = vpack.c.b16 %v1890, %v1888
  %v1927 = vpack.c.b16 %v1891, %v1889
  %v1928 = vpack.c.b16 %v1894, %v1892
  %v1929 = vpack.c.b16 %v1895, %v1893
  %v1930 = vpack.c.b16 %v1898, %v1896
  %v1931 = vpack.c.b16 %v1899, %v1897
  %v1932 = vpack.c.b16 %v1902, %v1900
  %v1933 = vpack.c.b16 %v1903, %v1901
  %v1934 = vpack.c.b16 %v1906, %v1904
  %v1935 = vpack.c.b16 %v1907, %v1905
  %v1936 = vpack.c.b16 %v1910, %v1908
  %v1937 = vpack.c.b16 %v1911, %v1909
  %v1938 = vpack.c.b16 %v1914, %v1912
  %v1939 = vpack.c.b16 %v1915, %v1913
  %v1940 = vpack.c.b16 %v1916, %v1916
  %v1941 = vpack.c.b16 %v1917, %v1917
  %vm1964 = vcmask 416768
  %v1966 = vsel %vm1964, %v1811, 0
  %v1969 = vsel %vm1964, %v1813, 0
  %v1972 = vsel %vm1964, %v1815, 0
  %v1975 = vsel %vm1964, %v1817, 0
  %v1978 = vsel %vm1964, %v1819, 0
  %v1981 = vsel %vm1964, %v1821, 0
  %v1984 = vsel %vm1964, %v1823, 0
  %v1987 = vsel %vm1964, %v1825, 0
  %vm1989 = vcmask 1040384
  %vm1990 = vcmask 1041408
  %v1991 = vsel %vm1989, 4294967295, 65535
  %v1992 = vsel %vm1990, %v1991, 0
  %v1994 = vand.u32 %v1940, %v1992
  %v1997 = vand.u32 %v1941, %v1992
  %1999 = vmatprep.subr.bf16.mxu0 %v1919
  %2000 = vmatpush1.bf16.msra.mxu0 %v1918
  %2001 = vmatprep.subr.bf16.mxu0 %v1921
  %2002 = vmatpush1.bf16.msra.mxu0 %v1920
  %2003 = vmatprep.subr.bf16.mxu0 %v1923
  %2004 = vmatpush1.bf16.msra.mxu0 %v1922
  %2005 = vmatprep.subr.bf16.mxu0 %v1925
  %2006 = vmatpush1.bf16.msra.mxu0 %v1924
  %2007 = vmatprep.subr.bf16.mxu0 %v1927
  %2008 = vmatpush1.bf16.msra.mxu0 %v1926
  %2009 = vmatprep.subr.bf16.mxu0 %v1929
  %2010 = vmatpush1.bf16.msra.mxu0 %v1928
  %2011 = vmatprep.subr.bf16.mxu0 %v1931
  %2012 = vmatpush1.bf16.msra.mxu0 %v1930
  %2013 = vmatprep.subr.bf16.mxu0 %v1933
  %2014 = vmatpush1.bf16.msra.mxu0 %v1932
  %2015 = vmatprep.subr.bf16.mxu0 %v1935
  %2016 = vmatpush1.bf16.msra.mxu0 %v1934
  %2017 = vmatprep.subr.bf16.mxu0 %v1937
  %2018 = vmatpush1.bf16.msra.mxu0 %v1936
  %2019 = vmatprep.subr.bf16.mxu0 %v1939
  %2020 = vmatpush1.bf16.msra.mxu0 %v1938
  %2021 = vmatprep.subr.bf16.mxu0 %v1997
  %2022 = vmatpush1.bf16.msra.mxu0 %v1994
  %2023 = vmatprep.subr.bf16.mxu0 0
  %2024 = vmatpush1.bf16.msra.mxu0 0
  %2025 = vmatprep.subr.bf16.mxu0 0
  %2026 = vmatpush1.bf16.msra.mxu0 0
  %2027 = vmatprep.subr.bf16.mxu0 0
  %2028 = vmatpush1.bf16.msra.mxu0 0
  %2029 = vmatprep.subr.bf16.mxu0 0
  %2030 = vmatpush1.bf16.msra.mxu0 0
  %2031 = vmatprep.mubr.bf16.mxu0 %v1966
  %2032 = vmatmul.mubr.bf16.gmra.mrb[0].mxu0 %v1810
  %v2033 = vpop.f32.mrb[0].mxu0
  %v2034 = vadd.f32 0.0, %v2033
  %v2035 = vpop.f32.mrb[0].mxu0
  %v2036 = vadd.f32 0.0, %v2035
  %v2037 = vpop.f32.mrb[0].mxu0
  %v2038 = vadd.f32 0.0, %v2037
  %v2039 = vpop.f32.mrb[0].mxu0
  %v2040 = vadd.f32 0.0, %v2039
  %2041 = vmatprep.mubr.bf16.mxu0 %v1969
  %2042 = vmatmul.mubr.bf16.gmra.mrb[0].mxu0 %v1812
  %v2043 = vpop.f32.mrb[0].mxu0
  %v2044 = vadd.f32 0.0, %v2043
  %v2045 = vpop.f32.mrb[0].mxu0
  %v2046 = vadd.f32 0.0, %v2045
  %v2047 = vpop.f32.mrb[0].mxu0
  %v2048 = vadd.f32 0.0, %v2047
  %v2049 = vpop.f32.mrb[0].mxu0
  %v2050 = vadd.f32 0.0, %v2049
  %2051 = vmatprep.mubr.bf16.mxu0 %v1972
  %2052 = vmatmul.mubr.bf16.gmra.mrb[0].mxu0 %v1814
  %v2053 = vpop.f32.mrb[0].mxu0
  %v2054 = vadd.f32 0.0, %v2053
  %v2055 = vpop.f32.mrb[0].mxu0
  %v2056 = vadd.f32 0.0, %v2055
  %v2057 = vpop.f32.mrb[0].mxu0
  %v2058 = vadd.f32 0.0, %v2057
  %v2059 = vpop.f32.mrb[0].mxu0
  %v2060 = vadd.f32 0.0, %v2059
  %2061 = vmatprep.mubr.bf16.mxu0 %v1975
  %2062 = vmatmul.mubr.bf16.gmra.mrb[0].mxu0 %v1816
  %v2063 = vpop.f32.mrb[0].mxu0
  %v2064 = vadd.f32 0.0, %v2063
  %v2065 = vpop.f32.mrb[0].mxu0
  %v2066 = vadd.f32 0.0, %v2065
  %v2067 = vpop.f32.mrb[0].mxu0
  %v2068 = vadd.f32 0.0, %v2067
  %v2069 = vpop.f32.mrb[0].mxu0
  %v2070 = vadd.f32 0.0, %v2069
  %2071 = vmatprep.mubr.bf16.mxu0 %v1978
  %2072 = vmatmul.mubr.bf16.gmra.mrb[0].mxu0 %v1818
  %v2073 = vpop.f32.mrb[0].mxu0
  %v2074 = vadd.f32 0.0, %v2073
  %v2075 = vpop.f32.mrb[0].mxu0
  %v2076 = vadd.f32 0.0, %v2075
  %v2077 = vpop.f32.mrb[0].mxu0
  %v2078 = vadd.f32 0.0, %v2077
  %v2079 = vpop.f32.mrb[0].mxu0
  %v2080 = vadd.f32 0.0, %v2079
  %2081 = vmatprep.mubr.bf16.mxu0 %v1981
  %2082 = vmatmul.mubr.bf16.gmra.mrb[0].mxu0 %v1820
  %v2083 = vpop.f32.mrb[0].mxu0
  %v2084 = vadd.f32 0.0, %v2083
  %v2085 = vpop.f32.mrb[0].mxu0
  %v2086 = vadd.f32 0.0, %v2085
  %v2087 = vpop.f32.mrb[0].mxu0
  %v2088 = vadd.f32 0.0, %v2087
  %v2089 = vpop.f32.mrb[0].mxu0
  %v2090 = vadd.f32 0.0, %v2089
  %2091 = vmatprep.mubr.bf16.mxu0 %v1984
  %2092 = vmatmul.mubr.bf16.gmra.mrb[0].mxu0 %v1822
  %v2093 = vpop.f32.mrb[0].mxu0
  %v2094 = vadd.f32 0.0, %v2093
  %v2095 = vpop.f32.mrb[0].mxu0
  %v2096 = vadd.f32 0.0, %v2095
  %v2097 = vpop.f32.mrb[0].mxu0
  %v2098 = vadd.f32 0.0, %v2097
  %v2099 = vpop.f32.mrb[0].mxu0
  %v2100 = vadd.f32 0.0, %v2099
  %2101 = vmatprep.mubr.bf16.mxu0 %v1987
  %2102 = vmatmul.mubr.bf16.gmra.mrb[0].mxu0 %v1824
  %v2103 = vpop.f32.mrb[0].mxu0
  %v2104 = vadd.f32 0.0, %v2103
  %v2105 = vpop.f32.mrb[0].mxu0
  %v2106 = vadd.f32 0.0, %v2105
  %v2107 = vpop.f32.mrb[0].mxu0
  %v2108 = vadd.f32 0.0, %v2107
  %v2109 = vpop.f32.mrb[0].mxu0
  %v2110 = vadd.f32 0.0, %v2109
  %2111 = vdwg.mxu0
  %v2112 = vmax.f32 %v2034, %v2036
  %v2113 = vmax.f32 %v2038, %v2040
  %v2114 = vmax.f32 %v2044, %v2046
  %v2115 = vmax.f32 %v2048, %v2050
  %v2116 = vmax.f32 %v2054, %v2056
  %v2117 = vmax.f32 %v2058, %v2060
  %v2118 = vmax.f32 %v2064, %v2066
  %v2119 = vmax.f32 %v2068, %v2070
  %v2120 = vmax.f32 %v2074, %v2076
  %v2121 = vmax.f32 %v2078, %v2080
  %v2122 = vmax.f32 %v2084, %v2086
  %v2123 = vmax.f32 %v2088, %v2090
  %v2124 = vmax.f32 %v2094, %v2096
  %v2125 = vmax.f32 %v2098, %v2100
  %v2126 = vmax.f32 %v2104, %v2106
  %v2127 = vmax.f32 %v2108, %v2110
  %v2128 = vpack.c.bf16 %v2113, %v2112
  %v2129 = vpack.c.bf16 %v2115, %v2114
  %v2130 = vpack.c.bf16 %v2117, %v2116
  %v2131 = vpack.c.bf16 %v2119, %v2118
  %v2132 = vpack.c.bf16 %v2121, %v2120
  %v2133 = vpack.c.bf16 %v2123, %v2122
  %v2134 = vpack.c.bf16 %v2125, %v2124
  %v2135 = vpack.c.bf16 %v2127, %v2126
  %2144 = vrot.lane.b32.xlu0 %v2128, 127
  %v2145 = vpop.permute.xlu0 %2144
  %2146 = vrot.lane.b32.xlu0 %v2129, 127
  %v2147 = vpop.permute.xlu0 %2146
  %2148 = vrot.lane.b32.xlu0 %v2130, 127
  %v2149 = vpop.permute.xlu0 %2148
  %2150 = vrot.lane.b32.xlu0 %v2131, 127
  %v2151 = vpop.permute.xlu0 %2150
  %2152 = vrot.lane.b32.xlu0 %v2132, 127
  %v2153 = vpop.permute.xlu0 %2152
  %2154 = vrot.lane.b32.xlu0 %v2133, 127
  %v2155 = vpop.permute.xlu0 %2154
  %2156 = vrot.lane.b32.xlu0 %v2134, 127
  %v2157 = vpop.permute.xlu0 %2156
  %2158 = vrot.lane.b32.xlu0 %v2135, 127
  %v2159 = vpop.permute.xlu0 %2158
  %2168 = vrot.lane.b32.xlu0 %v2128, 126
  %v2169 = vpop.permute.xlu0 %2168
  %2170 = vrot.lane.b32.xlu0 %v2129, 126
  %v2171 = vpop.permute.xlu0 %2170
  %2172 = vrot.lane.b32.xlu0 %v2130, 126
  %v2173 = vpop.permute.xlu0 %2172
  %2174 = vrot.lane.b32.xlu0 %v2131, 126
  %v2175 = vpop.permute.xlu0 %2174
  %2176 = vrot.lane.b32.xlu0 %v2132, 126
  %v2177 = vpop.permute.xlu0 %2176
  %2178 = vrot.lane.b32.xlu0 %v2133, 126
  %v2179 = vpop.permute.xlu0 %2178
  %2180 = vrot.lane.b32.xlu0 %v2134, 126
  %v2181 = vpop.permute.xlu0 %2180
  %2182 = vrot.lane.b32.xlu0 %v2135, 126
  %v2183 = vpop.permute.xlu0 %2182
  %2192 = vrot.lane.b32.xlu0 %v2128, 125
  %v2193 = vpop.permute.xlu0 %2192
  %2194 = vrot.lane.b32.xlu0 %v2129, 125
  %v2195 = vpop.permute.xlu0 %2194
  %2196 = vrot.lane.b32.xlu0 %v2130, 125
  %v2197 = vpop.permute.xlu0 %2196
  %2198 = vrot.lane.b32.xlu0 %v2131, 125
  %v2199 = vpop.permute.xlu0 %2198
  %2200 = vrot.lane.b32.xlu0 %v2132, 125
  %v2201 = vpop.permute.xlu0 %2200
  %2202 = vrot.lane.b32.xlu0 %v2133, 125
  %v2203 = vpop.permute.xlu0 %2202
  %2204 = vrot.lane.b32.xlu0 %v2134, 125
  %v2205 = vpop.permute.xlu0 %2204
  %2206 = vrot.lane.b32.xlu0 %v2135, 125
  %v2207 = vpop.permute.xlu0 %2206
  %2216 = vrot.lane.b32.xlu0 %v2128, 124
  %v2217 = vpop.permute.xlu0 %2216
  %2218 = vrot.lane.b32.xlu0 %v2129, 124
  %v2219 = vpop.permute.xlu0 %2218
  %2220 = vrot.lane.b32.xlu0 %v2130, 124
  %v2221 = vpop.permute.xlu0 %2220
  %2222 = vrot.lane.b32.xlu0 %v2131, 124
  %v2223 = vpop.permute.xlu0 %2222
  %2224 = vrot.lane.b32.xlu0 %v2132, 124
  %v2225 = vpop.permute.xlu0 %2224
  %2226 = vrot.lane.b32.xlu0 %v2133, 124
  %v2227 = vpop.permute.xlu0 %2226
  %2228 = vrot.lane.b32.xlu0 %v2134, 124
  %v2229 = vpop.permute.xlu0 %2228
  %2230 = vrot.lane.b32.xlu0 %v2135, 124
  %v2231 = vpop.permute.xlu0 %2230
  %2240 = vrot.lane.b32.xlu0 %v2128, 123
  %v2241 = vpop.permute.xlu0 %2240
  %2242 = vrot.lane.b32.xlu0 %v2129, 123
  %v2243 = vpop.permute.xlu0 %2242
  %2244 = vrot.lane.b32.xlu0 %v2130, 123
  %v2245 = vpop.permute.xlu0 %2244
  %2246 = vrot.lane.b32.xlu0 %v2131, 123
  %v2247 = vpop.permute.xlu0 %2246
  %2248 = vrot.lane.b32.xlu0 %v2132, 123
  %v2249 = vpop.permute.xlu0 %2248
  %2250 = vrot.lane.b32.xlu0 %v2133, 123
  %v2251 = vpop.permute.xlu0 %2250
  %2252 = vrot.lane.b32.xlu0 %v2134, 123
  %v2253 = vpop.permute.xlu0 %2252
  %2254 = vrot.lane.b32.xlu0 %v2135, 123
  %v2255 = vpop.permute.xlu0 %2254
  %2264 = vrot.lane.b32.xlu0 %v2128, 122
  %v2265 = vpop.permute.xlu0 %2264
  %2266 = vrot.lane.b32.xlu0 %v2129, 122
  %v2267 = vpop.permute.xlu0 %2266
  %2268 = vrot.lane.b32.xlu0 %v2130, 122
  %v2269 = vpop.permute.xlu0 %2268
  %2270 = vrot.lane.b32.xlu0 %v2131, 122
  %v2271 = vpop.permute.xlu0 %2270
  %2272 = vrot.lane.b32.xlu0 %v2132, 122
  %v2273 = vpop.permute.xlu0 %2272
  %2274 = vrot.lane.b32.xlu0 %v2133, 122
  %v2275 = vpop.permute.xlu0 %2274
  %2276 = vrot.lane.b32.xlu0 %v2134, 122
  %v2277 = vpop.permute.xlu0 %2276
  %2278 = vrot.lane.b32.xlu0 %v2135, 122
  %v2279 = vpop.permute.xlu0 %2278
  %2288 = vrot.lane.b32.xlu0 %v2128, 121
  %v2289 = vpop.permute.xlu0 %2288
  %2290 = vrot.lane.b32.xlu0 %v2129, 121
  %v2291 = vpop.permute.xlu0 %2290
  %2292 = vrot.lane.b32.xlu0 %v2130, 121
  %v2293 = vpop.permute.xlu0 %2292
  %2294 = vrot.lane.b32.xlu0 %v2131, 121
  %v2295 = vpop.permute.xlu0 %2294
  %2296 = vrot.lane.b32.xlu0 %v2132, 121
  %v2297 = vpop.permute.xlu0 %2296
  %2298 = vrot.lane.b32.xlu0 %v2133, 121
  %v2299 = vpop.permute.xlu0 %2298
  %2300 = vrot.lane.b32.xlu0 %v2134, 121
  %v2301 = vpop.permute.xlu0 %2300
  %2302 = vrot.lane.b32.xlu0 %v2135, 121
  %v2303 = vpop.permute.xlu0 %2302
  %v2312 = vld [vmem:[%s2] sm:$0xf]
  %v2313 = vld [vmem:[%s2 + $0x4] sm:$0xf]
  %v2314 = vld [vmem:[%s2 + $0x8] sm:$0xf]
  %v2315 = vld [vmem:[%s2 + $0xc] sm:$0xf]
  %v2320 = vunpack.c.l.b16 %v2312
  %v2321 = vunpack.c.l.b16 %v2313
  %v2322 = vunpack.c.l.b16 %v2314
  %v2323 = vunpack.c.l.b16 %v2315
  %v2324 = vpack.c.b16 %v2321, %v2320
  %v2325 = vpack.c.b16 %v2323, %v2322
  %2328 = vmatprep.subr.bf16.mxu0 0
  %2329 = vmatpush1.bf16.msra.mxu0 %v2128
  %2330 = vmatprep.subr.bf16.mxu0 0
  %2331 = vmatpush1.bf16.msra.mxu0 %v2145
  %2332 = vmatprep.subr.bf16.mxu0 0
  %2333 = vmatpush1.bf16.msra.mxu0 %v2169
  %2334 = vmatprep.subr.bf16.mxu0 0
  %2335 = vmatpush1.bf16.msra.mxu0 %v2193
  %2336 = vmatprep.subr.bf16.mxu0 0
  %2337 = vmatpush1.bf16.msra.mxu0 %v2217
  %2338 = vmatprep.subr.bf16.mxu0 0
  %2339 = vmatpush1.bf16.msra.mxu0 %v2241
  %2340 = vmatprep.subr.bf16.mxu0 0
  %2341 = vmatpush1.bf16.msra.mxu0 %v2265
  %2342 = vmatprep.subr.bf16.mxu0 0
  %2343 = vmatpush1.bf16.msra.mxu0 %v2289
  %2344 = vmatprep.subr.bf16.mxu0 0
  %2345 = vmatpush1.bf16.msra.mxu0 0
  %2346 = vmatprep.subr.bf16.mxu0 0
  %2347 = vmatpush1.bf16.msra.mxu0 0
  %2348 = vmatprep.subr.bf16.mxu0 0
  %2349 = vmatpush1.bf16.msra.mxu0 0
  %2350 = vmatprep.subr.bf16.mxu0 0
  %2351 = vmatpush1.bf16.msra.mxu0 0
  %2352 = vmatprep.subr.bf16.mxu0 0
  %2353 = vmatpush1.bf16.msra.mxu0 0
  %2354 = vmatprep.subr.bf16.mxu0 0
  %2355 = vmatpush1.bf16.msra.mxu0 0
  %2356 = vmatprep.subr.bf16.mxu0 0
  %2357 = vmatpush1.bf16.msra.mxu0 0
  %2358 = vmatprep.subr.bf16.mxu0 0
  %2359 = vmatpush1.bf16.msra.mxu0 0
  %2360 = vmatprep.mubr.bf16.mxu0 0
  %2361 = vmatmul.mubr.bf16.gmra.mrb[0].mxu0 %v2324
  %v2362 = vpop.f32.mrb[0].mxu0
  %v2363 = vadd.f32 0.0, %v2362
  %v2364 = vpop.f32.mrb[0].mxu0
  %v2365 = vpop.f32.mrb[0].mxu0
  %v2366 = vadd.f32 0.0, %v2365
  %v2367 = vpop.f32.mrb[0].mxu0
  %2368 = vmatprep.mubr.bf16.mxu0 0
  %2369 = vmatmul.mubr.bf16.gmra.mrb[0].mxu0 %v2325
  %v2370 = vpop.f32.mrb[0].mxu0
  %v2371 = vadd.f32 0.0, %v2370
  %v2372 = vpop.f32.mrb[0].mxu0
  %v2373 = vpop.f32.mrb[0].mxu0
  %v2374 = vadd.f32 0.0, %v2373
  %v2375 = vpop.f32.mrb[0].mxu0
  %2376 = vdwg.mxu0
  %2377 = vmatprep.subr.bf16.mxu0 0
  %2378 = vmatpush1.bf16.msra.mxu0 %v2129
  %2379 = vmatprep.subr.bf16.mxu0 0
  %2380 = vmatpush1.bf16.msra.mxu0 %v2147
  %2381 = vmatprep.subr.bf16.mxu0 0
  %2382 = vmatpush1.bf16.msra.mxu0 %v2171
  %2383 = vmatprep.subr.bf16.mxu0 0
  %2384 = vmatpush1.bf16.msra.mxu0 %v2195
  %2385 = vmatprep.subr.bf16.mxu0 0
  %2386 = vmatpush1.bf16.msra.mxu0 %v2219
  %2387 = vmatprep.subr.bf16.mxu0 0
  %2388 = vmatpush1.bf16.msra.mxu0 %v2243
  %2389 = vmatprep.subr.bf16.mxu0 0
  %2390 = vmatpush1.bf16.msra.mxu0 %v2267
  %2391 = vmatprep.subr.bf16.mxu0 0
  %2392 = vmatpush1.bf16.msra.mxu0 %v2291
  %2393 = vmatprep.subr.bf16.mxu0 0
  %2394 = vmatpush1.bf16.msra.mxu0 0
  %2395 = vmatprep.subr.bf16.mxu0 0
  %2396 = vmatpush1.bf16.msra.mxu0 0
  %2397 = vmatprep.subr.bf16.mxu0 0
  %2398 = vmatpush1.bf16.msra.mxu0 0
  %2399 = vmatprep.subr.bf16.mxu0 0
  %2400 = vmatpush1.bf16.msra.mxu0 0
  %2401 = vmatprep.subr.bf16.mxu0 0
  %2402 = vmatpush1.bf16.msra.mxu0 0
  %2403 = vmatprep.subr.bf16.mxu0 0
  %2404 = vmatpush1.bf16.msra.mxu0 0
  %2405 = vmatprep.subr.bf16.mxu0 0
  %2406 = vmatpush1.bf16.msra.mxu0 0
  %2407 = vmatprep.subr.bf16.mxu0 0
  %2408 = vmatpush1.bf16.msra.mxu0 0
  %2409 = vmatprep.mubr.bf16.mxu0 0
  %2410 = vmatmul.mubr.bf16.gmra.mrb[0].mxu0 %v2324
  %v2411 = vpop.f32.mrb[0].mxu0
  %v2412 = vadd.f32 0.0, %v2411
  %v2413 = vpop.f32.mrb[0].mxu0
  %v2414 = vpop.f32.mrb[0].mxu0
  %v2415 = vadd.f32 0.0, %v2414
  %v2416 = vpop.f32.mrb[0].mxu0
  %2417 = vmatprep.mubr.bf16.mxu0 0
  %2418 = vmatmul.mubr.bf16.gmra.mrb[0].mxu0 %v2325
  %v2419 = vpop.f32.mrb[0].mxu0
  %v2420 = vadd.f32 0.0, %v2419
  %v2421 = vpop.f32.mrb[0].mxu0
  %v2422 = vpop.f32.mrb[0].mxu0
  %v2423 = vadd.f32 0.0, %v2422
  %v2424 = vpop.f32.mrb[0].mxu0
  %2425 = vdwg.mxu0
  %2426 = vmatprep.subr.bf16.mxu0 0
  %2427 = vmatpush1.bf16.msra.mxu0 %v2130
  %2428 = vmatprep.subr.bf16.mxu0 0
  %2429 = vmatpush1.bf16.msra.mxu0 %v2149
  %2430 = vmatprep.subr.bf16.mxu0 0
  %2431 = vmatpush1.bf16.msra.mxu0 %v2173
  %2432 = vmatprep.subr.bf16.mxu0 0
  %2433 = vmatpush1.bf16.msra.mxu0 %v2197
  %2434 = vmatprep.subr.bf16.mxu0 0
  %2435 = vmatpush1.bf16.msra.mxu0 %v2221
  %2436 = vmatprep.subr.bf16.mxu0 0
  %2437 = vmatpush1.bf16.msra.mxu0 %v2245
  %2438 = vmatprep.subr.bf16.mxu0 0
  %2439 = vmatpush1.bf16.msra.mxu0 %v2269
  %2440 = vmatprep.subr.bf16.mxu0 0
  %2441 = vmatpush1.bf16.msra.mxu0 %v2293
  %2442 = vmatprep.subr.bf16.mxu0 0
  %2443 = vmatpush1.bf16.msra.mxu0 0
  %2444 = vmatprep.subr.bf16.mxu0 0
  %2445 = vmatpush1.bf16.msra.mxu0 0
  %2446 = vmatprep.subr.bf16.mxu0 0
  %2447 = vmatpush1.bf16.msra.mxu0 0
  %2448 = vmatprep.subr.bf16.mxu0 0
  %2449 = vmatpush1.bf16.msra.mxu0 0
  %2450 = vmatprep.subr.bf16.mxu0 0
  %2451 = vmatpush1.bf16.msra.mxu0 0
  %2452 = vmatprep.subr.bf16.mxu0 0
  %2453 = vmatpush1.bf16.msra.mxu0 0
  %2454 = vmatprep.subr.bf16.mxu0 0
  %2455 = vmatpush1.bf16.msra.mxu0 0
  %2456 = vmatprep.subr.bf16.mxu0 0
  %2457 = vmatpush1.bf16.msra.mxu0 0
  %2458 = vmatprep.mubr.bf16.mxu0 0
  %2459 = vmatmul.mubr.bf16.gmra.mrb[0].mxu0 %v2324
  %v2460 = vpop.f32.mrb[0].mxu0
  %v2461 = vadd.f32 0.0, %v2460
  %v2462 = vpop.f32.mrb[0].mxu0
  %v2463 = vpop.f32.mrb[0].mxu0
  %v2464 = vadd.f32 0.0, %v2463
  %v2465 = vpop.f32.mrb[0].mxu0
  %2466 = vmatprep.mubr.bf16.mxu0 0
  %2467 = vmatmul.mubr.bf16.gmra.mrb[0].mxu0 %v2325
  %v2468 = vpop.f32.mrb[0].mxu0
  %v2469 = vadd.f32 0.0, %v2468
  %v2470 = vpop.f32.mrb[0].mxu0
  %v2471 = vpop.f32.mrb[0].mxu0
  %v2472 = vadd.f32 0.0, %v2471
  %v2473 = vpop.f32.mrb[0].mxu0
  %2474 = vdwg.mxu0
  %2475 = vmatprep.subr.bf16.mxu0 0
  %2476 = vmatpush1.bf16.msra.mxu0 %v2131
  %2477 = vmatprep.subr.bf16.mxu0 0
  %2478 = vmatpush1.bf16.msra.mxu0 %v2151
  %2479 = vmatprep.subr.bf16.mxu0 0
  %2480 = vmatpush1.bf16.msra.mxu0 %v2175
  %2481 = vmatprep.subr.bf16.mxu0 0
  %2482 = vmatpush1.bf16.msra.mxu0 %v2199
  %2483 = vmatprep.subr.bf16.mxu0 0
  %2484 = vmatpush1.bf16.msra.mxu0 %v2223
  %2485 = vmatprep.subr.bf16.mxu0 0
  %2486 = vmatpush1.bf16.msra.mxu0 %v2247
  %2487 = vmatprep.subr.bf16.mxu0 0
  %2488 = vmatpush1.bf16.msra.mxu0 %v2271
  %2489 = vmatprep.subr.bf16.mxu0 0
  %2490 = vmatpush1.bf16.msra.mxu0 %v2295
  %2491 = vmatprep.subr.bf16.mxu0 0
  %2492 = vmatpush1.bf16.msra.mxu0 0
  %2493 = vmatprep.subr.bf16.mxu0 0
  %2494 = vmatpush1.bf16.msra.mxu0 0
  %2495 = vmatprep.subr.bf16.mxu0 0
  %2496 = vmatpush1.bf16.msra.mxu0 0
  %2497 = vmatprep.subr.bf16.mxu0 0
  %2498 = vmatpush1.bf16.msra.mxu0 0
  %2499 = vmatprep.subr.bf16.mxu0 0
  %2500 = vmatpush1.bf16.msra.mxu0 0
  %2501 = vmatprep.subr.bf16.mxu0 0
  %2502 = vmatpush1.bf16.msra.mxu0 0
  %2503 = vmatprep.subr.bf16.mxu0 0
  %2504 = vmatpush1.bf16.msra.mxu0 0
  %2505 = vmatprep.subr.bf16.mxu0 0
  %2506 = vmatpush1.bf16.msra.mxu0 0
  %2507 = vmatprep.mubr.bf16.mxu0 0
  %2508 = vmatmul.mubr.bf16.gmra.mrb[0].mxu0 %v2324
  %v2509 = vpop.f32.mrb[0].mxu0
  %v2510 = vadd.f32 0.0, %v2509
  %v2511 = vpop.f32.mrb[0].mxu0
  %v2512 = vpop.f32.mrb[0].mxu0
  %v2513 = vadd.f32 0.0, %v2512
  %v2514 = vpop.f32.mrb[0].mxu0
  %2515 = vmatprep.mubr.bf16.mxu0 0
  %2516 = vmatmul.mubr.bf16.gmra.mrb[0].mxu0 %v2325
  %v2517 = vpop.f32.mrb[0].mxu0
  %v2518 = vadd.f32 0.0, %v2517
  %v2519 = vpop.f32.mrb[0].mxu0
  %v2520 = vpop.f32.mrb[0].mxu0
  %v2521 = vadd.f32 0.0, %v2520
  %v2522 = vpop.f32.mrb[0].mxu0
  %2523 = vdwg.mxu0
  %2524 = vmatprep.subr.bf16.mxu0 0
  %2525 = vmatpush1.bf16.msra.mxu0 %v2132
  %2526 = vmatprep.subr.bf16.mxu0 0
  %2527 = vmatpush1.bf16.msra.mxu0 %v2153
  %2528 = vmatprep.subr.bf16.mxu0 0
  %2529 = vmatpush1.bf16.msra.mxu0 %v2177
  %2530 = vmatprep.subr.bf16.mxu0 0
  %2531 = vmatpush1.bf16.msra.mxu0 %v2201
  %2532 = vmatprep.subr.bf16.mxu0 0
  %2533 = vmatpush1.bf16.msra.mxu0 %v2225
  %2534 = vmatprep.subr.bf16.mxu0 0
  %2535 = vmatpush1.bf16.msra.mxu0 %v2249
  %2536 = vmatprep.subr.bf16.mxu0 0
  %2537 = vmatpush1.bf16.msra.mxu0 %v2273
  %2538 = vmatprep.subr.bf16.mxu0 0
  %2539 = vmatpush1.bf16.msra.mxu0 %v2297
  %2540 = vmatprep.subr.bf16.mxu0 0
  %2541 = vmatpush1.bf16.msra.mxu0 0
  %2542 = vmatprep.subr.bf16.mxu0 0
  %2543 = vmatpush1.bf16.msra.mxu0 0
  %2544 = vmatprep.subr.bf16.mxu0 0
  %2545 = vmatpush1.bf16.msra.mxu0 0
  %2546 = vmatprep.subr.bf16.mxu0 0
  %2547 = vmatpush1.bf16.msra.mxu0 0
  %2548 = vmatprep.subr.bf16.mxu0 0
  %2549 = vmatpush1.bf16.msra.mxu0 0
  %2550 = vmatprep.subr.bf16.mxu0 0
  %2551 = vmatpush1.bf16.msra.mxu0 0
  %2552 = vmatprep.subr.bf16.mxu0 0
  %2553 = vmatpush1.bf16.msra.mxu0 0
  %2554 = vmatprep.subr.bf16.mxu0 0
  %2555 = vmatpush1.bf16.msra.mxu0 0
  %2556 = vmatprep.mubr.bf16.mxu0 0
  %2557 = vmatmul.mubr.bf16.gmra.mrb[0].mxu0 %v2324
  %v2558 = vpop.f32.mrb[0].mxu0
  %v2559 = vadd.f32 0.0, %v2558
  %v2560 = vpop.f32.mrb[0].mxu0
  %v2561 = vpop.f32.mrb[0].mxu0
  %v2562 = vadd.f32 0.0, %v2561
  %v2563 = vpop.f32.mrb[0].mxu0
  %2564 = vmatprep.mubr.bf16.mxu0 0
  %2565 = vmatmul.mubr.bf16.gmra.mrb[0].mxu0 %v2325
  %v2566 = vpop.f32.mrb[0].mxu0
  %v2567 = vadd.f32 0.0, %v2566
  %v2568 = vpop.f32.mrb[0].mxu0
  %v2569 = vpop.f32.mrb[0].mxu0
  %v2570 = vadd.f32 0.0, %v2569
  %v2571 = vpop.f32.mrb[0].mxu0
  %2572 = vdwg.mxu0
  %2573 = vmatprep.subr.bf16.mxu0 0
  %2574 = vmatpush1.bf16.msra.mxu0 %v2133
  %2575 = vmatprep.subr.bf16.mxu0 0
  %2576 = vmatpush1.bf16.msra.mxu0 %v2155
  %2577 = vmatprep.subr.bf16.mxu0 0
  %2578 = vmatpush1.bf16.msra.mxu0 %v2179
  %2579 = vmatprep.subr.bf16.mxu0 0
  %2580 = vmatpush1.bf16.msra.mxu0 %v2203
  %2581 = vmatprep.subr.bf16.mxu0 0
  %2582 = vmatpush1.bf16.msra.mxu0 %v2227
  %2583 = vmatprep.subr.bf16.mxu0 0
  %2584 = vmatpush1.bf16.msra.mxu0 %v2251
  %2585 = vmatprep.subr.bf16.mxu0 0
  %2586 = vmatpush1.bf16.msra.mxu0 %v2275
  %2587 = vmatprep.subr.bf16.mxu0 0
  %2588 = vmatpush1.bf16.msra.mxu0 %v2299
  %2589 = vmatprep.subr.bf16.mxu0 0
  %2590 = vmatpush1.bf16.msra.mxu0 0
  %2591 = vmatprep.subr.bf16.mxu0 0
  %2592 = vmatpush1.bf16.msra.mxu0 0
  %2593 = vmatprep.subr.bf16.mxu0 0
  %2594 = vmatpush1.bf16.msra.mxu0 0
  %2595 = vmatprep.subr.bf16.mxu0 0
  %2596 = vmatpush1.bf16.msra.mxu0 0
  %2597 = vmatprep.subr.bf16.mxu0 0
  %2598 = vmatpush1.bf16.msra.mxu0 0
  %2599 = vmatprep.subr.bf16.mxu0 0
  %2600 = vmatpush1.bf16.msra.mxu0 0
  %2601 = vmatprep.subr.bf16.mxu0 0
  %2602 = vmatpush1.bf16.msra.mxu0 0
  %2603 = vmatprep.subr.bf16.mxu0 0
  %2604 = vmatpush1.bf16.msra.mxu0 0
  %2605 = vmatprep.mubr.bf16.mxu0 0
  %2606 = vmatmul.mubr.bf16.gmra.mrb[0].mxu0 %v2324
  %v2607 = vpop.f32.mrb[0].mxu0
  %v2608 = vadd.f32 0.0, %v2607
  %v2609 = vpop.f32.mrb[0].mxu0
  %v2610 = vpop.f32.mrb[0].mxu0
  %v2611 = vadd.f32 0.0, %v2610
  %v2612 = vpop.f32.mrb[0].mxu0
  %2613 = vmatprep.mubr.bf16.mxu0 0
  %2614 = vmatmul.mubr.bf16.gmra.mrb[0].mxu0 %v2325
  %v2615 = vpop.f32.mrb[0].mxu0
  %v2616 = vadd.f32 0.0, %v2615
  %v2617 = vpop.f32.mrb[0].mxu0
  %v2618 = vpop.f32.mrb[0].mxu0
  %v2619 = vadd.f32 0.0, %v2618
  %v2620 = vpop.f32.mrb[0].mxu0
  %2621 = vdwg.mxu0
  %2622 = vmatprep.subr.bf16.mxu0 0
  %2623 = vmatpush1.bf16.msra.mxu0 %v2134
  %2624 = vmatprep.subr.bf16.mxu0 0
  %2625 = vmatpush1.bf16.msra.mxu0 %v2157
  %2626 = vmatprep.subr.bf16.mxu0 0
  %2627 = vmatpush1.bf16.msra.mxu0 %v2181
  %2628 = vmatprep.subr.bf16.mxu0 0
  %2629 = vmatpush1.bf16.msra.mxu0 %v2205
  %2630 = vmatprep.subr.bf16.mxu0 0
  %2631 = vmatpush1.bf16.msra.mxu0 %v2229
  %2632 = vmatprep.subr.bf16.mxu0 0
  %2633 = vmatpush1.bf16.msra.mxu0 %v2253
  %2634 = vmatprep.subr.bf16.mxu0 0
  %2635 = vmatpush1.bf16.msra.mxu0 %v2277
  %2636 = vmatprep.subr.bf16.mxu0 0
  %2637 = vmatpush1.bf16.msra.mxu0 %v2301
  %2638 = vmatprep.subr.bf16.mxu0 0
  %2639 = vmatpush1.bf16.msra.mxu0 0
  %2640 = vmatprep.subr.bf16.mxu0 0
  %2641 = vmatpush1.bf16.msra.mxu0 0
  %2642 = vmatprep.subr.bf16.mxu0 0
  %2643 = vmatpush1.bf16.msra.mxu0 0
  %2644 = vmatprep.subr.bf16.mxu0 0
  %2645 = vmatpush1.bf16.msra.mxu0 0
  %2646 = vmatprep.subr.bf16.mxu0 0
  %2647 = vmatpush1.bf16.msra.mxu0 0
  %2648 = vmatprep.subr.bf16.mxu0 0
  %2649 = vmatpush1.bf16.msra.mxu0 0
  %2650 = vmatprep.subr.bf16.mxu0 0
  %2651 = vmatpush1.bf16.msra.mxu0 0
  %2652 = vmatprep.subr.bf16.mxu0 0
  %2653 = vmatpush1.bf16.msra.mxu0 0
  %2654 = vmatprep.mubr.bf16.mxu0 0
  %2655 = vmatmul.mubr.bf16.gmra.mrb[0].mxu0 %v2324
  %v2656 = vpop.f32.mrb[0].mxu0
  %v2657 = vadd.f32 0.0, %v2656
  %v2658 = vpop.f32.mrb[0].mxu0
  %v2659 = vpop.f32.mrb[0].mxu0
  %v2660 = vadd.f32 0.0, %v2659
  %v2661 = vpop.f32.mrb[0].mxu0
  %2662 = vmatprep.mubr.bf16.mxu0 0
  %2663 = vmatmul.mubr.bf16.gmra.mrb[0].mxu0 %v2325
  %v2664 = vpop.f32.mrb[0].mxu0
  %v2665 = vadd.f32 0.0, %v2664
  %v2666 = vpop.f32.mrb[0].mxu0
  %v2667 = vpop.f32.mrb[0].mxu0
  %v2668 = vadd.f32 0.0, %v2667
  %v2669 = vpop.f32.mrb[0].mxu0
  %2670 = vdwg.mxu0
  %2671 = vmatprep.subr.bf16.mxu0 0
  %2672 = vmatpush1.bf16.msra.mxu0 %v2135
  %2673 = vmatprep.subr.bf16.mxu0 0
  %2674 = vmatpush1.bf16.msra.mxu0 %v2159
  %2675 = vmatprep.subr.bf16.mxu0 0
  %2676 = vmatpush1.bf16.msra.mxu0 %v2183
  %2677 = vmatprep.subr.bf16.mxu0 0
  %2678 = vmatpush1.bf16.msra.mxu0 %v2207
  %2679 = vmatprep.subr.bf16.mxu0 0
  %2680 = vmatpush1.bf16.msra.mxu0 %v2231
  %2681 = vmatprep.subr.bf16.mxu0 0
  %2682 = vmatpush1.bf16.msra.mxu0 %v2255
  %2683 = vmatprep.subr.bf16.mxu0 0
  %2684 = vmatpush1.bf16.msra.mxu0 %v2279
  %2685 = vmatprep.subr.bf16.mxu0 0
  %2686 = vmatpush1.bf16.msra.mxu0 %v2303
  %2687 = vmatprep.subr.bf16.mxu0 0
  %2688 = vmatpush1.bf16.msra.mxu0 0
  %2689 = vmatprep.subr.bf16.mxu0 0
  %2690 = vmatpush1.bf16.msra.mxu0 0
  %2691 = vmatprep.subr.bf16.mxu0 0
  %2692 = vmatpush1.bf16.msra.mxu0 0
  %2693 = vmatprep.subr.bf16.mxu0 0
  %2694 = vmatpush1.bf16.msra.mxu0 0
  %2695 = vmatprep.subr.bf16.mxu0 0
  %2696 = vmatpush1.bf16.msra.mxu0 0
  %2697 = vmatprep.subr.bf16.mxu0 0
  %2698 = vmatpush1.bf16.msra.mxu0 0
  %2699 = vmatprep.subr.bf16.mxu0 0
  %2700 = vmatpush1.bf16.msra.mxu0 0
  %2701 = vmatprep.subr.bf16.mxu0 0
  %2702 = vmatpush1.bf16.msra.mxu0 0
  %2703 = vmatprep.mubr.bf16.mxu0 0
  %2704 = vmatmul.mubr.bf16.gmra.mrb[0].mxu0 %v2324
  %v2705 = vpop.f32.mrb[0].mxu0
  %v2706 = vadd.f32 0.0, %v2705
  %v2707 = vpop.f32.mrb[0].mxu0
  %v2708 = vpop.f32.mrb[0].mxu0
  %v2709 = vadd.f32 0.0, %v2708
  %v2710 = vpop.f32.mrb[0].mxu0
  %2711 = vmatprep.mubr.bf16.mxu0 0
  %2712 = vmatmul.mubr.bf16.gmra.mrb[0].mxu0 %v2325
  %v2713 = vpop.f32.mrb[0].mxu0
  %v2714 = vadd.f32 0.0, %v2713
  %v2715 = vpop.f32.mrb[0].mxu0
  %v2716 = vpop.f32.mrb[0].mxu0
  %v2717 = vadd.f32 0.0, %v2716
  %v2718 = vpop.f32.mrb[0].mxu0
  %2719 = vdwg.mxu0
  %v2720 = vmax.f32 %v2363, 0.0
  %v2721 = vmax.f32 %v2366, 0.0
  %v2722 = vmax.f32 %v2371, 0.0
  %v2723 = vmax.f32 %v2374, 0.0
  %v2724 = vmax.f32 %v2412, 0.0
  %v2725 = vmax.f32 %v2415, 0.0
  %v2726 = vmax.f32 %v2420, 0.0
  %v2727 = vmax.f32 %v2423, 0.0
  %v2728 = vmax.f32 %v2461, 0.0
  %v2729 = vmax.f32 %v2464, 0.0
  %v2730 = vmax.f32 %v2469, 0.0
  %v2731 = vmax.f32 %v2472, 0.0
  %v2732 = vmax.f32 %v2510, 0.0
  %v2733 = vmax.f32 %v2513, 0.0
  %v2734 = vmax.f32 %v2518, 0.0
  %v2735 = vmax.f32 %v2521, 0.0
  %v2736 = vmax.f32 %v2559, 0.0
  %v2737 = vmax.f32 %v2562, 0.0
  %v2738 = vmax.f32 %v2567, 0.0
  %v2739 = vmax.f32 %v2570, 0.0
  %v2740 = vmax.f32 %v2608, 0.0
  %v2741 = vmax.f32 %v2611, 0.0
  %v2742 = vmax.f32 %v2616, 0.0
  %v2743 = vmax.f32 %v2619, 0.0
  %v2744 = vmax.f32 %v2657, 0.0
  %v2745 = vmax.f32 %v2660, 0.0
  %v2746 = vmax.f32 %v2665, 0.0
  %v2747 = vmax.f32 %v2668, 0.0
  %v2748 = vmax.f32 %v2706, 0.0
  %v2749 = vmax.f32 %v2709, 0.0
  %v2750 = vmax.f32 %v2714, 0.0
  %v2751 = vmax.f32 %v2717, 0.0
  %v2752 = vpack.c.bf16 %v2721, %v2720
  %v2753 = vpack.c.bf16 %v2723, %v2722
  %v2754 = vpack.c.bf16 %v2725, %v2724
  %v2755 = vpack.c.bf16 %v2727, %v2726
  %v2756 = vpack.c.bf16 %v2729, %v2728
  %v2757 = vpack.c.bf16 %v2731, %v2730
  %v2758 = vpack.c.bf16 %v2733, %v2732
  %v2759 = vpack.c.bf16 %v2735, %v2734
  %v2760 = vpack.c.bf16 %v2737, %v2736
  %v2761 = vpack.c.bf16 %v2739, %v2738
  %v2762 = vpack.c.bf16 %v2741, %v2740
  %v2763 = vpack.c.bf16 %v2743, %v2742
  %v2764 = vpack.c.bf16 %v2745, %v2744
  %v2765 = vpack.c.bf16 %v2747, %v2746
  %v2766 = vpack.c.bf16 %v2749, %v2748
  %v2767 = vpack.c.bf16 %v2751, %v2750
  %v2768 = vld [vmem:[%s4] sm:$0xff]
  %v2769 = vld [vmem:[%s4 + $0x8] sm:$0xff]
  %v2770 = vld [vmem:[%s4 + $0x10] sm:$0xff]
  %v2771 = vld [vmem:[%s4 + $0x18] sm:$0xff]
  %v2772 = vld [vmem:[%s4 + $0x20] sm:$0xff]
  %v2773 = vld [vmem:[%s4 + $0x28] sm:$0xff]
  %v2774 = vld [vmem:[%s4 + $0x30] sm:$0xff]
  %v2775 = vld [vmem:[%s4 + $0x38] sm:$0xff]
  %v2776 = vld [vmem:[%s4 + $0x40] sm:$0xff]
  %v2777 = vld [vmem:[%s4 + $0x48] sm:$0xff]
  %v2778 = vld [vmem:[%s4 + $0x50] sm:$0xff]
  %v2779 = vld [vmem:[%s4 + $0x58] sm:$0x33]
  %v2792 = vunpack.c.l.b16 %v2768
  %v2793 = vunpack.c.h.b16 %v2768
  %v2794 = vunpack.c.l.b16 %v2769
  %v2795 = vunpack.c.h.b16 %v2769
  %v2796 = vunpack.c.l.b16 %v2770
  %v2797 = vunpack.c.h.b16 %v2770
  %v2798 = vunpack.c.l.b16 %v2771
  %v2799 = vunpack.c.h.b16 %v2771
  %v2800 = vunpack.c.l.b16 %v2772
  %v2801 = vunpack.c.h.b16 %v2772
  %v2802 = vunpack.c.l.b16 %v2773
  %v2803 = vunpack.c.h.b16 %v2773
  %v2804 = vunpack.c.l.b16 %v2774
  %v2805 = vunpack.c.h.b16 %v2774
  %v2806 = vunpack.c.l.b16 %v2775
  %v2807 = vunpack.c.h.b16 %v2775
  %v2808 = vunpack.c.l.b16 %v2776
  %v2809 = vunpack.c.h.b16 %v2776
  %v2810 = vunpack.c.l.b16 %v2777
  %v2811 = vunpack.c.h.b16 %v2777
  %v2812 = vunpack.c.l.b16 %v2778
  %v2813 = vunpack.c.h.b16 %v2778
  %v2814 = vunpack.c.l.b16 %v2779
  %v2815 = vunpack.c.h.b16 %v2779
  %v2816 = vpack.c.b16 %v2794, %v2792
  %v2817 = vpack.c.b16 %v2795, %v2793
  %v2818 = vpack.c.b16 %v2798, %v2796
  %v2819 = vpack.c.b16 %v2799, %v2797
  %v2820 = vpack.c.b16 %v2802, %v2800
  %v2821 = vpack.c.b16 %v2803, %v2801
  %v2822 = vpack.c.b16 %v2806, %v2804
  %v2823 = vpack.c.b16 %v2807, %v2805
  %v2824 = vpack.c.b16 %v2810, %v2808
  %v2825 = vpack.c.b16 %v2811, %v2809
  %v2826 = vpack.c.b16 %v2814, %v2812
  %v2827 = vpack.c.b16 %v2815, %v2813
  %vm2838 = vcmask 744448
  %v2840 = vsel %vm2838, %v2752, 0
  %v2843 = vsel %vm2838, %v2753, 0
  %v2846 = vsel %vm2838, %v2754, 0
  %v2849 = vsel %vm2838, %v2755, 0
  %v2852 = vsel %vm2838, %v2756, 0
  %v2855 = vsel %vm2838, %v2757, 0
  %v2858 = vsel %vm2838, %v2758, 0
  %v2861 = vsel %vm2838, %v2759, 0
  %v2864 = vsel %vm2838, %v2760, 0
  %v2867 = vsel %vm2838, %v2761, 0
  %v2870 = vsel %vm2838, %v2762, 0
  %v2873 = vsel %vm2838, %v2763, 0
  %v2876 = vsel %vm2838, %v2764, 0
  %v2879 = vsel %vm2838, %v2765, 0
  %v2882 = vsel %vm2838, %v2766, 0
  %v2885 = vsel %vm2838, %v2767, 0
  %vm2887 = vcmask 1044480
  %vm2888 = vcmask 1045504
  %v2889 = vsel %vm2887, 4294967295, 65535
  %v2890 = vsel %vm2888, %v2889, 0
  %v2892 = vand.u32 %v2826, %v2890
  %v2895 = vand.u32 %v2827, %v2890
  %2897 = vmatprep.subr.bf16.mxu0 %v2817
  %2898 = vmatpush1.bf16.msra.mxu0 %v2816
  %2899 = vmatprep.subr.bf16.mxu0 %v2819
  %2900 = vmatpush1.bf16.msra.mxu0 %v2818
  %2901 = vmatprep.subr.bf16.mxu0 %v2821
  %2902 = vmatpush1.bf16.msra.mxu0 %v2820
  %2903 = vmatprep.subr.bf16.mxu0 %v2823
  %2904 = vmatpush1.bf16.msra.mxu0 %v2822
  %2905 = vmatprep.subr.bf16.mxu0 %v2825
  %2906 = vmatpush1.bf16.msra.mxu0 %v2824
  %2907 = vmatprep.subr.bf16.mxu0 %v2895
  %2908 = vmatpush1.bf16.msra.mxu0 %v2892
  %2909 = vmatprep.subr.bf16.mxu0 0
  %2910 = vmatpush1.bf16.msra.mxu0 0
  %2911 = vmatprep.subr.bf16.mxu0 0
  %2912 = vmatpush1.bf16.msra.mxu0 0
  %2913 = vmatprep.subr.bf16.mxu0 0
  %2914 = vmatpush1.bf16.msra.mxu0 0
  %2915 = vmatprep.subr.bf16.mxu0 0
  %2916 = vmatpush1.bf16.msra.mxu0 0
  %2917 = vmatprep.subr.bf16.mxu0 0
  %2918 = vmatpush1.bf16.msra.mxu0 0
  %2919 = vmatprep.subr.bf16.mxu0 0
  %2920 = vmatpush1.bf16.msra.mxu0 0
  %2921 = vmatprep.subr.bf16.mxu0 0
  %2922 = vmatpush1.bf16.msra.mxu0 0
  %2923 = vmatprep.subr.bf16.mxu0 0
  %2924 = vmatpush1.bf16.msra.mxu0 0
  %2925 = vmatprep.subr.bf16.mxu0 0
  %2926 = vmatpush1.bf16.msra.mxu0 0
  %2927 = vmatprep.subr.bf16.mxu0 0
  %2928 = vmatpush1.bf16.msra.mxu0 0
  %2929 = vmatprep.mubr.bf16.mxu0 0
  %2930 = vmatmul.mubr.bf16.gmra.mrb[0].mxu0 %v2840
  %v2931 = vpop.f32.mrb[0].mxu0
  %v2932 = vadd.f32 0.0, %v2931
  %v2933 = vpop.f32.mrb[0].mxu0
  %v2934 = vadd.f32 0.0, %v2933
  %v2935 = vpop.f32.mrb[0].mxu0
  %v2936 = vadd.f32 0.0, %v2935
  %v2937 = vpop.f32.mrb[0].mxu0
  %v2938 = vadd.f32 0.0, %v2937
  %2939 = vmatprep.mubr.bf16.mxu0 0
  %2940 = vmatmul.mubr.bf16.gmra.mrb[0].mxu0 %v2843
  %v2941 = vpop.f32.mrb[0].mxu0
  %v2942 = vadd.f32 0.0, %v2941
  %v2943 = vpop.f32.mrb[0].mxu0
  %v2944 = vadd.f32 0.0, %v2943
  %v2945 = vpop.f32.mrb[0].mxu0
  %v2946 = vadd.f32 0.0, %v2945
  %v2947 = vpop.f32.mrb[0].mxu0
  %v2948 = vadd.f32 0.0, %v2947
  %2949 = vmatprep.mubr.bf16.mxu0 0
  %2950 = vmatmul.mubr.bf16.gmra.mrb[0].mxu0 %v2846
  %v2951 = vpop.f32.mrb[0].mxu0
  %v2952 = vadd.f32 0.0, %v2951
  %v2953 = vpop.f32.mrb[0].mxu0
  %v2954 = vadd.f32 0.0, %v2953
  %v2955 = vpop.f32.mrb[0].mxu0
  %v2956 = vadd.f32 0.0, %v2955
  %v2957 = vpop.f32.mrb[0].mxu0
  %v2958 = vadd.f32 0.0, %v2957
  %2959 = vmatprep.mubr.bf16.mxu0 0
  %2960 = vmatmul.mubr.bf16.gmra.mrb[0].mxu0 %v2849
  %v2961 = vpop.f32.mrb[0].mxu0
  %v2962 = vadd.f32 0.0, %v2961
  %v2963 = vpop.f32.mrb[0].mxu0
  %v2964 = vadd.f32 0.0, %v2963
  %v2965 = vpop.f32.mrb[0].mxu0
  %v2966 = vadd.f32 0.0, %v2965
  %v2967 = vpop.f32.mrb[0].mxu0
  %v2968 = vadd.f32 0.0, %v2967
  %2969 = vmatprep.mubr.bf16.mxu0 0
  %2970 = vmatmul.mubr.bf16.gmra.mrb[0].mxu0 %v2852
  %v2971 = vpop.f32.mrb[0].mxu0
  %v2972 = vadd.f32 0.0, %v2971
  %v2973 = vpop.f32.mrb[0].mxu0
  %v2974 = vadd.f32 0.0, %v2973
  %v2975 = vpop.f32.mrb[0].mxu0
  %v2976 = vadd.f32 0.0, %v2975
  %v2977 = vpop.f32.mrb[0].mxu0
  %v2978 = vadd.f32 0.0, %v2977
  %2979 = vmatprep.mubr.bf16.mxu0 0
  %2980 = vmatmul.mubr.bf16.gmra.mrb[0].mxu0 %v2855
  %v2981 = vpop.f32.mrb[0].mxu0
  %v2982 = vadd.f32 0.0, %v2981
  %v2983 = vpop.f32.mrb[0].mxu0
  %v2984 = vadd.f32 0.0, %v2983
  %v2985 = vpop.f32.mrb[0].mxu0
  %v2986 = vadd.f32 0.0, %v2985
  %v2987 = vpop.f32.mrb[0].mxu0
  %v2988 = vadd.f32 0.0, %v2987
  %2989 = vmatprep.mubr.bf16.mxu0 0
  %2990 = vmatmul.mubr.bf16.gmra.mrb[0].mxu0 %v2858
  %v2991 = vpop.f32.mrb[0].mxu0
  %v2992 = vadd.f32 0.0, %v2991
  %v2993 = vpop.f32.mrb[0].mxu0
  %v2994 = vadd.f32 0.0, %v2993
  %v2995 = vpop.f32.mrb[0].mxu0
  %v2996 = vadd.f32 0.0, %v2995
  %v2997 = vpop.f32.mrb[0].mxu0
  %v2998 = vadd.f32 0.0, %v2997
  %2999 = vmatprep.mubr.bf16.mxu0 0
  %3000 = vmatmul.mubr.bf16.gmra.mrb[0].mxu0 %v2861
  %v3001 = vpop.f32.mrb[0].mxu0
  %v3002 = vadd.f32 0.0, %v3001
  %v3003 = vpop.f32.mrb[0].mxu0
  %v3004 = vadd.f32 0.0, %v3003
  %v3005 = vpop.f32.mrb[0].mxu0
  %v3006 = vadd.f32 0.0, %v3005
  %v3007 = vpop.f32.mrb[0].mxu0
  %v3008 = vadd.f32 0.0, %v3007
  %3009 = vmatprep.mubr.bf16.mxu0 0
  %3010 = vmatmul.mubr.bf16.gmra.mrb[0].mxu0 %v2864
  %v3011 = vpop.f32.mrb[0].mxu0
  %v3012 = vadd.f32 0.0, %v3011
  %v3013 = vpop.f32.mrb[0].mxu0
  %v3014 = vadd.f32 0.0, %v3013
  %v3015 = vpop.f32.mrb[0].mxu0
  %v3016 = vadd.f32 0.0, %v3015
  %v3017 = vpop.f32.mrb[0].mxu0
  %v3018 = vadd.f32 0.0, %v3017
  %3019 = vmatprep.mubr.bf16.mxu0 0
  %3020 = vmatmul.mubr.bf16.gmra.mrb[0].mxu0 %v2867
  %v3021 = vpop.f32.mrb[0].mxu0
  %v3022 = vadd.f32 0.0, %v3021
  %v3023 = vpop.f32.mrb[0].mxu0
  %v3024 = vadd.f32 0.0, %v3023
  %v3025 = vpop.f32.mrb[0].mxu0
  %v3026 = vadd.f32 0.0, %v3025
  %v3027 = vpop.f32.mrb[0].mxu0
  %v3028 = vadd.f32 0.0, %v3027
  %3029 = vmatprep.mubr.bf16.mxu0 0
  %3030 = vmatmul.mubr.bf16.gmra.mrb[0].mxu0 %v2870
  %v3031 = vpop.f32.mrb[0].mxu0
  %v3032 = vadd.f32 0.0, %v3031
  %v3033 = vpop.f32.mrb[0].mxu0
  %v3034 = vadd.f32 0.0, %v3033
  %v3035 = vpop.f32.mrb[0].mxu0
  %v3036 = vadd.f32 0.0, %v3035
  %v3037 = vpop.f32.mrb[0].mxu0
  %v3038 = vadd.f32 0.0, %v3037
  %3039 = vmatprep.mubr.bf16.mxu0 0
  %3040 = vmatmul.mubr.bf16.gmra.mrb[0].mxu0 %v2873
  %v3041 = vpop.f32.mrb[0].mxu0
  %v3042 = vadd.f32 0.0, %v3041
  %v3043 = vpop.f32.mrb[0].mxu0
  %v3044 = vadd.f32 0.0, %v3043
  %v3045 = vpop.f32.mrb[0].mxu0
  %v3046 = vadd.f32 0.0, %v3045
  %v3047 = vpop.f32.mrb[0].mxu0
  %v3048 = vadd.f32 0.0, %v3047
  %3049 = vmatprep.mubr.bf16.mxu0 0
  %3050 = vmatmul.mubr.bf16.gmra.mrb[0].mxu0 %v2876
  %v3051 = vpop.f32.mrb[0].mxu0
  %v3052 = vadd.f32 0.0, %v3051
  %v3053 = vpop.f32.mrb[0].mxu0
  %v3054 = vadd.f32 0.0, %v3053
  %v3055 = vpop.f32.mrb[0].mxu0
  %v3056 = vadd.f32 0.0, %v3055
  %v3057 = vpop.f32.mrb[0].mxu0
  %v3058 = vadd.f32 0.0, %v3057
  %3059 = vmatprep.mubr.bf16.mxu0 0
  %3060 = vmatmul.mubr.bf16.gmra.mrb[0].mxu0 %v2879
  %v3061 = vpop.f32.mrb[0].mxu0
  %v3062 = vadd.f32 0.0, %v3061
  %v3063 = vpop.f32.mrb[0].mxu0
  %v3064 = vadd.f32 0.0, %v3063
  %v3065 = vpop.f32.mrb[0].mxu0
  %v3066 = vadd.f32 0.0, %v3065
  %v3067 = vpop.f32.mrb[0].mxu0
  %v3068 = vadd.f32 0.0, %v3067
  %3069 = vmatprep.mubr.bf16.mxu0 0
  %3070 = vmatmul.mubr.bf16.gmra.mrb[0].mxu0 %v2882
  %v3071 = vpop.f32.mrb[0].mxu0
  %v3072 = vadd.f32 0.0, %v3071
  %v3073 = vpop.f32.mrb[0].mxu0
  %v3074 = vadd.f32 0.0, %v3073
  %v3075 = vpop.f32.mrb[0].mxu0
  %v3076 = vadd.f32 0.0, %v3075
  %v3077 = vpop.f32.mrb[0].mxu0
  %v3078 = vadd.f32 0.0, %v3077
  %3079 = vmatprep.mubr.bf16.mxu0 0
  %3080 = vmatmul.mubr.bf16.gmra.mrb[0].mxu0 %v2885
  %v3081 = vpop.f32.mrb[0].mxu0
  %v3082 = vadd.f32 0.0, %v3081
  %v3083 = vpop.f32.mrb[0].mxu0
  %v3084 = vadd.f32 0.0, %v3083
  %v3085 = vpop.f32.mrb[0].mxu0
  %v3086 = vadd.f32 0.0, %v3085
  %v3087 = vpop.f32.mrb[0].mxu0
  %v3088 = vadd.f32 0.0, %v3087
  %3089 = vdwg.mxu0
  %v3090 = vmax.f32 %v2932, %v2934
  %v3091 = vmax.f32 %v2936, %v2938
  %v3092 = vmax.f32 %v2942, %v2944
  %v3093 = vmax.f32 %v2946, %v2948
  %v3094 = vmax.f32 %v2952, %v2954
  %v3095 = vmax.f32 %v2956, %v2958
  %v3096 = vmax.f32 %v2962, %v2964
  %v3097 = vmax.f32 %v2966, %v2968
  %v3098 = vmax.f32 %v2972, %v2974
  %v3099 = vmax.f32 %v2976, %v2978
  %v3100 = vmax.f32 %v2982, %v2984
  %v3101 = vmax.f32 %v2986, %v2988
  %v3102 = vmax.f32 %v2992, %v2994
  %v3103 = vmax.f32 %v2996, %v2998
  %v3104 = vmax.f32 %v3002, %v3004
  %v3105 = vmax.f32 %v3006, %v3008
  %v3106 = vmax.f32 %v3012, %v3014
  %v3107 = vmax.f32 %v3016, %v3018
  %v3108 = vmax.f32 %v3022, %v3024
  %v3109 = vmax.f32 %v3026, %v3028
  %v3110 = vmax.f32 %v3032, %v3034
  %v3111 = vmax.f32 %v3036, %v3038
  %v3112 = vmax.f32 %v3042, %v3044
  %v3113 = vmax.f32 %v3046, %v3048
  %v3114 = vmax.f32 %v3052, %v3054
  %v3115 = vmax.f32 %v3056, %v3058
  %v3116 = vmax.f32 %v3062, %v3064
  %v3117 = vmax.f32 %v3066, %v3068
  %v3118 = vmax.f32 %v3072, %v3074
  %v3119 = vmax.f32 %v3076, %v3078
  %v3120 = vmax.f32 %v3082, %v3084
  %v3121 = vmax.f32 %v3086, %v3088
  %v3122 = vld [vmem:[%s5] sm:$0xff]
  %v3123 = vld [vmem:[%s5 + $0x8] sm:$0xff]
  %v3124 = vld [vmem:[%s5 + $0x10] sm:$0xff]
  %v3125 = vld [vmem:[%s5 + $0x18] sm:$0xff]
  %v3126 = vld [vmem:[%s5 + $0x20] sm:$0xff]
  %v3127 = vld [vmem:[%s5 + $0x28] sm:$0xff]
  %v3128 = vld [vmem:[%s5 + $0x30] sm:$0xff]
  %v3129 = vld [vmem:[%s5 + $0x38] sm:$0xff]
  %v3130 = vld [vmem:[%s5 + $0x40] sm:$0xff]
  %v3131 = vld [vmem:[%s5 + $0x48] sm:$0xff]
  %v3132 = vld [vmem:[%s5 + $0x50] sm:$0xff]
  %v3133 = vld [vmem:[%s5 + $0x58] sm:$0xff]
  %v3134 = vld [vmem:[%s5 + $0x60] sm:$0xff]
  %v3135 = vld [vmem:[%s5 + $0x68] sm:$0xff]
  %v3136 = vld [vmem:[%s5 + $0x70] sm:$0xff]
  %v3137 = vld [vmem:[%s5 + $0x78] sm:$0xff]
  %v3138 = vld [vmem:[%s5 + $0x80] sm:$0xff]
  %v3139 = vld [vmem:[%s5 + $0x88] sm:$0xff]
  %v3140 = vld [vmem:[%s5 + $0x90] sm:$0xff]
  %v3141 = vld [vmem:[%s5 + $0x98] sm:$0xff]
  %v3142 = vld [vmem:[%s5 + $0xa0] sm:$0xff]
  %v3143 = vld [vmem:[%s5 + $0xa8] sm:$0xff]
  %v3144 = vld [vmem:[%s5 + $0xb0] sm:$0xff]
  %v3145 = vld [vmem:[%s5 + $0xb8] sm:$0xff]
  %v3146 = vld [vmem:[%s5 + $0xc0] sm:$0xff]
  %v3147 = vld [vmem:[%s5 + $0xc8] sm:$0xff]
  %v3148 = vld [vmem:[%s5 + $0xd0] sm:$0xff]
  %v3149 = vld [vmem:[%s5 + $0xd8] sm:$0xff]
  %v3150 = vld [vmem:[%s5 + $0xe0] sm:$0xff]
  %v3151 = vld [vmem:[%s5 + $0xe8] sm:$0xff]
  %v3152 = vld [vmem:[%s5 + $0xf0] sm:$0xff]
  %v3153 = vld [vmem:[%s5 + $0xf8] sm:$0xff]
  %v3154 = vpack.c.bf16 %v3091, %v3090
  %v3155 = vpack.c.bf16 %v3093, %v3092
  %v3156 = vpack.c.bf16 %v3095, %v3094
  %v3157 = vpack.c.bf16 %v3097, %v3096
  %v3158 = vpack.c.bf16 %v3099, %v3098
  %v3159 = vpack.c.bf16 %v3101, %v3100
  %v3160 = vpack.c.bf16 %v3103, %v3102
  %v3161 = vpack.c.bf16 %v3105, %v3104
  %v3162 = vpack.c.bf16 %v3107, %v3106
  %v3163 = vpack.c.bf16 %v3109, %v3108
  %v3164 = vpack.c.bf16 %v3111, %v3110
  %v3165 = vpack.c.bf16 %v3113, %v3112
  %v3166 = vpack.c.bf16 %v3115, %v3114
  %v3167 = vpack.c.bf16 %v3117, %v3116
  %v3168 = vpack.c.bf16 %v3119, %v3118
  %v3169 = vpack.c.bf16 %v3121, %v3120
  %v3202 = vunpack.c.l.b16 %v3122
  %v3203 = vunpack.c.h.b16 %v3122
  %v3204 = vunpack.c.l.b16 %v3123
  %v3205 = vunpack.c.h.b16 %v3123
  %v3206 = vunpack.c.l.b16 %v3124
  %v3207 = vunpack.c.h.b16 %v3124
  %v3208 = vunpack.c.l.b16 %v3125
  %v3209 = vunpack.c.h.b16 %v3125
  %v3210 = vunpack.c.l.b16 %v3126
  %v3211 = vunpack.c.h.b16 %v3126
  %v3212 = vunpack.c.l.b16 %v3127
  %v3213 = vunpack.c.h.b16 %v3127
  %v3214 = vunpack.c.l.b16 %v3128
  %v3215 = vunpack.c.h.b16 %v3128
  %v3216 = vunpack.c.l.b16 %v3129
  %v3217 = vunpack.c.h.b16 %v3129
  %v3218 = vunpack.c.l.b16 %v3130
  %v3219 = vunpack.c.h.b16 %v3130
  %v3220 = vunpack.c.l.b16 %v3131
  %v3221 = vunpack.c.h.b16 %v3131
  %v3222 = vunpack.c.l.b16 %v3132
  %v3223 = vunpack.c.h.b16 %v3132
  %v3224 = vunpack.c.l.b16 %v3133
  %v3225 = vunpack.c.h.b16 %v3133
  %v3226 = vunpack.c.l.b16 %v3134
  %v3227 = vunpack.c.h.b16 %v3134
  %v3228 = vunpack.c.l.b16 %v3135
  %v3229 = vunpack.c.h.b16 %v3135
  %v3230 = vunpack.c.l.b16 %v3136
  %v3231 = vunpack.c.h.b16 %v3136
  %v3232 = vunpack.c.l.b16 %v3137
  %v3233 = vunpack.c.h.b16 %v3137
  %v3234 = vunpack.c.l.b16 %v3138
  %v3235 = vunpack.c.h.b16 %v3138
  %v3236 = vunpack.c.l.b16 %v3139
  %v3237 = vunpack.c.h.b16 %v3139
  %v3238 = vunpack.c.l.b16 %v3140
  %v3239 = vunpack.c.h.b16 %v3140
  %v3240 = vunpack.c.l.b16 %v3141
  %v3241 = vunpack.c.h.b16 %v3141
  %v3242 = vunpack.c.l.b16 %v3142
  %v3243 = vunpack.c.h.b16 %v3142
  %v3244 = vunpack.c.l.b16 %v3143
  %v3245 = vunpack.c.h.b16 %v3143
  %v3246 = vunpack.c.l.b16 %v3144
  %v3247 = vunpack.c.h.b16 %v3144
  %v3248 = vunpack.c.l.b16 %v3145
  %v3249 = vunpack.c.h.b16 %v3145
  %v3250 = vunpack.c.l.b16 %v3146
  %v3251 = vunpack.c.h.b16 %v3146
  %v3252 = vunpack.c.l.b16 %v3147
  %v3253 = vunpack.c.h.b16 %v3147
  %v3254 = vunpack.c.l.b16 %v3148
  %v3255 = vunpack.c.h.b16 %v3148
  %v3256 = vunpack.c.l.b16 %v3149
  %v3257 = vunpack.c.h.b16 %v3149
  %v3258 = vunpack.c.l.b16 %v3150
  %v3259 = vunpack.c.h.b16 %v3150
  %v3260 = vunpack.c.l.b16 %v3151
  %v3261 = vunpack.c.h.b16 %v3151
  %v3262 = vunpack.c.l.b16 %v3152
  %v3263 = vunpack.c.h.b16 %v3152
  %v3264 = vunpack.c.l.b16 %v3153
  %v3265 = vunpack.c.h.b16 %v3153
  %v3266 = vpack.c.b16 %v3204, %v3202
  %v3267 = vpack.c.b16 %v3205, %v3203
  %v3268 = vpack.c.b16 %v3208, %v3206
  %v3269 = vpack.c.b16 %v3209, %v3207
  %v3270 = vpack.c.b16 %v3212, %v3210
  %v3271 = vpack.c.b16 %v3213, %v3211
  %v3272 = vpack.c.b16 %v3216, %v3214
  %v3273 = vpack.c.b16 %v3217, %v3215
  %v3274 = vpack.c.b16 %v3220, %v3218
  %v3275 = vpack.c.b16 %v3221, %v3219
  %v3276 = vpack.c.b16 %v3224, %v3222
  %v3277 = vpack.c.b16 %v3225, %v3223
  %v3278 = vpack.c.b16 %v3228, %v3226
  %v3279 = vpack.c.b16 %v3229, %v3227
  %v3280 = vpack.c.b16 %v3232, %v3230
  %v3281 = vpack.c.b16 %v3233, %v3231
  %v3282 = vpack.c.b16 %v3236, %v3234
  %v3283 = vpack.c.b16 %v3237, %v3235
  %v3284 = vpack.c.b16 %v3240, %v3238
  %v3285 = vpack.c.b16 %v3241, %v3239
  %v3286 = vpack.c.b16 %v3244, %v3242
  %v3287 = vpack.c.b16 %v3245, %v3243
  %v3288 = vpack.c.b16 %v3248, %v3246
  %v3289 = vpack.c.b16 %v3249, %v3247
  %v3290 = vpack.c.b16 %v3252, %v3250
  %v3291 = vpack.c.b16 %v3253, %v3251
  %v3292 = vpack.c.b16 %v3256, %v3254
  %v3293 = vpack.c.b16 %v3257, %v3255
  %v3294 = vpack.c.b16 %v3260, %v3258
  %v3295 = vpack.c.b16 %v3261, %v3259
  %v3296 = vpack.c.b16 %v3264, %v3262
  %v3297 = vpack.c.b16 %v3265, %v3263
  %3330 = vmatprep.subr.bf16.mxu0 0
  %3331 = vmatpush1.bf16.msra.mxu0 %v3154
  %3332 = vmatprep.subr.bf16.mxu0 0
  %3333 = vmatpush1.bf16.msra.mxu0 %v3155
  %3334 = vmatprep.subr.bf16.mxu0 0
  %3335 = vmatpush1.bf16.msra.mxu0 %v3156
  %3336 = vmatprep.subr.bf16.mxu0 0
  %3337 = vmatpush1.bf16.msra.mxu0 %v3157
  %3338 = vmatprep.subr.bf16.mxu0 0
  %3339 = vmatpush1.bf16.msra.mxu0 %v3158
  %3340 = vmatprep.subr.bf16.mxu0 0
  %3341 = vmatpush1.bf16.msra.mxu0 %v3159
  %3342 = vmatprep.subr.bf16.mxu0 0
  %3343 = vmatpush1.bf16.msra.mxu0 %v3160
  %3344 = vmatprep.subr.bf16.mxu0 0
  %3345 = vmatpush1.bf16.msra.mxu0 %v3161
  %3346 = vmatprep.subr.bf16.mxu0 0
  %3347 = vmatpush1.bf16.msra.mxu0 %v3162
  %3348 = vmatprep.subr.bf16.mxu0 0
  %3349 = vmatpush1.bf16.msra.mxu0 %v3163
  %3350 = vmatprep.subr.bf16.mxu0 0
  %3351 = vmatpush1.bf16.msra.mxu0 %v3164
  %3352 = vmatprep.subr.bf16.mxu0 0
  %3353 = vmatpush1.bf16.msra.mxu0 %v3165
  %3354 = vmatprep.subr.bf16.mxu0 0
  %3355 = vmatpush1.bf16.msra.mxu0 %v3166
  %3356 = vmatprep.subr.bf16.mxu0 0
  %3357 = vmatpush1.bf16.msra.mxu0 %v3167
  %3358 = vmatprep.subr.bf16.mxu0 0
  %3359 = vmatpush1.bf16.msra.mxu0 %v3168
  %3360 = vmatprep.subr.bf16.mxu0 0
  %3361 = vmatpush1.bf16.msra.mxu0 %v3169
  %3362 = vmatprep.mubr.bf16.mxu0 %v3267
  %3363 = vmatmul.mubr.bf16.gmra.mrb[0].mxu0 %v3266
  %v3364 = vpop.f32.mrb[0].mxu0
  %v3365 = vadd.f32 0.0, %v3364
  %v3366 = vpop.f32.mrb[0].mxu0
  %v3367 = vpop.f32.mrb[0].mxu0
  %v3368 = vadd.f32 0.0, %v3367
  %v3369 = vpop.f32.mrb[0].mxu0
  %3370 = vmatprep.mubr.bf16.mxu0 %v3269
  %3371 = vmatmul.mubr.bf16.gmra.mrb[0].mxu0 %v3268
  %v3372 = vpop.f32.mrb[0].mxu0
  %v3373 = vadd.f32 0.0, %v3372
  %v3374 = vpop.f32.mrb[0].mxu0
  %v3375 = vpop.f32.mrb[0].mxu0
  %v3376 = vadd.f32 0.0, %v3375
  %v3377 = vpop.f32.mrb[0].mxu0
  %3378 = vmatprep.mubr.bf16.mxu0 %v3271
  %3379 = vmatmul.mubr.bf16.gmra.mrb[0].mxu0 %v3270
  %v3380 = vpop.f32.mrb[0].mxu0
  %v3381 = vadd.f32 0.0, %v3380
  %v3382 = vpop.f32.mrb[0].mxu0
  %v3383 = vpop.f32.mrb[0].mxu0
  %v3384 = vadd.f32 0.0, %v3383
  %v3385 = vpop.f32.mrb[0].mxu0
  %3386 = vmatprep.mubr.bf16.mxu0 %v3273
  %3387 = vmatmul.mubr.bf16.gmra.mrb[0].mxu0 %v3272
  %v3388 = vpop.f32.mrb[0].mxu0
  %v3389 = vadd.f32 0.0, %v3388
  %v3390 = vpop.f32.mrb[0].mxu0
  %v3391 = vpop.f32.mrb[0].mxu0
  %v3392 = vadd.f32 0.0, %v3391
  %v3393 = vpop.f32.mrb[0].mxu0
  %3394 = vmatprep.mubr.bf16.mxu0 %v3275
  %3395 = vmatmul.mubr.bf16.gmra.mrb[0].mxu0 %v3274
  %v3396 = vpop.f32.mrb[0].mxu0
  %v3397 = vadd.f32 0.0, %v3396
  %v3398 = vpop.f32.mrb[0].mxu0
  %v3399 = vpop.f32.mrb[0].mxu0
  %v3400 = vadd.f32 0.0, %v3399
  %v3401 = vpop.f32.mrb[0].mxu0
  %3402 = vmatprep.mubr.bf16.mxu0 %v3277
  %3403 = vmatmul.mubr.bf16.gmra.mrb[0].mxu0 %v3276
  %v3404 = vpop.f32.mrb[0].mxu0
  %v3405 = vadd.f32 0.0, %v3404
  %v3406 = vpop.f32.mrb[0].mxu0
  %v3407 = vpop.f32.mrb[0].mxu0
  %v3408 = vadd.f32 0.0, %v3407
  %v3409 = vpop.f32.mrb[0].mxu0
  %3410 = vmatprep.mubr.bf16.mxu0 %v3279
  %3411 = vmatmul.mubr.bf16.gmra.mrb[0].mxu0 %v3278
  %v3412 = vpop.f32.mrb[0].mxu0
  %v3413 = vadd.f32 0.0, %v3412
  %v3414 = vpop.f32.mrb[0].mxu0
  %v3415 = vpop.f32.mrb[0].mxu0
  %v3416 = vadd.f32 0.0, %v3415
  %v3417 = vpop.f32.mrb[0].mxu0
  %3418 = vmatprep.mubr.bf16.mxu0 %v3281
  %3419 = vmatmul.mubr.bf16.gmra.mrb[0].mxu0 %v3280
  %v3420 = vpop.f32.mrb[0].mxu0
  %v3421 = vadd.f32 0.0, %v3420
  %v3422 = vpop.f32.mrb[0].mxu0
  %v3423 = vpop.f32.mrb[0].mxu0
  %v3424 = vadd.f32 0.0, %v3423
  %v3425 = vpop.f32.mrb[0].mxu0
  %3426 = vmatprep.mubr.bf16.mxu0 %v3283
  %3427 = vmatmul.mubr.bf16.gmra.mrb[0].mxu0 %v3282
  %v3428 = vpop.f32.mrb[0].mxu0
  %v3429 = vadd.f32 0.0, %v3428
  %v3430 = vpop.f32.mrb[0].mxu0
  %v3431 = vpop.f32.mrb[0].mxu0
  %v3432 = vadd.f32 0.0, %v3431
  %v3433 = vpop.f32.mrb[0].mxu0
  %3434 = vmatprep.mubr.bf16.mxu0 %v3285
  %3435 = vmatmul.mubr.bf16.gmra.mrb[0].mxu0 %v3284
  %v3436 = vpop.f32.mrb[0].mxu0
  %v3437 = vadd.f32 0.0, %v3436
  %v3438 = vpop.f32.mrb[0].mxu0
  %v3439 = vpop.f32.mrb[0].mxu0
  %v3440 = vadd.f32 0.0, %v3439
  %v3441 = vpop.f32.mrb[0].mxu0
  %3442 = vmatprep.mubr.bf16.mxu0 %v3287
  %3443 = vmatmul.mubr.bf16.gmra.mrb[0].mxu0 %v3286
  %v3444 = vpop.f32.mrb[0].mxu0
  %v3445 = vadd.f32 0.0, %v3444
  %v3446 = vpop.f32.mrb[0].mxu0
  %v3447 = vpop.f32.mrb[0].mxu0
  %v3448 = vadd.f32 0.0, %v3447
  %v3449 = vpop.f32.mrb[0].mxu0
  %3450 = vmatprep.mubr.bf16.mxu0 %v3289
  %3451 = vmatmul.mubr.bf16.gmra.mrb[0].mxu0 %v3288
  %v3452 = vpop.f32.mrb[0].mxu0
  %v3453 = vadd.f32 0.0, %v3452
  %v3454 = vpop.f32.mrb[0].mxu0
  %v3455 = vpop.f32.mrb[0].mxu0
  %v3456 = vadd.f32 0.0, %v3455
  %v3457 = vpop.f32.mrb[0].mxu0
  %3458 = vmatprep.mubr.bf16.mxu0 %v3291
  %3459 = vmatmul.mubr.bf16.gmra.mrb[0].mxu0 %v3290
  %v3460 = vpop.f32.mrb[0].mxu0
  %v3461 = vadd.f32 0.0, %v3460
  %v3462 = vpop.f32.mrb[0].mxu0
  %v3463 = vpop.f32.mrb[0].mxu0
  %v3464 = vadd.f32 0.0, %v3463
  %v3465 = vpop.f32.mrb[0].mxu0
  %3466 = vmatprep.mubr.bf16.mxu0 %v3293
  %3467 = vmatmul.mubr.bf16.gmra.mrb[0].mxu0 %v3292
  %v3468 = vpop.f32.mrb[0].mxu0
  %v3469 = vadd.f32 0.0, %v3468
  %v3470 = vpop.f32.mrb[0].mxu0
  %v3471 = vpop.f32.mrb[0].mxu0
  %v3472 = vadd.f32 0.0, %v3471
  %v3473 = vpop.f32.mrb[0].mxu0
  %3474 = vmatprep.mubr.bf16.mxu0 %v3295
  %3475 = vmatmul.mubr.bf16.gmra.mrb[0].mxu0 %v3294
  %v3476 = vpop.f32.mrb[0].mxu0
  %v3477 = vadd.f32 0.0, %v3476
  %v3478 = vpop.f32.mrb[0].mxu0
  %v3479 = vpop.f32.mrb[0].mxu0
  %v3480 = vadd.f32 0.0, %v3479
  %v3481 = vpop.f32.mrb[0].mxu0
  %3482 = vmatprep.mubr.bf16.mxu0 %v3297
  %3483 = vmatmul.mubr.bf16.gmra.mrb[0].mxu0 %v3296
  %v3484 = vpop.f32.mrb[0].mxu0
  %v3485 = vadd.f32 0.0, %v3484
  %v3486 = vpop.f32.mrb[0].mxu0
  %v3487 = vpop.f32.mrb[0].mxu0
  %v3488 = vadd.f32 0.0, %v3487
  %v3489 = vpop.f32.mrb[0].mxu0
  %3490 = vdwg.mxu0
  %v3491 = vpack.c.bf16 %v3365, %v3365
  %v3492 = vpack.c.bf16 %v3368, %v3368
  %v3493 = vpack.c.bf16 %v3373, %v3373
  %v3494 = vpack.c.bf16 %v3376, %v3376
  %v3495 = vpack.c.bf16 %v3381, %v3381
  %v3496 = vpack.c.bf16 %v3384, %v3384
  %v3497 = vpack.c.bf16 %v3389, %v3389
  %v3498 = vpack.c.bf16 %v3392, %v3392
  %v3499 = vpack.c.bf16 %v3397, %v3397
  %v3500 = vpack.c.bf16 %v3400, %v3400
  %v3501 = vpack.c.bf16 %v3405, %v3405
  %v3502 = vpack.c.bf16 %v3408, %v3408
  %v3503 = vpack.c.bf16 %v3413, %v3413
  %v3504 = vpack.c.bf16 %v3416, %v3416
  %v3505 = vpack.c.bf16 %v3421, %v3421
  %v3506 = vpack.c.bf16 %v3424, %v3424
  %v3507 = vpack.c.bf16 %v3429, %v3429
  %v3508 = vpack.c.bf16 %v3432, %v3432
  %v3509 = vpack.c.bf16 %v3437, %v3437
  %v3510 = vpack.c.bf16 %v3440, %v3440
  %v3511 = vpack.c.bf16 %v3445, %v3445
  %v3512 = vpack.c.bf16 %v3448, %v3448
  %v3513 = vpack.c.bf16 %v3453, %v3453
  %v3514 = vpack.c.bf16 %v3456, %v3456
  %v3515 = vpack.c.bf16 %v3461, %v3461
  %v3516 = vpack.c.bf16 %v3464, %v3464
  %v3517 = vpack.c.bf16 %v3469, %v3469
  %v3518 = vpack.c.bf16 %v3472, %v3472
  %v3519 = vpack.c.bf16 %v3477, %v3477
  %v3520 = vpack.c.bf16 %v3480, %v3480
  %v3521 = vpack.c.bf16 %v3485, %v3485
  %v3522 = vpack.c.bf16 %v3488, %v3488
  %v3523 = vld [vmem:[%s6] sm:$0xff]
  %v3524 = vld [vmem:[%s6 + $0x8] sm:$0xff]
  %v3525 = vld [vmem:[%s6 + $0x10] sm:$0xff]
  %v3526 = vld [vmem:[%s6 + $0x18] sm:$0xff]
  %v3527 = vld [vmem:[%s6 + $0x20] sm:$0xff]
  %v3528 = vld [vmem:[%s6 + $0x28] sm:$0x77]
  %s3529 = scalar_lea.vmem %s6, 48
  %v3530 = vld [vmem:[%s3529] sm:$0xff]
  %v3531 = vld [vmem:[%s3529 + $0x8] sm:$0xff]
  %v3532 = vld [vmem:[%s3529 + $0x10] sm:$0xff]
  %v3533 = vld [vmem:[%s3529 + $0x18] sm:$0xff]
  %v3534 = vld [vmem:[%s3529 + $0x20] sm:$0xff]
  %v3535 = vld [vmem:[%s3529 + $0x28] sm:$0x77]
  %v3542 = vunpack.c.l.b16 %v3530
  %v3543 = vunpack.c.h.b16 %v3530
  %v3544 = vunpack.c.l.b16 %v3531
  %v3545 = vunpack.c.h.b16 %v3531
  %v3546 = vunpack.c.l.b16 %v3532
  %v3547 = vunpack.c.h.b16 %v3532
  %v3548 = vunpack.c.l.b16 %v3533
  %v3549 = vunpack.c.h.b16 %v3533
  %v3550 = vunpack.c.l.b16 %v3534
  %v3551 = vunpack.c.h.b16 %v3534
  %v3552 = vunpack.c.l.b16 %v3535
  %v3553 = vunpack.c.h.b16 %v3535
  %v3554 = vpack.c.b16 %v3544, %v3542
  %v3555 = vpack.c.b16 %v3545, %v3543
  %v3556 = vpack.c.b16 %v3548, %v3546
  %v3557 = vpack.c.b16 %v3549, %v3547
  %v3558 = vpack.c.b16 %v3552, %v3550
  %v3559 = vpack.c.b16 %v3553, %v3551
  %vm3564 = vcmask 375808
  %v3566 = vsel %vm3564, %v3492, 0
  %vm3568 = vcmask 1046528
  %v3570 = vsel %vm3568, %v3558, 0
  %v3573 = vsel %vm3568, %v3559, 0
  %3575 = vmatprep.subr.bf16.mxu0 %v3555
  %3576 = vmatpush1.bf16.msra.mxu0 %v3554
  %3577 = vmatprep.subr.bf16.mxu0 %v3557
  %3578 = vmatpush1.bf16.msra.mxu0 %v3556
  %3579 = vmatprep.subr.bf16.mxu0 %v3573
  %3580 = vmatpush1.bf16.msra.mxu0 %v3570
  %3581 = vmatprep.subr.bf16.mxu0 0
  %3582 = vmatpush1.bf16.msra.mxu0 0
  %3583 = vmatprep.subr.bf16.mxu0 0
  %3584 = vmatpush1.bf16.msra.mxu0 0
  %3585 = vmatprep.subr.bf16.mxu0 0
  %3586 = vmatpush1.bf16.msra.mxu0 0
  %3587 = vmatprep.subr.bf16.mxu0 0
  %3588 = vmatpush1.bf16.msra.mxu0 0
  %3589 = vmatprep.subr.bf16.mxu0 0
  %3590 = vmatpush1.bf16.msra.mxu0 0
  %3591 = vmatprep.subr.bf16.mxu0 0
  %3592 = vmatpush1.bf16.msra.mxu0 0
  %3593 = vmatprep.subr.bf16.mxu0 0
  %3594 = vmatpush1.bf16.msra.mxu0 0
  %3595 = vmatprep.subr.bf16.mxu0 0
  %3596 = vmatpush1.bf16.msra.mxu0 0
  %3597 = vmatprep.subr.bf16.mxu0 0
  %3598 = vmatpush1.bf16.msra.mxu0 0
  %3599 = vmatprep.subr.bf16.mxu0 0
  %3600 = vmatpush1.bf16.msra.mxu0 0
  %3601 = vmatprep.subr.bf16.mxu0 0
  %3602 = vmatpush1.bf16.msra.mxu0 0
  %3603 = vmatprep.subr.bf16.mxu0 0
  %3604 = vmatpush1.bf16.msra.mxu0 0
  %3605 = vmatprep.subr.bf16.mxu0 0
  %3606 = vmatpush1.bf16.msra.mxu0 0
  %3607 = vmatprep.mubr.bf16.mxu0 0
  %3608 = vmatmul.mubr.bf16.gmra.mrb[0].mxu0 %v3566
  %v3609 = vpop.f32.mrb[0].mxu0
  %v3610 = vadd.f32 0.0, %v3609
  %v3611 = vpop.f32.mrb[0].mxu0
  %v3612 = vadd.f32 0.0, %v3611
  %v3613 = vpop.f32.mrb[0].mxu0
  %v3614 = vpop.f32.mrb[0].mxu0
  %3615 = vdwg.mxu0
  %v3622 = vunpack.c.l.b16 %v3523
  %v3623 = vunpack.c.h.b16 %v3523
  %v3624 = vunpack.c.l.b16 %v3524
  %v3625 = vunpack.c.h.b16 %v3524
  %v3626 = vunpack.c.l.b16 %v3525
  %v3627 = vunpack.c.h.b16 %v3525
  %v3628 = vunpack.c.l.b16 %v3526
  %v3629 = vunpack.c.h.b16 %v3526
  %v3630 = vunpack.c.l.b16 %v3527
  %v3631 = vunpack.c.h.b16 %v3527
  %v3632 = vunpack.c.l.b16 %v3528
  %v3633 = vunpack.c.h.b16 %v3528
  %v3634 = vpack.c.b16 %v3624, %v3622
  %v3635 = vpack.c.b16 %v3625, %v3623
  %v3636 = vpack.c.b16 %v3628, %v3626
  %v3637 = vpack.c.b16 %v3629, %v3627
  %v3638 = vpack.c.b16 %v3632, %v3630
  %v3639 = vpack.c.b16 %v3633, %v3631
  %v3645 = vsel %vm3564, %v3491, 0
  %v3648 = vsel %vm3568, %v3638, 0
  %v3651 = vsel %vm3568, %v3639, 0
  %3653 = vmatprep.subr.bf16.mxu0 %v3635
  %3654 = vmatpush1.bf16.msra.mxu0 %v3634
  %3655 = vmatprep.subr.bf16.mxu0 %v3637
  %3656 = vmatpush1.bf16.msra.mxu0 %v3636
  %3657 = vmatprep.subr.bf16.mxu0 %v3651
  %3658 = vmatpush1.bf16.msra.mxu0 %v3648
  %3659 = vmatprep.subr.bf16.mxu0 0
  %3660 = vmatpush1.bf16.msra.mxu0 0
  %3661 = vmatprep.subr.bf16.mxu0 0
  %3662 = vmatpush1.bf16.msra.mxu0 0
  %3663 = vmatprep.subr.bf16.mxu0 0
  %3664 = vmatpush1.bf16.msra.mxu0 0
  %3665 = vmatprep.subr.bf16.mxu0 0
  %3666 = vmatpush1.bf16.msra.mxu0 0
  %3667 = vmatprep.subr.bf16.mxu0 0
  %3668 = vmatpush1.bf16.msra.mxu0 0
  %3669 = vmatprep.subr.bf16.mxu0 0
  %3670 = vmatpush1.bf16.msra.mxu0 0
  %3671 = vmatprep.subr.bf16.mxu0 0
  %3672 = vmatpush1.bf16.msra.mxu0 0
  %3673 = vmatprep.subr.bf16.mxu0 0
  %3674 = vmatpush1.bf16.msra.mxu0 0
  %3675 = vmatprep.subr.bf16.mxu0 0
  %3676 = vmatpush1.bf16.msra.mxu0 0
  %3677 = vmatprep.subr.bf16.mxu0 0
  %3678 = vmatpush1.bf16.msra.mxu0 0
  %3679 = vmatprep.subr.bf16.mxu0 0
  %3680 = vmatpush1.bf16.msra.mxu0 0
  %3681 = vmatprep.subr.bf16.mxu0 0
  %3682 = vmatpush1.bf16.msra.mxu0 0
  %3683 = vmatprep.subr.bf16.mxu0 0
  %3684 = vmatpush1.bf16.msra.mxu0 0
  %3685 = vmatprep.mubr.bf16.mxu0 0
  %3686 = vmatmul.mubr.bf16.gmra.mrb[0].mxu0 %v3645
  %v3687 = vpop.f32.mrb[0].mxu0
  %v3688 = vadd.f32 %v3610, %v3687
  %v3689 = vpop.f32.mrb[0].mxu0
  %v3690 = vadd.f32 %v3612, %v3689
  %v3691 = vpop.f32.mrb[0].mxu0
  %v3692 = vpop.f32.mrb[0].mxu0
  %3693 = vdwg.mxu0
  %s3694 = scalar_lea.vmem %s6, 96
  %v3695 = vld [vmem:[%s3694] sm:$0xff]
  %v3696 = vld [vmem:[%s3694 + $0x8] sm:$0xff]
  %v3697 = vld [vmem:[%s3694 + $0x10] sm:$0xff]
  %v3698 = vld [vmem:[%s3694 + $0x18] sm:$0xff]
  %v3699 = vld [vmem:[%s3694 + $0x20] sm:$0xff]
  %v3700 = vld [vmem:[%s3694 + $0x28] sm:$0x77]
  %v3707 = vunpack.c.l.b16 %v3695
  %v3708 = vunpack.c.h.b16 %v3695
  %v3709 = vunpack.c.l.b16 %v3696
  %v3710 = vunpack.c.h.b16 %v3696
  %v3711 = vunpack.c.l.b16 %v3697
  %v3712 = vunpack.c.h.b16 %v3697
  %v3713 = vunpack.c.l.b16 %v3698
  %v3714 = vunpack.c.h.b16 %v3698
  %v3715 = vunpack.c.l.b16 %v3699
  %v3716 = vunpack.c.h.b16 %v3699
  %v3717 = vunpack.c.l.b16 %v3700
  %v3718 = vunpack.c.h.b16 %v3700
  %v3719 = vpack.c.b16 %v3709, %v3707
  %v3720 = vpack.c.b16 %v3710, %v3708
  %v3721 = vpack.c.b16 %v3713, %v3711
  %v3722 = vpack.c.b16 %v3714, %v3712
  %v3723 = vpack.c.b16 %v3717, %v3715
  %v3724 = vpack.c.b16 %v3718, %v3716
  %v3730 = vsel %vm3564, %v3493, 0
  %v3733 = vsel %vm3568, %v3723, 0
  %v3736 = vsel %vm3568, %v3724, 0
  %3738 = vmatprep.subr.bf16.mxu0 %v3720
  %3739 = vmatpush1.bf16.msra.mxu0 %v3719
  %3740 = vmatprep.subr.bf16.mxu0 %v3722
  %3741 = vmatpush1.bf16.msra.mxu0 %v3721
  %3742 = vmatprep.subr.bf16.mxu0 %v3736
  %3743 = vmatpush1.bf16.msra.mxu0 %v3733
  %3744 = vmatprep.subr.bf16.mxu0 0
  %3745 = vmatpush1.bf16.msra.mxu0 0
  %3746 = vmatprep.subr.bf16.mxu0 0
  %3747 = vmatpush1.bf16.msra.mxu0 0
  %3748 = vmatprep.subr.bf16.mxu0 0
  %3749 = vmatpush1.bf16.msra.mxu0 0
  %3750 = vmatprep.subr.bf16.mxu0 0
  %3751 = vmatpush1.bf16.msra.mxu0 0
  %3752 = vmatprep.subr.bf16.mxu0 0
  %3753 = vmatpush1.bf16.msra.mxu0 0
  %3754 = vmatprep.subr.bf16.mxu0 0
  %3755 = vmatpush1.bf16.msra.mxu0 0
  %3756 = vmatprep.subr.bf16.mxu0 0
  %3757 = vmatpush1.bf16.msra.mxu0 0
  %3758 = vmatprep.subr.bf16.mxu0 0
  %3759 = vmatpush1.bf16.msra.mxu0 0
  %3760 = vmatprep.subr.bf16.mxu0 0
  %3761 = vmatpush1.bf16.msra.mxu0 0
  %3762 = vmatprep.subr.bf16.mxu0 0
  %3763 = vmatpush1.bf16.msra.mxu0 0
  %3764 = vmatprep.subr.bf16.mxu0 0
  %3765 = vmatpush1.bf16.msra.mxu0 0
  %3766 = vmatprep.subr.bf16.mxu0 0
  %3767 = vmatpush1.bf16.msra.mxu0 0
  %3768 = vmatprep.subr.bf16.mxu0 0
  %3769 = vmatpush1.bf16.msra.mxu0 0
  %3770 = vmatprep.mubr.bf16.mxu0 0
  %3771 = vmatmul.mubr.bf16.gmra.mrb[0].mxu0 %v3730
  %v3772 = vpop.f32.mrb[0].mxu0
  %v3773 = vadd.f32 0.0, %v3772
  %v3774 = vpop.f32.mrb[0].mxu0
  %v3775 = vadd.f32 0.0, %v3774
  %v3776 = vpop.f32.mrb[0].mxu0
  %v3777 = vpop.f32.mrb[0].mxu0
  %3778 = vdwg.mxu0
  %v3779 = vadd.f32 %v3688, %v3773
  %v3780 = vadd.f32 %v3690, %v3775
  %s3781 = scalar_lea.vmem %s6, 144
  %v3782 = vld [vmem:[%s3781] sm:$0xff]
  %v3783 = vld [vmem:[%s3781 + $0x8] sm:$0xff]
  %v3784 = vld [vmem:[%s3781 + $0x10] sm:$0xff]
  %v3785 = vld [vmem:[%s3781 + $0x18] sm:$0xff]
  %v3786 = vld [vmem:[%s3781 + $0x20] sm:$0xff]
  %v3787 = vld [vmem:[%s3781 + $0x28] sm:$0x77]
  %v3794 = vunpack.c.l.b16 %v3782
  %v3795 = vunpack.c.h.b16 %v3782
  %v3796 = vunpack.c.l.b16 %v3783
  %v3797 = vunpack.c.h.b16 %v3783
  %v3798 = vunpack.c.l.b16 %v3784
  %v3799 = vunpack.c.h.b16 %v3784
  %v3800 = vunpack.c.l.b16 %v3785
  %v3801 = vunpack.c.h.b16 %v3785
  %v3802 = vunpack.c.l.b16 %v3786
  %v3803 = vunpack.c.h.b16 %v3786
  %v3804 = vunpack.c.l.b16 %v3787
  %v3805 = vunpack.c.h.b16 %v3787
  %v3806 = vpack.c.b16 %v3796, %v3794
  %v3807 = vpack.c.b16 %v3797, %v3795
  %v3808 = vpack.c.b16 %v3800, %v3798
  %v3809 = vpack.c.b16 %v3801, %v3799
  %v3810 = vpack.c.b16 %v3804, %v3802
  %v3811 = vpack.c.b16 %v3805, %v3803
  %v3817 = vsel %vm3564, %v3494, 0
  %v3820 = vsel %vm3568, %v3810, 0
  %v3823 = vsel %vm3568, %v3811, 0
  %3825 = vmatprep.subr.bf16.mxu0 %v3807
  %3826 = vmatpush1.bf16.msra.mxu0 %v3806
  %3827 = vmatprep.subr.bf16.mxu0 %v3809
  %3828 = vmatpush1.bf16.msra.mxu0 %v3808
  %3829 = vmatprep.subr.bf16.mxu0 %v3823
  %3830 = vmatpush1.bf16.msra.mxu0 %v3820
  %3831 = vmatprep.subr.bf16.mxu0 0
  %3832 = vmatpush1.bf16.msra.mxu0 0
  %3833 = vmatprep.subr.bf16.mxu0 0
  %3834 = vmatpush1.bf16.msra.mxu0 0
  %3835 = vmatprep.subr.bf16.mxu0 0
  %3836 = vmatpush1.bf16.msra.mxu0 0
  %3837 = vmatprep.subr.bf16.mxu0 0
  %3838 = vmatpush1.bf16.msra.mxu0 0
  %3839 = vmatprep.subr.bf16.mxu0 0
  %3840 = vmatpush1.bf16.msra.mxu0 0
  %3841 = vmatprep.subr.bf16.mxu0 0
  %3842 = vmatpush1.bf16.msra.mxu0 0
  %3843 = vmatprep.subr.bf16.mxu0 0
  %3844 = vmatpush1.bf16.msra.mxu0 0
  %3845 = vmatprep.subr.bf16.mxu0 0
  %3846 = vmatpush1.bf16.msra.mxu0 0
  %3847 = vmatprep.subr.bf16.mxu0 0
  %3848 = vmatpush1.bf16.msra.mxu0 0
  %3849 = vmatprep.subr.bf16.mxu0 0
  %3850 = vmatpush1.bf16.msra.mxu0 0
  %3851 = vmatprep.subr.bf16.mxu0 0
  %3852 = vmatpush1.bf16.msra.mxu0 0
  %3853 = vmatprep.subr.bf16.mxu0 0
  %3854 = vmatpush1.bf16.msra.mxu0 0
  %3855 = vmatprep.subr.bf16.mxu0 0
  %3856 = vmatpush1.bf16.msra.mxu0 0
  %3857 = vmatprep.mubr.bf16.mxu0 0
  %3858 = vmatmul.mubr.bf16.gmra.mrb[0].mxu0 %v3817
  %v3859 = vpop.f32.mrb[0].mxu0
  %v3860 = vadd.f32 0.0, %v3859
  %v3861 = vpop.f32.mrb[0].mxu0
  %v3862 = vadd.f32 0.0, %v3861
  %v3863 = vpop.f32.mrb[0].mxu0
  %v3864 = vpop.f32.mrb[0].mxu0
  %3865 = vdwg.mxu0
  %v3866 = vadd.f32 %v3779, %v3860
  %v3867 = vadd.f32 %v3780, %v3862
  %s3868 = scalar_lea.vmem %s6, 192
  %v3869 = vld [vmem:[%s3868] sm:$0xff]
  %v3870 = vld [vmem:[%s3868 + $0x8] sm:$0xff]
  %v3871 = vld [vmem:[%s3868 + $0x10] sm:$0xff]
  %v3872 = vld [vmem:[%s3868 + $0x18] sm:$0xff]
  %v3873 = vld [vmem:[%s3868 + $0x20] sm:$0xff]
  %v3874 = vld [vmem:[%s3868 + $0x28] sm:$0x77]
  %v3881 = vunpack.c.l.b16 %v3869
  %v3882 = vunpack.c.h.b16 %v3869
  %v3883 = vunpack.c.l.b16 %v3870
  %v3884 = vunpack.c.h.b16 %v3870
  %v3885 = vunpack.c.l.b16 %v3871
  %v3886 = vunpack.c.h.b16 %v3871
  %v3887 = vunpack.c.l.b16 %v3872
  %v3888 = vunpack.c.h.b16 %v3872
  %v3889 = vunpack.c.l.b16 %v3873
  %v3890 = vunpack.c.h.b16 %v3873
  %v3891 = vunpack.c.l.b16 %v3874
  %v3892 = vunpack.c.h.b16 %v3874
  %v3893 = vpack.c.b16 %v3883, %v3881
  %v3894 = vpack.c.b16 %v3884, %v3882
  %v3895 = vpack.c.b16 %v3887, %v3885
  %v3896 = vpack.c.b16 %v3888, %v3886
  %v3897 = vpack.c.b16 %v3891, %v3889
  %v3898 = vpack.c.b16 %v3892, %v3890
  %v3904 = vsel %vm3564, %v3495, 0
  %v3907 = vsel %vm3568, %v3897, 0
  %v3910 = vsel %vm3568, %v3898, 0
  %3912 = vmatprep.subr.bf16.mxu0 %v3894
  %3913 = vmatpush1.bf16.msra.mxu0 %v3893
  %3914 = vmatprep.subr.bf16.mxu0 %v3896
  %3915 = vmatpush1.bf16.msra.mxu0 %v3895
  %3916 = vmatprep.subr.bf16.mxu0 %v3910
  %3917 = vmatpush1.bf16.msra.mxu0 %v3907
  %3918 = vmatprep.subr.bf16.mxu0 0
  %3919 = vmatpush1.bf16.msra.mxu0 0
  %3920 = vmatprep.subr.bf16.mxu0 0
  %3921 = vmatpush1.bf16.msra.mxu0 0
  %3922 = vmatprep.subr.bf16.mxu0 0
  %3923 = vmatpush1.bf16.msra.mxu0 0
  %3924 = vmatprep.subr.bf16.mxu0 0
  %3925 = vmatpush1.bf16.msra.mxu0 0
  %3926 = vmatprep.subr.bf16.mxu0 0
  %3927 = vmatpush1.bf16.msra.mxu0 0
  %3928 = vmatprep.subr.bf16.mxu0 0
  %3929 = vmatpush1.bf16.msra.mxu0 0
  %3930 = vmatprep.subr.bf16.mxu0 0
  %3931 = vmatpush1.bf16.msra.mxu0 0
  %3932 = vmatprep.subr.bf16.mxu0 0
  %3933 = vmatpush1.bf16.msra.mxu0 0
  %3934 = vmatprep.subr.bf16.mxu0 0
  %3935 = vmatpush1.bf16.msra.mxu0 0
  %3936 = vmatprep.subr.bf16.mxu0 0
  %3937 = vmatpush1.bf16.msra.mxu0 0
  %3938 = vmatprep.subr.bf16.mxu0 0
  %3939 = vmatpush1.bf16.msra.mxu0 0
  %3940 = vmatprep.subr.bf16.mxu0 0
  %3941 = vmatpush1.bf16.msra.mxu0 0
  %3942 = vmatprep.subr.bf16.mxu0 0
  %3943 = vmatpush1.bf16.msra.mxu0 0
  %3944 = vmatprep.mubr.bf16.mxu0 0
  %3945 = vmatmul.mubr.bf16.gmra.mrb[0].mxu0 %v3904
  %v3946 = vpop.f32.mrb[0].mxu0
  %v3947 = vadd.f32 0.0, %v3946
  %v3948 = vpop.f32.mrb[0].mxu0
  %v3949 = vadd.f32 0.0, %v3948
  %v3950 = vpop.f32.mrb[0].mxu0
  %v3951 = vpop.f32.mrb[0].mxu0
  %3952 = vdwg.mxu0
  %v3953 = vadd.f32 %v3866, %v3947
  %v3954 = vadd.f32 %v3867, %v3949
  %s3955 = scalar_lea.vmem %s6, 240
  %v3956 = vld [vmem:[%s3955] sm:$0xff]
  %v3957 = vld [vmem:[%s3955 + $0x8] sm:$0xff]
  %v3958 = vld [vmem:[%s3955 + $0x10] sm:$0xff]
  %v3959 = vld [vmem:[%s3955 + $0x18] sm:$0xff]
  %v3960 = vld [vmem:[%s3955 + $0x20] sm:$0xff]
  %v3961 = vld [vmem:[%s3955 + $0x28] sm:$0x77]
  %v3968 = vunpack.c.l.b16 %v3956
  %v3969 = vunpack.c.h.b16 %v3956
  %v3970 = vunpack.c.l.b16 %v3957
  %v3971 = vunpack.c.h.b16 %v3957
  %v3972 = vunpack.c.l.b16 %v3958
  %v3973 = vunpack.c.h.b16 %v3958
  %v3974 = vunpack.c.l.b16 %v3959
  %v3975 = vunpack.c.h.b16 %v3959
  %v3976 = vunpack.c.l.b16 %v3960
  %v3977 = vunpack.c.h.b16 %v3960
  %v3978 = vunpack.c.l.b16 %v3961
  %v3979 = vunpack.c.h.b16 %v3961
  %v3980 = vpack.c.b16 %v3970, %v3968
  %v3981 = vpack.c.b16 %v3971, %v3969
  %v3982 = vpack.c.b16 %v3974, %v3972
  %v3983 = vpack.c.b16 %v3975, %v3973
  %v3984 = vpack.c.b16 %v3978, %v3976
  %v3985 = vpack.c.b16 %v3979, %v3977
  %v3991 = vsel %vm3564, %v3496, 0
  %v3994 = vsel %vm3568, %v3984, 0
  %v3997 = vsel %vm3568, %v3985, 0
  %3999 = vmatprep.subr.bf16.mxu0 %v3981
  %4000 = vmatpush1.bf16.msra.mxu0 %v3980
  %4001 = vmatprep.subr.bf16.mxu0 %v3983
  %4002 = vmatpush1.bf16.msra.mxu0 %v3982
  %4003 = vmatprep.subr.bf16.mxu0 %v3997
  %4004 = vmatpush1.bf16.msra.mxu0 %v3994
  %4005 = vmatprep.subr.bf16.mxu0 0
  %4006 = vmatpush1.bf16.msra.mxu0 0
  %4007 = vmatprep.subr.bf16.mxu0 0
  %4008 = vmatpush1.bf16.msra.mxu0 0
  %4009 = vmatprep.subr.bf16.mxu0 0
  %4010 = vmatpush1.bf16.msra.mxu0 0
  %4011 = vmatprep.subr.bf16.mxu0 0
  %4012 = vmatpush1.bf16.msra.mxu0 0
  %4013 = vmatprep.subr.bf16.mxu0 0
  %4014 = vmatpush1.bf16.msra.mxu0 0
  %4015 = vmatprep.subr.bf16.mxu0 0
  %4016 = vmatpush1.bf16.msra.mxu0 0
  %4017 = vmatprep.subr.bf16.mxu0 0
  %4018 = vmatpush1.bf16.msra.mxu0 0
  %4019 = vmatprep.subr.bf16.mxu0 0
  %4020 = vmatpush1.bf16.msra.mxu0 0
  %4021 = vmatprep.subr.bf16.mxu0 0
  %4022 = vmatpush1.bf16.msra.mxu0 0
  %4023 = vmatprep.subr.bf16.mxu0 0
  %4024 = vmatpush1.bf16.msra.mxu0 0
  %4025 = vmatprep.subr.bf16.mxu0 0
  %4026 = vmatpush1.bf16.msra.mxu0 0
  %4027 = vmatprep.subr.bf16.mxu0 0
  %4028 = vmatpush1.bf16.msra.mxu0 0
  %4029 = vmatprep.subr.bf16.mxu0 0
  %4030 = vmatpush1.bf16.msra.mxu0 0
  %4031 = vmatprep.mubr.bf16.mxu0 0
  %4032 = vmatmul.mubr.bf16.gmra.mrb[0].mxu0 %v3991
  %v4033 = vpop.f32.mrb[0].mxu0
  %v4034 = vadd.f32 0.0, %v4033
  %v4035 = vpop.f32.mrb[0].mxu0
  %v4036 = vadd.f32 0.0, %v4035
  %v4037 = vpop.f32.mrb[0].mxu0
  %v4038 = vpop.f32.mrb[0].mxu0
  %4039 = vdwg.mxu0
  %v4040 = vadd.f32 %v3953, %v4034
  %v4041 = vadd.f32 %v3954, %v4036
  %s4042 = scalar_lea.vmem %s6, 288
  %v4043 = vld [vmem:[%s4042] sm:$0xff]
  %v4044 = vld [vmem:[%s4042 + $0x8] sm:$0xff]
  %v4045 = vld [vmem:[%s4042 + $0x10] sm:$0xff]
  %v4046 = vld [vmem:[%s4042 + $0x18] sm:$0xff]
  %v4047 = vld [vmem:[%s4042 + $0x20] sm:$0xff]
  %v4048 = vld [vmem:[%s4042 + $0x28] sm:$0x77]
  %v4055 = vunpack.c.l.b16 %v4043
  %v4056 = vunpack.c.h.b16 %v4043
  %v4057 = vunpack.c.l.b16 %v4044
  %v4058 = vunpack.c.h.b16 %v4044
  %v4059 = vunpack.c.l.b16 %v4045
  %v4060 = vunpack.c.h.b16 %v4045
  %v4061 = vunpack.c.l.b16 %v4046
  %v4062 = vunpack.c.h.b16 %v4046
  %v4063 = vunpack.c.l.b16 %v4047
  %v4064 = vunpack.c.h.b16 %v4047
  %v4065 = vunpack.c.l.b16 %v4048
  %v4066 = vunpack.c.h.b16 %v4048
  %v4067 = vpack.c.b16 %v4057, %v4055
  %v4068 = vpack.c.b16 %v4058, %v4056
  %v4069 = vpack.c.b16 %v4061, %v4059
  %v4070 = vpack.c.b16 %v4062, %v4060
  %v4071 = vpack.c.b16 %v4065, %v4063
  %v4072 = vpack.c.b16 %v4066, %v4064
  %v4078 = vsel %vm3564, %v3497, 0
  %v4081 = vsel %vm3568, %v4071, 0
  %v4084 = vsel %vm3568, %v4072, 0
  %4086 = vmatprep.subr.bf16.mxu0 %v4068
  %4087 = vmatpush1.bf16.msra.mxu0 %v4067
  %4088 = vmatprep.subr.bf16.mxu0 %v4070
  %4089 = vmatpush1.bf16.msra.mxu0 %v4069
  %4090 = vmatprep.subr.bf16.mxu0 %v4084
  %4091 = vmatpush1.bf16.msra.mxu0 %v4081
  %4092 = vmatprep.subr.bf16.mxu0 0
  %4093 = vmatpush1.bf16.msra.mxu0 0
  %4094 = vmatprep.subr.bf16.mxu0 0
  %4095 = vmatpush1.bf16.msra.mxu0 0
  %4096 = vmatprep.subr.bf16.mxu0 0
  %4097 = vmatpush1.bf16.msra.mxu0 0
  %4098 = vmatprep.subr.bf16.mxu0 0
  %4099 = vmatpush1.bf16.msra.mxu0 0
  %4100 = vmatprep.subr.bf16.mxu0 0
  %4101 = vmatpush1.bf16.msra.mxu0 0
  %4102 = vmatprep.subr.bf16.mxu0 0
  %4103 = vmatpush1.bf16.msra.mxu0 0
  %4104 = vmatprep.subr.bf16.mxu0 0
  %4105 = vmatpush1.bf16.msra.mxu0 0
  %4106 = vmatprep.subr.bf16.mxu0 0
  %4107 = vmatpush1.bf16.msra.mxu0 0
  %4108 = vmatprep.subr.bf16.mxu0 0
  %4109 = vmatpush1.bf16.msra.mxu0 0
  %4110 = vmatprep.subr.bf16.mxu0 0
  %4111 = vmatpush1.bf16.msra.mxu0 0
  %4112 = vmatprep.subr.bf16.mxu0 0
  %4113 = vmatpush1.bf16.msra.mxu0 0
  %4114 = vmatprep.subr.bf16.mxu0 0
  %4115 = vmatpush1.bf16.msra.mxu0 0
  %4116 = vmatprep.subr.bf16.mxu0 0
  %4117 = vmatpush1.bf16.msra.mxu0 0
  %4118 = vmatprep.mubr.bf16.mxu0 0
  %4119 = vmatmul.mubr.bf16.gmra.mrb[0].mxu0 %v4078
  %v4120 = vpop.f32.mrb[0].mxu0
  %v4121 = vadd.f32 0.0, %v4120
  %v4122 = vpop.f32.mrb[0].mxu0
  %v4123 = vadd.f32 0.0, %v4122
  %v4124 = vpop.f32.mrb[0].mxu0
  %v4125 = vpop.f32.mrb[0].mxu0
  %4126 = vdwg.mxu0
  %v4127 = vadd.f32 %v4040, %v4121
  %v4128 = vadd.f32 %v4041, %v4123
  %s4129 = scalar_lea.vmem %s6, 336
  %v4130 = vld [vmem:[%s4129] sm:$0xff]
  %v4131 = vld [vmem:[%s4129 + $0x8] sm:$0xff]
  %v4132 = vld [vmem:[%s4129 + $0x10] sm:$0xff]
  %v4133 = vld [vmem:[%s4129 + $0x18] sm:$0xff]
  %v4134 = vld [vmem:[%s4129 + $0x20] sm:$0xff]
  %v4135 = vld [vmem:[%s4129 + $0x28] sm:$0x77]
  %v4142 = vunpack.c.l.b16 %v4130
  %v4143 = vunpack.c.h.b16 %v4130
  %v4144 = vunpack.c.l.b16 %v4131
  %v4145 = vunpack.c.h.b16 %v4131
  %v4146 = vunpack.c.l.b16 %v4132
  %v4147 = vunpack.c.h.b16 %v4132
  %v4148 = vunpack.c.l.b16 %v4133
  %v4149 = vunpack.c.h.b16 %v4133
  %v4150 = vunpack.c.l.b16 %v4134
  %v4151 = vunpack.c.h.b16 %v4134
  %v4152 = vunpack.c.l.b16 %v4135
  %v4153 = vunpack.c.h.b16 %v4135
  %v4154 = vpack.c.b16 %v4144, %v4142
  %v4155 = vpack.c.b16 %v4145, %v4143
  %v4156 = vpack.c.b16 %v4148, %v4146
  %v4157 = vpack.c.b16 %v4149, %v4147
  %v4158 = vpack.c.b16 %v4152, %v4150
  %v4159 = vpack.c.b16 %v4153, %v4151
  %v4165 = vsel %vm3564, %v3498, 0
  %v4168 = vsel %vm3568, %v4158, 0
  %v4171 = vsel %vm3568, %v4159, 0
  %4173 = vmatprep.subr.bf16.mxu0 %v4155
  %4174 = vmatpush1.bf16.msra.mxu0 %v4154
  %4175 = vmatprep.subr.bf16.mxu0 %v4157
  %4176 = vmatpush1.bf16.msra.mxu0 %v4156
  %4177 = vmatprep.subr.bf16.mxu0 %v4171
  %4178 = vmatpush1.bf16.msra.mxu0 %v4168
  %4179 = vmatprep.subr.bf16.mxu0 0
  %4180 = vmatpush1.bf16.msra.mxu0 0
  %4181 = vmatprep.subr.bf16.mxu0 0
  %4182 = vmatpush1.bf16.msra.mxu0 0
  %4183 = vmatprep.subr.bf16.mxu0 0
  %4184 = vmatpush1.bf16.msra.mxu0 0
  %4185 = vmatprep.subr.bf16.mxu0 0
  %4186 = vmatpush1.bf16.msra.mxu0 0
  %4187 = vmatprep.subr.bf16.mxu0 0
  %4188 = vmatpush1.bf16.msra.mxu0 0
  %4189 = vmatprep.subr.bf16.mxu0 0
  %4190 = vmatpush1.bf16.msra.mxu0 0
  %4191 = vmatprep.subr.bf16.mxu0 0
  %4192 = vmatpush1.bf16.msra.mxu0 0
  %4193 = vmatprep.subr.bf16.mxu0 0
  %4194 = vmatpush1.bf16.msra.mxu0 0
  %4195 = vmatprep.subr.bf16.mxu0 0
  %4196 = vmatpush1.bf16.msra.mxu0 0
  %4197 = vmatprep.subr.bf16.mxu0 0
  %4198 = vmatpush1.bf16.msra.mxu0 0
  %4199 = vmatprep.subr.bf16.mxu0 0
  %4200 = vmatpush1.bf16.msra.mxu0 0
  %4201 = vmatprep.subr.bf16.mxu0 0
  %4202 = vmatpush1.bf16.msra.mxu0 0
  %4203 = vmatprep.subr.bf16.mxu0 0
  %4204 = vmatpush1.bf16.msra.mxu0 0
  %4205 = vmatprep.mubr.bf16.mxu0 0
  %4206 = vmatmul.mubr.bf16.gmra.mrb[0].mxu0 %v4165
  %v4207 = vpop.f32.mrb[0].mxu0
  %v4208 = vadd.f32 0.0, %v4207
  %v4209 = vpop.f32.mrb[0].mxu0
  %v4210 = vadd.f32 0.0, %v4209
  %v4211 = vpop.f32.mrb[0].mxu0
  %v4212 = vpop.f32.mrb[0].mxu0
  %4213 = vdwg.mxu0
  %v4214 = vadd.f32 %v4127, %v4208
  %v4215 = vadd.f32 %v4128, %v4210
  %s4216 = scalar_lea.vmem %s6, 384
  %v4217 = vld [vmem:[%s4216] sm:$0xff]
  %v4218 = vld [vmem:[%s4216 + $0x8] sm:$0xff]
  %v4219 = vld [vmem:[%s4216 + $0x10] sm:$0xff]
  %v4220 = vld [vmem:[%s4216 + $0x18] sm:$0xff]
  %v4221 = vld [vmem:[%s4216 + $0x20] sm:$0xff]
  %v4222 = vld [vmem:[%s4216 + $0x28] sm:$0x77]
  %v4229 = vunpack.c.l.b16 %v4217
  %v4230 = vunpack.c.h.b16 %v4217
  %v4231 = vunpack.c.l.b16 %v4218
  %v4232 = vunpack.c.h.b16 %v4218
  %v4233 = vunpack.c.l.b16 %v4219
  %v4234 = vunpack.c.h.b16 %v4219
  %v4235 = vunpack.c.l.b16 %v4220
  %v4236 = vunpack.c.h.b16 %v4220
  %v4237 = vunpack.c.l.b16 %v4221
  %v4238 = vunpack.c.h.b16 %v4221
  %v4239 = vunpack.c.l.b16 %v4222
  %v4240 = vunpack.c.h.b16 %v4222
  %v4241 = vpack.c.b16 %v4231, %v4229
  %v4242 = vpack.c.b16 %v4232, %v4230
  %v4243 = vpack.c.b16 %v4235, %v4233
  %v4244 = vpack.c.b16 %v4236, %v4234
  %v4245 = vpack.c.b16 %v4239, %v4237
  %v4246 = vpack.c.b16 %v4240, %v4238
  %v4252 = vsel %vm3564, %v3499, 0
  %v4255 = vsel %vm3568, %v4245, 0
  %v4258 = vsel %vm3568, %v4246, 0
  %4260 = vmatprep.subr.bf16.mxu0 %v4242
  %4261 = vmatpush1.bf16.msra.mxu0 %v4241
  %4262 = vmatprep.subr.bf16.mxu0 %v4244
  %4263 = vmatpush1.bf16.msra.mxu0 %v4243
  %4264 = vmatprep.subr.bf16.mxu0 %v4258
  %4265 = vmatpush1.bf16.msra.mxu0 %v4255
  %4266 = vmatprep.subr.bf16.mxu0 0
  %4267 = vmatpush1.bf16.msra.mxu0 0
  %4268 = vmatprep.subr.bf16.mxu0 0
  %4269 = vmatpush1.bf16.msra.mxu0 0
  %4270 = vmatprep.subr.bf16.mxu0 0
  %4271 = vmatpush1.bf16.msra.mxu0 0
  %4272 = vmatprep.subr.bf16.mxu0 0
  %4273 = vmatpush1.bf16.msra.mxu0 0
  %4274 = vmatprep.subr.bf16.mxu0 0
  %4275 = vmatpush1.bf16.msra.mxu0 0
  %4276 = vmatprep.subr.bf16.mxu0 0
  %4277 = vmatpush1.bf16.msra.mxu0 0
  %4278 = vmatprep.subr.bf16.mxu0 0
  %4279 = vmatpush1.bf16.msra.mxu0 0
  %4280 = vmatprep.subr.bf16.mxu0 0
  %4281 = vmatpush1.bf16.msra.mxu0 0
  %4282 = vmatprep.subr.bf16.mxu0 0
  %4283 = vmatpush1.bf16.msra.mxu0 0
  %4284 = vmatprep.subr.bf16.mxu0 0
  %4285 = vmatpush1.bf16.msra.mxu0 0
  %4286 = vmatprep.subr.bf16.mxu0 0
  %4287 = vmatpush1.bf16.msra.mxu0 0
  %4288 = vmatprep.subr.bf16.mxu0 0
  %4289 = vmatpush1.bf16.msra.mxu0 0
  %4290 = vmatprep.subr.bf16.mxu0 0
  %4291 = vmatpush1.bf16.msra.mxu0 0
  %4292 = vmatprep.mubr.bf16.mxu0 0
  %4293 = vmatmul.mubr.bf16.gmra.mrb[0].mxu0 %v4252
  %v4294 = vpop.f32.mrb[0].mxu0
  %v4295 = vadd.f32 0.0, %v4294
  %v4296 = vpop.f32.mrb[0].mxu0
  %v4297 = vadd.f32 0.0, %v4296
  %v4298 = vpop.f32.mrb[0].mxu0
  %v4299 = vpop.f32.mrb[0].mxu0
  %4300 = vdwg.mxu0
  %v4301 = vadd.f32 %v4214, %v4295
  %v4302 = vadd.f32 %v4215, %v4297
  %s4303 = scalar_lea.vmem %s6, 432
  %v4304 = vld [vmem:[%s4303] sm:$0xff]
  %v4305 = vld [vmem:[%s4303 + $0x8] sm:$0xff]
  %v4306 = vld [vmem:[%s4303 + $0x10] sm:$0xff]
  %v4307 = vld [vmem:[%s4303 + $0x18] sm:$0xff]
  %v4308 = vld [vmem:[%s4303 + $0x20] sm:$0xff]
  %v4309 = vld [vmem:[%s4303 + $0x28] sm:$0x77]
  %v4316 = vunpack.c.l.b16 %v4304
  %v4317 = vunpack.c.h.b16 %v4304
  %v4318 = vunpack.c.l.b16 %v4305
  %v4319 = vunpack.c.h.b16 %v4305
  %v4320 = vunpack.c.l.b16 %v4306
  %v4321 = vunpack.c.h.b16 %v4306
  %v4322 = vunpack.c.l.b16 %v4307
  %v4323 = vunpack.c.h.b16 %v4307
  %v4324 = vunpack.c.l.b16 %v4308
  %v4325 = vunpack.c.h.b16 %v4308
  %v4326 = vunpack.c.l.b16 %v4309
  %v4327 = vunpack.c.h.b16 %v4309
  %v4328 = vpack.c.b16 %v4318, %v4316
  %v4329 = vpack.c.b16 %v4319, %v4317
  %v4330 = vpack.c.b16 %v4322, %v4320
  %v4331 = vpack.c.b16 %v4323, %v4321
  %v4332 = vpack.c.b16 %v4326, %v4324
  %v4333 = vpack.c.b16 %v4327, %v4325
  %v4339 = vsel %vm3564, %v3500, 0
  %v4342 = vsel %vm3568, %v4332, 0
  %v4345 = vsel %vm3568, %v4333, 0
  %4347 = vmatprep.subr.bf16.mxu0 %v4329
  %4348 = vmatpush1.bf16.msra.mxu0 %v4328
  %4349 = vmatprep.subr.bf16.mxu0 %v4331
  %4350 = vmatpush1.bf16.msra.mxu0 %v4330
  %4351 = vmatprep.subr.bf16.mxu0 %v4345
  %4352 = vmatpush1.bf16.msra.mxu0 %v4342
  %4353 = vmatprep.subr.bf16.mxu0 0
  %4354 = vmatpush1.bf16.msra.mxu0 0
  %4355 = vmatprep.subr.bf16.mxu0 0
  %4356 = vmatpush1.bf16.msra.mxu0 0
  %4357 = vmatprep.subr.bf16.mxu0 0
  %4358 = vmatpush1.bf16.msra.mxu0 0
  %4359 = vmatprep.subr.bf16.mxu0 0
  %4360 = vmatpush1.bf16.msra.mxu0 0
  %4361 = vmatprep.subr.bf16.mxu0 0
  %4362 = vmatpush1.bf16.msra.mxu0 0
  %4363 = vmatprep.subr.bf16.mxu0 0
  %4364 = vmatpush1.bf16.msra.mxu0 0
  %4365 = vmatprep.subr.bf16.mxu0 0
  %4366 = vmatpush1.bf16.msra.mxu0 0
  %4367 = vmatprep.subr.bf16.mxu0 0
  %4368 = vmatpush1.bf16.msra.mxu0 0
  %4369 = vmatprep.subr.bf16.mxu0 0
  %4370 = vmatpush1.bf16.msra.mxu0 0
  %4371 = vmatprep.subr.bf16.mxu0 0
  %4372 = vmatpush1.bf16.msra.mxu0 0
  %4373 = vmatprep.subr.bf16.mxu0 0
  %4374 = vmatpush1.bf16.msra.mxu0 0
  %4375 = vmatprep.subr.bf16.mxu0 0
  %4376 = vmatpush1.bf16.msra.mxu0 0
  %4377 = vmatprep.subr.bf16.mxu0 0
  %4378 = vmatpush1.bf16.msra.mxu0 0
  %4379 = vmatprep.mubr.bf16.mxu0 0
  %4380 = vmatmul.mubr.bf16.gmra.mrb[0].mxu0 %v4339
  %v4381 = vpop.f32.mrb[0].mxu0
  %v4382 = vadd.f32 0.0, %v4381
  %v4383 = vpop.f32.mrb[0].mxu0
  %v4384 = vadd.f32 0.0, %v4383
  %v4385 = vpop.f32.mrb[0].mxu0
  %v4386 = vpop.f32.mrb[0].mxu0
  %4387 = vdwg.mxu0
  %v4388 = vadd.f32 %v4301, %v4382
  %v4389 = vadd.f32 %v4302, %v4384
  %s4390 = scalar_lea.vmem %s6, 480
  %v4391 = vld [vmem:[%s4390] sm:$0xff]
  %v4392 = vld [vmem:[%s4390 + $0x8] sm:$0xff]
  %v4393 = vld [vmem:[%s4390 + $0x10] sm:$0xff]
  %v4394 = vld [vmem:[%s4390 + $0x18] sm:$0xff]
  %v4395 = vld [vmem:[%s4390 + $0x20] sm:$0xff]
  %v4396 = vld [vmem:[%s4390 + $0x28] sm:$0x77]
  %v4403 = vunpack.c.l.b16 %v4391
  %v4404 = vunpack.c.h.b16 %v4391
  %v4405 = vunpack.c.l.b16 %v4392
  %v4406 = vunpack.c.h.b16 %v4392
  %v4407 = vunpack.c.l.b16 %v4393
  %v4408 = vunpack.c.h.b16 %v4393
  %v4409 = vunpack.c.l.b16 %v4394
  %v4410 = vunpack.c.h.b16 %v4394
  %v4411 = vunpack.c.l.b16 %v4395
  %v4412 = vunpack.c.h.b16 %v4395
  %v4413 = vunpack.c.l.b16 %v4396
  %v4414 = vunpack.c.h.b16 %v4396
  %v4415 = vpack.c.b16 %v4405, %v4403
  %v4416 = vpack.c.b16 %v4406, %v4404
  %v4417 = vpack.c.b16 %v4409, %v4407
  %v4418 = vpack.c.b16 %v4410, %v4408
  %v4419 = vpack.c.b16 %v4413, %v4411
  %v4420 = vpack.c.b16 %v4414, %v4412
  %v4426 = vsel %vm3564, %v3501, 0
  %v4429 = vsel %vm3568, %v4419, 0
  %v4432 = vsel %vm3568, %v4420, 0
  %4434 = vmatprep.subr.bf16.mxu0 %v4416
  %4435 = vmatpush1.bf16.msra.mxu0 %v4415
  %4436 = vmatprep.subr.bf16.mxu0 %v4418
  %4437 = vmatpush1.bf16.msra.mxu0 %v4417
  %4438 = vmatprep.subr.bf16.mxu0 %v4432
  %4439 = vmatpush1.bf16.msra.mxu0 %v4429
  %4440 = vmatprep.subr.bf16.mxu0 0
  %4441 = vmatpush1.bf16.msra.mxu0 0
  %4442 = vmatprep.subr.bf16.mxu0 0
  %4443 = vmatpush1.bf16.msra.mxu0 0
  %4444 = vmatprep.subr.bf16.mxu0 0
  %4445 = vmatpush1.bf16.msra.mxu0 0
  %4446 = vmatprep.subr.bf16.mxu0 0
  %4447 = vmatpush1.bf16.msra.mxu0 0
  %4448 = vmatprep.subr.bf16.mxu0 0
  %4449 = vmatpush1.bf16.msra.mxu0 0
  %4450 = vmatprep.subr.bf16.mxu0 0
  %4451 = vmatpush1.bf16.msra.mxu0 0
  %4452 = vmatprep.subr.bf16.mxu0 0
  %4453 = vmatpush1.bf16.msra.mxu0 0
  %4454 = vmatprep.subr.bf16.mxu0 0
  %4455 = vmatpush1.bf16.msra.mxu0 0
  %4456 = vmatprep.subr.bf16.mxu0 0
  %4457 = vmatpush1.bf16.msra.mxu0 0
  %4458 = vmatprep.subr.bf16.mxu0 0
  %4459 = vmatpush1.bf16.msra.mxu0 0
  %4460 = vmatprep.subr.bf16.mxu0 0
  %4461 = vmatpush1.bf16.msra.mxu0 0
  %4462 = vmatprep.subr.bf16.mxu0 0
  %4463 = vmatpush1.bf16.msra.mxu0 0
  %4464 = vmatprep.subr.bf16.mxu0 0
  %4465 = vmatpush1.bf16.msra.mxu0 0
  %4466 = vmatprep.mubr.bf16.mxu0 0
  %4467 = vmatmul.mubr.bf16.gmra.mrb[0].mxu0 %v4426
  %v4468 = vpop.f32.mrb[0].mxu0
  %v4469 = vadd.f32 0.0, %v4468
  %v4470 = vpop.f32.mrb[0].mxu0
  %v4471 = vadd.f32 0.0, %v4470
  %v4472 = vpop.f32.mrb[0].mxu0
  %v4473 = vpop.f32.mrb[0].mxu0
  %4474 = vdwg.mxu0
  %v4475 = vadd.f32 %v4388, %v4469
  %v4476 = vadd.f32 %v4389, %v4471
  %s4477 = scalar_lea.vmem %s6, 528
  %v4478 = vld [vmem:[%s4477] sm:$0xff]
  %v4479 = vld [vmem:[%s4477 + $0x8] sm:$0xff]
  %v4480 = vld [vmem:[%s4477 + $0x10] sm:$0xff]
  %v4481 = vld [vmem:[%s4477 + $0x18] sm:$0xff]
  %v4482 = vld [vmem:[%s4477 + $0x20] sm:$0xff]
  %v4483 = vld [vmem:[%s4477 + $0x28] sm:$0x77]
  %v4490 = vunpack.c.l.b16 %v4478
  %v4491 = vunpack.c.h.b16 %v4478
  %v4492 = vunpack.c.l.b16 %v4479
  %v4493 = vunpack.c.h.b16 %v4479
  %v4494 = vunpack.c.l.b16 %v4480
  %v4495 = vunpack.c.h.b16 %v4480
  %v4496 = vunpack.c.l.b16 %v4481
  %v4497 = vunpack.c.h.b16 %v4481
  %v4498 = vunpack.c.l.b16 %v4482
  %v4499 = vunpack.c.h.b16 %v4482
  %v4500 = vunpack.c.l.b16 %v4483
  %v4501 = vunpack.c.h.b16 %v4483
  %v4502 = vpack.c.b16 %v4492, %v4490
  %v4503 = vpack.c.b16 %v4493, %v4491
  %v4504 = vpack.c.b16 %v4496, %v4494
  %v4505 = vpack.c.b16 %v4497, %v4495
  %v4506 = vpack.c.b16 %v4500, %v4498
  %v4507 = vpack.c.b16 %v4501, %v4499
  %v4513 = vsel %vm3564, %v3502, 0
  %v4516 = vsel %vm3568, %v4506, 0
  %v4519 = vsel %vm3568, %v4507, 0
  %4521 = vmatprep.subr.bf16.mxu0 %v4503
  %4522 = vmatpush1.bf16.msra.mxu0 %v4502
  %4523 = vmatprep.subr.bf16.mxu0 %v4505
  %4524 = vmatpush1.bf16.msra.mxu0 %v4504
  %4525 = vmatprep.subr.bf16.mxu0 %v4519
  %4526 = vmatpush1.bf16.msra.mxu0 %v4516
  %4527 = vmatprep.subr.bf16.mxu0 0
  %4528 = vmatpush1.bf16.msra.mxu0 0
  %4529 = vmatprep.subr.bf16.mxu0 0
  %4530 = vmatpush1.bf16.msra.mxu0 0
  %4531 = vmatprep.subr.bf16.mxu0 0
  %4532 = vmatpush1.bf16.msra.mxu0 0
  %4533 = vmatprep.subr.bf16.mxu0 0
  %4534 = vmatpush1.bf16.msra.mxu0 0
  %4535 = vmatprep.subr.bf16.mxu0 0
  %4536 = vmatpush1.bf16.msra.mxu0 0
  %4537 = vmatprep.subr.bf16.mxu0 0
  %4538 = vmatpush1.bf16.msra.mxu0 0
  %4539 = vmatprep.subr.bf16.mxu0 0
  %4540 = vmatpush1.bf16.msra.mxu0 0
  %4541 = vmatprep.subr.bf16.mxu0 0
  %4542 = vmatpush1.bf16.msra.mxu0 0
  %4543 = vmatprep.subr.bf16.mxu0 0
  %4544 = vmatpush1.bf16.msra.mxu0 0
  %4545 = vmatprep.subr.bf16.mxu0 0
  %4546 = vmatpush1.bf16.msra.mxu0 0
  %4547 = vmatprep.subr.bf16.mxu0 0
  %4548 = vmatpush1.bf16.msra.mxu0 0
  %4549 = vmatprep.subr.bf16.mxu0 0
  %4550 = vmatpush1.bf16.msra.mxu0 0
  %4551 = vmatprep.subr.bf16.mxu0 0
  %4552 = vmatpush1.bf16.msra.mxu0 0
  %4553 = vmatprep.mubr.bf16.mxu0 0
  %4554 = vmatmul.mubr.bf16.gmra.mrb[0].mxu0 %v4513
  %v4555 = vpop.f32.mrb[0].mxu0
  %v4556 = vadd.f32 0.0, %v4555
  %v4557 = vpop.f32.mrb[0].mxu0
  %v4558 = vadd.f32 0.0, %v4557
  %v4559 = vpop.f32.mrb[0].mxu0
  %v4560 = vpop.f32.mrb[0].mxu0
  %4561 = vdwg.mxu0
  %v4562 = vadd.f32 %v4475, %v4556
  %v4563 = vadd.f32 %v4476, %v4558
  %s4564 = scalar_lea.vmem %s6, 576
  %v4565 = vld [vmem:[%s4564] sm:$0xff]
  %v4566 = vld [vmem:[%s4564 + $0x8] sm:$0xff]
  %v4567 = vld [vmem:[%s4564 + $0x10] sm:$0xff]
  %v4568 = vld [vmem:[%s4564 + $0x18] sm:$0xff]
  %v4569 = vld [vmem:[%s4564 + $0x20] sm:$0xff]
  %v4570 = vld [vmem:[%s4564 + $0x28] sm:$0x77]
  %v4577 = vunpack.c.l.b16 %v4565
  %v4578 = vunpack.c.h.b16 %v4565
  %v4579 = vunpack.c.l.b16 %v4566
  %v4580 = vunpack.c.h.b16 %v4566
  %v4581 = vunpack.c.l.b16 %v4567
  %v4582 = vunpack.c.h.b16 %v4567
  %v4583 = vunpack.c.l.b16 %v4568
  %v4584 = vunpack.c.h.b16 %v4568
  %v4585 = vunpack.c.l.b16 %v4569
  %v4586 = vunpack.c.h.b16 %v4569
  %v4587 = vunpack.c.l.b16 %v4570
  %v4588 = vunpack.c.h.b16 %v4570
  %v4589 = vpack.c.b16 %v4579, %v4577
  %v4590 = vpack.c.b16 %v4580, %v4578
  %v4591 = vpack.c.b16 %v4583, %v4581
  %v4592 = vpack.c.b16 %v4584, %v4582
  %v4593 = vpack.c.b16 %v4587, %v4585
  %v4594 = vpack.c.b16 %v4588, %v4586
  %v4600 = vsel %vm3564, %v3503, 0
  %v4603 = vsel %vm3568, %v4593, 0
  %v4606 = vsel %vm3568, %v4594, 0
  %4608 = vmatprep.subr.bf16.mxu0 %v4590
  %4609 = vmatpush1.bf16.msra.mxu0 %v4589
  %4610 = vmatprep.subr.bf16.mxu0 %v4592
  %4611 = vmatpush1.bf16.msra.mxu0 %v4591
  %4612 = vmatprep.subr.bf16.mxu0 %v4606
  %4613 = vmatpush1.bf16.msra.mxu0 %v4603
  %4614 = vmatprep.subr.bf16.mxu0 0
  %4615 = vmatpush1.bf16.msra.mxu0 0
  %4616 = vmatprep.subr.bf16.mxu0 0
  %4617 = vmatpush1.bf16.msra.mxu0 0
  %4618 = vmatprep.subr.bf16.mxu0 0
  %4619 = vmatpush1.bf16.msra.mxu0 0
  %4620 = vmatprep.subr.bf16.mxu0 0
  %4621 = vmatpush1.bf16.msra.mxu0 0
  %4622 = vmatprep.subr.bf16.mxu0 0
  %4623 = vmatpush1.bf16.msra.mxu0 0
  %4624 = vmatprep.subr.bf16.mxu0 0
  %4625 = vmatpush1.bf16.msra.mxu0 0
  %4626 = vmatprep.subr.bf16.mxu0 0
  %4627 = vmatpush1.bf16.msra.mxu0 0
  %4628 = vmatprep.subr.bf16.mxu0 0
  %4629 = vmatpush1.bf16.msra.mxu0 0
  %4630 = vmatprep.subr.bf16.mxu0 0
  %4631 = vmatpush1.bf16.msra.mxu0 0
  %4632 = vmatprep.subr.bf16.mxu0 0
  %4633 = vmatpush1.bf16.msra.mxu0 0
  %4634 = vmatprep.subr.bf16.mxu0 0
  %4635 = vmatpush1.bf16.msra.mxu0 0
  %4636 = vmatprep.subr.bf16.mxu0 0
  %4637 = vmatpush1.bf16.msra.mxu0 0
  %4638 = vmatprep.subr.bf16.mxu0 0
  %4639 = vmatpush1.bf16.msra.mxu0 0
  %4640 = vmatprep.mubr.bf16.mxu0 0
  %4641 = vmatmul.mubr.bf16.gmra.mrb[0].mxu0 %v4600
  %v4642 = vpop.f32.mrb[0].mxu0
  %v4643 = vadd.f32 0.0, %v4642
  %v4644 = vpop.f32.mrb[0].mxu0
  %v4645 = vadd.f32 0.0, %v4644
  %v4646 = vpop.f32.mrb[0].mxu0
  %v4647 = vpop.f32.mrb[0].mxu0
  %4648 = vdwg.mxu0
  %v4649 = vadd.f32 %v4562, %v4643
  %v4650 = vadd.f32 %v4563, %v4645
  %s4651 = scalar_lea.vmem %s6, 624
  %v4652 = vld [vmem:[%s4651] sm:$0xff]
  %v4653 = vld [vmem:[%s4651 + $0x8] sm:$0xff]
  %v4654 = vld [vmem:[%s4651 + $0x10] sm:$0xff]
  %v4655 = vld [vmem:[%s4651 + $0x18] sm:$0xff]
  %v4656 = vld [vmem:[%s4651 + $0x20] sm:$0xff]
  %v4657 = vld [vmem:[%s4651 + $0x28] sm:$0x77]
  %v4664 = vunpack.c.l.b16 %v4652
  %v4665 = vunpack.c.h.b16 %v4652
  %v4666 = vunpack.c.l.b16 %v4653
  %v4667 = vunpack.c.h.b16 %v4653
  %v4668 = vunpack.c.l.b16 %v4654
  %v4669 = vunpack.c.h.b16 %v4654
  %v4670 = vunpack.c.l.b16 %v4655
  %v4671 = vunpack.c.h.b16 %v4655
  %v4672 = vunpack.c.l.b16 %v4656
  %v4673 = vunpack.c.h.b16 %v4656
  %v4674 = vunpack.c.l.b16 %v4657
  %v4675 = vunpack.c.h.b16 %v4657
  %v4676 = vpack.c.b16 %v4666, %v4664
  %v4677 = vpack.c.b16 %v4667, %v4665
  %v4678 = vpack.c.b16 %v4670, %v4668
  %v4679 = vpack.c.b16 %v4671, %v4669
  %v4680 = vpack.c.b16 %v4674, %v4672
  %v4681 = vpack.c.b16 %v4675, %v4673
  %v4687 = vsel %vm3564, %v3504, 0
  %v4690 = vsel %vm3568, %v4680, 0
  %v4693 = vsel %vm3568, %v4681, 0
  %4695 = vmatprep.subr.bf16.mxu0 %v4677
  %4696 = vmatpush1.bf16.msra.mxu0 %v4676
  %4697 = vmatprep.subr.bf16.mxu0 %v4679
  %4698 = vmatpush1.bf16.msra.mxu0 %v4678
  %4699 = vmatprep.subr.bf16.mxu0 %v4693
  %4700 = vmatpush1.bf16.msra.mxu0 %v4690
  %4701 = vmatprep.subr.bf16.mxu0 0
  %4702 = vmatpush1.bf16.msra.mxu0 0
  %4703 = vmatprep.subr.bf16.mxu0 0
  %4704 = vmatpush1.bf16.msra.mxu0 0
  %4705 = vmatprep.subr.bf16.mxu0 0
  %4706 = vmatpush1.bf16.msra.mxu0 0
  %4707 = vmatprep.subr.bf16.mxu0 0
  %4708 = vmatpush1.bf16.msra.mxu0 0
  %4709 = vmatprep.subr.bf16.mxu0 0
  %4710 = vmatpush1.bf16.msra.mxu0 0
  %4711 = vmatprep.subr.bf16.mxu0 0
  %4712 = vmatpush1.bf16.msra.mxu0 0
  %4713 = vmatprep.subr.bf16.mxu0 0
  %4714 = vmatpush1.bf16.msra.mxu0 0
  %4715 = vmatprep.subr.bf16.mxu0 0
  %4716 = vmatpush1.bf16.msra.mxu0 0
  %4717 = vmatprep.subr.bf16.mxu0 0
  %4718 = vmatpush1.bf16.msra.mxu0 0
  %4719 = vmatprep.subr.bf16.mxu0 0
  %4720 = vmatpush1.bf16.msra.mxu0 0
  %4721 = vmatprep.subr.bf16.mxu0 0
  %4722 = vmatpush1.bf16.msra.mxu0 0
  %4723 = vmatprep.subr.bf16.mxu0 0
  %4724 = vmatpush1.bf16.msra.mxu0 0
  %4725 = vmatprep.subr.bf16.mxu0 0
  %4726 = vmatpush1.bf16.msra.mxu0 0
  %4727 = vmatprep.mubr.bf16.mxu0 0
  %4728 = vmatmul.mubr.bf16.gmra.mrb[0].mxu0 %v4687
  %v4729 = vpop.f32.mrb[0].mxu0
  %v4730 = vadd.f32 0.0, %v4729
  %v4731 = vpop.f32.mrb[0].mxu0
  %v4732 = vadd.f32 0.0, %v4731
  %v4733 = vpop.f32.mrb[0].mxu0
  %v4734 = vpop.f32.mrb[0].mxu0
  %4735 = vdwg.mxu0
  %v4736 = vadd.f32 %v4649, %v4730
  %v4737 = vadd.f32 %v4650, %v4732
  %s4738 = scalar_lea.vmem %s6, 672
  %v4739 = vld [vmem:[%s4738] sm:$0xff]
  %v4740 = vld [vmem:[%s4738 + $0x8] sm:$0xff]
  %v4741 = vld [vmem:[%s4738 + $0x10] sm:$0xff]
  %v4742 = vld [vmem:[%s4738 + $0x18] sm:$0xff]
  %v4743 = vld [vmem:[%s4738 + $0x20] sm:$0xff]
  %v4744 = vld [vmem:[%s4738 + $0x28] sm:$0x77]
  %v4751 = vunpack.c.l.b16 %v4739
  %v4752 = vunpack.c.h.b16 %v4739
  %v4753 = vunpack.c.l.b16 %v4740
  %v4754 = vunpack.c.h.b16 %v4740
  %v4755 = vunpack.c.l.b16 %v4741
  %v4756 = vunpack.c.h.b16 %v4741
  %v4757 = vunpack.c.l.b16 %v4742
  %v4758 = vunpack.c.h.b16 %v4742
  %v4759 = vunpack.c.l.b16 %v4743
  %v4760 = vunpack.c.h.b16 %v4743
  %v4761 = vunpack.c.l.b16 %v4744
  %v4762 = vunpack.c.h.b16 %v4744
  %v4763 = vpack.c.b16 %v4753, %v4751
  %v4764 = vpack.c.b16 %v4754, %v4752
  %v4765 = vpack.c.b16 %v4757, %v4755
  %v4766 = vpack.c.b16 %v4758, %v4756
  %v4767 = vpack.c.b16 %v4761, %v4759
  %v4768 = vpack.c.b16 %v4762, %v4760
  %v4774 = vsel %vm3564, %v3505, 0
  %v4777 = vsel %vm3568, %v4767, 0
  %v4780 = vsel %vm3568, %v4768, 0
  %4782 = vmatprep.subr.bf16.mxu0 %v4764
  %4783 = vmatpush1.bf16.msra.mxu0 %v4763
  %4784 = vmatprep.subr.bf16.mxu0 %v4766
  %4785 = vmatpush1.bf16.msra.mxu0 %v4765
  %4786 = vmatprep.subr.bf16.mxu0 %v4780
  %4787 = vmatpush1.bf16.msra.mxu0 %v4777
  %4788 = vmatprep.subr.bf16.mxu0 0
  %4789 = vmatpush1.bf16.msra.mxu0 0
  %4790 = vmatprep.subr.bf16.mxu0 0
  %4791 = vmatpush1.bf16.msra.mxu0 0
  %4792 = vmatprep.subr.bf16.mxu0 0
  %4793 = vmatpush1.bf16.msra.mxu0 0
  %4794 = vmatprep.subr.bf16.mxu0 0
  %4795 = vmatpush1.bf16.msra.mxu0 0
  %4796 = vmatprep.subr.bf16.mxu0 0
  %4797 = vmatpush1.bf16.msra.mxu0 0
  %4798 = vmatprep.subr.bf16.mxu0 0
  %4799 = vmatpush1.bf16.msra.mxu0 0
  %4800 = vmatprep.subr.bf16.mxu0 0
  %4801 = vmatpush1.bf16.msra.mxu0 0
  %4802 = vmatprep.subr.bf16.mxu0 0
  %4803 = vmatpush1.bf16.msra.mxu0 0
  %4804 = vmatprep.subr.bf16.mxu0 0
  %4805 = vmatpush1.bf16.msra.mxu0 0
  %4806 = vmatprep.subr.bf16.mxu0 0
  %4807 = vmatpush1.bf16.msra.mxu0 0
  %4808 = vmatprep.subr.bf16.mxu0 0
  %4809 = vmatpush1.bf16.msra.mxu0 0
  %4810 = vmatprep.subr.bf16.mxu0 0
  %4811 = vmatpush1.bf16.msra.mxu0 0
  %4812 = vmatprep.subr.bf16.mxu0 0
  %4813 = vmatpush1.bf16.msra.mxu0 0
  %4814 = vmatprep.mubr.bf16.mxu0 0
  %4815 = vmatmul.mubr.bf16.gmra.mrb[0].mxu0 %v4774
  %v4816 = vpop.f32.mrb[0].mxu0
  %v4817 = vadd.f32 0.0, %v4816
  %v4818 = vpop.f32.mrb[0].mxu0
  %v4819 = vadd.f32 0.0, %v4818
  %v4820 = vpop.f32.mrb[0].mxu0
  %v4821 = vpop.f32.mrb[0].mxu0
  %4822 = vdwg.mxu0
  %v4823 = vadd.f32 %v4736, %v4817
  %v4824 = vadd.f32 %v4737, %v4819
  %s4825 = scalar_lea.vmem %s6, 720
  %v4826 = vld [vmem:[%s4825] sm:$0xff]
  %v4827 = vld [vmem:[%s4825 + $0x8] sm:$0xff]
  %v4828 = vld [vmem:[%s4825 + $0x10] sm:$0xff]
  %v4829 = vld [vmem:[%s4825 + $0x18] sm:$0xff]
  %v4830 = vld [vmem:[%s4825 + $0x20] sm:$0xff]
  %v4831 = vld [vmem:[%s4825 + $0x28] sm:$0x77]
  %v4838 = vunpack.c.l.b16 %v4826
  %v4839 = vunpack.c.h.b16 %v4826
  %v4840 = vunpack.c.l.b16 %v4827
  %v4841 = vunpack.c.h.b16 %v4827
  %v4842 = vunpack.c.l.b16 %v4828
  %v4843 = vunpack.c.h.b16 %v4828
  %v4844 = vunpack.c.l.b16 %v4829
  %v4845 = vunpack.c.h.b16 %v4829
  %v4846 = vunpack.c.l.b16 %v4830
  %v4847 = vunpack.c.h.b16 %v4830
  %v4848 = vunpack.c.l.b16 %v4831
  %v4849 = vunpack.c.h.b16 %v4831
  %v4850 = vpack.c.b16 %v4840, %v4838
  %v4851 = vpack.c.b16 %v4841, %v4839
  %v4852 = vpack.c.b16 %v4844, %v4842
  %v4853 = vpack.c.b16 %v4845, %v4843
  %v4854 = vpack.c.b16 %v4848, %v4846
  %v4855 = vpack.c.b16 %v4849, %v4847
  %v4861 = vsel %vm3564, %v3506, 0
  %v4864 = vsel %vm3568, %v4854, 0
  %v4867 = vsel %vm3568, %v4855, 0
  %4869 = vmatprep.subr.bf16.mxu0 %v4851
  %4870 = vmatpush1.bf16.msra.mxu0 %v4850
  %4871 = vmatprep.subr.bf16.mxu0 %v4853
  %4872 = vmatpush1.bf16.msra.mxu0 %v4852
  %4873 = vmatprep.subr.bf16.mxu0 %v4867
  %4874 = vmatpush1.bf16.msra.mxu0 %v4864
  %4875 = vmatprep.subr.bf16.mxu0 0
  %4876 = vmatpush1.bf16.msra.mxu0 0
  %4877 = vmatprep.subr.bf16.mxu0 0
  %4878 = vmatpush1.bf16.msra.mxu0 0
  %4879 = vmatprep.subr.bf16.mxu0 0
  %4880 = vmatpush1.bf16.msra.mxu0 0
  %4881 = vmatprep.subr.bf16.mxu0 0
  %4882 = vmatpush1.bf16.msra.mxu0 0
  %4883 = vmatprep.subr.bf16.mxu0 0
  %4884 = vmatpush1.bf16.msra.mxu0 0
  %4885 = vmatprep.subr.bf16.mxu0 0
  %4886 = vmatpush1.bf16.msra.mxu0 0
  %4887 = vmatprep.subr.bf16.mxu0 0
  %4888 = vmatpush1.bf16.msra.mxu0 0
  %4889 = vmatprep.subr.bf16.mxu0 0
  %4890 = vmatpush1.bf16.msra.mxu0 0
  %4891 = vmatprep.subr.bf16.mxu0 0
  %4892 = vmatpush1.bf16.msra.mxu0 0
  %4893 = vmatprep.subr.bf16.mxu0 0
  %4894 = vmatpush1.bf16.msra.mxu0 0
  %4895 = vmatprep.subr.bf16.mxu0 0
  %4896 = vmatpush1.bf16.msra.mxu0 0
  %4897 = vmatprep.subr.bf16.mxu0 0
  %4898 = vmatpush1.bf16.msra.mxu0 0
  %4899 = vmatprep.subr.bf16.mxu0 0
  %4900 = vmatpush1.bf16.msra.mxu0 0
  %4901 = vmatprep.mubr.bf16.mxu0 0
  %4902 = vmatmul.mubr.bf16.gmra.mrb[0].mxu0 %v4861
  %v4903 = vpop.f32.mrb[0].mxu0
  %v4904 = vadd.f32 0.0, %v4903
  %v4905 = vpop.f32.mrb[0].mxu0
  %v4906 = vadd.f32 0.0, %v4905
  %v4907 = vpop.f32.mrb[0].mxu0
  %v4908 = vpop.f32.mrb[0].mxu0
  %4909 = vdwg.mxu0
  %v4910 = vadd.f32 %v4823, %v4904
  %v4911 = vadd.f32 %v4824, %v4906
  %s4912 = scalar_lea.vmem %s6, 768
  %v4913 = vld [vmem:[%s4912] sm:$0xff]
  %v4914 = vld [vmem:[%s4912 + $0x8] sm:$0xff]
  %v4915 = vld [vmem:[%s4912 + $0x10] sm:$0xff]
  %v4916 = vld [vmem:[%s4912 + $0x18] sm:$0xff]
  %v4917 = vld [vmem:[%s4912 + $0x20] sm:$0xff]
  %v4918 = vld [vmem:[%s4912 + $0x28] sm:$0x77]
  %v4925 = vunpack.c.l.b16 %v4913
  %v4926 = vunpack.c.h.b16 %v4913
  %v4927 = vunpack.c.l.b16 %v4914
  %v4928 = vunpack.c.h.b16 %v4914
  %v4929 = vunpack.c.l.b16 %v4915
  %v4930 = vunpack.c.h.b16 %v4915
  %v4931 = vunpack.c.l.b16 %v4916
  %v4932 = vunpack.c.h.b16 %v4916
  %v4933 = vunpack.c.l.b16 %v4917
  %v4934 = vunpack.c.h.b16 %v4917
  %v4935 = vunpack.c.l.b16 %v4918
  %v4936 = vunpack.c.h.b16 %v4918
  %v4937 = vpack.c.b16 %v4927, %v4925
  %v4938 = vpack.c.b16 %v4928, %v4926
  %v4939 = vpack.c.b16 %v4931, %v4929
  %v4940 = vpack.c.b16 %v4932, %v4930
  %v4941 = vpack.c.b16 %v4935, %v4933
  %v4942 = vpack.c.b16 %v4936, %v4934
  %v4948 = vsel %vm3564, %v3507, 0
  %v4951 = vsel %vm3568, %v4941, 0
  %v4954 = vsel %vm3568, %v4942, 0
  %4956 = vmatprep.subr.bf16.mxu0 %v4938
  %4957 = vmatpush1.bf16.msra.mxu0 %v4937
  %4958 = vmatprep.subr.bf16.mxu0 %v4940
  %4959 = vmatpush1.bf16.msra.mxu0 %v4939
  %4960 = vmatprep.subr.bf16.mxu0 %v4954
  %4961 = vmatpush1.bf16.msra.mxu0 %v4951
  %4962 = vmatprep.subr.bf16.mxu0 0
  %4963 = vmatpush1.bf16.msra.mxu0 0
  %4964 = vmatprep.subr.bf16.mxu0 0
  %4965 = vmatpush1.bf16.msra.mxu0 0
  %4966 = vmatprep.subr.bf16.mxu0 0
  %4967 = vmatpush1.bf16.msra.mxu0 0
  %4968 = vmatprep.subr.bf16.mxu0 0
  %4969 = vmatpush1.bf16.msra.mxu0 0
  %4970 = vmatprep.subr.bf16.mxu0 0
  %4971 = vmatpush1.bf16.msra.mxu0 0
  %4972 = vmatprep.subr.bf16.mxu0 0
  %4973 = vmatpush1.bf16.msra.mxu0 0
  %4974 = vmatprep.subr.bf16.mxu0 0
  %4975 = vmatpush1.bf16.msra.mxu0 0
  %4976 = vmatprep.subr.bf16.mxu0 0
  %4977 = vmatpush1.bf16.msra.mxu0 0
  %4978 = vmatprep.subr.bf16.mxu0 0
  %4979 = vmatpush1.bf16.msra.mxu0 0
  %4980 = vmatprep.subr.bf16.mxu0 0
  %4981 = vmatpush1.bf16.msra.mxu0 0
  %4982 = vmatprep.subr.bf16.mxu0 0
  %4983 = vmatpush1.bf16.msra.mxu0 0
  %4984 = vmatprep.subr.bf16.mxu0 0
  %4985 = vmatpush1.bf16.msra.mxu0 0
  %4986 = vmatprep.subr.bf16.mxu0 0
  %4987 = vmatpush1.bf16.msra.mxu0 0
  %4988 = vmatprep.mubr.bf16.mxu0 0
  %4989 = vmatmul.mubr.bf16.gmra.mrb[0].mxu0 %v4948
  %v4990 = vpop.f32.mrb[0].mxu0
  %v4991 = vadd.f32 0.0, %v4990
  %v4992 = vpop.f32.mrb[0].mxu0
  %v4993 = vadd.f32 0.0, %v4992
  %v4994 = vpop.f32.mrb[0].mxu0
  %v4995 = vpop.f32.mrb[0].mxu0
  %4996 = vdwg.mxu0
  %v4997 = vadd.f32 %v4910, %v4991
  %v4998 = vadd.f32 %v4911, %v4993
  %s4999 = scalar_lea.vmem %s6, 816
  %v5000 = vld [vmem:[%s4999] sm:$0xff]
  %v5001 = vld [vmem:[%s4999 + $0x8] sm:$0xff]
  %v5002 = vld [vmem:[%s4999 + $0x10] sm:$0xff]
  %v5003 = vld [vmem:[%s4999 + $0x18] sm:$0xff]
  %v5004 = vld [vmem:[%s4999 + $0x20] sm:$0xff]
  %v5005 = vld [vmem:[%s4999 + $0x28] sm:$0x77]
  %v5012 = vunpack.c.l.b16 %v5000
  %v5013 = vunpack.c.h.b16 %v5000
  %v5014 = vunpack.c.l.b16 %v5001
  %v5015 = vunpack.c.h.b16 %v5001
  %v5016 = vunpack.c.l.b16 %v5002
  %v5017 = vunpack.c.h.b16 %v5002
  %v5018 = vunpack.c.l.b16 %v5003
  %v5019 = vunpack.c.h.b16 %v5003
  %v5020 = vunpack.c.l.b16 %v5004
  %v5021 = vunpack.c.h.b16 %v5004
  %v5022 = vunpack.c.l.b16 %v5005
  %v5023 = vunpack.c.h.b16 %v5005
  %v5024 = vpack.c.b16 %v5014, %v5012
  %v5025 = vpack.c.b16 %v5015, %v5013
  %v5026 = vpack.c.b16 %v5018, %v5016
  %v5027 = vpack.c.b16 %v5019, %v5017
  %v5028 = vpack.c.b16 %v5022, %v5020
  %v5029 = vpack.c.b16 %v5023, %v5021
  %v5035 = vsel %vm3564, %v3508, 0
  %v5038 = vsel %vm3568, %v5028, 0
  %v5041 = vsel %vm3568, %v5029, 0
  %5043 = vmatprep.subr.bf16.mxu0 %v5025
  %5044 = vmatpush1.bf16.msra.mxu0 %v5024
  %5045 = vmatprep.subr.bf16.mxu0 %v5027
  %5046 = vmatpush1.bf16.msra.mxu0 %v5026
  %5047 = vmatprep.subr.bf16.mxu0 %v5041
  %5048 = vmatpush1.bf16.msra.mxu0 %v5038
  %5049 = vmatprep.subr.bf16.mxu0 0
  %5050 = vmatpush1.bf16.msra.mxu0 0
  %5051 = vmatprep.subr.bf16.mxu0 0
  %5052 = vmatpush1.bf16.msra.mxu0 0
  %5053 = vmatprep.subr.bf16.mxu0 0
  %5054 = vmatpush1.bf16.msra.mxu0 0
  %5055 = vmatprep.subr.bf16.mxu0 0
  %5056 = vmatpush1.bf16.msra.mxu0 0
  %5057 = vmatprep.subr.bf16.mxu0 0
  %5058 = vmatpush1.bf16.msra.mxu0 0
  %5059 = vmatprep.subr.bf16.mxu0 0
  %5060 = vmatpush1.bf16.msra.mxu0 0
  %5061 = vmatprep.subr.bf16.mxu0 0
  %5062 = vmatpush1.bf16.msra.mxu0 0
  %5063 = vmatprep.subr.bf16.mxu0 0
  %5064 = vmatpush1.bf16.msra.mxu0 0
  %5065 = vmatprep.subr.bf16.mxu0 0
  %5066 = vmatpush1.bf16.msra.mxu0 0
  %5067 = vmatprep.subr.bf16.mxu0 0
  %5068 = vmatpush1.bf16.msra.mxu0 0
  %5069 = vmatprep.subr.bf16.mxu0 0
  %5070 = vmatpush1.bf16.msra.mxu0 0
  %5071 = vmatprep.subr.bf16.mxu0 0
  %5072 = vmatpush1.bf16.msra.mxu0 0
  %5073 = vmatprep.subr.bf16.mxu0 0
  %5074 = vmatpush1.bf16.msra.mxu0 0
  %5075 = vmatprep.mubr.bf16.mxu0 0
  %5076 = vmatmul.mubr.bf16.gmra.mrb[0].mxu0 %v5035
  %v5077 = vpop.f32.mrb[0].mxu0
  %v5078 = vadd.f32 0.0, %v5077
  %v5079 = vpop.f32.mrb[0].mxu0
  %v5080 = vadd.f32 0.0, %v5079
  %v5081 = vpop.f32.mrb[0].mxu0
  %v5082 = vpop.f32.mrb[0].mxu0
  %5083 = vdwg.mxu0
  %v5084 = vadd.f32 %v4997, %v5078
  %v5085 = vadd.f32 %v4998, %v5080
  %s5086 = scalar_lea.vmem %s6, 864
  %v5087 = vld [vmem:[%s5086] sm:$0xff]
  %v5088 = vld [vmem:[%s5086 + $0x8] sm:$0xff]
  %v5089 = vld [vmem:[%s5086 + $0x10] sm:$0xff]
  %v5090 = vld [vmem:[%s5086 + $0x18] sm:$0xff]
  %v5091 = vld [vmem:[%s5086 + $0x20] sm:$0xff]
  %v5092 = vld [vmem:[%s5086 + $0x28] sm:$0x77]
  %v5099 = vunpack.c.l.b16 %v5087
  %v5100 = vunpack.c.h.b16 %v5087
  %v5101 = vunpack.c.l.b16 %v5088
  %v5102 = vunpack.c.h.b16 %v5088
  %v5103 = vunpack.c.l.b16 %v5089
  %v5104 = vunpack.c.h.b16 %v5089
  %v5105 = vunpack.c.l.b16 %v5090
  %v5106 = vunpack.c.h.b16 %v5090
  %v5107 = vunpack.c.l.b16 %v5091
  %v5108 = vunpack.c.h.b16 %v5091
  %v5109 = vunpack.c.l.b16 %v5092
  %v5110 = vunpack.c.h.b16 %v5092
  %v5111 = vpack.c.b16 %v5101, %v5099
  %v5112 = vpack.c.b16 %v5102, %v5100
  %v5113 = vpack.c.b16 %v5105, %v5103
  %v5114 = vpack.c.b16 %v5106, %v5104
  %v5115 = vpack.c.b16 %v5109, %v5107
  %v5116 = vpack.c.b16 %v5110, %v5108
  %v5122 = vsel %vm3564, %v3509, 0
  %v5125 = vsel %vm3568, %v5115, 0
  %v5128 = vsel %vm3568, %v5116, 0
  %5130 = vmatprep.subr.bf16.mxu0 %v5112
  %5131 = vmatpush1.bf16.msra.mxu0 %v5111
  %5132 = vmatprep.subr.bf16.mxu0 %v5114
  %5133 = vmatpush1.bf16.msra.mxu0 %v5113
  %5134 = vmatprep.subr.bf16.mxu0 %v5128
  %5135 = vmatpush1.bf16.msra.mxu0 %v5125
  %5136 = vmatprep.subr.bf16.mxu0 0
  %5137 = vmatpush1.bf16.msra.mxu0 0
  %5138 = vmatprep.subr.bf16.mxu0 0
  %5139 = vmatpush1.bf16.msra.mxu0 0
  %5140 = vmatprep.subr.bf16.mxu0 0
  %5141 = vmatpush1.bf16.msra.mxu0 0
  %5142 = vmatprep.subr.bf16.mxu0 0
  %5143 = vmatpush1.bf16.msra.mxu0 0
  %5144 = vmatprep.subr.bf16.mxu0 0
  %5145 = vmatpush1.bf16.msra.mxu0 0
  %5146 = vmatprep.subr.bf16.mxu0 0
  %5147 = vmatpush1.bf16.msra.mxu0 0
  %5148 = vmatprep.subr.bf16.mxu0 0
  %5149 = vmatpush1.bf16.msra.mxu0 0
  %5150 = vmatprep.subr.bf16.mxu0 0
  %5151 = vmatpush1.bf16.msra.mxu0 0
  %5152 = vmatprep.subr.bf16.mxu0 0
  %5153 = vmatpush1.bf16.msra.mxu0 0
  %5154 = vmatprep.subr.bf16.mxu0 0
  %5155 = vmatpush1.bf16.msra.mxu0 0
  %5156 = vmatprep.subr.bf16.mxu0 0
  %5157 = vmatpush1.bf16.msra.mxu0 0
  %5158 = vmatprep.subr.bf16.mxu0 0
  %5159 = vmatpush1.bf16.msra.mxu0 0
  %5160 = vmatprep.subr.bf16.mxu0 0
  %5161 = vmatpush1.bf16.msra.mxu0 0
  %5162 = vmatprep.mubr.bf16.mxu0 0
  %5163 = vmatmul.mubr.bf16.gmra.mrb[0].mxu0 %v5122
  %v5164 = vpop.f32.mrb[0].mxu0
  %v5165 = vadd.f32 0.0, %v5164
  %v5166 = vpop.f32.mrb[0].mxu0
  %v5167 = vadd.f32 0.0, %v5166
  %v5168 = vpop.f32.mrb[0].mxu0
  %v5169 = vpop.f32.mrb[0].mxu0
  %5170 = vdwg.mxu0
  %v5171 = vadd.f32 %v5084, %v5165
  %v5172 = vadd.f32 %v5085, %v5167
  %s5173 = scalar_lea.vmem %s6, 912
  %v5174 = vld [vmem:[%s5173] sm:$0xff]
  %v5175 = vld [vmem:[%s5173 + $0x8] sm:$0xff]
  %v5176 = vld [vmem:[%s5173 + $0x10] sm:$0xff]
  %v5177 = vld [vmem:[%s5173 + $0x18] sm:$0xff]
  %v5178 = vld [vmem:[%s5173 + $0x20] sm:$0xff]
  %v5179 = vld [vmem:[%s5173 + $0x28] sm:$0x77]
  %v5186 = vunpack.c.l.b16 %v5174
  %v5187 = vunpack.c.h.b16 %v5174
  %v5188 = vunpack.c.l.b16 %v5175
  %v5189 = vunpack.c.h.b16 %v5175
  %v5190 = vunpack.c.l.b16 %v5176
  %v5191 = vunpack.c.h.b16 %v5176
  %v5192 = vunpack.c.l.b16 %v5177
  %v5193 = vunpack.c.h.b16 %v5177
  %v5194 = vunpack.c.l.b16 %v5178
  %v5195 = vunpack.c.h.b16 %v5178
  %v5196 = vunpack.c.l.b16 %v5179
  %v5197 = vunpack.c.h.b16 %v5179
  %v5198 = vpack.c.b16 %v5188, %v5186
  %v5199 = vpack.c.b16 %v5189, %v5187
  %v5200 = vpack.c.b16 %v5192, %v5190
  %v5201 = vpack.c.b16 %v5193, %v5191
  %v5202 = vpack.c.b16 %v5196, %v5194
  %v5203 = vpack.c.b16 %v5197, %v5195
  %v5209 = vsel %vm3564, %v3510, 0
  %v5212 = vsel %vm3568, %v5202, 0
  %v5215 = vsel %vm3568, %v5203, 0
  %5217 = vmatprep.subr.bf16.mxu0 %v5199
  %5218 = vmatpush1.bf16.msra.mxu0 %v5198
  %5219 = vmatprep.subr.bf16.mxu0 %v5201
  %5220 = vmatpush1.bf16.msra.mxu0 %v5200
  %5221 = vmatprep.subr.bf16.mxu0 %v5215
  %5222 = vmatpush1.bf16.msra.mxu0 %v5212
  %5223 = vmatprep.subr.bf16.mxu0 0
  %5224 = vmatpush1.bf16.msra.mxu0 0
  %5225 = vmatprep.subr.bf16.mxu0 0
  %5226 = vmatpush1.bf16.msra.mxu0 0
  %5227 = vmatprep.subr.bf16.mxu0 0
  %5228 = vmatpush1.bf16.msra.mxu0 0
  %5229 = vmatprep.subr.bf16.mxu0 0
  %5230 = vmatpush1.bf16.msra.mxu0 0
  %5231 = vmatprep.subr.bf16.mxu0 0
  %5232 = vmatpush1.bf16.msra.mxu0 0
  %5233 = vmatprep.subr.bf16.mxu0 0
  %5234 = vmatpush1.bf16.msra.mxu0 0
  %5235 = vmatprep.subr.bf16.mxu0 0
  %5236 = vmatpush1.bf16.msra.mxu0 0
  %5237 = vmatprep.subr.bf16.mxu0 0
  %5238 = vmatpush1.bf16.msra.mxu0 0
  %5239 = vmatprep.subr.bf16.mxu0 0
  %5240 = vmatpush1.bf16.msra.mxu0 0
  %5241 = vmatprep.subr.bf16.mxu0 0
  %5242 = vmatpush1.bf16.msra.mxu0 0
  %5243 = vmatprep.subr.bf16.mxu0 0
  %5244 = vmatpush1.bf16.msra.mxu0 0
  %5245 = vmatprep.subr.bf16.mxu0 0
  %5246 = vmatpush1.bf16.msra.mxu0 0
  %5247 = vmatprep.subr.bf16.mxu0 0
  %5248 = vmatpush1.bf16.msra.mxu0 0
  %5249 = vmatprep.mubr.bf16.mxu0 0
  %5250 = vmatmul.mubr.bf16.gmra.mrb[0].mxu0 %v5209
  %v5251 = vpop.f32.mrb[0].mxu0
  %v5252 = vadd.f32 0.0, %v5251
  %v5253 = vpop.f32.mrb[0].mxu0
  %v5254 = vadd.f32 0.0, %v5253
  %v5255 = vpop.f32.mrb[0].mxu0
  %v5256 = vpop.f32.mrb[0].mxu0
  %5257 = vdwg.mxu0
  %v5258 = vadd.f32 %v5171, %v5252
  %v5259 = vadd.f32 %v5172, %v5254
  %s5260 = scalar_lea.vmem %s6, 960
  %v5261 = vld [vmem:[%s5260] sm:$0xff]
  %v5262 = vld [vmem:[%s5260 + $0x8] sm:$0xff]
  %v5263 = vld [vmem:[%s5260 + $0x10] sm:$0xff]
  %v5264 = vld [vmem:[%s5260 + $0x18] sm:$0xff]
  %v5265 = vld [vmem:[%s5260 + $0x20] sm:$0xff]
  %v5266 = vld [vmem:[%s5260 + $0x28] sm:$0x77]
  %v5273 = vunpack.c.l.b16 %v5261
  %v5274 = vunpack.c.h.b16 %v5261
  %v5275 = vunpack.c.l.b16 %v5262
  %v5276 = vunpack.c.h.b16 %v5262
  %v5277 = vunpack.c.l.b16 %v5263
  %v5278 = vunpack.c.h.b16 %v5263
  %v5279 = vunpack.c.l.b16 %v5264
  %v5280 = vunpack.c.h.b16 %v5264
  %v5281 = vunpack.c.l.b16 %v5265
  %v5282 = vunpack.c.h.b16 %v5265
  %v5283 = vunpack.c.l.b16 %v5266
  %v5284 = vunpack.c.h.b16 %v5266
  %v5285 = vpack.c.b16 %v5275, %v5273
  %v5286 = vpack.c.b16 %v5276, %v5274
  %v5287 = vpack.c.b16 %v5279, %v5277
  %v5288 = vpack.c.b16 %v5280, %v5278
  %v5289 = vpack.c.b16 %v5283, %v5281
  %v5290 = vpack.c.b16 %v5284, %v5282
  %v5296 = vsel %vm3564, %v3511, 0
  %v5299 = vsel %vm3568, %v5289, 0
  %v5302 = vsel %vm3568, %v5290, 0
  %5304 = vmatprep.subr.bf16.mxu0 %v5286
  %5305 = vmatpush1.bf16.msra.mxu0 %v5285
  %5306 = vmatprep.subr.bf16.mxu0 %v5288
  %5307 = vmatpush1.bf16.msra.mxu0 %v5287
  %5308 = vmatprep.subr.bf16.mxu0 %v5302
  %5309 = vmatpush1.bf16.msra.mxu0 %v5299
  %5310 = vmatprep.subr.bf16.mxu0 0
  %5311 = vmatpush1.bf16.msra.mxu0 0
  %5312 = vmatprep.subr.bf16.mxu0 0
  %5313 = vmatpush1.bf16.msra.mxu0 0
  %5314 = vmatprep.subr.bf16.mxu0 0
  %5315 = vmatpush1.bf16.msra.mxu0 0
  %5316 = vmatprep.subr.bf16.mxu0 0
  %5317 = vmatpush1.bf16.msra.mxu0 0
  %5318 = vmatprep.subr.bf16.mxu0 0
  %5319 = vmatpush1.bf16.msra.mxu0 0
  %5320 = vmatprep.subr.bf16.mxu0 0
  %5321 = vmatpush1.bf16.msra.mxu0 0
  %5322 = vmatprep.subr.bf16.mxu0 0
  %5323 = vmatpush1.bf16.msra.mxu0 0
  %5324 = vmatprep.subr.bf16.mxu0 0
  %5325 = vmatpush1.bf16.msra.mxu0 0
  %5326 = vmatprep.subr.bf16.mxu0 0
  %5327 = vmatpush1.bf16.msra.mxu0 0
  %5328 = vmatprep.subr.bf16.mxu0 0
  %5329 = vmatpush1.bf16.msra.mxu0 0
  %5330 = vmatprep.subr.bf16.mxu0 0
  %5331 = vmatpush1.bf16.msra.mxu0 0
  %5332 = vmatprep.subr.bf16.mxu0 0
  %5333 = vmatpush1.bf16.msra.mxu0 0
  %5334 = vmatprep.subr.bf16.mxu0 0
  %5335 = vmatpush1.bf16.msra.mxu0 0
  %5336 = vmatprep.mubr.bf16.mxu0 0
  %5337 = vmatmul.mubr.bf16.gmra.mrb[0].mxu0 %v5296
  %v5338 = vpop.f32.mrb[0].mxu0
  %v5339 = vadd.f32 0.0, %v5338
  %v5340 = vpop.f32.mrb[0].mxu0
  %v5341 = vadd.f32 0.0, %v5340
  %v5342 = vpop.f32.mrb[0].mxu0
  %v5343 = vpop.f32.mrb[0].mxu0
  %5344 = vdwg.mxu0
  %v5345 = vadd.f32 %v5258, %v5339
  %v5346 = vadd.f32 %v5259, %v5341
  %s5347 = scalar_lea.vmem %s6, 1008
  %v5348 = vld [vmem:[%s5347] sm:$0xff]
  %v5349 = vld [vmem:[%s5347 + $0x8] sm:$0xff]
  %v5350 = vld [vmem:[%s5347 + $0x10] sm:$0xff]
  %v5351 = vld [vmem:[%s5347 + $0x18] sm:$0xff]
  %v5352 = vld [vmem:[%s5347 + $0x20] sm:$0xff]
  %v5353 = vld [vmem:[%s5347 + $0x28] sm:$0x77]
  %v5360 = vunpack.c.l.b16 %v5348
  %v5361 = vunpack.c.h.b16 %v5348
  %v5362 = vunpack.c.l.b16 %v5349
  %v5363 = vunpack.c.h.b16 %v5349
  %v5364 = vunpack.c.l.b16 %v5350
  %v5365 = vunpack.c.h.b16 %v5350
  %v5366 = vunpack.c.l.b16 %v5351
  %v5367 = vunpack.c.h.b16 %v5351
  %v5368 = vunpack.c.l.b16 %v5352
  %v5369 = vunpack.c.h.b16 %v5352
  %v5370 = vunpack.c.l.b16 %v5353
  %v5371 = vunpack.c.h.b16 %v5353
  %v5372 = vpack.c.b16 %v5362, %v5360
  %v5373 = vpack.c.b16 %v5363, %v5361
  %v5374 = vpack.c.b16 %v5366, %v5364
  %v5375 = vpack.c.b16 %v5367, %v5365
  %v5376 = vpack.c.b16 %v5370, %v5368
  %v5377 = vpack.c.b16 %v5371, %v5369
  %v5383 = vsel %vm3564, %v3512, 0
  %v5386 = vsel %vm3568, %v5376, 0
  %v5389 = vsel %vm3568, %v5377, 0
  %5391 = vmatprep.subr.bf16.mxu0 %v5373
  %5392 = vmatpush1.bf16.msra.mxu0 %v5372
  %5393 = vmatprep.subr.bf16.mxu0 %v5375
  %5394 = vmatpush1.bf16.msra.mxu0 %v5374
  %5395 = vmatprep.subr.bf16.mxu0 %v5389
  %5396 = vmatpush1.bf16.msra.mxu0 %v5386
  %5397 = vmatprep.subr.bf16.mxu0 0
  %5398 = vmatpush1.bf16.msra.mxu0 0
  %5399 = vmatprep.subr.bf16.mxu0 0
  %5400 = vmatpush1.bf16.msra.mxu0 0
  %5401 = vmatprep.subr.bf16.mxu0 0
  %5402 = vmatpush1.bf16.msra.mxu0 0
  %5403 = vmatprep.subr.bf16.mxu0 0
  %5404 = vmatpush1.bf16.msra.mxu0 0
  %5405 = vmatprep.subr.bf16.mxu0 0
  %5406 = vmatpush1.bf16.msra.mxu0 0
  %5407 = vmatprep.subr.bf16.mxu0 0
  %5408 = vmatpush1.bf16.msra.mxu0 0
  %5409 = vmatprep.subr.bf16.mxu0 0
  %5410 = vmatpush1.bf16.msra.mxu0 0
  %5411 = vmatprep.subr.bf16.mxu0 0
  %5412 = vmatpush1.bf16.msra.mxu0 0
  %5413 = vmatprep.subr.bf16.mxu0 0
  %5414 = vmatpush1.bf16.msra.mxu0 0
  %5415 = vmatprep.subr.bf16.mxu0 0
  %5416 = vmatpush1.bf16.msra.mxu0 0
  %5417 = vmatprep.subr.bf16.mxu0 0
  %5418 = vmatpush1.bf16.msra.mxu0 0
  %5419 = vmatprep.subr.bf16.mxu0 0
  %5420 = vmatpush1.bf16.msra.mxu0 0
  %5421 = vmatprep.subr.bf16.mxu0 0
  %5422 = vmatpush1.bf16.msra.mxu0 0
  %5423 = vmatprep.mubr.bf16.mxu0 0
  %5424 = vmatmul.mubr.bf16.gmra.mrb[0].mxu0 %v5383
  %v5425 = vpop.f32.mrb[0].mxu0
  %v5426 = vadd.f32 0.0, %v5425
  %v5427 = vpop.f32.mrb[0].mxu0
  %v5428 = vadd.f32 0.0, %v5427
  %v5429 = vpop.f32.mrb[0].mxu0
  %v5430 = vpop.f32.mrb[0].mxu0
  %5431 = vdwg.mxu0
  %v5432 = vadd.f32 %v5345, %v5426
  %v5433 = vadd.f32 %v5346, %v5428
  %s5434 = scalar_lea.vmem %s6, 1056
  %v5435 = vld [vmem:[%s5434] sm:$0xff]
  %v5436 = vld [vmem:[%s5434 + $0x8] sm:$0xff]
  %v5437 = vld [vmem:[%s5434 + $0x10] sm:$0xff]
  %v5438 = vld [vmem:[%s5434 + $0x18] sm:$0xff]
  %v5439 = vld [vmem:[%s5434 + $0x20] sm:$0xff]
  %v5440 = vld [vmem:[%s5434 + $0x28] sm:$0x77]
  %v5447 = vunpack.c.l.b16 %v5435
  %v5448 = vunpack.c.h.b16 %v5435
  %v5449 = vunpack.c.l.b16 %v5436
  %v5450 = vunpack.c.h.b16 %v5436
  %v5451 = vunpack.c.l.b16 %v5437
  %v5452 = vunpack.c.h.b16 %v5437
  %v5453 = vunpack.c.l.b16 %v5438
  %v5454 = vunpack.c.h.b16 %v5438
  %v5455 = vunpack.c.l.b16 %v5439
  %v5456 = vunpack.c.h.b16 %v5439
  %v5457 = vunpack.c.l.b16 %v5440
  %v5458 = vunpack.c.h.b16 %v5440
  %v5459 = vpack.c.b16 %v5449, %v5447
  %v5460 = vpack.c.b16 %v5450, %v5448
  %v5461 = vpack.c.b16 %v5453, %v5451
  %v5462 = vpack.c.b16 %v5454, %v5452
  %v5463 = vpack.c.b16 %v5457, %v5455
  %v5464 = vpack.c.b16 %v5458, %v5456
  %v5470 = vsel %vm3564, %v3513, 0
  %v5473 = vsel %vm3568, %v5463, 0
  %v5476 = vsel %vm3568, %v5464, 0
  %5478 = vmatprep.subr.bf16.mxu0 %v5460
  %5479 = vmatpush1.bf16.msra.mxu0 %v5459
  %5480 = vmatprep.subr.bf16.mxu0 %v5462
  %5481 = vmatpush1.bf16.msra.mxu0 %v5461
  %5482 = vmatprep.subr.bf16.mxu0 %v5476
  %5483 = vmatpush1.bf16.msra.mxu0 %v5473
  %5484 = vmatprep.subr.bf16.mxu0 0
  %5485 = vmatpush1.bf16.msra.mxu0 0
  %5486 = vmatprep.subr.bf16.mxu0 0
  %5487 = vmatpush1.bf16.msra.mxu0 0
  %5488 = vmatprep.subr.bf16.mxu0 0
  %5489 = vmatpush1.bf16.msra.mxu0 0
  %5490 = vmatprep.subr.bf16.mxu0 0
  %5491 = vmatpush1.bf16.msra.mxu0 0
  %5492 = vmatprep.subr.bf16.mxu0 0
  %5493 = vmatpush1.bf16.msra.mxu0 0
  %5494 = vmatprep.subr.bf16.mxu0 0
  %5495 = vmatpush1.bf16.msra.mxu0 0
  %5496 = vmatprep.subr.bf16.mxu0 0
  %5497 = vmatpush1.bf16.msra.mxu0 0
  %5498 = vmatprep.subr.bf16.mxu0 0
  %5499 = vmatpush1.bf16.msra.mxu0 0
  %5500 = vmatprep.subr.bf16.mxu0 0
  %5501 = vmatpush1.bf16.msra.mxu0 0
  %5502 = vmatprep.subr.bf16.mxu0 0
  %5503 = vmatpush1.bf16.msra.mxu0 0
  %5504 = vmatprep.subr.bf16.mxu0 0
  %5505 = vmatpush1.bf16.msra.mxu0 0
  %5506 = vmatprep.subr.bf16.mxu0 0
  %5507 = vmatpush1.bf16.msra.mxu0 0
  %5508 = vmatprep.subr.bf16.mxu0 0
  %5509 = vmatpush1.bf16.msra.mxu0 0
  %5510 = vmatprep.mubr.bf16.mxu0 0
  %5511 = vmatmul.mubr.bf16.gmra.mrb[0].mxu0 %v5470
  %v5512 = vpop.f32.mrb[0].mxu0
  %v5513 = vadd.f32 0.0, %v5512
  %v5514 = vpop.f32.mrb[0].mxu0
  %v5515 = vadd.f32 0.0, %v5514
  %v5516 = vpop.f32.mrb[0].mxu0
  %v5517 = vpop.f32.mrb[0].mxu0
  %5518 = vdwg.mxu0
  %v5519 = vadd.f32 %v5432, %v5513
  %v5520 = vadd.f32 %v5433, %v5515
  %s5521 = scalar_lea.vmem %s6, 1104
  %v5522 = vld [vmem:[%s5521] sm:$0xff]
  %v5523 = vld [vmem:[%s5521 + $0x8] sm:$0xff]
  %v5524 = vld [vmem:[%s5521 + $0x10] sm:$0xff]
  %v5525 = vld [vmem:[%s5521 + $0x18] sm:$0xff]
  %v5526 = vld [vmem:[%s5521 + $0x20] sm:$0xff]
  %v5527 = vld [vmem:[%s5521 + $0x28] sm:$0x77]
  %v5534 = vunpack.c.l.b16 %v5522
  %v5535 = vunpack.c.h.b16 %v5522
  %v5536 = vunpack.c.l.b16 %v5523
  %v5537 = vunpack.c.h.b16 %v5523
  %v5538 = vunpack.c.l.b16 %v5524
  %v5539 = vunpack.c.h.b16 %v5524
  %v5540 = vunpack.c.l.b16 %v5525
  %v5541 = vunpack.c.h.b16 %v5525
  %v5542 = vunpack.c.l.b16 %v5526
  %v5543 = vunpack.c.h.b16 %v5526
  %v5544 = vunpack.c.l.b16 %v5527
  %v5545 = vunpack.c.h.b16 %v5527
  %v5546 = vpack.c.b16 %v5536, %v5534
  %v5547 = vpack.c.b16 %v5537, %v5535
  %v5548 = vpack.c.b16 %v5540, %v5538
  %v5549 = vpack.c.b16 %v5541, %v5539
  %v5550 = vpack.c.b16 %v5544, %v5542
  %v5551 = vpack.c.b16 %v5545, %v5543
  %v5557 = vsel %vm3564, %v3514, 0
  %v5560 = vsel %vm3568, %v5550, 0
  %v5563 = vsel %vm3568, %v5551, 0
  %5565 = vmatprep.subr.bf16.mxu0 %v5547
  %5566 = vmatpush1.bf16.msra.mxu0 %v5546
  %5567 = vmatprep.subr.bf16.mxu0 %v5549
  %5568 = vmatpush1.bf16.msra.mxu0 %v5548
  %5569 = vmatprep.subr.bf16.mxu0 %v5563
  %5570 = vmatpush1.bf16.msra.mxu0 %v5560
  %5571 = vmatprep.subr.bf16.mxu0 0
  %5572 = vmatpush1.bf16.msra.mxu0 0
  %5573 = vmatprep.subr.bf16.mxu0 0
  %5574 = vmatpush1.bf16.msra.mxu0 0
  %5575 = vmatprep.subr.bf16.mxu0 0
  %5576 = vmatpush1.bf16.msra.mxu0 0
  %5577 = vmatprep.subr.bf16.mxu0 0
  %5578 = vmatpush1.bf16.msra.mxu0 0
  %5579 = vmatprep.subr.bf16.mxu0 0
  %5580 = vmatpush1.bf16.msra.mxu0 0
  %5581 = vmatprep.subr.bf16.mxu0 0
  %5582 = vmatpush1.bf16.msra.mxu0 0
  %5583 = vmatprep.subr.bf16.mxu0 0
  %5584 = vmatpush1.bf16.msra.mxu0 0
  %5585 = vmatprep.subr.bf16.mxu0 0
  %5586 = vmatpush1.bf16.msra.mxu0 0
  %5587 = vmatprep.subr.bf16.mxu0 0
  %5588 = vmatpush1.bf16.msra.mxu0 0
  %5589 = vmatprep.subr.bf16.mxu0 0
  %5590 = vmatpush1.bf16.msra.mxu0 0
  %5591 = vmatprep.subr.bf16.mxu0 0
  %5592 = vmatpush1.bf16.msra.mxu0 0
  %5593 = vmatprep.subr.bf16.mxu0 0
  %5594 = vmatpush1.bf16.msra.mxu0 0
  %5595 = vmatprep.subr.bf16.mxu0 0
  %5596 = vmatpush1.bf16.msra.mxu0 0
  %5597 = vmatprep.mubr.bf16.mxu0 0
  %5598 = vmatmul.mubr.bf16.gmra.mrb[0].mxu0 %v5557
  %v5599 = vpop.f32.mrb[0].mxu0
  %v5600 = vadd.f32 0.0, %v5599
  %v5601 = vpop.f32.mrb[0].mxu0
  %v5602 = vadd.f32 0.0, %v5601
  %v5603 = vpop.f32.mrb[0].mxu0
  %v5604 = vpop.f32.mrb[0].mxu0
  %5605 = vdwg.mxu0
  %v5606 = vadd.f32 %v5519, %v5600
  %v5607 = vadd.f32 %v5520, %v5602
  %s5608 = scalar_lea.vmem %s6, 1152
  %v5609 = vld [vmem:[%s5608] sm:$0xff]
  %v5610 = vld [vmem:[%s5608 + $0x8] sm:$0xff]
  %v5611 = vld [vmem:[%s5608 + $0x10] sm:$0xff]
  %v5612 = vld [vmem:[%s5608 + $0x18] sm:$0xff]
  %v5613 = vld [vmem:[%s5608 + $0x20] sm:$0xff]
  %v5614 = vld [vmem:[%s5608 + $0x28] sm:$0x77]
  %v5621 = vunpack.c.l.b16 %v5609
  %v5622 = vunpack.c.h.b16 %v5609
  %v5623 = vunpack.c.l.b16 %v5610
  %v5624 = vunpack.c.h.b16 %v5610
  %v5625 = vunpack.c.l.b16 %v5611
  %v5626 = vunpack.c.h.b16 %v5611
  %v5627 = vunpack.c.l.b16 %v5612
  %v5628 = vunpack.c.h.b16 %v5612
  %v5629 = vunpack.c.l.b16 %v5613
  %v5630 = vunpack.c.h.b16 %v5613
  %v5631 = vunpack.c.l.b16 %v5614
  %v5632 = vunpack.c.h.b16 %v5614
  %v5633 = vpack.c.b16 %v5623, %v5621
  %v5634 = vpack.c.b16 %v5624, %v5622
  %v5635 = vpack.c.b16 %v5627, %v5625
  %v5636 = vpack.c.b16 %v5628, %v5626
  %v5637 = vpack.c.b16 %v5631, %v5629
  %v5638 = vpack.c.b16 %v5632, %v5630
  %v5644 = vsel %vm3564, %v3515, 0
  %v5647 = vsel %vm3568, %v5637, 0
  %v5650 = vsel %vm3568, %v5638, 0
  %5652 = vmatprep.subr.bf16.mxu0 %v5634
  %5653 = vmatpush1.bf16.msra.mxu0 %v5633
  %5654 = vmatprep.subr.bf16.mxu0 %v5636
  %5655 = vmatpush1.bf16.msra.mxu0 %v5635
  %5656 = vmatprep.subr.bf16.mxu0 %v5650
  %5657 = vmatpush1.bf16.msra.mxu0 %v5647
  %5658 = vmatprep.subr.bf16.mxu0 0
  %5659 = vmatpush1.bf16.msra.mxu0 0
  %5660 = vmatprep.subr.bf16.mxu0 0
  %5661 = vmatpush1.bf16.msra.mxu0 0
  %5662 = vmatprep.subr.bf16.mxu0 0
  %5663 = vmatpush1.bf16.msra.mxu0 0
  %5664 = vmatprep.subr.bf16.mxu0 0
  %5665 = vmatpush1.bf16.msra.mxu0 0
  %5666 = vmatprep.subr.bf16.mxu0 0
  %5667 = vmatpush1.bf16.msra.mxu0 0
  %5668 = vmatprep.subr.bf16.mxu0 0
  %5669 = vmatpush1.bf16.msra.mxu0 0
  %5670 = vmatprep.subr.bf16.mxu0 0
  %5671 = vmatpush1.bf16.msra.mxu0 0
  %5672 = vmatprep.subr.bf16.mxu0 0
  %5673 = vmatpush1.bf16.msra.mxu0 0
  %5674 = vmatprep.subr.bf16.mxu0 0
  %5675 = vmatpush1.bf16.msra.mxu0 0
  %5676 = vmatprep.subr.bf16.mxu0 0
  %5677 = vmatpush1.bf16.msra.mxu0 0
  %5678 = vmatprep.subr.bf16.mxu0 0
  %5679 = vmatpush1.bf16.msra.mxu0 0
  %5680 = vmatprep.subr.bf16.mxu0 0
  %5681 = vmatpush1.bf16.msra.mxu0 0
  %5682 = vmatprep.subr.bf16.mxu0 0
  %5683 = vmatpush1.bf16.msra.mxu0 0
  %5684 = vmatprep.mubr.bf16.mxu0 0
  %5685 = vmatmul.mubr.bf16.gmra.mrb[0].mxu0 %v5644
  %v5686 = vpop.f32.mrb[0].mxu0
  %v5687 = vadd.f32 0.0, %v5686
  %v5688 = vpop.f32.mrb[0].mxu0
  %v5689 = vadd.f32 0.0, %v5688
  %v5690 = vpop.f32.mrb[0].mxu0
  %v5691 = vpop.f32.mrb[0].mxu0
  %5692 = vdwg.mxu0
  %v5693 = vadd.f32 %v5606, %v5687
  %v5694 = vadd.f32 %v5607, %v5689
  %s5695 = scalar_lea.vmem %s6, 1200
  %v5696 = vld [vmem:[%s5695] sm:$0xff]
  %v5697 = vld [vmem:[%s5695 + $0x8] sm:$0xff]
  %v5698 = vld [vmem:[%s5695 + $0x10] sm:$0xff]
  %v5699 = vld [vmem:[%s5695 + $0x18] sm:$0xff]
  %v5700 = vld [vmem:[%s5695 + $0x20] sm:$0xff]
  %v5701 = vld [vmem:[%s5695 + $0x28] sm:$0x77]
  %v5708 = vunpack.c.l.b16 %v5696
  %v5709 = vunpack.c.h.b16 %v5696
  %v5710 = vunpack.c.l.b16 %v5697
  %v5711 = vunpack.c.h.b16 %v5697
  %v5712 = vunpack.c.l.b16 %v5698
  %v5713 = vunpack.c.h.b16 %v5698
  %v5714 = vunpack.c.l.b16 %v5699
  %v5715 = vunpack.c.h.b16 %v5699
  %v5716 = vunpack.c.l.b16 %v5700
  %v5717 = vunpack.c.h.b16 %v5700
  %v5718 = vunpack.c.l.b16 %v5701
  %v5719 = vunpack.c.h.b16 %v5701
  %v5720 = vpack.c.b16 %v5710, %v5708
  %v5721 = vpack.c.b16 %v5711, %v5709
  %v5722 = vpack.c.b16 %v5714, %v5712
  %v5723 = vpack.c.b16 %v5715, %v5713
  %v5724 = vpack.c.b16 %v5718, %v5716
  %v5725 = vpack.c.b16 %v5719, %v5717
  %v5731 = vsel %vm3564, %v3516, 0
  %v5734 = vsel %vm3568, %v5724, 0
  %v5737 = vsel %vm3568, %v5725, 0
  %5739 = vmatprep.subr.bf16.mxu0 %v5721
  %5740 = vmatpush1.bf16.msra.mxu0 %v5720
  %5741 = vmatprep.subr.bf16.mxu0 %v5723
  %5742 = vmatpush1.bf16.msra.mxu0 %v5722
  %5743 = vmatprep.subr.bf16.mxu0 %v5737
  %5744 = vmatpush1.bf16.msra.mxu0 %v5734
  %5745 = vmatprep.subr.bf16.mxu0 0
  %5746 = vmatpush1.bf16.msra.mxu0 0
  %5747 = vmatprep.subr.bf16.mxu0 0
  %5748 = vmatpush1.bf16.msra.mxu0 0
  %5749 = vmatprep.subr.bf16.mxu0 0
  %5750 = vmatpush1.bf16.msra.mxu0 0
  %5751 = vmatprep.subr.bf16.mxu0 0
  %5752 = vmatpush1.bf16.msra.mxu0 0
  %5753 = vmatprep.subr.bf16.mxu0 0
  %5754 = vmatpush1.bf16.msra.mxu0 0
  %5755 = vmatprep.subr.bf16.mxu0 0
  %5756 = vmatpush1.bf16.msra.mxu0 0
  %5757 = vmatprep.subr.bf16.mxu0 0
  %5758 = vmatpush1.bf16.msra.mxu0 0
  %5759 = vmatprep.subr.bf16.mxu0 0
  %5760 = vmatpush1.bf16.msra.mxu0 0
  %5761 = vmatprep.subr.bf16.mxu0 0
  %5762 = vmatpush1.bf16.msra.mxu0 0
  %5763 = vmatprep.subr.bf16.mxu0 0
  %5764 = vmatpush1.bf16.msra.mxu0 0
  %5765 = vmatprep.subr.bf16.mxu0 0
  %5766 = vmatpush1.bf16.msra.mxu0 0
  %5767 = vmatprep.subr.bf16.mxu0 0
  %5768 = vmatpush1.bf16.msra.mxu0 0
  %5769 = vmatprep.subr.bf16.mxu0 0
  %5770 = vmatpush1.bf16.msra.mxu0 0
  %5771 = vmatprep.mubr.bf16.mxu0 0
  %5772 = vmatmul.mubr.bf16.gmra.mrb[0].mxu0 %v5731
  %v5773 = vpop.f32.mrb[0].mxu0
  %v5774 = vadd.f32 0.0, %v5773
  %v5775 = vpop.f32.mrb[0].mxu0
  %v5776 = vadd.f32 0.0, %v5775
  %v5777 = vpop.f32.mrb[0].mxu0
  %v5778 = vpop.f32.mrb[0].mxu0
  %5779 = vdwg.mxu0
  %v5780 = vadd.f32 %v5693, %v5774
  %v5781 = vadd.f32 %v5694, %v5776
  %s5782 = scalar_lea.vmem %s6, 1248
  %v5783 = vld [vmem:[%s5782] sm:$0xff]
  %v5784 = vld [vmem:[%s5782 + $0x8] sm:$0xff]
  %v5785 = vld [vmem:[%s5782 + $0x10] sm:$0xff]
  %v5786 = vld [vmem:[%s5782 + $0x18] sm:$0xff]
  %v5787 = vld [vmem:[%s5782 + $0x20] sm:$0xff]
  %v5788 = vld [vmem:[%s5782 + $0x28] sm:$0x77]
  %v5795 = vunpack.c.l.b16 %v5783
  %v5796 = vunpack.c.h.b16 %v5783
  %v5797 = vunpack.c.l.b16 %v5784
  %v5798 = vunpack.c.h.b16 %v5784
  %v5799 = vunpack.c.l.b16 %v5785
  %v5800 = vunpack.c.h.b16 %v5785
  %v5801 = vunpack.c.l.b16 %v5786
  %v5802 = vunpack.c.h.b16 %v5786
  %v5803 = vunpack.c.l.b16 %v5787
  %v5804 = vunpack.c.h.b16 %v5787
  %v5805 = vunpack.c.l.b16 %v5788
  %v5806 = vunpack.c.h.b16 %v5788
  %v5807 = vpack.c.b16 %v5797, %v5795
  %v5808 = vpack.c.b16 %v5798, %v5796
  %v5809 = vpack.c.b16 %v5801, %v5799
  %v5810 = vpack.c.b16 %v5802, %v5800
  %v5811 = vpack.c.b16 %v5805, %v5803
  %v5812 = vpack.c.b16 %v5806, %v5804
  %v5818 = vsel %vm3564, %v3517, 0
  %v5821 = vsel %vm3568, %v5811, 0
  %v5824 = vsel %vm3568, %v5812, 0
  %5826 = vmatprep.subr.bf16.mxu0 %v5808
  %5827 = vmatpush1.bf16.msra.mxu0 %v5807
  %5828 = vmatprep.subr.bf16.mxu0 %v5810
  %5829 = vmatpush1.bf16.msra.mxu0 %v5809
  %5830 = vmatprep.subr.bf16.mxu0 %v5824
  %5831 = vmatpush1.bf16.msra.mxu0 %v5821
  %5832 = vmatprep.subr.bf16.mxu0 0
  %5833 = vmatpush1.bf16.msra.mxu0 0
  %5834 = vmatprep.subr.bf16.mxu0 0
  %5835 = vmatpush1.bf16.msra.mxu0 0
  %5836 = vmatprep.subr.bf16.mxu0 0
  %5837 = vmatpush1.bf16.msra.mxu0 0
  %5838 = vmatprep.subr.bf16.mxu0 0
  %5839 = vmatpush1.bf16.msra.mxu0 0
  %5840 = vmatprep.subr.bf16.mxu0 0
  %5841 = vmatpush1.bf16.msra.mxu0 0
  %5842 = vmatprep.subr.bf16.mxu0 0
  %5843 = vmatpush1.bf16.msra.mxu0 0
  %5844 = vmatprep.subr.bf16.mxu0 0
  %5845 = vmatpush1.bf16.msra.mxu0 0
  %5846 = vmatprep.subr.bf16.mxu0 0
  %5847 = vmatpush1.bf16.msra.mxu0 0
  %5848 = vmatprep.subr.bf16.mxu0 0
  %5849 = vmatpush1.bf16.msra.mxu0 0
  %5850 = vmatprep.subr.bf16.mxu0 0
  %5851 = vmatpush1.bf16.msra.mxu0 0
  %5852 = vmatprep.subr.bf16.mxu0 0
  %5853 = vmatpush1.bf16.msra.mxu0 0
  %5854 = vmatprep.subr.bf16.mxu0 0
  %5855 = vmatpush1.bf16.msra.mxu0 0
  %5856 = vmatprep.subr.bf16.mxu0 0
  %5857 = vmatpush1.bf16.msra.mxu0 0
  %5858 = vmatprep.mubr.bf16.mxu0 0
  %5859 = vmatmul.mubr.bf16.gmra.mrb[0].mxu0 %v5818
  %v5860 = vpop.f32.mrb[0].mxu0
  %v5861 = vadd.f32 0.0, %v5860
  %v5862 = vpop.f32.mrb[0].mxu0
  %v5863 = vadd.f32 0.0, %v5862
  %v5864 = vpop.f32.mrb[0].mxu0
  %v5865 = vpop.f32.mrb[0].mxu0
  %5866 = vdwg.mxu0
  %v5867 = vadd.f32 %v5780, %v5861
  %v5868 = vadd.f32 %v5781, %v5863
  %s5869 = scalar_lea.vmem %s6, 1296
  %v5870 = vld [vmem:[%s5869] sm:$0xff]
  %v5871 = vld [vmem:[%s5869 + $0x8] sm:$0xff]
  %v5872 = vld [vmem:[%s5869 + $0x10] sm:$0xff]
  %v5873 = vld [vmem:[%s5869 + $0x18] sm:$0xff]
  %v5874 = vld [vmem:[%s5869 + $0x20] sm:$0xff]
  %v5875 = vld [vmem:[%s5869 + $0x28] sm:$0x77]
  %v5882 = vunpack.c.l.b16 %v5870
  %v5883 = vunpack.c.h.b16 %v5870
  %v5884 = vunpack.c.l.b16 %v5871
  %v5885 = vunpack.c.h.b16 %v5871
  %v5886 = vunpack.c.l.b16 %v5872
  %v5887 = vunpack.c.h.b16 %v5872
  %v5888 = vunpack.c.l.b16 %v5873
  %v5889 = vunpack.c.h.b16 %v5873
  %v5890 = vunpack.c.l.b16 %v5874
  %v5891 = vunpack.c.h.b16 %v5874
  %v5892 = vunpack.c.l.b16 %v5875
  %v5893 = vunpack.c.h.b16 %v5875
  %v5894 = vpack.c.b16 %v5884, %v5882
  %v5895 = vpack.c.b16 %v5885, %v5883
  %v5896 = vpack.c.b16 %v5888, %v5886
  %v5897 = vpack.c.b16 %v5889, %v5887
  %v5898 = vpack.c.b16 %v5892, %v5890
  %v5899 = vpack.c.b16 %v5893, %v5891
  %v5905 = vsel %vm3564, %v3518, 0
  %v5908 = vsel %vm3568, %v5898, 0
  %v5911 = vsel %vm3568, %v5899, 0
  %5913 = vmatprep.subr.bf16.mxu0 %v5895
  %5914 = vmatpush1.bf16.msra.mxu0 %v5894
  %5915 = vmatprep.subr.bf16.mxu0 %v5897
  %5916 = vmatpush1.bf16.msra.mxu0 %v5896
  %5917 = vmatprep.subr.bf16.mxu0 %v5911
  %5918 = vmatpush1.bf16.msra.mxu0 %v5908
  %5919 = vmatprep.subr.bf16.mxu0 0
  %5920 = vmatpush1.bf16.msra.mxu0 0
  %5921 = vmatprep.subr.bf16.mxu0 0
  %5922 = vmatpush1.bf16.msra.mxu0 0
  %5923 = vmatprep.subr.bf16.mxu0 0
  %5924 = vmatpush1.bf16.msra.mxu0 0
  %5925 = vmatprep.subr.bf16.mxu0 0
  %5926 = vmatpush1.bf16.msra.mxu0 0
  %5927 = vmatprep.subr.bf16.mxu0 0
  %5928 = vmatpush1.bf16.msra.mxu0 0
  %5929 = vmatprep.subr.bf16.mxu0 0
  %5930 = vmatpush1.bf16.msra.mxu0 0
  %5931 = vmatprep.subr.bf16.mxu0 0
  %5932 = vmatpush1.bf16.msra.mxu0 0
  %5933 = vmatprep.subr.bf16.mxu0 0
  %5934 = vmatpush1.bf16.msra.mxu0 0
  %5935 = vmatprep.subr.bf16.mxu0 0
  %5936 = vmatpush1.bf16.msra.mxu0 0
  %5937 = vmatprep.subr.bf16.mxu0 0
  %5938 = vmatpush1.bf16.msra.mxu0 0
  %5939 = vmatprep.subr.bf16.mxu0 0
  %5940 = vmatpush1.bf16.msra.mxu0 0
  %5941 = vmatprep.subr.bf16.mxu0 0
  %5942 = vmatpush1.bf16.msra.mxu0 0
  %5943 = vmatprep.subr.bf16.mxu0 0
  %5944 = vmatpush1.bf16.msra.mxu0 0
  %5945 = vmatprep.mubr.bf16.mxu0 0
  %5946 = vmatmul.mubr.bf16.gmra.mrb[0].mxu0 %v5905
  %v5947 = vpop.f32.mrb[0].mxu0
  %v5948 = vadd.f32 0.0, %v5947
  %v5949 = vpop.f32.mrb[0].mxu0
  %v5950 = vadd.f32 0.0, %v5949
  %v5951 = vpop.f32.mrb[0].mxu0
  %v5952 = vpop.f32.mrb[0].mxu0
  %5953 = vdwg.mxu0
  %v5954 = vadd.f32 %v5867, %v5948
  %v5955 = vadd.f32 %v5868, %v5950
  %s5956 = scalar_lea.vmem %s6, 1344
  %v5957 = vld [vmem:[%s5956] sm:$0xff]
  %v5958 = vld [vmem:[%s5956 + $0x8] sm:$0xff]
  %v5959 = vld [vmem:[%s5956 + $0x10] sm:$0xff]
  %v5960 = vld [vmem:[%s5956 + $0x18] sm:$0xff]
  %v5961 = vld [vmem:[%s5956 + $0x20] sm:$0xff]
  %v5962 = vld [vmem:[%s5956 + $0x28] sm:$0x77]
  %v5969 = vunpack.c.l.b16 %v5957
  %v5970 = vunpack.c.h.b16 %v5957
  %v5971 = vunpack.c.l.b16 %v5958
  %v5972 = vunpack.c.h.b16 %v5958
  %v5973 = vunpack.c.l.b16 %v5959
  %v5974 = vunpack.c.h.b16 %v5959
  %v5975 = vunpack.c.l.b16 %v5960
  %v5976 = vunpack.c.h.b16 %v5960
  %v5977 = vunpack.c.l.b16 %v5961
  %v5978 = vunpack.c.h.b16 %v5961
  %v5979 = vunpack.c.l.b16 %v5962
  %v5980 = vunpack.c.h.b16 %v5962
  %v5981 = vpack.c.b16 %v5971, %v5969
  %v5982 = vpack.c.b16 %v5972, %v5970
  %v5983 = vpack.c.b16 %v5975, %v5973
  %v5984 = vpack.c.b16 %v5976, %v5974
  %v5985 = vpack.c.b16 %v5979, %v5977
  %v5986 = vpack.c.b16 %v5980, %v5978
  %v5992 = vsel %vm3564, %v3519, 0
  %v5995 = vsel %vm3568, %v5985, 0
  %v5998 = vsel %vm3568, %v5986, 0
  %6000 = vmatprep.subr.bf16.mxu0 %v5982
  %6001 = vmatpush1.bf16.msra.mxu0 %v5981
  %6002 = vmatprep.subr.bf16.mxu0 %v5984
  %6003 = vmatpush1.bf16.msra.mxu0 %v5983
  %6004 = vmatprep.subr.bf16.mxu0 %v5998
  %6005 = vmatpush1.bf16.msra.mxu0 %v5995
  %6006 = vmatprep.subr.bf16.mxu0 0
  %6007 = vmatpush1.bf16.msra.mxu0 0
  %6008 = vmatprep.subr.bf16.mxu0 0
  %6009 = vmatpush1.bf16.msra.mxu0 0
  %6010 = vmatprep.subr.bf16.mxu0 0
  %6011 = vmatpush1.bf16.msra.mxu0 0
  %6012 = vmatprep.subr.bf16.mxu0 0
  %6013 = vmatpush1.bf16.msra.mxu0 0
  %6014 = vmatprep.subr.bf16.mxu0 0
  %6015 = vmatpush1.bf16.msra.mxu0 0
  %6016 = vmatprep.subr.bf16.mxu0 0
  %6017 = vmatpush1.bf16.msra.mxu0 0
  %6018 = vmatprep.subr.bf16.mxu0 0
  %6019 = vmatpush1.bf16.msra.mxu0 0
  %6020 = vmatprep.subr.bf16.mxu0 0
  %6021 = vmatpush1.bf16.msra.mxu0 0
  %6022 = vmatprep.subr.bf16.mxu0 0
  %6023 = vmatpush1.bf16.msra.mxu0 0
  %6024 = vmatprep.subr.bf16.mxu0 0
  %6025 = vmatpush1.bf16.msra.mxu0 0
  %6026 = vmatprep.subr.bf16.mxu0 0
  %6027 = vmatpush1.bf16.msra.mxu0 0
  %6028 = vmatprep.subr.bf16.mxu0 0
  %6029 = vmatpush1.bf16.msra.mxu0 0
  %6030 = vmatprep.subr.bf16.mxu0 0
  %6031 = vmatpush1.bf16.msra.mxu0 0
  %6032 = vmatprep.mubr.bf16.mxu0 0
  %6033 = vmatmul.mubr.bf16.gmra.mrb[0].mxu0 %v5992
  %v6034 = vpop.f32.mrb[0].mxu0
  %v6035 = vadd.f32 0.0, %v6034
  %v6036 = vpop.f32.mrb[0].mxu0
  %v6037 = vadd.f32 0.0, %v6036
  %v6038 = vpop.f32.mrb[0].mxu0
  %v6039 = vpop.f32.mrb[0].mxu0
  %6040 = vdwg.mxu0
  %v6041 = vadd.f32 %v5954, %v6035
  %v6042 = vadd.f32 %v5955, %v6037
  %s6043 = scalar_lea.vmem %s6, 1392
  %v6044 = vld [vmem:[%s6043] sm:$0xff]
  %v6045 = vld [vmem:[%s6043 + $0x8] sm:$0xff]
  %v6046 = vld [vmem:[%s6043 + $0x10] sm:$0xff]
  %v6047 = vld [vmem:[%s6043 + $0x18] sm:$0xff]
  %v6048 = vld [vmem:[%s6043 + $0x20] sm:$0xff]
  %v6049 = vld [vmem:[%s6043 + $0x28] sm:$0x77]
  %v6056 = vunpack.c.l.b16 %v6044
  %v6057 = vunpack.c.h.b16 %v6044
  %v6058 = vunpack.c.l.b16 %v6045
  %v6059 = vunpack.c.h.b16 %v6045
  %v6060 = vunpack.c.l.b16 %v6046
  %v6061 = vunpack.c.h.b16 %v6046
  %v6062 = vunpack.c.l.b16 %v6047
  %v6063 = vunpack.c.h.b16 %v6047
  %v6064 = vunpack.c.l.b16 %v6048
  %v6065 = vunpack.c.h.b16 %v6048
  %v6066 = vunpack.c.l.b16 %v6049
  %v6067 = vunpack.c.h.b16 %v6049
  %v6068 = vpack.c.b16 %v6058, %v6056
  %v6069 = vpack.c.b16 %v6059, %v6057
  %v6070 = vpack.c.b16 %v6062, %v6060
  %v6071 = vpack.c.b16 %v6063, %v6061
  %v6072 = vpack.c.b16 %v6066, %v6064
  %v6073 = vpack.c.b16 %v6067, %v6065
  %v6079 = vsel %vm3564, %v3520, 0
  %v6082 = vsel %vm3568, %v6072, 0
  %v6085 = vsel %vm3568, %v6073, 0
  %6087 = vmatprep.subr.bf16.mxu0 %v6069
  %6088 = vmatpush1.bf16.msra.mxu0 %v6068
  %6089 = vmatprep.subr.bf16.mxu0 %v6071
  %6090 = vmatpush1.bf16.msra.mxu0 %v6070
  %6091 = vmatprep.subr.bf16.mxu0 %v6085
  %6092 = vmatpush1.bf16.msra.mxu0 %v6082
  %6093 = vmatprep.subr.bf16.mxu0 0
  %6094 = vmatpush1.bf16.msra.mxu0 0
  %6095 = vmatprep.subr.bf16.mxu0 0
  %6096 = vmatpush1.bf16.msra.mxu0 0
  %6097 = vmatprep.subr.bf16.mxu0 0
  %6098 = vmatpush1.bf16.msra.mxu0 0
  %6099 = vmatprep.subr.bf16.mxu0 0
  %6100 = vmatpush1.bf16.msra.mxu0 0
  %6101 = vmatprep.subr.bf16.mxu0 0
  %6102 = vmatpush1.bf16.msra.mxu0 0
  %6103 = vmatprep.subr.bf16.mxu0 0
  %6104 = vmatpush1.bf16.msra.mxu0 0
  %6105 = vmatprep.subr.bf16.mxu0 0
  %6106 = vmatpush1.bf16.msra.mxu0 0
  %6107 = vmatprep.subr.bf16.mxu0 0
  %6108 = vmatpush1.bf16.msra.mxu0 0
  %6109 = vmatprep.subr.bf16.mxu0 0
  %6110 = vmatpush1.bf16.msra.mxu0 0
  %6111 = vmatprep.subr.bf16.mxu0 0
  %6112 = vmatpush1.bf16.msra.mxu0 0
  %6113 = vmatprep.subr.bf16.mxu0 0
  %6114 = vmatpush1.bf16.msra.mxu0 0
  %6115 = vmatprep.subr.bf16.mxu0 0
  %6116 = vmatpush1.bf16.msra.mxu0 0
  %6117 = vmatprep.subr.bf16.mxu0 0
  %6118 = vmatpush1.bf16.msra.mxu0 0
  %6119 = vmatprep.mubr.bf16.mxu0 0
  %6120 = vmatmul.mubr.bf16.gmra.mrb[0].mxu0 %v6079
  %v6121 = vpop.f32.mrb[0].mxu0
  %v6122 = vadd.f32 0.0, %v6121
  %v6123 = vpop.f32.mrb[0].mxu0
  %v6124 = vadd.f32 0.0, %v6123
  %v6125 = vpop.f32.mrb[0].mxu0
  %v6126 = vpop.f32.mrb[0].mxu0
  %6127 = vdwg.mxu0
  %v6128 = vadd.f32 %v6041, %v6122
  %v6129 = vadd.f32 %v6042, %v6124
  %s6130 = scalar_lea.vmem %s6, 1440
  %v6131 = vld [vmem:[%s6130] sm:$0xff]
  %v6132 = vld [vmem:[%s6130 + $0x8] sm:$0xff]
  %v6133 = vld [vmem:[%s6130 + $0x10] sm:$0xff]
  %v6134 = vld [vmem:[%s6130 + $0x18] sm:$0xff]
  %v6135 = vld [vmem:[%s6130 + $0x20] sm:$0xff]
  %v6136 = vld [vmem:[%s6130 + $0x28] sm:$0x77]
  %v6143 = vunpack.c.l.b16 %v6131
  %v6144 = vunpack.c.h.b16 %v6131
  %v6145 = vunpack.c.l.b16 %v6132
  %v6146 = vunpack.c.h.b16 %v6132
  %v6147 = vunpack.c.l.b16 %v6133
  %v6148 = vunpack.c.h.b16 %v6133
  %v6149 = vunpack.c.l.b16 %v6134
  %v6150 = vunpack.c.h.b16 %v6134
  %v6151 = vunpack.c.l.b16 %v6135
  %v6152 = vunpack.c.h.b16 %v6135
  %v6153 = vunpack.c.l.b16 %v6136
  %v6154 = vunpack.c.h.b16 %v6136
  %v6155 = vpack.c.b16 %v6145, %v6143
  %v6156 = vpack.c.b16 %v6146, %v6144
  %v6157 = vpack.c.b16 %v6149, %v6147
  %v6158 = vpack.c.b16 %v6150, %v6148
  %v6159 = vpack.c.b16 %v6153, %v6151
  %v6160 = vpack.c.b16 %v6154, %v6152
  %v6166 = vsel %vm3564, %v3521, 0
  %v6169 = vsel %vm3568, %v6159, 0
  %v6172 = vsel %vm3568, %v6160, 0
  %6174 = vmatprep.subr.bf16.mxu0 %v6156
  %6175 = vmatpush1.bf16.msra.mxu0 %v6155
  %6176 = vmatprep.subr.bf16.mxu0 %v6158
  %6177 = vmatpush1.bf16.msra.mxu0 %v6157
  %6178 = vmatprep.subr.bf16.mxu0 %v6172
  %6179 = vmatpush1.bf16.msra.mxu0 %v6169
  %6180 = vmatprep.subr.bf16.mxu0 0
  %6181 = vmatpush1.bf16.msra.mxu0 0
  %6182 = vmatprep.subr.bf16.mxu0 0
  %6183 = vmatpush1.bf16.msra.mxu0 0
  %6184 = vmatprep.subr.bf16.mxu0 0
  %6185 = vmatpush1.bf16.msra.mxu0 0
  %6186 = vmatprep.subr.bf16.mxu0 0
  %6187 = vmatpush1.bf16.msra.mxu0 0
  %6188 = vmatprep.subr.bf16.mxu0 0
  %6189 = vmatpush1.bf16.msra.mxu0 0
  %6190 = vmatprep.subr.bf16.mxu0 0
  %6191 = vmatpush1.bf16.msra.mxu0 0
  %6192 = vmatprep.subr.bf16.mxu0 0
  %6193 = vmatpush1.bf16.msra.mxu0 0
  %6194 = vmatprep.subr.bf16.mxu0 0
  %6195 = vmatpush1.bf16.msra.mxu0 0
  %6196 = vmatprep.subr.bf16.mxu0 0
  %6197 = vmatpush1.bf16.msra.mxu0 0
  %6198 = vmatprep.subr.bf16.mxu0 0
  %6199 = vmatpush1.bf16.msra.mxu0 0
  %6200 = vmatprep.subr.bf16.mxu0 0
  %6201 = vmatpush1.bf16.msra.mxu0 0
  %6202 = vmatprep.subr.bf16.mxu0 0
  %6203 = vmatpush1.bf16.msra.mxu0 0
  %6204 = vmatprep.subr.bf16.mxu0 0
  %6205 = vmatpush1.bf16.msra.mxu0 0
  %6206 = vmatprep.mubr.bf16.mxu0 0
  %6207 = vmatmul.mubr.bf16.gmra.mrb[0].mxu0 %v6166
  %v6208 = vpop.f32.mrb[0].mxu0
  %v6209 = vadd.f32 0.0, %v6208
  %v6210 = vpop.f32.mrb[0].mxu0
  %v6211 = vadd.f32 0.0, %v6210
  %v6212 = vpop.f32.mrb[0].mxu0
  %v6213 = vpop.f32.mrb[0].mxu0
  %6214 = vdwg.mxu0
  %v6215 = vadd.f32 %v6128, %v6209
  %v6216 = vadd.f32 %v6129, %v6211
  %s6217 = scalar_lea.vmem %s6, 1488
  %v6218 = vld [vmem:[%s6217] sm:$0xff]
  %v6219 = vld [vmem:[%s6217 + $0x8] sm:$0xff]
  %v6220 = vld [vmem:[%s6217 + $0x10] sm:$0xff]
  %v6221 = vld [vmem:[%s6217 + $0x18] sm:$0xff]
  %v6222 = vld [vmem:[%s6217 + $0x20] sm:$0xff]
  %v6223 = vld [vmem:[%s6217 + $0x28] sm:$0x77]
  %v6230 = vunpack.c.l.b16 %v6218
  %v6231 = vunpack.c.h.b16 %v6218
  %v6232 = vunpack.c.l.b16 %v6219
  %v6233 = vunpack.c.h.b16 %v6219
  %v6234 = vunpack.c.l.b16 %v6220
  %v6235 = vunpack.c.h.b16 %v6220
  %v6236 = vunpack.c.l.b16 %v6221
  %v6237 = vunpack.c.h.b16 %v6221
  %v6238 = vunpack.c.l.b16 %v6222
  %v6239 = vunpack.c.h.b16 %v6222
  %v6240 = vunpack.c.l.b16 %v6223
  %v6241 = vunpack.c.h.b16 %v6223
  %v6242 = vpack.c.b16 %v6232, %v6230
  %v6243 = vpack.c.b16 %v6233, %v6231
  %v6244 = vpack.c.b16 %v6236, %v6234
  %v6245 = vpack.c.b16 %v6237, %v6235
  %v6246 = vpack.c.b16 %v6240, %v6238
  %v6247 = vpack.c.b16 %v6241, %v6239
  %v6253 = vsel %vm3564, %v3522, 0
  %v6256 = vsel %vm3568, %v6246, 0
  %v6259 = vsel %vm3568, %v6247, 0
  %6261 = vmatprep.subr.bf16.mxu0 %v6243
  %6262 = vmatpush1.bf16.msra.mxu0 %v6242
  %6263 = vmatprep.subr.bf16.mxu0 %v6245
  %6264 = vmatpush1.bf16.msra.mxu0 %v6244
  %6265 = vmatprep.subr.bf16.mxu0 %v6259
  %6266 = vmatpush1.bf16.msra.mxu0 %v6256
  %6267 = vmatprep.subr.bf16.mxu0 0
  %6268 = vmatpush1.bf16.msra.mxu0 0
  %6269 = vmatprep.subr.bf16.mxu0 0
  %6270 = vmatpush1.bf16.msra.mxu0 0
  %6271 = vmatprep.subr.bf16.mxu0 0
  %6272 = vmatpush1.bf16.msra.mxu0 0
  %6273 = vmatprep.subr.bf16.mxu0 0
  %6274 = vmatpush1.bf16.msra.mxu0 0
  %6275 = vmatprep.subr.bf16.mxu0 0
  %6276 = vmatpush1.bf16.msra.mxu0 0
  %6277 = vmatprep.subr.bf16.mxu0 0
  %6278 = vmatpush1.bf16.msra.mxu0 0
  %6279 = vmatprep.subr.bf16.mxu0 0
  %6280 = vmatpush1.bf16.msra.mxu0 0
  %6281 = vmatprep.subr.bf16.mxu0 0
  %6282 = vmatpush1.bf16.msra.mxu0 0
  %6283 = vmatprep.subr.bf16.mxu0 0
  %6284 = vmatpush1.bf16.msra.mxu0 0
  %6285 = vmatprep.subr.bf16.mxu0 0
  %6286 = vmatpush1.bf16.msra.mxu0 0
  %6287 = vmatprep.subr.bf16.mxu0 0
  %6288 = vmatpush1.bf16.msra.mxu0 0
  %6289 = vmatprep.subr.bf16.mxu0 0
  %6290 = vmatpush1.bf16.msra.mxu0 0
  %6291 = vmatprep.subr.bf16.mxu0 0
  %6292 = vmatpush1.bf16.msra.mxu0 0
  %6293 = vmatprep.mubr.bf16.mxu0 0
  %6294 = vmatmul.mubr.bf16.gmra.mrb[0].mxu0 %v6253
  %v6295 = vpop.f32.mrb[0].mxu0
  %v6296 = vadd.f32 0.0, %v6295
  %v6297 = vpop.f32.mrb[0].mxu0
  %v6298 = vadd.f32 0.0, %v6297
  %v6299 = vpop.f32.mrb[0].mxu0
  %v6300 = vpop.f32.mrb[0].mxu0
  %6301 = vdwg.mxu0
  %v6302 = vadd.f32 %v6215, %v6296
  %v6303 = vadd.f32 %v6216, %v6298
  %v6304 = vld [vmem:[%s7] sm:$0x3]
  %v6306 = vlaneseq
  %v6307 = vshrl.u32 %v6306, 7
  %v6308 = vsub.s32 0, %v6307
  %v6309 = vrot.slane %v6304, %v6308
  %v6310 = vlaneseq
  %v6311 = vshrl.u32 %v6310, 7
  %v6312 = vsub.s32 1, %v6311
  %v6313 = vrot.slane %v6304, %v6312
  %v6316 = vadd.f32 %v6302, %v6309
  %v6317 = vadd.f32 %v6303, %v6313
  %v6318 = vpack.c.bf16 %v6316, %v6316
  %v6319 = vpack.c.bf16 %v6317, %v6317
  %v6320 = vld [vmem:[%s8] sm:$0xff]
  %v6321 = vld [vmem:[%s8 + $0x8] sm:$0xff]
  %v6322 = vld [vmem:[%s8 + $0x10] sm:$0xff]
  %v6323 = vld [vmem:[%s8 + $0x18] sm:$0xff]
  %v6324 = vld [vmem:[%s8 + $0x20] sm:$0xff]
  %v6325 = vld [vmem:[%s8 + $0x28] sm:$0xff]
  %v6326 = vld [vmem:[%s8 + $0x30] sm:$0xff]
  %v6327 = vld [vmem:[%s8 + $0x38] sm:$0xff]
  %v6328 = vld [vmem:[%s8 + $0x40] sm:$0xff]
  %v6329 = vld [vmem:[%s8 + $0x48] sm:$0xff]
  %v6330 = vld [vmem:[%s8 + $0x50] sm:$0xff]
  %v6331 = vld [vmem:[%s8 + $0x58] sm:$0xff]
  %v6332 = vld [vmem:[%s8 + $0x60] sm:$0xff]
  %v6333 = vld [vmem:[%s8 + $0x68] sm:$0xff]
  %v6334 = vld [vmem:[%s8 + $0x70] sm:$0xff]
  %v6335 = vld [vmem:[%s8 + $0x78] sm:$0xff]
  %v6336 = vld [vmem:[%s8 + $0x80] sm:$0xff]
  %v6337 = vld [vmem:[%s8 + $0x88] sm:$0xff]
  %v6338 = vld [vmem:[%s8 + $0x90] sm:$0xff]
  %v6339 = vld [vmem:[%s8 + $0x98] sm:$0xff]
  %v6340 = vld [vmem:[%s8 + $0xa0] sm:$0xff]
  %v6341 = vld [vmem:[%s8 + $0xa8] sm:$0xff]
  %v6342 = vld [vmem:[%s8 + $0xb0] sm:$0xff]
  %v6343 = vld [vmem:[%s8 + $0xb8] sm:$0xff]
  %v6344 = vld [vmem:[%s8 + $0xc0] sm:$0xff]
  %v6345 = vld [vmem:[%s8 + $0xc8] sm:$0xff]
  %v6346 = vld [vmem:[%s8 + $0xd0] sm:$0xff]
  %v6347 = vld [vmem:[%s8 + $0xd8] sm:$0xff]
  %v6348 = vld [vmem:[%s8 + $0xe0] sm:$0xff]
  %v6349 = vld [vmem:[%s8 + $0xe8] sm:$0xff]
  %v6350 = vld [vmem:[%s8 + $0xf0] sm:$0xff]
  %v6351 = vld [vmem:[%s8 + $0xf8] sm:$0xff]
  %v6352 = vld [vmem:[%s8 + $0x100] sm:$0xff]
  %v6353 = vld [vmem:[%s8 + $0x108] sm:$0xff]
  %v6354 = vld [vmem:[%s8 + $0x110] sm:$0xff]
  %v6355 = vld [vmem:[%s8 + $0x118] sm:$0xff]
  %v6356 = vld [vmem:[%s8 + $0x120] sm:$0xff]
  %v6357 = vld [vmem:[%s8 + $0x128] sm:$0xff]
  %v6358 = vld [vmem:[%s8 + $0x130] sm:$0xff]
  %v6359 = vld [vmem:[%s8 + $0x138] sm:$0xff]
  %v6360 = vld [vmem:[%s8 + $0x140] sm:$0xff]
  %v6361 = vld [vmem:[%s8 + $0x148] sm:$0xff]
  %v6362 = vld [vmem:[%s8 + $0x150] sm:$0xff]
  %v6363 = vld [vmem:[%s8 + $0x158] sm:$0xff]
  %v6364 = vld [vmem:[%s8 + $0x160] sm:$0xff]
  %v6365 = vld [vmem:[%s8 + $0x168] sm:$0xff]
  %v6366 = vld [vmem:[%s8 + $0x170] sm:$0xff]
  %v6367 = vld [vmem:[%s8 + $0x178] sm:$0xff]
  %v6368 = vld [vmem:[%s8 + $0x180] sm:$0xff]
  %v6369 = vld [vmem:[%s8 + $0x188] sm:$0xff]
  %v6370 = vld [vmem:[%s8 + $0x190] sm:$0xff]
  %v6371 = vld [vmem:[%s8 + $0x198] sm:$0xff]
  %v6372 = vld [vmem:[%s8 + $0x1a0] sm:$0xff]
  %v6373 = vld [vmem:[%s8 + $0x1a8] sm:$0xff]
  %v6374 = vld [vmem:[%s8 + $0x1b0] sm:$0xff]
  %v6375 = vld [vmem:[%s8 + $0x1b8] sm:$0xff]
  %v6376 = vld [vmem:[%s8 + $0x1c0] sm:$0xff]
  %v6377 = vld [vmem:[%s8 + $0x1c8] sm:$0xff]
  %v6378 = vld [vmem:[%s8 + $0x1d0] sm:$0xff]
  %v6379 = vld [vmem:[%s8 + $0x1d8] sm:$0xff]
  %v6380 = vld [vmem:[%s8 + $0x1e0] sm:$0xff]
  %v6381 = vld [vmem:[%s8 + $0x1e8] sm:$0xff]
  %v6382 = vld [vmem:[%s8 + $0x1f0] sm:$0xff]
  %v6383 = vld [vmem:[%s8 + $0x1f8] sm:$0xff]
  %v6384 = vld [vmem:[%s9] sm:$0xf]
  %v6386 = vlaneseq
  %v6387 = vshrl.u32 %v6386, 7
  %v6388 = vsub.s32 0, %v6387
  %v6389 = vrot.slane %v6384, %v6388
  %v6390 = vlaneseq
  %v6391 = vshrl.u32 %v6390, 7
  %v6392 = vsub.s32 1, %v6391
  %v6393 = vrot.slane %v6384, %v6392
  %v6394 = vlaneseq
  %v6395 = vshrl.u32 %v6394, 7
  %v6396 = vsub.s32 2, %v6395
  %v6397 = vrot.slane %v6384, %v6396
  %v6398 = vlaneseq
  %v6399 = vshrl.u32 %v6398, 7
  %v6400 = vsub.s32 3, %v6399
  %v6401 = vrot.slane %v6384, %v6400
  %v6470 = vunpack.c.l.b16 %v6320
  %v6471 = vunpack.c.h.b16 %v6320
  %v6472 = vunpack.c.l.b16 %v6321
  %v6473 = vunpack.c.h.b16 %v6321
  %v6474 = vunpack.c.l.b16 %v6322
  %v6475 = vunpack.c.h.b16 %v6322
  %v6476 = vunpack.c.l.b16 %v6323
  %v6477 = vunpack.c.h.b16 %v6323
  %v6478 = vunpack.c.l.b16 %v6324
  %v6479 = vunpack.c.h.b16 %v6324
  %v6480 = vunpack.c.l.b16 %v6325
  %v6481 = vunpack.c.h.b16 %v6325
  %v6482 = vunpack.c.l.b16 %v6326
  %v6483 = vunpack.c.h.b16 %v6326
  %v6484 = vunpack.c.l.b16 %v6327
  %v6485 = vunpack.c.h.b16 %v6327
  %v6486 = vunpack.c.l.b16 %v6328
  %v6487 = vunpack.c.h.b16 %v6328
  %v6488 = vunpack.c.l.b16 %v6329
  %v6489 = vunpack.c.h.b16 %v6329
  %v6490 = vunpack.c.l.b16 %v6330
  %v6491 = vunpack.c.h.b16 %v6330
  %v6492 = vunpack.c.l.b16 %v6331
  %v6493 = vunpack.c.h.b16 %v6331
  %v6494 = vunpack.c.l.b16 %v6332
  %v6495 = vunpack.c.h.b16 %v6332
  %v6496 = vunpack.c.l.b16 %v6333
  %v6497 = vunpack.c.h.b16 %v6333
  %v6498 = vunpack.c.l.b16 %v6334
  %v6499 = vunpack.c.h.b16 %v6334
  %v6500 = vunpack.c.l.b16 %v6335
  %v6501 = vunpack.c.h.b16 %v6335
  %v6502 = vunpack.c.l.b16 %v6336
  %v6503 = vunpack.c.h.b16 %v6336
  %v6504 = vunpack.c.l.b16 %v6337
  %v6505 = vunpack.c.h.b16 %v6337
  %v6506 = vunpack.c.l.b16 %v6338
  %v6507 = vunpack.c.h.b16 %v6338
  %v6508 = vunpack.c.l.b16 %v6339
  %v6509 = vunpack.c.h.b16 %v6339
  %v6510 = vunpack.c.l.b16 %v6340
  %v6511 = vunpack.c.h.b16 %v6340
  %v6512 = vunpack.c.l.b16 %v6341
  %v6513 = vunpack.c.h.b16 %v6341
  %v6514 = vunpack.c.l.b16 %v6342
  %v6515 = vunpack.c.h.b16 %v6342
  %v6516 = vunpack.c.l.b16 %v6343
  %v6517 = vunpack.c.h.b16 %v6343
  %v6518 = vunpack.c.l.b16 %v6344
  %v6519 = vunpack.c.h.b16 %v6344
  %v6520 = vunpack.c.l.b16 %v6345
  %v6521 = vunpack.c.h.b16 %v6345
  %v6522 = vunpack.c.l.b16 %v6346
  %v6523 = vunpack.c.h.b16 %v6346
  %v6524 = vunpack.c.l.b16 %v6347
  %v6525 = vunpack.c.h.b16 %v6347
  %v6526 = vunpack.c.l.b16 %v6348
  %v6527 = vunpack.c.h.b16 %v6348
  %v6528 = vunpack.c.l.b16 %v6349
  %v6529 = vunpack.c.h.b16 %v6349
  %v6530 = vunpack.c.l.b16 %v6350
  %v6531 = vunpack.c.h.b16 %v6350
  %v6532 = vunpack.c.l.b16 %v6351
  %v6533 = vunpack.c.h.b16 %v6351
  %v6534 = vunpack.c.l.b16 %v6352
  %v6535 = vunpack.c.h.b16 %v6352
  %v6536 = vunpack.c.l.b16 %v6353
  %v6537 = vunpack.c.h.b16 %v6353
  %v6538 = vunpack.c.l.b16 %v6354
  %v6539 = vunpack.c.h.b16 %v6354
  %v6540 = vunpack.c.l.b16 %v6355
  %v6541 = vunpack.c.h.b16 %v6355
  %v6542 = vunpack.c.l.b16 %v6356
  %v6543 = vunpack.c.h.b16 %v6356
  %v6544 = vunpack.c.l.b16 %v6357
  %v6545 = vunpack.c.h.b16 %v6357
  %v6546 = vunpack.c.l.b16 %v6358
  %v6547 = vunpack.c.h.b16 %v6358
  %v6548 = vunpack.c.l.b16 %v6359
  %v6549 = vunpack.c.h.b16 %v6359
  %v6550 = vunpack.c.l.b16 %v6360
  %v6551 = vunpack.c.h.b16 %v6360
  %v6552 = vunpack.c.l.b16 %v6361
  %v6553 = vunpack.c.h.b16 %v6361
  %v6554 = vunpack.c.l.b16 %v6362
  %v6555 = vunpack.c.h.b16 %v6362
  %v6556 = vunpack.c.l.b16 %v6363
  %v6557 = vunpack.c.h.b16 %v6363
  %v6558 = vunpack.c.l.b16 %v6364
  %v6559 = vunpack.c.h.b16 %v6364
  %v6560 = vunpack.c.l.b16 %v6365
  %v6561 = vunpack.c.h.b16 %v6365
  %v6562 = vunpack.c.l.b16 %v6366
  %v6563 = vunpack.c.h.b16 %v6366
  %v6564 = vunpack.c.l.b16 %v6367
  %v6565 = vunpack.c.h.b16 %v6367
  %v6566 = vunpack.c.l.b16 %v6368
  %v6567 = vunpack.c.h.b16 %v6368
  %v6568 = vunpack.c.l.b16 %v6369
  %v6569 = vunpack.c.h.b16 %v6369
  %v6570 = vunpack.c.l.b16 %v6370
  %v6571 = vunpack.c.h.b16 %v6370
  %v6572 = vunpack.c.l.b16 %v6371
  %v6573 = vunpack.c.h.b16 %v6371
  %v6574 = vunpack.c.l.b16 %v6372
  %v6575 = vunpack.c.h.b16 %v6372
  %v6576 = vunpack.c.l.b16 %v6373
  %v6577 = vunpack.c.h.b16 %v6373
  %v6578 = vunpack.c.l.b16 %v6374
  %v6579 = vunpack.c.h.b16 %v6374
  %v6580 = vunpack.c.l.b16 %v6375
  %v6581 = vunpack.c.h.b16 %v6375
  %v6582 = vunpack.c.l.b16 %v6376
  %v6583 = vunpack.c.h.b16 %v6376
  %v6584 = vunpack.c.l.b16 %v6377
  %v6585 = vunpack.c.h.b16 %v6377
  %v6586 = vunpack.c.l.b16 %v6378
  %v6587 = vunpack.c.h.b16 %v6378
  %v6588 = vunpack.c.l.b16 %v6379
  %v6589 = vunpack.c.h.b16 %v6379
  %v6590 = vunpack.c.l.b16 %v6380
  %v6591 = vunpack.c.h.b16 %v6380
  %v6592 = vunpack.c.l.b16 %v6381
  %v6593 = vunpack.c.h.b16 %v6381
  %v6594 = vunpack.c.l.b16 %v6382
  %v6595 = vunpack.c.h.b16 %v6382
  %v6596 = vunpack.c.l.b16 %v6383
  %v6597 = vunpack.c.h.b16 %v6383
  %v6598 = vpack.c.b16 %v6474, %v6470
  %v6599 = vpack.c.b16 %v6475, %v6471
  %v6600 = vpack.c.b16 %v6476, %v6472
  %v6601 = vpack.c.b16 %v6477, %v6473
  %v6602 = vpack.c.b16 %v6482, %v6478
  %v6603 = vpack.c.b16 %v6483, %v6479
  %v6604 = vpack.c.b16 %v6484, %v6480
  %v6605 = vpack.c.b16 %v6485, %v6481
  %v6606 = vpack.c.b16 %v6490, %v6486
  %v6607 = vpack.c.b16 %v6491, %v6487
  %v6608 = vpack.c.b16 %v6492, %v6488
  %v6609 = vpack.c.b16 %v6493, %v6489
  %v6610 = vpack.c.b16 %v6498, %v6494
  %v6611 = vpack.c.b16 %v6499, %v6495
  %v6612 = vpack.c.b16 %v6500, %v6496
  %v6613 = vpack.c.b16 %v6501, %v6497
  %v6614 = vpack.c.b16 %v6506, %v6502
  %v6615 = vpack.c.b16 %v6507, %v6503
  %v6616 = vpack.c.b16 %v6508, %v6504
  %v6617 = vpack.c.b16 %v6509, %v6505
  %v6618 = vpack.c.b16 %v6514, %v6510
  %v6619 = vpack.c.b16 %v6515, %v6511
  %v6620 = vpack.c.b16 %v6516, %v6512
  %v6621 = vpack.c.b16 %v6517, %v6513
  %v6622 = vpack.c.b16 %v6522, %v6518
  %v6623 = vpack.c.b16 %v6523, %v6519
  %v6624 = vpack.c.b16 %v6524, %v6520
  %v6625 = vpack.c.b16 %v6525, %v6521
  %v6626 = vpack.c.b16 %v6530, %v6526
  %v6627 = vpack.c.b16 %v6531, %v6527
  %v6628 = vpack.c.b16 %v6532, %v6528
  %v6629 = vpack.c.b16 %v6533, %v6529
  %v6630 = vpack.c.b16 %v6538, %v6534
  %v6631 = vpack.c.b16 %v6539, %v6535
  %v6632 = vpack.c.b16 %v6540, %v6536
  %v6633 = vpack.c.b16 %v6541, %v6537
  %v6634 = vpack.c.b16 %v6546, %v6542
  %v6635 = vpack.c.b16 %v6547, %v6543
  %v6636 = vpack.c.b16 %v6548, %v6544
  %v6637 = vpack.c.b16 %v6549, %v6545
  %v6638 = vpack.c.b16 %v6554, %v6550
  %v6639 = vpack.c.b16 %v6555, %v6551
  %v6640 = vpack.c.b16 %v6556, %v6552
  %v6641 = vpack.c.b16 %v6557, %v6553
  %v6642 = vpack.c.b16 %v6562, %v6558
  %v6643 = vpack.c.b16 %v6563, %v6559
  %v6644 = vpack.c.b16 %v6564, %v6560
  %v6645 = vpack.c.b16 %v6565, %v6561
  %v6646 = vpack.c.b16 %v6570, %v6566
  %v6647 = vpack.c.b16 %v6571, %v6567
  %v6648 = vpack.c.b16 %v6572, %v6568
  %v6649 = vpack.c.b16 %v6573, %v6569
  %v6650 = vpack.c.b16 %v6578, %v6574
  %v6651 = vpack.c.b16 %v6579, %v6575
  %v6652 = vpack.c.b16 %v6580, %v6576
  %v6653 = vpack.c.b16 %v6581, %v6577
  %v6654 = vpack.c.b16 %v6586, %v6582
  %v6655 = vpack.c.b16 %v6587, %v6583
  %v6656 = vpack.c.b16 %v6588, %v6584
  %v6657 = vpack.c.b16 %v6589, %v6585
  %v6658 = vpack.c.b16 %v6594, %v6590
  %v6659 = vpack.c.b16 %v6595, %v6591
  %v6660 = vpack.c.b16 %v6596, %v6592
  %v6661 = vpack.c.b16 %v6597, %v6593
  %6726 = vmatprep.subr.bf16.mxu0 %v6599
  %6727 = vmatpush1.bf16.msra.mxu0 %v6598
  %6728 = vmatprep.subr.bf16.mxu0 %v6603
  %6729 = vmatpush1.bf16.msra.mxu0 %v6602
  %6730 = vmatprep.subr.bf16.mxu0 %v6607
  %6731 = vmatpush1.bf16.msra.mxu0 %v6606
  %6732 = vmatprep.subr.bf16.mxu0 %v6611
  %6733 = vmatpush1.bf16.msra.mxu0 %v6610
  %6734 = vmatprep.subr.bf16.mxu0 %v6615
  %6735 = vmatpush1.bf16.msra.mxu0 %v6614
  %6736 = vmatprep.subr.bf16.mxu0 %v6619
  %6737 = vmatpush1.bf16.msra.mxu0 %v6618
  %6738 = vmatprep.subr.bf16.mxu0 %v6623
  %6739 = vmatpush1.bf16.msra.mxu0 %v6622
  %6740 = vmatprep.subr.bf16.mxu0 %v6627
  %6741 = vmatpush1.bf16.msra.mxu0 %v6626
  %6742 = vmatprep.subr.bf16.mxu0 %v6631
  %6743 = vmatpush1.bf16.msra.mxu0 %v6630
  %6744 = vmatprep.subr.bf16.mxu0 %v6635
  %6745 = vmatpush1.bf16.msra.mxu0 %v6634
  %6746 = vmatprep.subr.bf16.mxu0 %v6639
  %6747 = vmatpush1.bf16.msra.mxu0 %v6638
  %6748 = vmatprep.subr.bf16.mxu0 %v6643
  %6749 = vmatpush1.bf16.msra.mxu0 %v6642
  %6750 = vmatprep.subr.bf16.mxu0 %v6647
  %6751 = vmatpush1.bf16.msra.mxu0 %v6646
  %6752 = vmatprep.subr.bf16.mxu0 %v6651
  %6753 = vmatpush1.bf16.msra.mxu0 %v6650
  %6754 = vmatprep.subr.bf16.mxu0 %v6655
  %6755 = vmatpush1.bf16.msra.mxu0 %v6654
  %6756 = vmatprep.subr.bf16.mxu0 %v6659
  %6757 = vmatpush1.bf16.msra.mxu0 %v6658
  %6758 = vmatprep.mubr.bf16.mxu0 %v6319
  %6759 = vmatmul.mubr.bf16.gmra.mrb[0].mxu0 %v6318
  %v6760 = vpop.f32.mrb[0].mxu0
  %v6761 = vadd.f32 %v6389, %v6760
  %v6762 = vpop.f32.mrb[0].mxu0
  %v6763 = vadd.f32 %v6393, %v6762
  %v6764 = vpop.f32.mrb[0].mxu0
  %v6765 = vpop.f32.mrb[0].mxu0
  %6766 = vdwg.mxu0
  %6767 = vmatprep.subr.bf16.mxu0 %v6601
  %6768 = vmatpush1.bf16.msra.mxu0 %v6600
  %6769 = vmatprep.subr.bf16.mxu0 %v6605
  %6770 = vmatpush1.bf16.msra.mxu0 %v6604
  %6771 = vmatprep.subr.bf16.mxu0 %v6609
  %6772 = vmatpush1.bf16.msra.mxu0 %v6608
  %6773 = vmatprep.subr.bf16.mxu0 %v6613
  %6774 = vmatpush1.bf16.msra.mxu0 %v6612
  %6775 = vmatprep.subr.bf16.mxu0 %v6617
  %6776 = vmatpush1.bf16.msra.mxu0 %v6616
  %6777 = vmatprep.subr.bf16.mxu0 %v6621
  %6778 = vmatpush1.bf16.msra.mxu0 %v6620
  %6779 = vmatprep.subr.bf16.mxu0 %v6625
  %6780 = vmatpush1.bf16.msra.mxu0 %v6624
  %6781 = vmatprep.subr.bf16.mxu0 %v6629
  %6782 = vmatpush1.bf16.msra.mxu0 %v6628
  %6783 = vmatprep.subr.bf16.mxu0 %v6633
  %6784 = vmatpush1.bf16.msra.mxu0 %v6632
  %6785 = vmatprep.subr.bf16.mxu0 %v6637
  %6786 = vmatpush1.bf16.msra.mxu0 %v6636
  %6787 = vmatprep.subr.bf16.mxu0 %v6641
  %6788 = vmatpush1.bf16.msra.mxu0 %v6640
  %6789 = vmatprep.subr.bf16.mxu0 %v6645
  %6790 = vmatpush1.bf16.msra.mxu0 %v6644
  %6791 = vmatprep.subr.bf16.mxu0 %v6649
  %6792 = vmatpush1.bf16.msra.mxu0 %v6648
  %6793 = vmatprep.subr.bf16.mxu0 %v6653
  %6794 = vmatpush1.bf16.msra.mxu0 %v6652
  %6795 = vmatprep.subr.bf16.mxu0 %v6657
  %6796 = vmatpush1.bf16.msra.mxu0 %v6656
  %6797 = vmatprep.subr.bf16.mxu0 %v6661
  %6798 = vmatpush1.bf16.msra.mxu0 %v6660
  %6799 = vmatprep.mubr.bf16.mxu0 %v6319
  %6800 = vmatmul.mubr.bf16.gmra.mrb[0].mxu0 %v6318
  %v6801 = vpop.f32.mrb[0].mxu0
  %v6802 = vadd.f32 %v6397, %v6801
  %v6803 = vpop.f32.mrb[0].mxu0
  %v6804 = vadd.f32 %v6401, %v6803
  %v6805 = vpop.f32.mrb[0].mxu0
  %v6806 = vpop.f32.mrb[0].mxu0
  %6807 = vdwg.mxu0
  %6808 = vst [vmem:[%s10] sm:$0xff] %v6761
  %6809 = vst [vmem:[%s10 + $0x8] sm:$0xff] %v6763
  %6810 = vst [vmem:[%s10 + $0x10] sm:$0xff] %v6802
  %6811 = vst [vmem:[%s10 + $0x18] sm:$0xff] %v6804
  // Predicated region
  $region42: #{epilepsy_cnn_target_forward.1} parent=0 // pred_check
    _
  $region43: #{epilepsy_cnn_target_forward.1} parent=0 // pred_check_branch
    %6813 = sbr.rel (0) target = $region45
  $region44: #{epilepsy_cnn_target_forward.1} parent=0 // pred_region
    _
  $region45: #{epilepsy_cnn_target_forward.1} parent=0 // pred_fallthru
    _
  // Predicated region
  $region46: #{epilepsy_cnn_target_forward.1} parent=0 // pred_check
    _
  $region47: #{epilepsy_cnn_target_forward.1} parent=0 // pred_check_branch
    %6815 = sbr.rel (0) target = $region49
  $region48: #{epilepsy_cnn_target_forward.1} parent=0 // pred_region
    _
  $region49: #{epilepsy_cnn_target_forward.1} parent=0 // pred_fallthru
    _

</llo_original>
